<compile_context>
chip_gen: v6e
topology: v6e:2x2x1
jax: 0.10.0
libtpu: 0.0.40
codegen_flags: <defaults>
</compile_context>

<pallas_src>
import functools

import jax
import jax.numpy as jnp
import numpy as np
from jax import lax
from jax.experimental import pallas as pl
from jax.experimental.pallas import tpu as pltpu

EPS = 1e-5
NEG_SLOPE = 0.1


def _bn_leaky(h, gamma, beta):
    """One-pass training-mode BatchNorm (batch stats, biased var) + LeakyReLU(0.1).

    h: (M, C) f32, gamma/beta: (1, C) f32.  Stats kept in f32.
    NOTE: one-pass E[x^2]-E[x]^2 is adequate at the test tolerance; switch to a
    shifted two-pass variance if tolerances tighten.
    """
    n = h.shape[0]
    s = jnp.sum(h, axis=0, keepdims=True)
    ss = jnp.sum(h * h, axis=0, keepdims=True)
    mean = s * (1.0 / n)
    var = ss * (1.0 / n) - mean * mean
    scale = gamma * lax.rsqrt(var + EPS)
    shift = beta - mean * scale
    y = h * scale + shift
    return jnp.where(y > 0, y, NEG_SLOPE * y)


def _fused_repeats_kernel(use_residual,
                          x_ref, w1_ref, g1_ref, b1_ref, w3_ref, g2_ref, b2_ref,
                          o_ref, pad_ref):
    N, H, W, C = o_ref.shape
    Cmid = w1_ref.shape[1]
    r = pl.program_id(0)

    # First repeat: zero the padded scratch once (halo stays zero afterwards,
    # interior is fully overwritten every repeat) and seed the VMEM-resident
    # bf16 running activation (the constant-index output block) straight from
    # the HBM input with a one-time DMA.
    @pl.when(r == 0)
    def _init():
        pad_ref[...] = jnp.zeros_like(pad_ref)
        pltpu.sync_copy(x_ref, o_ref)

    xb = o_ref[...]                                  # bf16 resident activation
    x2d = xb.reshape(N * H * W, C)                   # bf16 MXU LHS (no cast pass)

    # ---- CNNBlock 1: 1x1 conv (C -> C/2, no bias) + BN + LeakyReLU ----------
    h1 = jnp.dot(x2d, w1_ref[...], preferred_element_type=jnp.float32)
    h1 = _bn_leaky(h1, g1_ref[...], b1_ref[...])

    # ---- CNNBlock 2: 3x3 conv, padding=1 (C/2 -> C, no bias) + BN + Leaky ---
    # Interior of the zero-padded bf16 scratch <- normalized/activated h1.
    pad_ref[:, 1:H + 1, 1:W + 1, :] = (
        h1.reshape(N, H, W, Cmid).astype(pad_ref.dtype))

    # Wide-K im2col (K = 3*Cmid) per row tap di; each patch is built and
    # immediately consumed so only ONE patch is live at a time.
    acc = None
    for di in range(3):
        band = pad_ref[:, di:di + H, :, :]           # (N, H, W+2, Cmid) bf16
        patch = jnp.concatenate(
            [band[:, :, 0:W, :], band[:, :, 1:W + 1, :], band[:, :, 2:W + 2, :]],
            axis=-1).reshape(N * H * W, 3 * Cmid)    # bf16 MXU LHS
        part = jnp.dot(patch, w3_ref[di], preferred_element_type=jnp.float32)
        acc = part if acc is None else acc + part

    h2 = _bn_leaky(acc, g2_ref[...], b2_ref[...])

    # Residual add stays in f32 (only the resident store is bf16).
    out = (x2d.astype(jnp.float32) + h2) if use_residual else h2
    o_ref[...] = out.reshape(N, H, W, C).astype(o_ref.dtype)


def _vmem_limit_bytes(N, H, W, C, Cmid):
    """Generation-aware scoped-VMEM budget from actual block/scratch/temp bytes."""
    nhw = N * H * W
    out_blk = 2 * nhw * C * 2                         # bf16 output block (assume 2 bufs)
    pad = N * (H + 2) * (W + 2) * Cmid * 2            # bf16 padded scratch (single buf)
    wts = 2 * ((C * Cmid + 9 * Cmid * C) * 2          # bf16 w1 + w3, 2-deep stream
               + (2 * Cmid + 2 * C) * 4)              # f32 BN params
    # Live in-kernel temps: h1 (f32) + ONE im2col patch (bf16) + acc (f32) + out (f32).
    temps = nhw * (Cmid * 4 + 3 * Cmid * 2 + C * 4 + C * 4)
    need = int((out_blk + pad + wts + temps) * 1.3)   # headroom for relayouts
    try:
        info = pltpu.get_tpu_info()
        phys = int(getattr(info, "vmem_capacity_bytes", 0)) or 64 * 1024 * 1024
    except Exception:                                 # conservative fallback (v7x size)
        phys = 64 * 1024 * 1024
    cap = (phys * 7) // 8                             # stay below physical (v7x: 56 MiB)
    return max(16 * 1024 * 1024, min(need, cap))


def residual_block_forward(x, params, *, use_residual=True):
    """Mirrors ResidualBlock.forward: all `num_repeats` fused in one pallas_call."""
    N, H, W, C = x.shape
    w1, g1, b1, w3, g2, b2 = params
    R = w1.shape[0]
    Cmid = w1.shape[2]

    # bf16 MXU operands / bf16 resident activation (accumulation stays f32).
    w1b = w1.astype(jnp.bfloat16)
    # (R, 9, Cmid, C) tap-major [di*3+dj] -> (R, 3, 3*Cmid, C): K index = dj*Cmid + c.
    w3b = w3.reshape(R, 3, 3, Cmid, C).reshape(R, 3, 3 * Cmid, C).astype(jnp.bfloat16)
    xb = x.astype(jnp.bfloat16)

    kernel = functools.partial(_fused_repeats_kernel, use_residual)

    out = pl.pallas_call(
        kernel,
        out_shape=jax.ShapeDtypeStruct((N, H, W, C), jnp.bfloat16),
        grid_spec=pltpu.PrefetchScalarGridSpec(
            num_scalar_prefetch=0,
            grid=(R,),
            in_specs=[
                # Invariant input: raw HBM ref (no auto-pipelined VMEM block);
                # copied once into the resident output block at r == 0.
                pl.BlockSpec(memory_space=pl.ANY),
                # Per-repeat weights / BN params: stream over the repeat axis
                # (default 2-deep buffering already hides their DMA).
                pl.BlockSpec((None, C, Cmid), lambda r: (r, 0, 0)),
                pl.BlockSpec((None, 1, Cmid), lambda r: (r, 0, 0)),
                pl.BlockSpec((None, 1, Cmid), lambda r: (r, 0, 0)),
                pl.BlockSpec((None, 3, 3 * Cmid, C), lambda r: (r, 0, 0, 0)),
                pl.BlockSpec((None, 1, C), lambda r: (r, 0, 0)),
                pl.BlockSpec((None, 1, C), lambda r: (r, 0, 0)),
            ],
            # Constant output block index: the bf16 running activation stays in
            # VMEM across all repeats, written back to HBM once at the end.
            out_specs=pl.BlockSpec((N, H, W, C), lambda r: (0, 0, 0, 0)),
            scratch_shapes=[pltpu.VMEM((N, H + 2, W + 2, Cmid), jnp.bfloat16)],
        ),
        compiler_params=pltpu.CompilerParams(
            dimension_semantics=("arbitrary",),   # sequential dependency across repeats
            vmem_limit_bytes=_vmem_limit_bytes(N, H, W, C, Cmid),
        ),
    )(xb, w1b, g1, b1, w3b, g2, b2)
    return out.astype(x.dtype)


def init_params(key, channels, num_repeats):
    """Deterministic synthetic weights, stacked over repeats (BN gamma=1, beta=0)."""
    cmid = channels // 2
    k1, k2 = jax.random.split(key)
    w1 = jax.random.normal(k1, (num_repeats, channels, cmid), jnp.float32) / np.sqrt(channels)
    w3 = jax.random.normal(k2, (num_repeats, 9, cmid, channels), jnp.float32) / np.sqrt(9 * cmid)
    g1 = jnp.ones((num_repeats, 1, cmid), jnp.float32)
    b1 = jnp.zeros((num_repeats, 1, cmid), jnp.float32)
    g2 = jnp.ones((num_repeats, 1, channels), jnp.float32)
    b2 = jnp.zeros((num_repeats, 1, channels), jnp.float32)
    return (w1, g1, b1, w3, g2, b2)


def ref_forward(x, params, use_residual=True):
    """Plain-JAX f32 reference with identical math (coarse sanity check)."""
    w1s, g1s, b1s, w3s, g2s, b2s = params
    R = w1s.shape[0]
    for r in range(R):
        w1, g1, b1, w3, g2, b2 = w1s[r], g1s[r], b1s[r], w3s[r], g2s[r], b2s[r]
        N, H, W, C = x.shape
        cmid = w1.shape[1]
        h = x.reshape(-1, C) @ w1
        m = h.mean(0, keepdims=True)
        v = ((h - m) ** 2).mean(0, keepdims=True)
        h = (h - m) / jnp.sqrt(v + EPS) * g1 + b1
        h = jnp.where(h > 0, h, NEG_SLOPE * h)
        hp = jnp.pad(h.reshape(N, H, W, cmid), ((0, 0), (1, 1), (1, 1), (0, 0)))
        acc = jnp.zeros((N * H * W, C), jnp.float32)
        for di in range(3):
            for dj in range(3):
                acc = acc + hp[:, di:di + H, dj:dj + W, :].reshape(-1, cmid) @ w3[di * 3 + dj]
        m = acc.mean(0, keepdims=True)
        v = ((acc - m) ** 2).mean(0, keepdims=True)
        h2 = (acc - m) / jnp.sqrt(v + EPS) * g2 + b2
        h2 = jnp.where(h2 > 0, h2, NEG_SLOPE * h2)
        h2 = h2.reshape(N, H, W, C)
        x = x + h2 if use_residual else h2
    return x


if __name__ == "__main__":
    # Small shapes: batch=2, channels=8 (C/2=4), spatial=16x16, num_repeats=2.
    # NOTE: production use wants C, Cmid to be multiples of 128 (prefer 256 for
    # the v6e/v7x 256-wide MXU); this toy C=8 path runs entirely in masked
    # partial vregs and is not performance-representative.
    key = jax.random.PRNGKey(0)
    kx, kp = jax.random.split(key)
    x = jax.random.normal(kx, (2, 16, 16, 8), jnp.float32)   # NHWC (== NCHW [2,8,16,16])
    params = init_params(kp, channels=8, num_repeats=2)

    ref = jax.block_until_ready(ref_forward(x, params, use_residual=True))
    out = jax.block_until_ready(residual_block_forward(x, params, use_residual=True))

    assert out.shape == x.shape and out.dtype == x.dtype
    assert bool(jnp.all(jnp.isfinite(out)))
    # Coarse tolerance: bf16 MXU operands + bf16 resident activation vs f32 reference.
    np.testing.assert_allclose(np.asarray(out), np.asarray(ref), atol=0.2, rtol=0.0)

    print("KERNEL_OK")
</pallas_src>

<mosaic_0001>
module attributes {stable_mosaic.version = 11 : i64} {
  func.func @_fused_repeats_kernel(%arg0: i32, %arg1: memref<2x16x16x8xbf16, #tpu.memory_space<any>>, %arg2: memref<1x8x4xbf16, #tpu.memory_space<vmem>>, %arg3: memref<1x1x4xf32, #tpu.memory_space<vmem>>, %arg4: memref<1x1x4xf32, #tpu.memory_space<vmem>>, %arg5: memref<1x3x12x8xbf16, #tpu.memory_space<vmem>>, %arg6: memref<1x1x8xf32, #tpu.memory_space<vmem>>, %arg7: memref<1x1x8xf32, #tpu.memory_space<vmem>>, %arg8: memref<2x16x16x8xbf16, #tpu.memory_space<vmem>>, %arg9: memref<2x18x18x4xbf16, #tpu.memory_space<vmem>>) attributes {dimension_semantics = [#tpu.dimension_semantics<arbitrary>], iteration_bounds = array<i64: 2>, scalar_prefetch = 0 : i64, scratch_operands = 1 : i64, tpu.core_type = #tpu.core_type<tc>, window_params = [{}, {transform_indices = @transform_1, window_bounds = array<i64: 1, 8, 4>}, {transform_indices = @transform_2, window_bounds = array<i64: 1, 1, 4>}, {transform_indices = @transform_3, window_bounds = array<i64: 1, 1, 4>}, {transform_indices = @transform_4, window_bounds = array<i64: 1, 3, 12, 8>}, {transform_indices = @transform_5, window_bounds = array<i64: 1, 1, 8>}, {transform_indices = @transform_6, window_bounds = array<i64: 1, 1, 8>}, {pipeline_mode = #tpu.pipeline_mode<synchronous>, transform_indices = @transform_7, window_bounds = array<i64: 2, 16, 16, 8>}]} {
    %c0_i32 = arith.constant 0 : i32
    %0 = arith.cmpi eq, %arg0, %c0_i32 : i32
    %1 = arith.extui %0 : i1 to i32
    %c0_i32_0 = arith.constant 0 : i32
    %2 = arith.cmpi ne, %1, %c0_i32_0 : i32
    scf.if %2 {
      %cst_66 = arith.constant 0.000000e+00 : bf16
      %105 = vector.broadcast %cst_66 : bf16 to vector<2x18x18x4xbf16>
      %c0_67 = arith.constant 0 : index
      %c0_68 = arith.constant 0 : index
      %c0_69 = arith.constant 0 : index
      %c0_70 = arith.constant 0 : index
      %106 = vector.load %arg9[%c0_67, %c0_68, %c0_69, %c0_70] : memref<2x18x18x4xbf16, #tpu.memory_space<vmem>>, vector<2x18x18x4xbf16>
      tpu.vector_store %arg9[%c0_67, %c0_68, %c0_69, %c0_70], %105 {strides = array<i32>} : memref<2x18x18x4xbf16, #tpu.memory_space<vmem>>, vector<2x18x18x4xbf16>,
      "tpu.region"() ({
        %107 = tpu.sem_alloc : memref<!tpu.dma_semaphore, #tpu.memory_space<semaphore_mem>>
        tpu.enqueue_dma source(%arg1 : memref<2x16x16x8xbf16, #tpu.memory_space<any>>) target(%arg8 : memref<2x16x16x8xbf16, #tpu.memory_space<vmem>>) target_semaphore(%107 : memref<!tpu.dma_semaphore, #tpu.memory_space<semaphore_mem>>)
        tpu.wait_dma2 semaphore(%107 : memref<!tpu.dma_semaphore, #tpu.memory_space<semaphore_mem>>) src(%arg1 : memref<2x16x16x8xbf16, #tpu.memory_space<any>>) dst(%arg8 : memref<2x16x16x8xbf16, #tpu.memory_space<vmem>>)
        tpu.yield
      }) : () -> ()
    } else {
    }
    %c0 = arith.constant 0 : index
    %c0_1 = arith.constant 0 : index
    %c0_2 = arith.constant 0 : index
    %c0_3 = arith.constant 0 : index
    %3 = vector.load %arg8[%c0, %c0_1, %c0_2, %c0_3] : memref<2x16x16x8xbf16, #tpu.memory_space<vmem>>, vector<2x16x16x8xbf16>
    %4 = vector.shape_cast %3 : vector<2x16x16x8xbf16> to vector<512x8xbf16>
    %c0_4 = arith.constant 0 : index
    %c0_5 = arith.constant 0 : index
    %c0_6 = arith.constant 0 : index
    %5 = vector.load %arg2[%c0_4, %c0_5, %c0_6] : memref<1x8x4xbf16, #tpu.memory_space<vmem>>, vector<1x8x4xbf16>
    %6 = vector.shape_cast %5 : vector<1x8x4xbf16> to vector<8x4xbf16>
    %cst = arith.constant dense<0.000000e+00> : vector<512x4xf32>
    %7 = tpu.matmul %4, %6, %cst {dimension_numbers = #tpu.dot_dimension_numbers<[1], [0], [0], [1], [0, 0, 1, 1], [], []>} : vector<512x8xbf16>, vector<8x4xbf16>, vector<512x4xf32> -> vector<512x4xf32>
    %c0_7 = arith.constant 0 : index
    %c0_8 = arith.constant 0 : index
    %c0_9 = arith.constant 0 : index
    %8 = vector.load %arg3[%c0_7, %c0_8, %c0_9] : memref<1x1x4xf32, #tpu.memory_space<vmem>>, vector<1x1x4xf32>
    %9 = vector.shape_cast %8 : vector<1x1x4xf32> to vector<1x4xf32>
    %c0_10 = arith.constant 0 : index
    %c0_11 = arith.constant 0 : index
    %c0_12 = arith.constant 0 : index
    %10 = vector.load %arg4[%c0_10, %c0_11, %c0_12] : memref<1x1x4xf32, #tpu.memory_space<vmem>>, vector<1x1x4xf32>
    %11 = vector.shape_cast %10 : vector<1x1x4xf32> to vector<1x4xf32>
    %cst_13 = arith.constant dense<0.000000e+00> : vector<4xf32>
    %12 = vector.multi_reduction <add>, %7, %cst_13 [0] : vector<512x4xf32> to vector<4xf32>
    %13 = vector.shape_cast %12 : vector<4xf32> to vector<1x4xf32>
    %14 = arith.mulf %7, %7 : vector<512x4xf32>
    %cst_14 = arith.constant dense<0.000000e+00> : vector<4xf32>
    %15 = vector.multi_reduction <add>, %14, %cst_14 [0] : vector<512x4xf32> to vector<4xf32>
    %16 = vector.shape_cast %15 : vector<4xf32> to vector<1x4xf32>
    %cst_15 = arith.constant 0.001953125 : f32
    %17 = vector.broadcast %cst_15 : f32 to vector<1x4xf32>
    %18 = arith.mulf %13, %17 : vector<1x4xf32>
    %cst_16 = arith.constant 0.001953125 : f32
    %19 = vector.broadcast %cst_16 : f32 to vector<1x4xf32>
    %20 = arith.mulf %16, %19 : vector<1x4xf32>
    %21 = arith.mulf %18, %18 : vector<1x4xf32>
    %22 = arith.subf %20, %21 : vector<1x4xf32>
    %cst_17 = arith.constant 9.99999974E-6 : f32
    %23 = vector.broadcast %cst_17 : f32 to vector<1x4xf32>
    %24 = arith.addf %22, %23 : vector<1x4xf32>
    %25 = math.rsqrt %24 : vector<1x4xf32>
    %26 = arith.mulf %9, %25 : vector<1x4xf32>
    %27 = arith.mulf %18, %26 : vector<1x4xf32>
    %28 = arith.subf %11, %27 : vector<1x4xf32>
    %29 = vector.broadcast %26 : vector<1x4xf32> to vector<512x4xf32>
    %30 = arith.mulf %7, %29 : vector<512x4xf32>
    %31 = vector.broadcast %28 : vector<1x4xf32> to vector<512x4xf32>
    %32 = arith.addf %30, %31 : vector<512x4xf32>
    %cst_18 = arith.constant 0.000000e+00 : f32
    %33 = vector.broadcast %cst_18 : f32 to vector<512x4xf32>
    %34 = arith.cmpf ogt, %32, %33 : vector<512x4xf32>
    %cst_19 = arith.constant 1.000000e-01 : f32
    %35 = vector.broadcast %cst_19 : f32 to vector<512x4xf32>
    %36 = arith.mulf %35, %32 : vector<512x4xf32>
    %37 = arith.select %34, %32, %36 : vector<512x4xi1>, vector<512x4xf32>
    %38 = vector.shape_cast %37 : vector<512x4xf32> to vector<2x16x16x4xf32>
    %39 = arith.truncf %38 : vector<2x16x16x4xf32> to vector<2x16x16x4xbf16>
    %c0_20 = arith.constant 0 : index
    %c1 = arith.constant 1 : index
    %c1_21 = arith.constant 1 : index
    %c0_22 = arith.constant 0 : index
    %40 = vector.load %arg9[%c0_20, %c1, %c1_21, %c0_22] : memref<2x18x18x4xbf16, #tpu.memory_space<vmem>>, vector<2x16x16x4xbf16>
    tpu.vector_store %arg9[%c0_20, %c1, %c1_21, %c0_22], %39 {strides = array<i32>} : memref<2x18x18x4xbf16, #tpu.memory_space<vmem>>, vector<2x16x16x4xbf16>,
    %c0_23 = arith.constant 0 : index
    %c0_24 = arith.constant 0 : index
    %c0_25 = arith.constant 0 : index
    %c0_26 = arith.constant 0 : index
    %41 = vector.load %arg9[%c0_23, %c0_24, %c0_25, %c0_26] : memref<2x18x18x4xbf16, #tpu.memory_space<vmem>>, vector<2x16x18x4xbf16>
    %42 = vector.extract_strided_slice %41 {offsets = [0, 0, 0, 0], sizes = [2, 16, 16, 4], strides = [1, 1, 1, 1]} : vector<2x16x18x4xbf16> to vector<2x16x16x4xbf16>
    %43 = vector.extract_strided_slice %41 {offsets = [0, 0, 1, 0], sizes = [2, 16, 16, 4], strides = [1, 1, 1, 1]} : vector<2x16x18x4xbf16> to vector<2x16x16x4xbf16>
    %44 = vector.extract_strided_slice %41 {offsets = [0, 0, 2, 0], sizes = [2, 16, 16, 4], strides = [1, 1, 1, 1]} : vector<2x16x18x4xbf16> to vector<2x16x16x4xbf16>
    %45 = tpu.concatenate %42, %43, %44 in 3 : vector<2x16x16x4xbf16>, vector<2x16x16x4xbf16>, vector<2x16x16x4xbf16> -> vector<2x16x16x12xbf16>
    %46 = vector.shape_cast %45 : vector<2x16x16x12xbf16> to vector<512x12xbf16>
    %c0_27 = arith.constant 0 : index
    %c0_28 = arith.constant 0 : index
    %c0_29 = arith.constant 0 : index
    %c0_30 = arith.constant 0 : index
    %47 = vector.load %arg5[%c0_27, %c0_28, %c0_29, %c0_30] : memref<1x3x12x8xbf16, #tpu.memory_space<vmem>>, vector<1x1x12x8xbf16>
    %48 = vector.shape_cast %47 : vector<1x1x12x8xbf16> to vector<12x8xbf16>
    %cst_31 = arith.constant dense<0.000000e+00> : vector<512x8xf32>
    %49 = tpu.matmul %46, %48, %cst_31 {dimension_numbers = #tpu.dot_dimension_numbers<[1], [0], [0], [1], [0, 0, 1, 1], [], []>} : vector<512x12xbf16>, vector<12x8xbf16>, vector<512x8xf32> -> vector<512x8xf32>
    %c0_32 = arith.constant 0 : index
    %c1_33 = arith.constant 1 : index
    %c0_34 = arith.constant 0 : index
    %c0_35 = arith.constant 0 : index
    %50 = vector.load %arg9[%c0_32, %c1_33, %c0_34, %c0_35] : memref<2x18x18x4xbf16, #tpu.memory_space<vmem>>, vector<2x16x18x4xbf16>
    %51 = vector.extract_strided_slice %50 {offsets = [0, 0, 0, 0], sizes = [2, 16, 16, 4], strides = [1, 1, 1, 1]} : vector<2x16x18x4xbf16> to vector<2x16x16x4xbf16>
    %52 = vector.extract_strided_slice %50 {offsets = [0, 0, 1, 0], sizes = [2, 16, 16, 4], strides = [1, 1, 1, 1]} : vector<2x16x18x4xbf16> to vector<2x16x16x4xbf16>
    %53 = vector.extract_strided_slice %50 {offsets = [0, 0, 2, 0], sizes = [2, 16, 16, 4], strides = [1, 1, 1, 1]} : vector<2x16x18x4xbf16> to vector<2x16x16x4xbf16>
    %54 = tpu.concatenate %51, %52, %53 in 3 : vector<2x16x16x4xbf16>, vector<2x16x16x4xbf16>, vector<2x16x16x4xbf16> -> vector<2x16x16x12xbf16>
    %55 = vector.shape_cast %54 : vector<2x16x16x12xbf16> to vector<512x12xbf16>
    %c0_36 = arith.constant 0 : index
    %c1_37 = arith.constant 1 : index
    %c0_38 = arith.constant 0 : index
    %c0_39 = arith.constant 0 : index
    %56 = vector.load %arg5[%c0_36, %c1_37, %c0_38, %c0_39] : memref<1x3x12x8xbf16, #tpu.memory_space<vmem>>, vector<1x1x12x8xbf16>
    %57 = vector.shape_cast %56 : vector<1x1x12x8xbf16> to vector<12x8xbf16>
    %cst_40 = arith.constant dense<0.000000e+00> : vector<512x8xf32>
    %58 = tpu.matmul %55, %57, %cst_40 {dimension_numbers = #tpu.dot_dimension_numbers<[1], [0], [0], [1], [0, 0, 1, 1], [], []>} : vector<512x12xbf16>, vector<12x8xbf16>, vector<512x8xf32> -> vector<512x8xf32>
    %59 = arith.addf %49, %58 : vector<512x8xf32>
    %c0_41 = arith.constant 0 : index
    %c2 = arith.constant 2 : index
    %c0_42 = arith.constant 0 : index
    %c0_43 = arith.constant 0 : index
    %60 = vector.load %arg9[%c0_41, %c2, %c0_42, %c0_43] : memref<2x18x18x4xbf16, #tpu.memory_space<vmem>>, vector<2x16x18x4xbf16>
    %61 = vector.extract_strided_slice %60 {offsets = [0, 0, 0, 0], sizes = [2, 16, 16, 4], strides = [1, 1, 1, 1]} : vector<2x16x18x4xbf16> to vector<2x16x16x4xbf16>
    %62 = vector.extract_strided_slice %60 {offsets = [0, 0, 1, 0], sizes = [2, 16, 16, 4], strides = [1, 1, 1, 1]} : vector<2x16x18x4xbf16> to vector<2x16x16x4xbf16>
    %63 = vector.extract_strided_slice %60 {offsets = [0, 0, 2, 0], sizes = [2, 16, 16, 4], strides = [1, 1, 1, 1]} : vector<2x16x18x4xbf16> to vector<2x16x16x4xbf16>
    %64 = tpu.concatenate %61, %62, %63 in 3 : vector<2x16x16x4xbf16>, vector<2x16x16x4xbf16>, vector<2x16x16x4xbf16> -> vector<2x16x16x12xbf16>
    %65 = vector.shape_cast %64 : vector<2x16x16x12xbf16> to vector<512x12xbf16>
    %c0_44 = arith.constant 0 : index
    %c2_45 = arith.constant 2 : index
    %c0_46 = arith.constant 0 : index
    %c0_47 = arith.constant 0 : index
    %66 = vector.load %arg5[%c0_44, %c2_45, %c0_46, %c0_47] : memref<1x3x12x8xbf16, #tpu.memory_space<vmem>>, vector<1x1x12x8xbf16>
    %67 = vector.shape_cast %66 : vector<1x1x12x8xbf16> to vector<12x8xbf16>
    %cst_48 = arith.constant dense<0.000000e+00> : vector<512x8xf32>
    %68 = tpu.matmul %65, %67, %cst_48 {dimension_numbers = #tpu.dot_dimension_numbers<[1], [0], [0], [1], [0, 0, 1, 1], [], []>} : vector<512x12xbf16>, vector<12x8xbf16>, vector<512x8xf32> -> vector<512x8xf32>
    %69 = arith.addf %59, %68 : vector<512x8xf32>
    %c0_49 = arith.constant 0 : index
    %c0_50 = arith.constant 0 : index
    %c0_51 = arith.constant 0 : index
    %70 = vector.load %arg6[%c0_49, %c0_50, %c0_51] : memref<1x1x8xf32, #tpu.memory_space<vmem>>, vector<1x1x8xf32>
    %71 = vector.shape_cast %70 : vector<1x1x8xf32> to vector<1x8xf32>
    %c0_52 = arith.constant 0 : index
    %c0_53 = arith.constant 0 : index
    %c0_54 = arith.constant 0 : index
    %72 = vector.load %arg7[%c0_52, %c0_53, %c0_54] : memref<1x1x8xf32, #tpu.memory_space<vmem>>, vector<1x1x8xf32>
    %73 = vector.shape_cast %72 : vector<1x1x8xf32> to vector<1x8xf32>
    %cst_55 = arith.constant dense<0.000000e+00> : vector<8xf32>
    %74 = vector.multi_reduction <add>, %69, %cst_55 [0] : vector<512x8xf32> to vector<8xf32>
    %75 = vector.shape_cast %74 : vector<8xf32> to vector<1x8xf32>
    %76 = arith.mulf %69, %69 : vector<512x8xf32>
    %cst_56 = arith.constant dense<0.000000e+00> : vector<8xf32>
    %77 = vector.multi_reduction <add>, %76, %cst_56 [0] : vector<512x8xf32> to vector<8xf32>
    %78 = vector.shape_cast %77 : vector<8xf32> to vector<1x8xf32>
    %cst_57 = arith.constant 0.001953125 : f32
    %79 = vector.broadcast %cst_57 : f32 to vector<1x8xf32>
    %80 = arith.mulf %75, %79 : vector<1x8xf32>
    %cst_58 = arith.constant 0.001953125 : f32
    %81 = vector.broadcast %cst_58 : f32 to vector<1x8xf32>
    %82 = arith.mulf %78, %81 : vector<1x8xf32>
    %83 = arith.mulf %80, %80 : vector<1x8xf32>
    %84 = arith.subf %82, %83 : vector<1x8xf32>
    %cst_59 = arith.constant 9.99999974E-6 : f32
    %85 = vector.broadcast %cst_59 : f32 to vector<1x8xf32>
    %86 = arith.addf %84, %85 : vector<1x8xf32>
    %87 = math.rsqrt %86 : vector<1x8xf32>
    %88 = arith.mulf %71, %87 : vector<1x8xf32>
    %89 = arith.mulf %80, %88 : vector<1x8xf32>
    %90 = arith.subf %73, %89 : vector<1x8xf32>
    %91 = vector.broadcast %88 : vector<1x8xf32> to vector<512x8xf32>
    %92 = arith.mulf %69, %91 : vector<512x8xf32>
    %93 = vector.broadcast %90 : vector<1x8xf32> to vector<512x8xf32>
    %94 = arith.addf %92, %93 : vector<512x8xf32>
    %cst_60 = arith.constant 0.000000e+00 : f32
    %95 = vector.broadcast %cst_60 : f32 to vector<512x8xf32>
    %96 = arith.cmpf ogt, %94, %95 : vector<512x8xf32>
    %cst_61 = arith.constant 1.000000e-01 : f32
    %97 = vector.broadcast %cst_61 : f32 to vector<512x8xf32>
    %98 = arith.mulf %97, %94 : vector<512x8xf32>
    %99 = arith.select %96, %94, %98 : vector<512x8xi1>, vector<512x8xf32>
    %100 = arith.extf %4 : vector<512x8xbf16> to vector<512x8xf32>
    %101 = arith.addf %100, %99 : vector<512x8xf32>
    %102 = vector.shape_cast %101 : vector<512x8xf32> to vector<2x16x16x8xf32>
    %103 = arith.truncf %102 : vector<2x16x16x8xf32> to vector<2x16x16x8xbf16>
    %c0_62 = arith.constant 0 : index
    %c0_63 = arith.constant 0 : index
    %c0_64 = arith.constant 0 : index
    %c0_65 = arith.constant 0 : index
    %104 = vector.load %arg8[%c0_62, %c0_63, %c0_64, %c0_65] : memref<2x16x16x8xbf16, #tpu.memory_space<vmem>>, vector<2x16x16x8xbf16>
    tpu.vector_store %arg8[%c0_62, %c0_63, %c0_64, %c0_65], %103 {strides = array<i32>} : memref<2x16x16x8xbf16, #tpu.memory_space<vmem>>, vector<2x16x16x8xbf16>,
    return
  }
  func.func @transform_1(%arg0: i32) -> (i32, i32, i32) {
    %c0_i32 = arith.constant 0 : i32
    %c0_i32_0 = arith.constant 0 : i32
    %c0_i32_1 = arith.constant 0 : i32
    return %arg0, %c0_i32, %c0_i32_0 : i32, i32, i32
  }
  func.func @transform_2(%arg0: i32) -> (i32, i32, i32) {
    %c0_i32 = arith.constant 0 : i32
    %c0_i32_0 = arith.constant 0 : i32
    %c0_i32_1 = arith.constant 0 : i32
    return %arg0, %c0_i32, %c0_i32_0 : i32, i32, i32
  }
  func.func @transform_3(%arg0: i32) -> (i32, i32, i32) {
    %c0_i32 = arith.constant 0 : i32
    %c0_i32_0 = arith.constant 0 : i32
    %c0_i32_1 = arith.constant 0 : i32
    return %arg0, %c0_i32, %c0_i32_0 : i32, i32, i32
  }
  func.func @transform_4(%arg0: i32) -> (i32, i32, i32, i32) {
    %c0_i32 = arith.constant 0 : i32
    %c0_i32_0 = arith.constant 0 : i32
    %c0_i32_1 = arith.constant 0 : i32
    %c0_i32_2 = arith.constant 0 : i32
    return %arg0, %c0_i32, %c0_i32_0, %c0_i32_1 : i32, i32, i32, i32
  }
  func.func @transform_5(%arg0: i32) -> (i32, i32, i32) {
    %c0_i32 = arith.constant 0 : i32
    %c0_i32_0 = arith.constant 0 : i32
    %c0_i32_1 = arith.constant 0 : i32
    return %arg0, %c0_i32, %c0_i32_0 : i32, i32, i32
  }
  func.func @transform_6(%arg0: i32) -> (i32, i32, i32) {
    %c0_i32 = arith.constant 0 : i32
    %c0_i32_0 = arith.constant 0 : i32
    %c0_i32_1 = arith.constant 0 : i32
    return %arg0, %c0_i32, %c0_i32_0 : i32, i32, i32
  }
  func.func @transform_7(%arg0: i32) -> (i32, i32, i32, i32) {
    %c0_i32 = arith.constant 0 : i32
    %c0_i32_0 = arith.constant 0 : i32
    %c0_i32_1 = arith.constant 0 : i32
    %c0_i32_2 = arith.constant 0 : i32
    %c0_i32_3 = arith.constant 0 : i32
    return %c0_i32, %c0_i32_0, %c0_i32_1, %c0_i32_2 : i32, i32, i32, i32
  }
}

</mosaic_0001>

<llo_original>
// kernel: tpu_custom_call.1
$region0: #{tpu_custom_call.1}
  #allocation0 [shape = 'u32[]', space=smem, size = 0x4, offset = 0x4, fixed_abs, tag = 'smem constant byte address 0x4 - core index']
  #allocation1 [shape = 'u32[144,128]{1,0:T(1,128)}', space=vmem, size = 0x12000, scoped, tag = 'internal scratch']
  #allocation2 [shape = 'bf16[2,18,18,4]{3,2,1,0:T(8,128)(2,1)}', space=vmem, size = 0x36000, scoped, tag = 'scratch operand']
  #allocation4 [shape = 's32[]', space=sflag, size = 0x4, offset = 0, fixed_abs, tag = 'sflag constant byte address 0x0 - dummy sync flag']
  %s0 = inlined_call_operand.vmem [shape: bf16[2,16,16,8], index: 0, kind: input, shape index: {}]
  %s1 = inlined_call_operand.vmem [shape: bf16[2,8,4], index: 1, kind: input, shape index: {}]
  %s2 = inlined_call_operand.vmem [shape: f32[2,1,4], index: 2, kind: input, shape index: {}]
  %s3 = inlined_call_operand.vmem [shape: f32[2,1,4], index: 3, kind: input, shape index: {}]
  %s4 = inlined_call_operand.vmem [shape: bf16[2,3,12,8], index: 4, kind: input, shape index: {}]
  %s5 = inlined_call_operand.vmem [shape: f32[2,1,8], index: 5, kind: input, shape index: {}]
  %s6 = inlined_call_operand.vmem [shape: f32[2,1,8], index: 6, kind: input, shape index: {}]
  %s7 = inlined_call_operand.vmem [shape: bf16[2,16,16,8], index: 7, kind: output, shape index: {}]
  %s8 = sld [smem:[#allocation0]]
  $region96: #{tpu_custom_call.1} parent=0
    _
  %s10 = ssub.s32 1, %s8
  %s11 = scalar_select 0, %s10, %s8
  loop: start=0, step=1, limit=4
  $region2: #{tpu_custom_call.1} parent=0 // loop_pre_header
    _
  $region3: #{tpu_custom_call.1} parent=0 // loop_header
    %s13 = sphi 0, %s17
    %p14 = scmp.ge.s32.totalorder %s13, 4
    %s23 = sphi 0, %s25
    %s26 = sphi 0, %s23
    %s27 = sphi 0, %s26
    %s43 = sphi 0, %s27
    %s49 = sphi 0, %s51
    %s52 = sphi 0, %s49
    %s53 = sphi 0, %s52
    %s69 = sphi 0, %s53
    %s75 = sphi 0, %s77
    %s78 = sphi 0, %s75
    %s79 = sphi 0, %s78
    %s95 = sphi 0, %s79
    %s101 = sphi 0, %s103
    %s104 = sphi 0, %s101
    %s105 = sphi 0, %s104
    %s121 = sphi 0, %s105
    %s127 = sphi 0, %s129
    %s130 = sphi 0, %s127
    %s131 = sphi 0, %s130
    %s147 = sphi 0, %s131
    %s153 = sphi 0, %s155
    %s156 = sphi 0, %s153
    %s157 = sphi 0, %s156
    %s173 = sphi 0, %s157
    %s177 = sphi 0, %s177
    %s179 = sphi 0, %s177
    %s180 = sphi 0, %s179
    %s194 = sphi 0, %s180
  $region4: #{tpu_custom_call.1} parent=0 // loop_header_branch
    %16 = sbr.rel (%p14) target = $region8
  $region5: #{tpu_custom_call.1} parent=0 // loop_body
    %s18 = ssub.s32 %s13, 1
    %s19 = ssub.s32 %s13, 2
    %s20 = sadd.s32 %s13, 1
    %s21 = ssub.s32 %s13, %s20
    %p22 = scmp.eq.s32.totalorder %s21, 0
    %s24 = sadd.s32 %s23, 1
    %s25 = scalar_select %p22, %s23, %s24
    %p28 = pneg %p22
    %p29 = scmp.eq.s32.totalorder %s13, 1
    %p30 = por %p28, %p29
    %p31 = scmp.ne.s32.totalorder %s23, %s26
    %p32 = scmp.eq.s32.totalorder %s13, 0
    %p33 = por %p31, %p32
    %p34 = scmp.ne.s32.totalorder %s23, %s26
    %p35 = scmp.eq.s32.totalorder %s18, 1
    %p36 = por %p34, %p35
    %p37 = scmp.ne.s32.totalorder %s26, %s27
    %p38 = scmp.eq.s32.totalorder %s18, 0
    %p39 = por %p37, %p38
    %p40 = scmp.ne.s32.totalorder %s26, %s27
    %p41 = scmp.eq.s32.totalorder %s19, 1
    %p42 = por %p40, %p41
    %p44 = scmp.ne.s32.totalorder %s27, %s43
    %p45 = scmp.eq.s32.totalorder %s19, 0
    %p46 = por %p44, %p45
    %s47 = ssub.s32 %s13, %s20
    %p48 = scmp.eq.s32.totalorder %s47, 0
    %s50 = sadd.s32 %s49, 1
    %s51 = scalar_select %p48, %s49, %s50
    %p54 = pneg %p48
    %p55 = scmp.eq.s32.totalorder %s13, 1
    %p56 = por %p54, %p55
    %p57 = scmp.ne.s32.totalorder %s49, %s52
    %p58 = scmp.eq.s32.totalorder %s13, 0
    %p59 = por %p57, %p58
    %p60 = scmp.ne.s32.totalorder %s49, %s52
    %p61 = scmp.eq.s32.totalorder %s18, 1
    %p62 = por %p60, %p61
    %p63 = scmp.ne.s32.totalorder %s52, %s53
    %p64 = scmp.eq.s32.totalorder %s18, 0
    %p65 = por %p63, %p64
    %p66 = scmp.ne.s32.totalorder %s52, %s53
    %p67 = scmp.eq.s32.totalorder %s19, 1
    %p68 = por %p66, %p67
    %p70 = scmp.ne.s32.totalorder %s53, %s69
    %p71 = scmp.eq.s32.totalorder %s19, 0
    %p72 = por %p70, %p71
    %s73 = ssub.s32 %s13, %s20
    %p74 = scmp.eq.s32.totalorder %s73, 0
    %s76 = sadd.s32 %s75, 1
    %s77 = scalar_select %p74, %s75, %s76
    %p80 = pneg %p74
    %p81 = scmp.eq.s32.totalorder %s13, 1
    %p82 = por %p80, %p81
    %p83 = scmp.ne.s32.totalorder %s75, %s78
    %p84 = scmp.eq.s32.totalorder %s13, 0
    %p85 = por %p83, %p84
    %p86 = scmp.ne.s32.totalorder %s75, %s78
    %p87 = scmp.eq.s32.totalorder %s18, 1
    %p88 = por %p86, %p87
    %p89 = scmp.ne.s32.totalorder %s78, %s79
    %p90 = scmp.eq.s32.totalorder %s18, 0
    %p91 = por %p89, %p90
    %p92 = scmp.ne.s32.totalorder %s78, %s79
    %p93 = scmp.eq.s32.totalorder %s19, 1
    %p94 = por %p92, %p93
    %p96 = scmp.ne.s32.totalorder %s79, %s95
    %p97 = scmp.eq.s32.totalorder %s19, 0
    %p98 = por %p96, %p97
    %s99 = ssub.s32 %s13, %s20
    %p100 = scmp.eq.s32.totalorder %s99, 0
    %s102 = sadd.s32 %s101, 1
    %s103 = scalar_select %p100, %s101, %s102
    %p106 = pneg %p100
    %p107 = scmp.eq.s32.totalorder %s13, 1
    %p108 = por %p106, %p107
    %p109 = scmp.ne.s32.totalorder %s101, %s104
    %p110 = scmp.eq.s32.totalorder %s13, 0
    %p111 = por %p109, %p110
    %p112 = scmp.ne.s32.totalorder %s101, %s104
    %p113 = scmp.eq.s32.totalorder %s18, 1
    %p114 = por %p112, %p113
    %p115 = scmp.ne.s32.totalorder %s104, %s105
    %p116 = scmp.eq.s32.totalorder %s18, 0
    %p117 = por %p115, %p116
    %p118 = scmp.ne.s32.totalorder %s104, %s105
    %p119 = scmp.eq.s32.totalorder %s19, 1
    %p120 = por %p118, %p119
    %p122 = scmp.ne.s32.totalorder %s105, %s121
    %p123 = scmp.eq.s32.totalorder %s19, 0
    %p124 = por %p122, %p123
    %s125 = ssub.s32 %s13, %s20
    %p126 = scmp.eq.s32.totalorder %s125, 0
    %s128 = sadd.s32 %s127, 1
    %s129 = scalar_select %p126, %s127, %s128
    %p132 = pneg %p126
    %p133 = scmp.eq.s32.totalorder %s13, 1
    %p134 = por %p132, %p133
    %p135 = scmp.ne.s32.totalorder %s127, %s130
    %p136 = scmp.eq.s32.totalorder %s13, 0
    %p137 = por %p135, %p136
    %p138 = scmp.ne.s32.totalorder %s127, %s130
    %p139 = scmp.eq.s32.totalorder %s18, 1
    %p140 = por %p138, %p139
    %p141 = scmp.ne.s32.totalorder %s130, %s131
    %p142 = scmp.eq.s32.totalorder %s18, 0
    %p143 = por %p141, %p142
    %p144 = scmp.ne.s32.totalorder %s130, %s131
    %p145 = scmp.eq.s32.totalorder %s19, 1
    %p146 = por %p144, %p145
    %p148 = scmp.ne.s32.totalorder %s131, %s147
    %p149 = scmp.eq.s32.totalorder %s19, 0
    %p150 = por %p148, %p149
    %s151 = ssub.s32 %s13, %s20
    %p152 = scmp.eq.s32.totalorder %s151, 0
    %s154 = sadd.s32 %s153, 1
    %s155 = scalar_select %p152, %s153, %s154
    %p158 = pneg %p152
    %p159 = scmp.eq.s32.totalorder %s13, 1
    %p160 = por %p158, %p159
    %p161 = scmp.ne.s32.totalorder %s153, %s156
    %p162 = scmp.eq.s32.totalorder %s13, 0
    %p163 = por %p161, %p162
    %p164 = scmp.ne.s32.totalorder %s153, %s156
    %p165 = scmp.eq.s32.totalorder %s18, 1
    %p166 = por %p164, %p165
    %p167 = scmp.ne.s32.totalorder %s156, %s157
    %p168 = scmp.eq.s32.totalorder %s18, 0
    %p169 = por %p167, %p168
    %p170 = scmp.ne.s32.totalorder %s156, %s157
    %p171 = scmp.eq.s32.totalorder %s19, 1
    %p172 = por %p170, %p171
    %p174 = scmp.ne.s32.totalorder %s157, %s173
    %p175 = scmp.eq.s32.totalorder %s19, 0
    %p176 = por %p174, %p175
    %s178 = sadd.s32 %s177, 1
    %p181 = scmp.eq.s32.totalorder %s13, 1
    %p182 = scmp.ne.s32.totalorder %s177, %s179
    %p183 = scmp.eq.s32.totalorder %s13, 0
    %p184 = por %p182, %p183
    %p185 = scmp.ne.s32.totalorder %s177, %s179
    %p186 = scmp.eq.s32.totalorder %s18, 1
    %p187 = por %p185, %p186
    %p188 = scmp.ne.s32.totalorder %s179, %s180
    %p189 = scmp.eq.s32.totalorder %s18, 0
    %p190 = por %p188, %p189
    %p191 = scmp.ne.s32.totalorder %s179, %s180
    %p192 = scmp.eq.s32.totalorder %s19, 1
    %p193 = por %p191, %p192
    %p195 = scmp.ne.s32.totalorder %s180, %s194
    %p196 = scmp.eq.s32.totalorder %s19, 0
    %p197 = por %p195, %p196
    %p198 = scmp.le.s32.totalorder 1, %s13
    %p199 = scmp.lt.s32.totalorder %s13, 3
    %p200 = pnand %p198, %p199
    %p201 = pneg %p200
    // Predicated region
    $region9: #{tpu_custom_call.1} parent=5 // pred_check
      _
    $region10: #{tpu_custom_call.1} parent=5 // pred_check_branch
      %203 = sbr.rel (%p200) target = $region12
    $region11: #{tpu_custom_call.1} parent=5 // pred_region
      %s204 = ssub.s32 %s13, 1
    $region12: #{tpu_custom_call.1} parent=5 // pred_fallthru
      _
    %p205 = scmp.lt.s32.totalorder %s13, 2
    // Predicated region
    $region13: #{tpu_custom_call.1} parent=5 // pred_check
      %p206 = pneg %p205
    $region14: #{tpu_custom_call.1} parent=5 // pred_check_branch
      %208 = sbr.rel (%p206) target = $region16
    $region15: #{tpu_custom_call.1} parent=5 // pred_region
      // Predicated region
      $region17: #{tpu_custom_call.1} parent=15 // pred_check
        %p209 = pneg %p33
      $region18: #{tpu_custom_call.1} parent=15 // pred_check_branch
        %211 = sbr.rel (%p209) target = $region20
      $region19: #{tpu_custom_call.1} parent=15 // pred_region
        %p212 = scmp.lt.s32.totalorder %s13, 1
        %s213 = scalar_select %p212, %s13, 1
        %s214 = smul.addr %s213, 4
        %s215 = scalar_lea.vmem %s1, %s214
      $region20: #{tpu_custom_call.1} parent=15 // pred_fallthru
        _
      // Predicated region
      $region21: #{tpu_custom_call.1} parent=15 // pred_check
        %p216 = pneg %p59
      $region22: #{tpu_custom_call.1} parent=15 // pred_check_branch
        %218 = sbr.rel (%p216) target = $region24
      $region23: #{tpu_custom_call.1} parent=15 // pred_region
        %p219 = scmp.lt.s32.totalorder %s13, 1
        %s220 = scalar_select %p219, %s13, 1
        %s221 = scalar_lea.vmem %s2, %s220
      $region24: #{tpu_custom_call.1} parent=15 // pred_fallthru
        _
      // Predicated region
      $region25: #{tpu_custom_call.1} parent=15 // pred_check
        %p222 = pneg %p85
      $region26: #{tpu_custom_call.1} parent=15 // pred_check_branch
        %224 = sbr.rel (%p222) target = $region28
      $region27: #{tpu_custom_call.1} parent=15 // pred_region
        %p225 = scmp.lt.s32.totalorder %s13, 1
        %s226 = scalar_select %p225, %s13, 1
        %s227 = scalar_lea.vmem %s3, %s226
      $region28: #{tpu_custom_call.1} parent=15 // pred_fallthru
        _
      // Predicated region
      $region29: #{tpu_custom_call.1} parent=15 // pred_check
        %p228 = pneg %p111
      $region30: #{tpu_custom_call.1} parent=15 // pred_check_branch
        %230 = sbr.rel (%p228) target = $region32
      $region31: #{tpu_custom_call.1} parent=15 // pred_region
        %p231 = scmp.lt.s32.totalorder %s13, 1
        %s232 = scalar_select %p231, %s13, 1
        %s233 = smul.addr %s232, 6
        %s234 = smul.addr %s233, 4
        %s235 = scalar_lea.vmem %s4, %s234
      $region32: #{tpu_custom_call.1} parent=15 // pred_fallthru
        _
      // Predicated region
      $region33: #{tpu_custom_call.1} parent=15 // pred_check
        %p236 = pneg %p137
      $region34: #{tpu_custom_call.1} parent=15 // pred_check_branch
        %238 = sbr.rel (%p236) target = $region36
      $region35: #{tpu_custom_call.1} parent=15 // pred_region
        %p239 = scmp.lt.s32.totalorder %s13, 1
        %s240 = scalar_select %p239, %s13, 1
        %s241 = scalar_lea.vmem %s5, %s240
      $region36: #{tpu_custom_call.1} parent=15 // pred_fallthru
        _
      // Predicated region
      $region37: #{tpu_custom_call.1} parent=15 // pred_check
        %p242 = pneg %p163
      $region38: #{tpu_custom_call.1} parent=15 // pred_check_branch
        %244 = sbr.rel (%p242) target = $region40
      $region39: #{tpu_custom_call.1} parent=15 // pred_region
        %p245 = scmp.lt.s32.totalorder %s13, 1
        %s246 = scalar_select %p245, %s13, 1
        %s247 = scalar_lea.vmem %s6, %s246
      $region40: #{tpu_custom_call.1} parent=15 // pred_fallthru
        _
    $region16: #{tpu_custom_call.1} parent=5 // pred_fallthru
      _
    %p248 = scmp.le.s32.totalorder 1, %s13
    %p249 = scmp.lt.s32.totalorder %s13, 3
    %p250 = pnand %p248, %p249
    %p251 = pneg %p250
    // Predicated region
    $region41: #{tpu_custom_call.1} parent=5 // pred_check
      _
    $region42: #{tpu_custom_call.1} parent=5 // pred_check_branch
      %253 = sbr.rel (%p250) target = $region44
    $region43: #{tpu_custom_call.1} parent=5 // pred_region
      %s254 = ssub.s32 %s13, 1
      %p255 = scmp.lt.s32.totalorder %s18, 1
      %s256 = scalar_select %p255, %s18, 1
      %s257 = smul.addr %s256, 4
      %s258 = scalar_lea.vmem %s1, %s257
      %p259 = pneg %p39
      %p260 = pneg %p36
      %p261 = scmp.lt.s32.totalorder %s18, 1
      %s262 = scalar_select %p261, %s18, 1
      %s263 = scalar_lea.vmem %s2, %s262
      %p264 = pneg %p65
      %p265 = pneg %p62
      %p266 = scmp.lt.s32.totalorder %s18, 1
      %s267 = scalar_select %p266, %s18, 1
      %s268 = scalar_lea.vmem %s3, %s267
      %p269 = pneg %p91
      %p270 = pneg %p88
      %p271 = scmp.lt.s32.totalorder %s18, 1
      %s272 = scalar_select %p271, %s18, 1
      %s273 = smul.addr %s272, 6
      %s274 = smul.addr %s273, 4
      %s275 = scalar_lea.vmem %s4, %s274
      %p276 = pneg %p117
      %p277 = pneg %p114
      %p278 = scmp.lt.s32.totalorder %s18, 1
      %s279 = scalar_select %p278, %s18, 1
      %s280 = scalar_lea.vmem %s5, %s279
      %p281 = pneg %p143
      %p282 = pneg %p140
      %p283 = scmp.lt.s32.totalorder %s18, 1
      %s284 = scalar_select %p283, %s18, 1
      %s285 = scalar_lea.vmem %s6, %s284
      %p286 = pneg %p169
      %p287 = pneg %p166
      %p288 = pneg %p190
      %p289 = pneg %p187
      %p290 = scmp.lt.s32.totalorder %s18, 1
      %s291 = scalar_select %p290, %s18, 1
      %s292 = smul.addr %s291, 4
      %s293 = scalar_lea.vmem %s1, %s292
      %p294 = scmp.lt.s32.totalorder %s18, 1
      %s295 = scalar_select %p294, %s18, 1
      %s296 = scalar_lea.vmem %s2, %s295
      %p297 = scmp.lt.s32.totalorder %s18, 1
      %s298 = scalar_select %p297, %s18, 1
      %s299 = scalar_lea.vmem %s3, %s298
      %p300 = scmp.lt.s32.totalorder %s18, 1
      %s301 = scalar_select %p300, %s18, 1
      %s302 = smul.addr %s301, 6
      %s303 = smul.addr %s302, 4
      %s304 = scalar_lea.vmem %s4, %s303
      %p305 = scmp.lt.s32.totalorder %s18, 1
      %s306 = scalar_select %p305, %s18, 1
      %s307 = scalar_lea.vmem %s5, %s306
      %p308 = scmp.lt.s32.totalorder %s18, 1
      %s309 = scalar_select %p308, %s18, 1
      %s310 = scalar_lea.vmem %s6, %s309
      %p312 = scmp.eq.s32.totalorder %s18, 0
      // Predicated region
      $region45: #{tpu_custom_call.1} parent=43 // pred_check
        %p313 = pneg %p312
      $region46: #{tpu_custom_call.1} parent=43 // pred_check_branch
        %315 = sbr.rel (%p313) target = $region48
      $region47: #{tpu_custom_call.1} parent=43 // pred_region
        %vm316 = vcmask 27648
        %317 = vst.msk [vmem:[#allocation2] sm:$0xf] %vm316, 0
        %318 = vst.msk [vmem:[#allocation2 + $0x4] sm:$0xf] %vm316, 0
        %vm319 = vcmask 24576
        %320 = vst.msk [vmem:[#allocation2 + $0x8] sm:$0x1] %vm319, 0
        %321 = vst.msk [vmem:[#allocation2 + $0xc] sm:$0xf] %vm316, 0
        %322 = vst.msk [vmem:[#allocation2 + $0x10] sm:$0xf] %vm316, 0
        %323 = vst.msk [vmem:[#allocation2 + $0x14] sm:$0x1] %vm319, 0
        %324 = vst.msk [vmem:[#allocation2 + $0x18] sm:$0xf] %vm316, 0
        %325 = vst.msk [vmem:[#allocation2 + $0x1c] sm:$0xf] %vm316, 0
        %326 = vst.msk [vmem:[#allocation2 + $0x20] sm:$0x1] %vm319, 0
        %327 = vst.msk [vmem:[#allocation2 + $0x24] sm:$0xf] %vm316, 0
        %328 = vst.msk [vmem:[#allocation2 + $0x28] sm:$0xf] %vm316, 0
        %329 = vst.msk [vmem:[#allocation2 + $0x2c] sm:$0x1] %vm319, 0
        %330 = vst.msk [vmem:[#allocation2 + $0x30] sm:$0xf] %vm316, 0
        %331 = vst.msk [vmem:[#allocation2 + $0x34] sm:$0xf] %vm316, 0
        %332 = vst.msk [vmem:[#allocation2 + $0x38] sm:$0x1] %vm319, 0
        %333 = vst.msk [vmem:[#allocation2 + $0x3c] sm:$0xf] %vm316, 0
        %334 = vst.msk [vmem:[#allocation2 + $0x40] sm:$0xf] %vm316, 0
        %335 = vst.msk [vmem:[#allocation2 + $0x44] sm:$0x1] %vm319, 0
        %336 = vst.msk [vmem:[#allocation2 + $0x48] sm:$0xf] %vm316, 0
        %337 = vst.msk [vmem:[#allocation2 + $0x4c] sm:$0xf] %vm316, 0
        %338 = vst.msk [vmem:[#allocation2 + $0x50] sm:$0x1] %vm319, 0
        %339 = vst.msk [vmem:[#allocation2 + $0x54] sm:$0xf] %vm316, 0
        %340 = vst.msk [vmem:[#allocation2 + $0x58] sm:$0xf] %vm316, 0
        %341 = vst.msk [vmem:[#allocation2 + $0x5c] sm:$0x1] %vm319, 0
        %342 = vst.msk [vmem:[#allocation2 + $0x60] sm:$0xf] %vm316, 0
        %343 = vst.msk [vmem:[#allocation2 + $0x64] sm:$0xf] %vm316, 0
        %344 = vst.msk [vmem:[#allocation2 + $0x68] sm:$0x1] %vm319, 0
        %345 = vst.msk [vmem:[#allocation2 + $0x6c] sm:$0xf] %vm316, 0
        %346 = vst.msk [vmem:[#allocation2 + $0x70] sm:$0xf] %vm316, 0
        %347 = vst.msk [vmem:[#allocation2 + $0x74] sm:$0x1] %vm319, 0
        %348 = vst.msk [vmem:[#allocation2 + $0x78] sm:$0xf] %vm316, 0
        %349 = vst.msk [vmem:[#allocation2 + $0x7c] sm:$0xf] %vm316, 0
        %350 = vst.msk [vmem:[#allocation2 + $0x80] sm:$0x1] %vm319, 0
        %351 = vst.msk [vmem:[#allocation2 + $0x84] sm:$0xf] %vm316, 0
        %352 = vst.msk [vmem:[#allocation2 + $0x88] sm:$0xf] %vm316, 0
        %353 = vst.msk [vmem:[#allocation2 + $0x8c] sm:$0x1] %vm319, 0
        %354 = vst.msk [vmem:[#allocation2 + $0x90] sm:$0xf] %vm316, 0
        %355 = vst.msk [vmem:[#allocation2 + $0x94] sm:$0xf] %vm316, 0
        %356 = vst.msk [vmem:[#allocation2 + $0x98] sm:$0x1] %vm319, 0
        %357 = vst.msk [vmem:[#allocation2 + $0x9c] sm:$0xf] %vm316, 0
        %358 = vst.msk [vmem:[#allocation2 + $0xa0] sm:$0xf] %vm316, 0
        %359 = vst.msk [vmem:[#allocation2 + $0xa4] sm:$0x1] %vm319, 0
        %360 = vst.msk [vmem:[#allocation2 + $0xa8] sm:$0xf] %vm316, 0
        %361 = vst.msk [vmem:[#allocation2 + $0xac] sm:$0xf] %vm316, 0
        %362 = vst.msk [vmem:[#allocation2 + $0xb0] sm:$0x1] %vm319, 0
        %363 = vst.msk [vmem:[#allocation2 + $0xb4] sm:$0xf] %vm316, 0
        %364 = vst.msk [vmem:[#allocation2 + $0xb8] sm:$0xf] %vm316, 0
        %365 = vst.msk [vmem:[#allocation2 + $0xbc] sm:$0x1] %vm319, 0
        %366 = vst.msk [vmem:[#allocation2 + $0xc0] sm:$0xf] %vm316, 0
        %367 = vst.msk [vmem:[#allocation2 + $0xc4] sm:$0xf] %vm316, 0
        %368 = vst.msk [vmem:[#allocation2 + $0xc8] sm:$0x1] %vm319, 0
        %369 = vst.msk [vmem:[#allocation2 + $0xcc] sm:$0xf] %vm316, 0
        %370 = vst.msk [vmem:[#allocation2 + $0xd0] sm:$0xf] %vm316, 0
        %371 = vst.msk [vmem:[#allocation2 + $0xd4] sm:$0x1] %vm319, 0
        %372 = vst.msk [vmem:[#allocation2 + $0xd8] sm:$0xf] %vm316, 0
        %373 = vst.msk [vmem:[#allocation2 + $0xdc] sm:$0xf] %vm316, 0
        %374 = vst.msk [vmem:[#allocation2 + $0xe0] sm:$0x1] %vm319, 0
        %375 = vst.msk [vmem:[#allocation2 + $0xe4] sm:$0xf] %vm316, 0
        %376 = vst.msk [vmem:[#allocation2 + $0xe8] sm:$0xf] %vm316, 0
        %377 = vst.msk [vmem:[#allocation2 + $0xec] sm:$0x1] %vm319, 0
        %378 = vst.msk [vmem:[#allocation2 + $0xf0] sm:$0xf] %vm316, 0
        %379 = vst.msk [vmem:[#allocation2 + $0xf4] sm:$0xf] %vm316, 0
        %380 = vst.msk [vmem:[#allocation2 + $0xf8] sm:$0x1] %vm319, 0
        %381 = vst.msk [vmem:[#allocation2 + $0xfc] sm:$0xf] %vm316, 0
        %382 = vst.msk [vmem:[#allocation2 + $0x100] sm:$0xf] %vm316, 0
        %383 = vst.msk [vmem:[#allocation2 + $0x104] sm:$0x1] %vm319, 0
        %384 = vst.msk [vmem:[#allocation2 + $0x108] sm:$0xf] %vm316, 0
        %385 = vst.msk [vmem:[#allocation2 + $0x10c] sm:$0xf] %vm316, 0
        %386 = vst.msk [vmem:[#allocation2 + $0x110] sm:$0x1] %vm319, 0
        %387 = vst.msk [vmem:[#allocation2 + $0x114] sm:$0xf] %vm316, 0
        %388 = vst.msk [vmem:[#allocation2 + $0x118] sm:$0xf] %vm316, 0
        %389 = vst.msk [vmem:[#allocation2 + $0x11c] sm:$0x1] %vm319, 0
        %390 = vst.msk [vmem:[#allocation2 + $0x120] sm:$0xf] %vm316, 0
        %391 = vst.msk [vmem:[#allocation2 + $0x124] sm:$0xf] %vm316, 0
        %392 = vst.msk [vmem:[#allocation2 + $0x128] sm:$0x1] %vm319, 0
        %393 = vst.msk [vmem:[#allocation2 + $0x12c] sm:$0xf] %vm316, 0
        %394 = vst.msk [vmem:[#allocation2 + $0x130] sm:$0xf] %vm316, 0
        %395 = vst.msk [vmem:[#allocation2 + $0x134] sm:$0x1] %vm319, 0
        %396 = vst.msk [vmem:[#allocation2 + $0x138] sm:$0xf] %vm316, 0
        %397 = vst.msk [vmem:[#allocation2 + $0x13c] sm:$0xf] %vm316, 0
        %398 = vst.msk [vmem:[#allocation2 + $0x140] sm:$0x1] %vm319, 0
        %399 = vst.msk [vmem:[#allocation2 + $0x144] sm:$0xf] %vm316, 0
        %400 = vst.msk [vmem:[#allocation2 + $0x148] sm:$0xf] %vm316, 0
        %401 = vst.msk [vmem:[#allocation2 + $0x14c] sm:$0x1] %vm319, 0
        %402 = vst.msk [vmem:[#allocation2 + $0x150] sm:$0xf] %vm316, 0
        %403 = vst.msk [vmem:[#allocation2 + $0x154] sm:$0xf] %vm316, 0
        %404 = vst.msk [vmem:[#allocation2 + $0x158] sm:$0x1] %vm319, 0
        %405 = vst.msk [vmem:[#allocation2 + $0x15c] sm:$0xf] %vm316, 0
        %406 = vst.msk [vmem:[#allocation2 + $0x160] sm:$0xf] %vm316, 0
        %407 = vst.msk [vmem:[#allocation2 + $0x164] sm:$0x1] %vm319, 0
        %408 = vst.msk [vmem:[#allocation2 + $0x168] sm:$0xf] %vm316, 0
        %409 = vst.msk [vmem:[#allocation2 + $0x16c] sm:$0xf] %vm316, 0
        %410 = vst.msk [vmem:[#allocation2 + $0x170] sm:$0x1] %vm319, 0
        %411 = vst.msk [vmem:[#allocation2 + $0x174] sm:$0xf] %vm316, 0
        %412 = vst.msk [vmem:[#allocation2 + $0x178] sm:$0xf] %vm316, 0
        %413 = vst.msk [vmem:[#allocation2 + $0x17c] sm:$0x1] %vm319, 0
        %414 = vst.msk [vmem:[#allocation2 + $0x180] sm:$0xf] %vm316, 0
        %415 = vst.msk [vmem:[#allocation2 + $0x184] sm:$0xf] %vm316, 0
        %416 = vst.msk [vmem:[#allocation2 + $0x188] sm:$0x1] %vm319, 0
        %417 = vst.msk [vmem:[#allocation2 + $0x18c] sm:$0xf] %vm316, 0
        %418 = vst.msk [vmem:[#allocation2 + $0x190] sm:$0xf] %vm316, 0
        %419 = vst.msk [vmem:[#allocation2 + $0x194] sm:$0x1] %vm319, 0
        %420 = vst.msk [vmem:[#allocation2 + $0x198] sm:$0xf] %vm316, 0
        %421 = vst.msk [vmem:[#allocation2 + $0x19c] sm:$0xf] %vm316, 0
        %422 = vst.msk [vmem:[#allocation2 + $0x1a0] sm:$0x1] %vm319, 0
        %423 = vst.msk [vmem:[#allocation2 + $0x1a4] sm:$0xf] %vm316, 0
        %424 = vst.msk [vmem:[#allocation2 + $0x1a8] sm:$0xf] %vm316, 0
        %425 = vst.msk [vmem:[#allocation2 + $0x1ac] sm:$0x1] %vm319, 0
        $region49: #{tpu_custom_call.1} parent=47
          #allocation3 [shape = 's32[1]{0}', space=sflag, size = 0x4, scoped, tag = 'scoped memory for tpu_custom_call.1']
          %p427 = scmp.lt.u32.totalorder 256, 8
          %p428 = pneg %p427
          // Predicated region
          $region50: #{tpu_custom_call.1} parent=49 // pred_check
            _
          $region51: #{tpu_custom_call.1} parent=49 // pred_check_branch
            %430 = sbr.rel (%p427) target = $region53
          $region52: #{tpu_custom_call.1} parent=49 // pred_region
            %s446 = sand.u32 256, 7
            %p447 = scmp.eq.s32.totalorder %s446, 0
            // Predicated region
            $region65: #{tpu_custom_call.1} parent=52 // pred_check
              %p448 = pneg %p447
            $region66: #{tpu_custom_call.1} parent=52 // pred_check_branch
              %450 = sbr.rel (%p448) target = $region68
            $region67: #{tpu_custom_call.1} parent=52 // pred_region
              loop: start=0, step=1, limit=1
              $region69: #{tpu_custom_call.1} parent=67 // loop_pre_header
                _
              $region70: #{tpu_custom_call.1} parent=67 // loop_header
                %s452 = sphi 0, %s456
                %p453 = scmp.ge.s32.totalorder %s452, 1
                %s457 = sphi %s0, %s0
                %s458 = sphi %s7, %s7
              $region71: #{tpu_custom_call.1} parent=67 // loop_header_branch
                %455 = sbr.rel (%p453) target = $region75
              $region72: #{tpu_custom_call.1} parent=67 // loop_body
                %v459 = vld [vmem:[%s457] sm:$0xff]
                %460 = vst [vmem:[%s458] sm:$0xff] %v459
                %v461 = vld [vmem:[%s457 + $0x8] sm:$0xff]
                %462 = vst [vmem:[%s458 + $0x8] sm:$0xff] %v461
                %v463 = vld [vmem:[%s457 + $0x10] sm:$0xff]
                %464 = vst [vmem:[%s458 + $0x10] sm:$0xff] %v463
                %v465 = vld [vmem:[%s457 + $0x18] sm:$0xff]
                %466 = vst [vmem:[%s458 + $0x18] sm:$0xff] %v465
                %v467 = vld [vmem:[%s457 + $0x20] sm:$0xff]
                %468 = vst [vmem:[%s458 + $0x20] sm:$0xff] %v467
                %v469 = vld [vmem:[%s457 + $0x28] sm:$0xff]
                %470 = vst [vmem:[%s458 + $0x28] sm:$0xff] %v469
                %v471 = vld [vmem:[%s457 + $0x30] sm:$0xff]
                %472 = vst [vmem:[%s458 + $0x30] sm:$0xff] %v471
                %v473 = vld [vmem:[%s457 + $0x38] sm:$0xff]
                %474 = vst [vmem:[%s458 + $0x38] sm:$0xff] %v473
                %v475 = vld [vmem:[%s457 + $0x40] sm:$0xff]
                %476 = vst [vmem:[%s458 + $0x40] sm:$0xff] %v475
                %v477 = vld [vmem:[%s457 + $0x48] sm:$0xff]
                %478 = vst [vmem:[%s458 + $0x48] sm:$0xff] %v477
                %v479 = vld [vmem:[%s457 + $0x50] sm:$0xff]
                %480 = vst [vmem:[%s458 + $0x50] sm:$0xff] %v479
                %v481 = vld [vmem:[%s457 + $0x58] sm:$0xff]
                %482 = vst [vmem:[%s458 + $0x58] sm:$0xff] %v481
                %v483 = vld [vmem:[%s457 + $0x60] sm:$0xff]
                %484 = vst [vmem:[%s458 + $0x60] sm:$0xff] %v483
                %v485 = vld [vmem:[%s457 + $0x68] sm:$0xff]
                %486 = vst [vmem:[%s458 + $0x68] sm:$0xff] %v485
                %v487 = vld [vmem:[%s457 + $0x70] sm:$0xff]
                %488 = vst [vmem:[%s458 + $0x70] sm:$0xff] %v487
                %v489 = vld [vmem:[%s457 + $0x78] sm:$0xff]
                %490 = vst [vmem:[%s458 + $0x78] sm:$0xff] %v489
                %v491 = vld [vmem:[%s457 + $0x80] sm:$0xff]
                %492 = vst [vmem:[%s458 + $0x80] sm:$0xff] %v491
                %v493 = vld [vmem:[%s457 + $0x88] sm:$0xff]
                %494 = vst [vmem:[%s458 + $0x88] sm:$0xff] %v493
                %v495 = vld [vmem:[%s457 + $0x90] sm:$0xff]
                %496 = vst [vmem:[%s458 + $0x90] sm:$0xff] %v495
                %v497 = vld [vmem:[%s457 + $0x98] sm:$0xff]
                %498 = vst [vmem:[%s458 + $0x98] sm:$0xff] %v497
                %v499 = vld [vmem:[%s457 + $0xa0] sm:$0xff]
                %500 = vst [vmem:[%s458 + $0xa0] sm:$0xff] %v499
                %v501 = vld [vmem:[%s457 + $0xa8] sm:$0xff]
                %502 = vst [vmem:[%s458 + $0xa8] sm:$0xff] %v501
                %v503 = vld [vmem:[%s457 + $0xb0] sm:$0xff]
                %504 = vst [vmem:[%s458 + $0xb0] sm:$0xff] %v503
                %v505 = vld [vmem:[%s457 + $0xb8] sm:$0xff]
                %506 = vst [vmem:[%s458 + $0xb8] sm:$0xff] %v505
                %v507 = vld [vmem:[%s457 + $0xc0] sm:$0xff]
                %508 = vst [vmem:[%s458 + $0xc0] sm:$0xff] %v507
                %v509 = vld [vmem:[%s457 + $0xc8] sm:$0xff]
                %510 = vst [vmem:[%s458 + $0xc8] sm:$0xff] %v509
                %v511 = vld [vmem:[%s457 + $0xd0] sm:$0xff]
                %512 = vst [vmem:[%s458 + $0xd0] sm:$0xff] %v511
                %v513 = vld [vmem:[%s457 + $0xd8] sm:$0xff]
                %514 = vst [vmem:[%s458 + $0xd8] sm:$0xff] %v513
                %v515 = vld [vmem:[%s457 + $0xe0] sm:$0xff]
                %516 = vst [vmem:[%s458 + $0xe0] sm:$0xff] %v515
                %v517 = vld [vmem:[%s457 + $0xe8] sm:$0xff]
                %518 = vst [vmem:[%s458 + $0xe8] sm:$0xff] %v517
                %v519 = vld [vmem:[%s457 + $0xf0] sm:$0xff]
                %520 = vst [vmem:[%s458 + $0xf0] sm:$0xff] %v519
                %v521 = vld [vmem:[%s457 + $0xf8] sm:$0xff]
                %522 = vst [vmem:[%s458 + $0xf8] sm:$0xff] %v521
              $region73: #{tpu_custom_call.1} parent=67 // loop_footer
                %s456 = sadd.s32 1, %s452
              $region74: #{tpu_custom_call.1} parent=67 // loop_footer_branch
                %451 = sbr.rel target = $region70
              $region75: #{tpu_custom_call.1} parent=67 // loop_exit
                _
            $region68: #{tpu_custom_call.1} parent=52 // pred_fallthru
              _
            %p523 = pneg %p447
            // Predicated region
            $region76: #{tpu_custom_call.1} parent=52 // pred_check
              _
            $region77: #{tpu_custom_call.1} parent=52 // pred_check_branch
              %525 = sbr.rel (%p447) target = $region79
            $region78: #{tpu_custom_call.1} parent=52 // pred_region
              %s526 = sand.u32 256, 7
            $region79: #{tpu_custom_call.1} parent=52 // pred_fallthru
              _
          $region53: #{tpu_custom_call.1} parent=49 // pred_fallthru
            _
          // Predicated region
          $region54: #{tpu_custom_call.1} parent=49 // pred_check
            %p431 = pneg %p427
          $region55: #{tpu_custom_call.1} parent=49 // pred_check_branch
            %433 = sbr.rel (%p431) target = $region57
          $region56: #{tpu_custom_call.1} parent=49 // pred_region
            %s434 = sshll.u32 1, 256
            %s435 = ssub.s32 %s434, 1
            loop: start=0, step=1, limit=1
            $region58: #{tpu_custom_call.1} parent=56 // loop_pre_header
              _
            $region59: #{tpu_custom_call.1} parent=56 // loop_header
              %s437 = sphi 0, %s441
              %p438 = scmp.ge.s32.totalorder %s437, 1
              %s442 = sphi %s0, %s0
              %s443 = sphi %s7, %s7
            $region60: #{tpu_custom_call.1} parent=56 // loop_header_branch
              %440 = sbr.rel (%p438) target = $region64
            $region61: #{tpu_custom_call.1} parent=56 // loop_body
              %v444 = vld [vmem:[%s442] sm:%s435]
              %445 = vst [vmem:[%s443] sm:%s435] %v444
            $region62: #{tpu_custom_call.1} parent=56 // loop_footer
              %s441 = sadd.s32 1, %s437
            $region63: #{tpu_custom_call.1} parent=56 // loop_footer_branch
              %436 = sbr.rel target = $region59
            $region64: #{tpu_custom_call.1} parent=56 // loop_exit
              _
          $region57: #{tpu_custom_call.1} parent=49 // pred_fallthru
            _
          // Predicated region
          $region80: #{tpu_custom_call.1} parent=49 // pred_check
            _
          $region81: #{tpu_custom_call.1} parent=49 // pred_check_branch
            %529 = sbr.rel (0) target = $region83
          $region82: #{tpu_custom_call.1} parent=49 // pred_region
            %530 = vsyncadd [#allocation3], 4096
          $region83: #{tpu_custom_call.1} parent=49 // pred_fallthru
            _
          %s531 = smul.u32 4, 2
          %s532 = smul.u32 %s531, 16
          %s533 = smul.u32 %s532, 2
          %s534 = smul.u32 %s533, 1
          %s535 = sshll.u32 %s534, 4
          %536 = dma.done [#allocation3], %s535
      $region48: #{tpu_custom_call.1} parent=43 // pred_fallthru
        _
      %v537 = vld [vmem:[%s7] sm:$0xf]
      %v538 = vld [vmem:[%s7 + $0x4] sm:$0xf]
      %v539 = vld [vmem:[%s7 + $0x8] sm:$0xf]
      %v540 = vld [vmem:[%s7 + $0xc] sm:$0xf]
      %v541 = vld [vmem:[%s7 + $0x10] sm:$0xf]
      %v542 = vld [vmem:[%s7 + $0x14] sm:$0xf]
      %v543 = vld [vmem:[%s7 + $0x18] sm:$0xf]
      %v544 = vld [vmem:[%s7 + $0x1c] sm:$0xf]
      %v545 = vld [vmem:[%s7 + $0x20] sm:$0xf]
      %v546 = vld [vmem:[%s7 + $0x24] sm:$0xf]
      %v547 = vld [vmem:[%s7 + $0x28] sm:$0xf]
      %v548 = vld [vmem:[%s7 + $0x2c] sm:$0xf]
      %v549 = vld [vmem:[%s7 + $0x30] sm:$0xf]
      %v550 = vld [vmem:[%s7 + $0x34] sm:$0xf]
      %v551 = vld [vmem:[%s7 + $0x38] sm:$0xf]
      %v552 = vld [vmem:[%s7 + $0x3c] sm:$0xf]
      %v553 = vld [vmem:[%s7 + $0x40] sm:$0xf]
      %v554 = vld [vmem:[%s7 + $0x44] sm:$0xf]
      %v555 = vld [vmem:[%s7 + $0x48] sm:$0xf]
      %v556 = vld [vmem:[%s7 + $0x4c] sm:$0xf]
      %v557 = vld [vmem:[%s7 + $0x50] sm:$0xf]
      %v558 = vld [vmem:[%s7 + $0x54] sm:$0xf]
      %v559 = vld [vmem:[%s7 + $0x58] sm:$0xf]
      %v560 = vld [vmem:[%s7 + $0x5c] sm:$0xf]
      %v561 = vld [vmem:[%s7 + $0x60] sm:$0xf]
      %v562 = vld [vmem:[%s7 + $0x64] sm:$0xf]
      %v563 = vld [vmem:[%s7 + $0x68] sm:$0xf]
      %v564 = vld [vmem:[%s7 + $0x6c] sm:$0xf]
      %v565 = vld [vmem:[%s7 + $0x70] sm:$0xf]
      %v566 = vld [vmem:[%s7 + $0x74] sm:$0xf]
      %v567 = vld [vmem:[%s7 + $0x78] sm:$0xf]
      %v568 = vld [vmem:[%s7 + $0x7c] sm:$0xf]
      %v569 = vld [vmem:[%s7 + $0x80] sm:$0xf]
      %v570 = vld [vmem:[%s7 + $0x84] sm:$0xf]
      %v571 = vld [vmem:[%s7 + $0x88] sm:$0xf]
      %v572 = vld [vmem:[%s7 + $0x8c] sm:$0xf]
      %v573 = vld [vmem:[%s7 + $0x90] sm:$0xf]
      %v574 = vld [vmem:[%s7 + $0x94] sm:$0xf]
      %v575 = vld [vmem:[%s7 + $0x98] sm:$0xf]
      %v576 = vld [vmem:[%s7 + $0x9c] sm:$0xf]
      %v577 = vld [vmem:[%s7 + $0xa0] sm:$0xf]
      %v578 = vld [vmem:[%s7 + $0xa4] sm:$0xf]
      %v579 = vld [vmem:[%s7 + $0xa8] sm:$0xf]
      %v580 = vld [vmem:[%s7 + $0xac] sm:$0xf]
      %v581 = vld [vmem:[%s7 + $0xb0] sm:$0xf]
      %v582 = vld [vmem:[%s7 + $0xb4] sm:$0xf]
      %v583 = vld [vmem:[%s7 + $0xb8] sm:$0xf]
      %v584 = vld [vmem:[%s7 + $0xbc] sm:$0xf]
      %v585 = vld [vmem:[%s7 + $0xc0] sm:$0xf]
      %v586 = vld [vmem:[%s7 + $0xc4] sm:$0xf]
      %v587 = vld [vmem:[%s7 + $0xc8] sm:$0xf]
      %v588 = vld [vmem:[%s7 + $0xcc] sm:$0xf]
      %v589 = vld [vmem:[%s7 + $0xd0] sm:$0xf]
      %v590 = vld [vmem:[%s7 + $0xd4] sm:$0xf]
      %v591 = vld [vmem:[%s7 + $0xd8] sm:$0xf]
      %v592 = vld [vmem:[%s7 + $0xdc] sm:$0xf]
      %v593 = vld [vmem:[%s7 + $0xe0] sm:$0xf]
      %v594 = vld [vmem:[%s7 + $0xe4] sm:$0xf]
      %v595 = vld [vmem:[%s7 + $0xe8] sm:$0xf]
      %v596 = vld [vmem:[%s7 + $0xec] sm:$0xf]
      %v597 = vld [vmem:[%s7 + $0xf0] sm:$0xf]
      %v598 = vld [vmem:[%s7 + $0xf4] sm:$0xf]
      %v599 = vld [vmem:[%s7 + $0xf8] sm:$0xf]
      %v600 = vld [vmem:[%s7 + $0xfc] sm:$0xf]
      %v601 = vld [vmem:[%s293] sm:$0xf]
      %v666 = vunpack.c.l.b16 %v537
      %v667 = vunpack.c.l.b16 %v538
      %v668 = vunpack.c.l.b16 %v539
      %v669 = vunpack.c.l.b16 %v540
      %v670 = vunpack.c.l.b16 %v541
      %v671 = vunpack.c.l.b16 %v542
      %v672 = vunpack.c.l.b16 %v543
      %v673 = vunpack.c.l.b16 %v544
      %v674 = vunpack.c.l.b16 %v545
      %v675 = vunpack.c.l.b16 %v546
      %v676 = vunpack.c.l.b16 %v547
      %v677 = vunpack.c.l.b16 %v548
      %v678 = vunpack.c.l.b16 %v549
      %v679 = vunpack.c.l.b16 %v550
      %v680 = vunpack.c.l.b16 %v551
      %v681 = vunpack.c.l.b16 %v552
      %v682 = vunpack.c.l.b16 %v553
      %v683 = vunpack.c.l.b16 %v554
      %v684 = vunpack.c.l.b16 %v555
      %v685 = vunpack.c.l.b16 %v556
      %v686 = vunpack.c.l.b16 %v557
      %v687 = vunpack.c.l.b16 %v558
      %v688 = vunpack.c.l.b16 %v559
      %v689 = vunpack.c.l.b16 %v560
      %v690 = vunpack.c.l.b16 %v561
      %v691 = vunpack.c.l.b16 %v562
      %v692 = vunpack.c.l.b16 %v563
      %v693 = vunpack.c.l.b16 %v564
      %v694 = vunpack.c.l.b16 %v565
      %v695 = vunpack.c.l.b16 %v566
      %v696 = vunpack.c.l.b16 %v567
      %v697 = vunpack.c.l.b16 %v568
      %v698 = vunpack.c.l.b16 %v569
      %v699 = vunpack.c.l.b16 %v570
      %v700 = vunpack.c.l.b16 %v571
      %v701 = vunpack.c.l.b16 %v572
      %v702 = vunpack.c.l.b16 %v573
      %v703 = vunpack.c.l.b16 %v574
      %v704 = vunpack.c.l.b16 %v575
      %v705 = vunpack.c.l.b16 %v576
      %v706 = vunpack.c.l.b16 %v577
      %v707 = vunpack.c.l.b16 %v578
      %v708 = vunpack.c.l.b16 %v579
      %v709 = vunpack.c.l.b16 %v580
      %v710 = vunpack.c.l.b16 %v581
      %v711 = vunpack.c.l.b16 %v582
      %v712 = vunpack.c.l.b16 %v583
      %v713 = vunpack.c.l.b16 %v584
      %v714 = vunpack.c.l.b16 %v585
      %v715 = vunpack.c.l.b16 %v586
      %v716 = vunpack.c.l.b16 %v587
      %v717 = vunpack.c.l.b16 %v588
      %v718 = vunpack.c.l.b16 %v589
      %v719 = vunpack.c.l.b16 %v590
      %v720 = vunpack.c.l.b16 %v591
      %v721 = vunpack.c.l.b16 %v592
      %v722 = vunpack.c.l.b16 %v593
      %v723 = vunpack.c.l.b16 %v594
      %v724 = vunpack.c.l.b16 %v595
      %v725 = vunpack.c.l.b16 %v596
      %v726 = vunpack.c.l.b16 %v597
      %v727 = vunpack.c.l.b16 %v598
      %v728 = vunpack.c.l.b16 %v599
      %v729 = vunpack.c.l.b16 %v600
      %v730 = vpack.c.b16 %v667, %v666
      %v731 = vpack.c.b16 %v669, %v668
      %v732 = vpack.c.b16 %v671, %v670
      %v733 = vpack.c.b16 %v673, %v672
      %v734 = vpack.c.b16 %v675, %v674
      %v735 = vpack.c.b16 %v677, %v676
      %v736 = vpack.c.b16 %v679, %v678
      %v737 = vpack.c.b16 %v681, %v680
      %v738 = vpack.c.b16 %v683, %v682
      %v739 = vpack.c.b16 %v685, %v684
      %v740 = vpack.c.b16 %v687, %v686
      %v741 = vpack.c.b16 %v689, %v688
      %v742 = vpack.c.b16 %v691, %v690
      %v743 = vpack.c.b16 %v693, %v692
      %v744 = vpack.c.b16 %v695, %v694
      %v745 = vpack.c.b16 %v697, %v696
      %v746 = vpack.c.b16 %v699, %v698
      %v747 = vpack.c.b16 %v701, %v700
      %v748 = vpack.c.b16 %v703, %v702
      %v749 = vpack.c.b16 %v705, %v704
      %v750 = vpack.c.b16 %v707, %v706
      %v751 = vpack.c.b16 %v709, %v708
      %v752 = vpack.c.b16 %v711, %v710
      %v753 = vpack.c.b16 %v713, %v712
      %v754 = vpack.c.b16 %v715, %v714
      %v755 = vpack.c.b16 %v717, %v716
      %v756 = vpack.c.b16 %v719, %v718
      %v757 = vpack.c.b16 %v721, %v720
      %v758 = vpack.c.b16 %v723, %v722
      %v759 = vpack.c.b16 %v725, %v724
      %v760 = vpack.c.b16 %v727, %v726
      %v761 = vpack.c.b16 %v729, %v728
      %vm762 = vcmask 64512
      %v764 = vsel %vm762, %v730, 0
      %v767 = vsel %vm762, %v731, 0
      %v770 = vsel %vm762, %v732, 0
      %v773 = vsel %vm762, %v733, 0
      %v776 = vsel %vm762, %v734, 0
      %v779 = vsel %vm762, %v735, 0
      %v782 = vsel %vm762, %v736, 0
      %v785 = vsel %vm762, %v737, 0
      %v788 = vsel %vm762, %v738, 0
      %v791 = vsel %vm762, %v739, 0
      %v794 = vsel %vm762, %v740, 0
      %v797 = vsel %vm762, %v741, 0
      %v800 = vsel %vm762, %v742, 0
      %v803 = vsel %vm762, %v743, 0
      %v806 = vsel %vm762, %v744, 0
      %v809 = vsel %vm762, %v745, 0
      %v812 = vsel %vm762, %v746, 0
      %v815 = vsel %vm762, %v747, 0
      %v818 = vsel %vm762, %v748, 0
      %v821 = vsel %vm762, %v749, 0
      %v824 = vsel %vm762, %v750, 0
      %v827 = vsel %vm762, %v751, 0
      %v830 = vsel %vm762, %v752, 0
      %v833 = vsel %vm762, %v753, 0
      %v836 = vsel %vm762, %v754, 0
      %v839 = vsel %vm762, %v755, 0
      %v842 = vsel %vm762, %v756, 0
      %v845 = vsel %vm762, %v757, 0
      %v848 = vsel %vm762, %v758, 0
      %v851 = vsel %vm762, %v759, 0
      %v854 = vsel %vm762, %v760, 0
      %v857 = vsel %vm762, %v761, 0
      %vm859 = vcmask 1043456
      %v861 = vsel %vm859, %v601, 0
      %863 = vmatprep.subr.bf16.mxu0 0
      %864 = vmatpush1.bf16.msra.mxu0 0
      %865 = vmatprep.subr.bf16.mxu0 0
      %866 = vmatpush1.bf16.msra.mxu0 0
      %867 = vmatprep.subr.bf16.mxu0 0
      %868 = vmatpush1.bf16.msra.mxu0 0
      %869 = vmatprep.subr.bf16.mxu0 0
      %870 = vmatpush1.bf16.msra.mxu0 0
      %871 = vmatprep.subr.bf16.mxu0 0
      %872 = vmatpush1.bf16.msra.mxu0 0
      %873 = vmatprep.subr.bf16.mxu0 0
      %874 = vmatpush1.bf16.msra.mxu0 0
      %875 = vmatprep.subr.bf16.mxu0 0
      %876 = vmatpush1.bf16.msra.mxu0 0
      %877 = vmatprep.subr.bf16.mxu0 0
      %878 = vmatpush1.bf16.msra.mxu0 %v861
      %879 = vmatprep.subr.bf16.mxu0 0
      %880 = vmatpush2.bf16.msra.mxu0 0
      %881 = vmatprep.subr.bf16.mxu0 0
      %882 = vmatpush2.bf16.msra.mxu0 0
      %883 = vmatprep.subr.bf16.mxu0 0
      %884 = vmatpush2.bf16.msra.mxu0 0
      %885 = vmatprep.subr.bf16.mxu0 0
      %886 = vmatpush2.bf16.msra.mxu0 0
      %887 = vmatprep.subr.bf16.mxu0 0
      %888 = vmatpush2.bf16.msra.mxu0 0
      %889 = vmatprep.subr.bf16.mxu0 0
      %890 = vmatpush2.bf16.msra.mxu0 0
      %891 = vmatprep.subr.bf16.mxu0 0
      %892 = vmatpush2.bf16.msra.mxu0 0
      %893 = vmatprep.subr.bf16.mxu0 0
      %894 = vmatpush2.bf16.msra.mxu0 0
      %895 = vmatprep.mubr.bf16.mxu0 0
      %896 = vmatmul.mubr.bf16.gmra.mxu0 %v764
      %v897 = vpop.f32.mrf.mxu0
      %v898 = vadd.f32 0.0, %v897
      %v899 = vpop.f32.mrf.mxu0
      %v900 = vpop.f32.mrf.mxu0
      %v901 = vadd.f32 0.0, %v900
      %v902 = vpop.f32.mrf.mxu0
      %903 = vmatprep.mubr.bf16.mxu0 0
      %904 = vmatmul.mubr.bf16.gmra.mxu0 %v767
      %v905 = vpop.f32.mrf.mxu0
      %v906 = vadd.f32 0.0, %v905
      %v907 = vpop.f32.mrf.mxu0
      %v908 = vpop.f32.mrf.mxu0
      %v909 = vadd.f32 0.0, %v908
      %v910 = vpop.f32.mrf.mxu0
      %911 = vmatprep.mubr.bf16.mxu0 0
      %912 = vmatmul.mubr.bf16.gmra.mxu0 %v770
      %v913 = vpop.f32.mrf.mxu0
      %v914 = vadd.f32 0.0, %v913
      %v915 = vpop.f32.mrf.mxu0
      %v916 = vpop.f32.mrf.mxu0
      %v917 = vadd.f32 0.0, %v916
      %v918 = vpop.f32.mrf.mxu0
      %919 = vmatprep.mubr.bf16.mxu0 0
      %920 = vmatmul.mubr.bf16.gmra.mxu0 %v773
      %v921 = vpop.f32.mrf.mxu0
      %v922 = vadd.f32 0.0, %v921
      %v923 = vpop.f32.mrf.mxu0
      %v924 = vpop.f32.mrf.mxu0
      %v925 = vadd.f32 0.0, %v924
      %v926 = vpop.f32.mrf.mxu0
      %927 = vmatprep.mubr.bf16.mxu0 0
      %928 = vmatmul.mubr.bf16.gmra.mxu0 %v776
      %v929 = vpop.f32.mrf.mxu0
      %v930 = vadd.f32 0.0, %v929
      %v931 = vpop.f32.mrf.mxu0
      %v932 = vpop.f32.mrf.mxu0
      %v933 = vadd.f32 0.0, %v932
      %v934 = vpop.f32.mrf.mxu0
      %935 = vmatprep.mubr.bf16.mxu0 0
      %936 = vmatmul.mubr.bf16.gmra.mxu0 %v779
      %v937 = vpop.f32.mrf.mxu0
      %v938 = vadd.f32 0.0, %v937
      %v939 = vpop.f32.mrf.mxu0
      %v940 = vpop.f32.mrf.mxu0
      %v941 = vadd.f32 0.0, %v940
      %v942 = vpop.f32.mrf.mxu0
      %943 = vmatprep.mubr.bf16.mxu0 0
      %944 = vmatmul.mubr.bf16.gmra.mxu0 %v782
      %v945 = vpop.f32.mrf.mxu0
      %v946 = vadd.f32 0.0, %v945
      %v947 = vpop.f32.mrf.mxu0
      %v948 = vpop.f32.mrf.mxu0
      %v949 = vadd.f32 0.0, %v948
      %v950 = vpop.f32.mrf.mxu0
      %951 = vmatprep.mubr.bf16.mxu0 0
      %952 = vmatmul.mubr.bf16.gmra.mxu0 %v785
      %v953 = vpop.f32.mrf.mxu0
      %v954 = vadd.f32 0.0, %v953
      %v955 = vpop.f32.mrf.mxu0
      %v956 = vpop.f32.mrf.mxu0
      %v957 = vadd.f32 0.0, %v956
      %v958 = vpop.f32.mrf.mxu0
      %959 = vmatprep.mubr.bf16.mxu0 0
      %960 = vmatmul.mubr.bf16.gmra.mxu0 %v788
      %v961 = vpop.f32.mrf.mxu0
      %v962 = vadd.f32 0.0, %v961
      %v963 = vpop.f32.mrf.mxu0
      %v964 = vpop.f32.mrf.mxu0
      %v965 = vadd.f32 0.0, %v964
      %v966 = vpop.f32.mrf.mxu0
      %967 = vmatprep.mubr.bf16.mxu0 0
      %968 = vmatmul.mubr.bf16.gmra.mxu0 %v791
      %v969 = vpop.f32.mrf.mxu0
      %v970 = vadd.f32 0.0, %v969
      %v971 = vpop.f32.mrf.mxu0
      %v972 = vpop.f32.mrf.mxu0
      %v973 = vadd.f32 0.0, %v972
      %v974 = vpop.f32.mrf.mxu0
      %975 = vmatprep.mubr.bf16.mxu0 0
      %976 = vmatmul.mubr.bf16.gmra.mxu0 %v794
      %v977 = vpop.f32.mrf.mxu0
      %v978 = vadd.f32 0.0, %v977
      %v979 = vpop.f32.mrf.mxu0
      %v980 = vpop.f32.mrf.mxu0
      %v981 = vadd.f32 0.0, %v980
      %v982 = vpop.f32.mrf.mxu0
      %983 = vmatprep.mubr.bf16.mxu0 0
      %984 = vmatmul.mubr.bf16.gmra.mxu0 %v797
      %v985 = vpop.f32.mrf.mxu0
      %v986 = vadd.f32 0.0, %v985
      %v987 = vpop.f32.mrf.mxu0
      %v988 = vpop.f32.mrf.mxu0
      %v989 = vadd.f32 0.0, %v988
      %v990 = vpop.f32.mrf.mxu0
      %991 = vmatprep.mubr.bf16.mxu0 0
      %992 = vmatmul.mubr.bf16.gmra.mxu0 %v800
      %v993 = vpop.f32.mrf.mxu0
      %v994 = vadd.f32 0.0, %v993
      %v995 = vpop.f32.mrf.mxu0
      %v996 = vpop.f32.mrf.mxu0
      %v997 = vadd.f32 0.0, %v996
      %v998 = vpop.f32.mrf.mxu0
      %999 = vmatprep.mubr.bf16.mxu0 0
      %1000 = vmatmul.mubr.bf16.gmra.mxu0 %v803
      %v1001 = vpop.f32.mrf.mxu0
      %v1002 = vadd.f32 0.0, %v1001
      %v1003 = vpop.f32.mrf.mxu0
      %v1004 = vpop.f32.mrf.mxu0
      %v1005 = vadd.f32 0.0, %v1004
      %v1006 = vpop.f32.mrf.mxu0
      %1007 = vmatprep.mubr.bf16.mxu0 0
      %1008 = vmatmul.mubr.bf16.gmra.mxu0 %v806
      %v1009 = vpop.f32.mrf.mxu0
      %v1010 = vadd.f32 0.0, %v1009
      %v1011 = vpop.f32.mrf.mxu0
      %v1012 = vpop.f32.mrf.mxu0
      %v1013 = vadd.f32 0.0, %v1012
      %v1014 = vpop.f32.mrf.mxu0
      %1015 = vmatprep.mubr.bf16.mxu0 0
      %1016 = vmatmul.mubr.bf16.gmra.mxu0 %v809
      %v1017 = vpop.f32.mrf.mxu0
      %v1018 = vadd.f32 0.0, %v1017
      %v1019 = vpop.f32.mrf.mxu0
      %v1020 = vpop.f32.mrf.mxu0
      %v1021 = vadd.f32 0.0, %v1020
      %v1022 = vpop.f32.mrf.mxu0
      %1023 = vmatprep.mubr.bf16.mxu0 0
      %1024 = vmatmul.mubr.bf16.gmra.mxu0 %v812
      %v1025 = vpop.f32.mrf.mxu0
      %v1026 = vadd.f32 0.0, %v1025
      %v1027 = vpop.f32.mrf.mxu0
      %v1028 = vpop.f32.mrf.mxu0
      %v1029 = vadd.f32 0.0, %v1028
      %v1030 = vpop.f32.mrf.mxu0
      %1031 = vmatprep.mubr.bf16.mxu0 0
      %1032 = vmatmul.mubr.bf16.gmra.mxu0 %v815
      %v1033 = vpop.f32.mrf.mxu0
      %v1034 = vadd.f32 0.0, %v1033
      %v1035 = vpop.f32.mrf.mxu0
      %v1036 = vpop.f32.mrf.mxu0
      %v1037 = vadd.f32 0.0, %v1036
      %v1038 = vpop.f32.mrf.mxu0
      %1039 = vmatprep.mubr.bf16.mxu0 0
      %1040 = vmatmul.mubr.bf16.gmra.mxu0 %v818
      %v1041 = vpop.f32.mrf.mxu0
      %v1042 = vadd.f32 0.0, %v1041
      %v1043 = vpop.f32.mrf.mxu0
      %v1044 = vpop.f32.mrf.mxu0
      %v1045 = vadd.f32 0.0, %v1044
      %v1046 = vpop.f32.mrf.mxu0
      %1047 = vmatprep.mubr.bf16.mxu0 0
      %1048 = vmatmul.mubr.bf16.gmra.mxu0 %v821
      %v1049 = vpop.f32.mrf.mxu0
      %v1050 = vadd.f32 0.0, %v1049
      %v1051 = vpop.f32.mrf.mxu0
      %v1052 = vpop.f32.mrf.mxu0
      %v1053 = vadd.f32 0.0, %v1052
      %v1054 = vpop.f32.mrf.mxu0
      %1055 = vmatprep.mubr.bf16.mxu0 0
      %1056 = vmatmul.mubr.bf16.gmra.mxu0 %v824
      %v1057 = vpop.f32.mrf.mxu0
      %v1058 = vadd.f32 0.0, %v1057
      %v1059 = vpop.f32.mrf.mxu0
      %v1060 = vpop.f32.mrf.mxu0
      %v1061 = vadd.f32 0.0, %v1060
      %v1062 = vpop.f32.mrf.mxu0
      %1063 = vmatprep.mubr.bf16.mxu0 0
      %1064 = vmatmul.mubr.bf16.gmra.mxu0 %v827
      %v1065 = vpop.f32.mrf.mxu0
      %v1066 = vadd.f32 0.0, %v1065
      %v1067 = vpop.f32.mrf.mxu0
      %v1068 = vpop.f32.mrf.mxu0
      %v1069 = vadd.f32 0.0, %v1068
      %v1070 = vpop.f32.mrf.mxu0
      %1071 = vmatprep.mubr.bf16.mxu0 0
      %1072 = vmatmul.mubr.bf16.gmra.mxu0 %v830
      %v1073 = vpop.f32.mrf.mxu0
      %v1074 = vadd.f32 0.0, %v1073
      %v1075 = vpop.f32.mrf.mxu0
      %v1076 = vpop.f32.mrf.mxu0
      %v1077 = vadd.f32 0.0, %v1076
      %v1078 = vpop.f32.mrf.mxu0
      %1079 = vmatprep.mubr.bf16.mxu0 0
      %1080 = vmatmul.mubr.bf16.gmra.mxu0 %v833
      %v1081 = vpop.f32.mrf.mxu0
      %v1082 = vadd.f32 0.0, %v1081
      %v1083 = vpop.f32.mrf.mxu0
      %v1084 = vpop.f32.mrf.mxu0
      %v1085 = vadd.f32 0.0, %v1084
      %v1086 = vpop.f32.mrf.mxu0
      %1087 = vmatprep.mubr.bf16.mxu0 0
      %1088 = vmatmul.mubr.bf16.gmra.mxu0 %v836
      %v1089 = vpop.f32.mrf.mxu0
      %v1090 = vadd.f32 0.0, %v1089
      %v1091 = vpop.f32.mrf.mxu0
      %v1092 = vpop.f32.mrf.mxu0
      %v1093 = vadd.f32 0.0, %v1092
      %v1094 = vpop.f32.mrf.mxu0
      %1095 = vmatprep.mubr.bf16.mxu0 0
      %1096 = vmatmul.mubr.bf16.gmra.mxu0 %v839
      %v1097 = vpop.f32.mrf.mxu0
      %v1098 = vadd.f32 0.0, %v1097
      %v1099 = vpop.f32.mrf.mxu0
      %v1100 = vpop.f32.mrf.mxu0
      %v1101 = vadd.f32 0.0, %v1100
      %v1102 = vpop.f32.mrf.mxu0
      %1103 = vmatprep.mubr.bf16.mxu0 0
      %1104 = vmatmul.mubr.bf16.gmra.mxu0 %v842
      %v1105 = vpop.f32.mrf.mxu0
      %v1106 = vadd.f32 0.0, %v1105
      %v1107 = vpop.f32.mrf.mxu0
      %v1108 = vpop.f32.mrf.mxu0
      %v1109 = vadd.f32 0.0, %v1108
      %v1110 = vpop.f32.mrf.mxu0
      %1111 = vmatprep.mubr.bf16.mxu0 0
      %1112 = vmatmul.mubr.bf16.gmra.mxu0 %v845
      %v1113 = vpop.f32.mrf.mxu0
      %v1114 = vadd.f32 0.0, %v1113
      %v1115 = vpop.f32.mrf.mxu0
      %v1116 = vpop.f32.mrf.mxu0
      %v1117 = vadd.f32 0.0, %v1116
      %v1118 = vpop.f32.mrf.mxu0
      %1119 = vmatprep.mubr.bf16.mxu0 0
      %1120 = vmatmul.mubr.bf16.gmra.mxu0 %v848
      %v1121 = vpop.f32.mrf.mxu0
      %v1122 = vadd.f32 0.0, %v1121
      %v1123 = vpop.f32.mrf.mxu0
      %v1124 = vpop.f32.mrf.mxu0
      %v1125 = vadd.f32 0.0, %v1124
      %v1126 = vpop.f32.mrf.mxu0
      %1127 = vmatprep.mubr.bf16.mxu0 0
      %1128 = vmatmul.mubr.bf16.gmra.mxu0 %v851
      %v1129 = vpop.f32.mrf.mxu0
      %v1130 = vadd.f32 0.0, %v1129
      %v1131 = vpop.f32.mrf.mxu0
      %v1132 = vpop.f32.mrf.mxu0
      %v1133 = vadd.f32 0.0, %v1132
      %v1134 = vpop.f32.mrf.mxu0
      %1135 = vmatprep.mubr.bf16.mxu0 0
      %1136 = vmatmul.mubr.bf16.gmra.mxu0 %v854
      %v1137 = vpop.f32.mrf.mxu0
      %v1138 = vadd.f32 0.0, %v1137
      %v1139 = vpop.f32.mrf.mxu0
      %v1140 = vpop.f32.mrf.mxu0
      %v1141 = vadd.f32 0.0, %v1140
      %v1142 = vpop.f32.mrf.mxu0
      %1143 = vmatprep.mubr.bf16.mxu0 0
      %1144 = vmatmul.mubr.bf16.gmra.mxu0 %v857
      %v1145 = vpop.f32.mrf.mxu0
      %v1146 = vadd.f32 0.0, %v1145
      %v1147 = vpop.f32.mrf.mxu0
      %v1148 = vpop.f32.mrf.mxu0
      %v1149 = vadd.f32 0.0, %v1148
      %v1150 = vpop.f32.mrf.mxu0
      %1151 = vdwg.mxu0
      %v1152 = vld [vmem:[%s296] sm:$0x1]
      %v1153 = vld [vmem:[%s299] sm:$0x1]
      %vm1154 = vcmask 31744
      %v1155 = vsel %vm1154, %v898, 0.0
      %v1156 = vsel %vm1154, %v901, 0.0
      %v1157 = vadd.f32 %v1155, %v1156
      %v1158 = vsel %vm1154, %v906, 0.0
      %v1159 = vadd.f32 %v1157, %v1158
      %v1160 = vsel %vm1154, %v909, 0.0
      %v1161 = vadd.f32 %v1159, %v1160
      %v1162 = vsel %vm1154, %v914, 0.0
      %v1163 = vadd.f32 %v1161, %v1162
      %v1164 = vsel %vm1154, %v917, 0.0
      %v1165 = vadd.f32 %v1163, %v1164
      %v1166 = vsel %vm1154, %v922, 0.0
      %v1167 = vadd.f32 %v1165, %v1166
      %v1168 = vsel %vm1154, %v925, 0.0
      %v1169 = vadd.f32 %v1167, %v1168
      %v1170 = vsel %vm1154, %v930, 0.0
      %v1171 = vadd.f32 %v1169, %v1170
      %v1172 = vsel %vm1154, %v933, 0.0
      %v1173 = vadd.f32 %v1171, %v1172
      %v1174 = vsel %vm1154, %v938, 0.0
      %v1175 = vadd.f32 %v1173, %v1174
      %v1176 = vsel %vm1154, %v941, 0.0
      %v1177 = vadd.f32 %v1175, %v1176
      %v1178 = vsel %vm1154, %v946, 0.0
      %v1179 = vadd.f32 %v1177, %v1178
      %v1180 = vsel %vm1154, %v949, 0.0
      %v1181 = vadd.f32 %v1179, %v1180
      %v1182 = vsel %vm1154, %v954, 0.0
      %v1183 = vadd.f32 %v1181, %v1182
      %v1184 = vsel %vm1154, %v957, 0.0
      %v1185 = vadd.f32 %v1183, %v1184
      %v1186 = vsel %vm1154, %v962, 0.0
      %v1187 = vadd.f32 %v1185, %v1186
      %v1188 = vsel %vm1154, %v965, 0.0
      %v1189 = vadd.f32 %v1187, %v1188
      %v1190 = vsel %vm1154, %v970, 0.0
      %v1191 = vadd.f32 %v1189, %v1190
      %v1192 = vsel %vm1154, %v973, 0.0
      %v1193 = vadd.f32 %v1191, %v1192
      %v1194 = vsel %vm1154, %v978, 0.0
      %v1195 = vadd.f32 %v1193, %v1194
      %v1196 = vsel %vm1154, %v981, 0.0
      %v1197 = vadd.f32 %v1195, %v1196
      %v1198 = vsel %vm1154, %v986, 0.0
      %v1199 = vadd.f32 %v1197, %v1198
      %v1200 = vsel %vm1154, %v989, 0.0
      %v1201 = vadd.f32 %v1199, %v1200
      %v1202 = vsel %vm1154, %v994, 0.0
      %v1203 = vadd.f32 %v1201, %v1202
      %v1204 = vsel %vm1154, %v997, 0.0
      %v1205 = vadd.f32 %v1203, %v1204
      %v1206 = vsel %vm1154, %v1002, 0.0
      %v1207 = vadd.f32 %v1205, %v1206
      %v1208 = vsel %vm1154, %v1005, 0.0
      %v1209 = vadd.f32 %v1207, %v1208
      %v1210 = vsel %vm1154, %v1010, 0.0
      %v1211 = vadd.f32 %v1209, %v1210
      %v1212 = vsel %vm1154, %v1013, 0.0
      %v1213 = vadd.f32 %v1211, %v1212
      %v1214 = vsel %vm1154, %v1018, 0.0
      %v1215 = vadd.f32 %v1213, %v1214
      %v1216 = vsel %vm1154, %v1021, 0.0
      %v1217 = vadd.f32 %v1215, %v1216
      %v1218 = vsel %vm1154, %v1026, 0.0
      %v1219 = vadd.f32 %v1217, %v1218
      %v1220 = vsel %vm1154, %v1029, 0.0
      %v1221 = vadd.f32 %v1219, %v1220
      %v1222 = vsel %vm1154, %v1034, 0.0
      %v1223 = vadd.f32 %v1221, %v1222
      %v1224 = vsel %vm1154, %v1037, 0.0
      %v1225 = vadd.f32 %v1223, %v1224
      %v1226 = vsel %vm1154, %v1042, 0.0
      %v1227 = vadd.f32 %v1225, %v1226
      %v1228 = vsel %vm1154, %v1045, 0.0
      %v1229 = vadd.f32 %v1227, %v1228
      %v1230 = vsel %vm1154, %v1050, 0.0
      %v1231 = vadd.f32 %v1229, %v1230
      %v1232 = vsel %vm1154, %v1053, 0.0
      %v1233 = vadd.f32 %v1231, %v1232
      %v1234 = vsel %vm1154, %v1058, 0.0
      %v1235 = vadd.f32 %v1233, %v1234
      %v1236 = vsel %vm1154, %v1061, 0.0
      %v1237 = vadd.f32 %v1235, %v1236
      %v1238 = vsel %vm1154, %v1066, 0.0
      %v1239 = vadd.f32 %v1237, %v1238
      %v1240 = vsel %vm1154, %v1069, 0.0
      %v1241 = vadd.f32 %v1239, %v1240
      %v1242 = vsel %vm1154, %v1074, 0.0
      %v1243 = vadd.f32 %v1241, %v1242
      %v1244 = vsel %vm1154, %v1077, 0.0
      %v1245 = vadd.f32 %v1243, %v1244
      %v1246 = vsel %vm1154, %v1082, 0.0
      %v1247 = vadd.f32 %v1245, %v1246
      %v1248 = vsel %vm1154, %v1085, 0.0
      %v1249 = vadd.f32 %v1247, %v1248
      %v1250 = vsel %vm1154, %v1090, 0.0
      %v1251 = vadd.f32 %v1249, %v1250
      %v1252 = vsel %vm1154, %v1093, 0.0
      %v1253 = vadd.f32 %v1251, %v1252
      %v1254 = vsel %vm1154, %v1098, 0.0
      %v1255 = vadd.f32 %v1253, %v1254
      %v1256 = vsel %vm1154, %v1101, 0.0
      %v1257 = vadd.f32 %v1255, %v1256
      %v1258 = vsel %vm1154, %v1106, 0.0
      %v1259 = vadd.f32 %v1257, %v1258
      %v1260 = vsel %vm1154, %v1109, 0.0
      %v1261 = vadd.f32 %v1259, %v1260
      %v1262 = vsel %vm1154, %v1114, 0.0
      %v1263 = vadd.f32 %v1261, %v1262
      %v1264 = vsel %vm1154, %v1117, 0.0
      %v1265 = vadd.f32 %v1263, %v1264
      %v1266 = vsel %vm1154, %v1122, 0.0
      %v1267 = vadd.f32 %v1265, %v1266
      %v1268 = vsel %vm1154, %v1125, 0.0
      %v1269 = vadd.f32 %v1267, %v1268
      %v1270 = vsel %vm1154, %v1130, 0.0
      %v1271 = vadd.f32 %v1269, %v1270
      %v1272 = vsel %vm1154, %v1133, 0.0
      %v1273 = vadd.f32 %v1271, %v1272
      %v1274 = vsel %vm1154, %v1138, 0.0
      %v1275 = vadd.f32 %v1273, %v1274
      %v1276 = vsel %vm1154, %v1141, 0.0
      %v1277 = vadd.f32 %v1275, %v1276
      %v1278 = vsel %vm1154, %v1146, 0.0
      %v1279 = vadd.f32 %v1277, %v1278
      %v1280 = vsel %vm1154, %v1149, 0.0
      %v1281 = vadd.f32 %v1279, %v1280
      %v1282 = vrot.slane %v1281, 4
      %v1283 = vadd.f32 %v1281, %v1282
      %v1284 = vrot.slane %v1283, 2
      %v1285 = vadd.f32 %v1283, %v1284
      %v1286 = vrot.slane %v1285, 1
      %v1287 = vadd.f32 %v1285, %v1286
      %v1288 = vmul.f32 %v898, %v898
      %v1289 = vmul.f32 %v901, %v901
      %v1290 = vmul.f32 %v906, %v906
      %v1291 = vmul.f32 %v909, %v909
      %v1292 = vmul.f32 %v914, %v914
      %v1293 = vmul.f32 %v917, %v917
      %v1294 = vmul.f32 %v922, %v922
      %v1295 = vmul.f32 %v925, %v925
      %v1296 = vmul.f32 %v930, %v930
      %v1297 = vmul.f32 %v933, %v933
      %v1298 = vmul.f32 %v938, %v938
      %v1299 = vmul.f32 %v941, %v941
      %v1300 = vmul.f32 %v946, %v946
      %v1301 = vmul.f32 %v949, %v949
      %v1302 = vmul.f32 %v954, %v954
      %v1303 = vmul.f32 %v957, %v957
      %v1304 = vmul.f32 %v962, %v962
      %v1305 = vmul.f32 %v965, %v965
      %v1306 = vmul.f32 %v970, %v970
      %v1307 = vmul.f32 %v973, %v973
      %v1308 = vmul.f32 %v978, %v978
      %v1309 = vmul.f32 %v981, %v981
      %v1310 = vmul.f32 %v986, %v986
      %v1311 = vmul.f32 %v989, %v989
      %v1312 = vmul.f32 %v994, %v994
      %v1313 = vmul.f32 %v997, %v997
      %v1314 = vmul.f32 %v1002, %v1002
      %v1315 = vmul.f32 %v1005, %v1005
      %v1316 = vmul.f32 %v1010, %v1010
      %v1317 = vmul.f32 %v1013, %v1013
      %v1318 = vmul.f32 %v1018, %v1018
      %v1319 = vmul.f32 %v1021, %v1021
      %v1320 = vmul.f32 %v1026, %v1026
      %v1321 = vmul.f32 %v1029, %v1029
      %v1322 = vmul.f32 %v1034, %v1034
      %v1323 = vmul.f32 %v1037, %v1037
      %v1324 = vmul.f32 %v1042, %v1042
      %v1325 = vmul.f32 %v1045, %v1045
      %v1326 = vmul.f32 %v1050, %v1050
      %v1327 = vmul.f32 %v1053, %v1053
      %v1328 = vmul.f32 %v1058, %v1058
      %v1329 = vmul.f32 %v1061, %v1061
      %v1330 = vmul.f32 %v1066, %v1066
      %v1331 = vmul.f32 %v1069, %v1069
      %v1332 = vmul.f32 %v1074, %v1074
      %v1333 = vmul.f32 %v1077, %v1077
      %v1334 = vmul.f32 %v1082, %v1082
      %v1335 = vmul.f32 %v1085, %v1085
      %v1336 = vmul.f32 %v1090, %v1090
      %v1337 = vmul.f32 %v1093, %v1093
      %v1338 = vmul.f32 %v1098, %v1098
      %v1339 = vmul.f32 %v1101, %v1101
      %v1340 = vmul.f32 %v1106, %v1106
      %v1341 = vmul.f32 %v1109, %v1109
      %v1342 = vmul.f32 %v1114, %v1114
      %v1343 = vmul.f32 %v1117, %v1117
      %v1344 = vmul.f32 %v1122, %v1122
      %v1345 = vmul.f32 %v1125, %v1125
      %v1346 = vmul.f32 %v1130, %v1130
      %v1347 = vmul.f32 %v1133, %v1133
      %v1348 = vmul.f32 %v1138, %v1138
      %v1349 = vmul.f32 %v1141, %v1141
      %v1350 = vmul.f32 %v1146, %v1146
      %v1351 = vmul.f32 %v1149, %v1149
      %v1352 = vsel %vm1154, %v1288, 0.0
      %v1353 = vsel %vm1154, %v1289, 0.0
      %v1354 = vadd.f32 %v1352, %v1353
      %v1355 = vsel %vm1154, %v1290, 0.0
      %v1356 = vadd.f32 %v1354, %v1355
      %v1357 = vsel %vm1154, %v1291, 0.0
      %v1358 = vadd.f32 %v1356, %v1357
      %v1359 = vsel %vm1154, %v1292, 0.0
      %v1360 = vadd.f32 %v1358, %v1359
      %v1361 = vsel %vm1154, %v1293, 0.0
      %v1362 = vadd.f32 %v1360, %v1361
      %v1363 = vsel %vm1154, %v1294, 0.0
      %v1364 = vadd.f32 %v1362, %v1363
      %v1365 = vsel %vm1154, %v1295, 0.0
      %v1366 = vadd.f32 %v1364, %v1365
      %v1367 = vsel %vm1154, %v1296, 0.0
      %v1368 = vadd.f32 %v1366, %v1367
      %v1369 = vsel %vm1154, %v1297, 0.0
      %v1370 = vadd.f32 %v1368, %v1369
      %v1371 = vsel %vm1154, %v1298, 0.0
      %v1372 = vadd.f32 %v1370, %v1371
      %v1373 = vsel %vm1154, %v1299, 0.0
      %v1374 = vadd.f32 %v1372, %v1373
      %v1375 = vsel %vm1154, %v1300, 0.0
      %v1376 = vadd.f32 %v1374, %v1375
      %v1377 = vsel %vm1154, %v1301, 0.0
      %v1378 = vadd.f32 %v1376, %v1377
      %v1379 = vsel %vm1154, %v1302, 0.0
      %v1380 = vadd.f32 %v1378, %v1379
      %v1381 = vsel %vm1154, %v1303, 0.0
      %v1382 = vadd.f32 %v1380, %v1381
      %v1383 = vsel %vm1154, %v1304, 0.0
      %v1384 = vadd.f32 %v1382, %v1383
      %v1385 = vsel %vm1154, %v1305, 0.0
      %v1386 = vadd.f32 %v1384, %v1385
      %v1387 = vsel %vm1154, %v1306, 0.0
      %v1388 = vadd.f32 %v1386, %v1387
      %v1389 = vsel %vm1154, %v1307, 0.0
      %v1390 = vadd.f32 %v1388, %v1389
      %v1391 = vsel %vm1154, %v1308, 0.0
      %v1392 = vadd.f32 %v1390, %v1391
      %v1393 = vsel %vm1154, %v1309, 0.0
      %v1394 = vadd.f32 %v1392, %v1393
      %v1395 = vsel %vm1154, %v1310, 0.0
      %v1396 = vadd.f32 %v1394, %v1395
      %v1397 = vsel %vm1154, %v1311, 0.0
      %v1398 = vadd.f32 %v1396, %v1397
      %v1399 = vsel %vm1154, %v1312, 0.0
      %v1400 = vadd.f32 %v1398, %v1399
      %v1401 = vsel %vm1154, %v1313, 0.0
      %v1402 = vadd.f32 %v1400, %v1401
      %v1403 = vsel %vm1154, %v1314, 0.0
      %v1404 = vadd.f32 %v1402, %v1403
      %v1405 = vsel %vm1154, %v1315, 0.0
      %v1406 = vadd.f32 %v1404, %v1405
      %v1407 = vsel %vm1154, %v1316, 0.0
      %v1408 = vadd.f32 %v1406, %v1407
      %v1409 = vsel %vm1154, %v1317, 0.0
      %v1410 = vadd.f32 %v1408, %v1409
      %v1411 = vsel %vm1154, %v1318, 0.0
      %v1412 = vadd.f32 %v1410, %v1411
      %v1413 = vsel %vm1154, %v1319, 0.0
      %v1414 = vadd.f32 %v1412, %v1413
      %v1415 = vsel %vm1154, %v1320, 0.0
      %v1416 = vadd.f32 %v1414, %v1415
      %v1417 = vsel %vm1154, %v1321, 0.0
      %v1418 = vadd.f32 %v1416, %v1417
      %v1419 = vsel %vm1154, %v1322, 0.0
      %v1420 = vadd.f32 %v1418, %v1419
      %v1421 = vsel %vm1154, %v1323, 0.0
      %v1422 = vadd.f32 %v1420, %v1421
      %v1423 = vsel %vm1154, %v1324, 0.0
      %v1424 = vadd.f32 %v1422, %v1423
      %v1425 = vsel %vm1154, %v1325, 0.0
      %v1426 = vadd.f32 %v1424, %v1425
      %v1427 = vsel %vm1154, %v1326, 0.0
      %v1428 = vadd.f32 %v1426, %v1427
      %v1429 = vsel %vm1154, %v1327, 0.0
      %v1430 = vadd.f32 %v1428, %v1429
      %v1431 = vsel %vm1154, %v1328, 0.0
      %v1432 = vadd.f32 %v1430, %v1431
      %v1433 = vsel %vm1154, %v1329, 0.0
      %v1434 = vadd.f32 %v1432, %v1433
      %v1435 = vsel %vm1154, %v1330, 0.0
      %v1436 = vadd.f32 %v1434, %v1435
      %v1437 = vsel %vm1154, %v1331, 0.0
      %v1438 = vadd.f32 %v1436, %v1437
      %v1439 = vsel %vm1154, %v1332, 0.0
      %v1440 = vadd.f32 %v1438, %v1439
      %v1441 = vsel %vm1154, %v1333, 0.0
      %v1442 = vadd.f32 %v1440, %v1441
      %v1443 = vsel %vm1154, %v1334, 0.0
      %v1444 = vadd.f32 %v1442, %v1443
      %v1445 = vsel %vm1154, %v1335, 0.0
      %v1446 = vadd.f32 %v1444, %v1445
      %v1447 = vsel %vm1154, %v1336, 0.0
      %v1448 = vadd.f32 %v1446, %v1447
      %v1449 = vsel %vm1154, %v1337, 0.0
      %v1450 = vadd.f32 %v1448, %v1449
      %v1451 = vsel %vm1154, %v1338, 0.0
      %v1452 = vadd.f32 %v1450, %v1451
      %v1453 = vsel %vm1154, %v1339, 0.0
      %v1454 = vadd.f32 %v1452, %v1453
      %v1455 = vsel %vm1154, %v1340, 0.0
      %v1456 = vadd.f32 %v1454, %v1455
      %v1457 = vsel %vm1154, %v1341, 0.0
      %v1458 = vadd.f32 %v1456, %v1457
      %v1459 = vsel %vm1154, %v1342, 0.0
      %v1460 = vadd.f32 %v1458, %v1459
      %v1461 = vsel %vm1154, %v1343, 0.0
      %v1462 = vadd.f32 %v1460, %v1461
      %v1463 = vsel %vm1154, %v1344, 0.0
      %v1464 = vadd.f32 %v1462, %v1463
      %v1465 = vsel %vm1154, %v1345, 0.0
      %v1466 = vadd.f32 %v1464, %v1465
      %v1467 = vsel %vm1154, %v1346, 0.0
      %v1468 = vadd.f32 %v1466, %v1467
      %v1469 = vsel %vm1154, %v1347, 0.0
      %v1470 = vadd.f32 %v1468, %v1469
      %v1471 = vsel %vm1154, %v1348, 0.0
      %v1472 = vadd.f32 %v1470, %v1471
      %v1473 = vsel %vm1154, %v1349, 0.0
      %v1474 = vadd.f32 %v1472, %v1473
      %v1475 = vsel %vm1154, %v1350, 0.0
      %v1476 = vadd.f32 %v1474, %v1475
      %v1477 = vsel %vm1154, %v1351, 0.0
      %v1478 = vadd.f32 %v1476, %v1477
      %v1479 = vrot.slane %v1478, 4
      %v1480 = vadd.f32 %v1478, %v1479
      %v1481 = vrot.slane %v1480, 2
      %v1482 = vadd.f32 %v1480, %v1481
      %v1483 = vrot.slane %v1482, 1
      %v1484 = vadd.f32 %v1482, %v1483
      %v1485 = vmul.f32 %v1287, 0.001953125
      %v1486 = vmul.f32 %v1484, 0.001953125
      %v1487 = vmul.f32 %v1485, %v1485
      %v1488 = vsub.f32 %v1486, %v1487
      %v1489 = vadd.f32 %v1488, 1e-05
      %v1490 = vrsqrt.pop %v1489
      %v1491 = vmul.f32 %v1152, %v1490
      %v1492 = vmul.f32 %v1485, %v1491
      %v1493 = vsub.f32 %v1153, %v1492
      %v1495 = vlaneseq
      %v1496 = vshrl.u32 %v1495, 7
      %v1497 = vsub.s32 0, %v1496
      %v1498 = vrot.slane %v1491, %v1497
      %v1500 = vmul.f32 %v898, %v1498
      %v1501 = vmul.f32 %v901, %v1498
      %v1502 = vmul.f32 %v906, %v1498
      %v1503 = vmul.f32 %v909, %v1498
      %v1504 = vmul.f32 %v914, %v1498
      %v1505 = vmul.f32 %v917, %v1498
      %v1506 = vmul.f32 %v922, %v1498
      %v1507 = vmul.f32 %v925, %v1498
      %v1508 = vmul.f32 %v930, %v1498
      %v1509 = vmul.f32 %v933, %v1498
      %v1510 = vmul.f32 %v938, %v1498
      %v1511 = vmul.f32 %v941, %v1498
      %v1512 = vmul.f32 %v946, %v1498
      %v1513 = vmul.f32 %v949, %v1498
      %v1514 = vmul.f32 %v954, %v1498
      %v1515 = vmul.f32 %v957, %v1498
      %v1516 = vmul.f32 %v962, %v1498
      %v1517 = vmul.f32 %v965, %v1498
      %v1518 = vmul.f32 %v970, %v1498
      %v1519 = vmul.f32 %v973, %v1498
      %v1520 = vmul.f32 %v978, %v1498
      %v1521 = vmul.f32 %v981, %v1498
      %v1522 = vmul.f32 %v986, %v1498
      %v1523 = vmul.f32 %v989, %v1498
      %v1524 = vmul.f32 %v994, %v1498
      %v1525 = vmul.f32 %v997, %v1498
      %v1526 = vmul.f32 %v1002, %v1498
      %v1527 = vmul.f32 %v1005, %v1498
      %v1528 = vmul.f32 %v1010, %v1498
      %v1529 = vmul.f32 %v1013, %v1498
      %v1530 = vmul.f32 %v1018, %v1498
      %v1531 = vmul.f32 %v1021, %v1498
      %v1532 = vmul.f32 %v1026, %v1498
      %v1533 = vmul.f32 %v1029, %v1498
      %v1534 = vmul.f32 %v1034, %v1498
      %v1535 = vmul.f32 %v1037, %v1498
      %v1536 = vmul.f32 %v1042, %v1498
      %v1537 = vmul.f32 %v1045, %v1498
      %v1538 = vmul.f32 %v1050, %v1498
      %v1539 = vmul.f32 %v1053, %v1498
      %v1540 = vmul.f32 %v1058, %v1498
      %v1541 = vmul.f32 %v1061, %v1498
      %v1542 = vmul.f32 %v1066, %v1498
      %v1543 = vmul.f32 %v1069, %v1498
      %v1544 = vmul.f32 %v1074, %v1498
      %v1545 = vmul.f32 %v1077, %v1498
      %v1546 = vmul.f32 %v1082, %v1498
      %v1547 = vmul.f32 %v1085, %v1498
      %v1548 = vmul.f32 %v1090, %v1498
      %v1549 = vmul.f32 %v1093, %v1498
      %v1550 = vmul.f32 %v1098, %v1498
      %v1551 = vmul.f32 %v1101, %v1498
      %v1552 = vmul.f32 %v1106, %v1498
      %v1553 = vmul.f32 %v1109, %v1498
      %v1554 = vmul.f32 %v1114, %v1498
      %v1555 = vmul.f32 %v1117, %v1498
      %v1556 = vmul.f32 %v1122, %v1498
      %v1557 = vmul.f32 %v1125, %v1498
      %v1558 = vmul.f32 %v1130, %v1498
      %v1559 = vmul.f32 %v1133, %v1498
      %v1560 = vmul.f32 %v1138, %v1498
      %v1561 = vmul.f32 %v1141, %v1498
      %v1562 = vmul.f32 %v1146, %v1498
      %v1563 = vmul.f32 %v1149, %v1498
      %v1565 = vlaneseq
      %v1566 = vshrl.u32 %v1565, 7
      %v1567 = vsub.s32 0, %v1566
      %v1568 = vrot.slane %v1493, %v1567
      %v1570 = vadd.f32 %v1500, %v1568
      %v1571 = vadd.f32 %v1501, %v1568
      %v1572 = vadd.f32 %v1502, %v1568
      %v1573 = vadd.f32 %v1503, %v1568
      %v1574 = vadd.f32 %v1504, %v1568
      %v1575 = vadd.f32 %v1505, %v1568
      %v1576 = vadd.f32 %v1506, %v1568
      %v1577 = vadd.f32 %v1507, %v1568
      %v1578 = vadd.f32 %v1508, %v1568
      %v1579 = vadd.f32 %v1509, %v1568
      %v1580 = vadd.f32 %v1510, %v1568
      %v1581 = vadd.f32 %v1511, %v1568
      %v1582 = vadd.f32 %v1512, %v1568
      %v1583 = vadd.f32 %v1513, %v1568
      %v1584 = vadd.f32 %v1514, %v1568
      %v1585 = vadd.f32 %v1515, %v1568
      %v1586 = vadd.f32 %v1516, %v1568
      %v1587 = vadd.f32 %v1517, %v1568
      %v1588 = vadd.f32 %v1518, %v1568
      %v1589 = vadd.f32 %v1519, %v1568
      %v1590 = vadd.f32 %v1520, %v1568
      %v1591 = vadd.f32 %v1521, %v1568
      %v1592 = vadd.f32 %v1522, %v1568
      %v1593 = vadd.f32 %v1523, %v1568
      %v1594 = vadd.f32 %v1524, %v1568
      %v1595 = vadd.f32 %v1525, %v1568
      %v1596 = vadd.f32 %v1526, %v1568
      %v1597 = vadd.f32 %v1527, %v1568
      %v1598 = vadd.f32 %v1528, %v1568
      %v1599 = vadd.f32 %v1529, %v1568
      %v1600 = vadd.f32 %v1530, %v1568
      %v1601 = vadd.f32 %v1531, %v1568
      %v1602 = vadd.f32 %v1532, %v1568
      %v1603 = vadd.f32 %v1533, %v1568
      %v1604 = vadd.f32 %v1534, %v1568
      %v1605 = vadd.f32 %v1535, %v1568
      %v1606 = vadd.f32 %v1536, %v1568
      %v1607 = vadd.f32 %v1537, %v1568
      %v1608 = vadd.f32 %v1538, %v1568
      %v1609 = vadd.f32 %v1539, %v1568
      %v1610 = vadd.f32 %v1540, %v1568
      %v1611 = vadd.f32 %v1541, %v1568
      %v1612 = vadd.f32 %v1542, %v1568
      %v1613 = vadd.f32 %v1543, %v1568
      %v1614 = vadd.f32 %v1544, %v1568
      %v1615 = vadd.f32 %v1545, %v1568
      %v1616 = vadd.f32 %v1546, %v1568
      %v1617 = vadd.f32 %v1547, %v1568
      %v1618 = vadd.f32 %v1548, %v1568
      %v1619 = vadd.f32 %v1549, %v1568
      %v1620 = vadd.f32 %v1550, %v1568
      %v1621 = vadd.f32 %v1551, %v1568
      %v1622 = vadd.f32 %v1552, %v1568
      %v1623 = vadd.f32 %v1553, %v1568
      %v1624 = vadd.f32 %v1554, %v1568
      %v1625 = vadd.f32 %v1555, %v1568
      %v1626 = vadd.f32 %v1556, %v1568
      %v1627 = vadd.f32 %v1557, %v1568
      %v1628 = vadd.f32 %v1558, %v1568
      %v1629 = vadd.f32 %v1559, %v1568
      %v1630 = vadd.f32 %v1560, %v1568
      %v1631 = vadd.f32 %v1561, %v1568
      %v1632 = vadd.f32 %v1562, %v1568
      %v1633 = vadd.f32 %v1563, %v1568
      %vm1634 = vcmp.gt.f32.partialorder %v1570, 0.0
      %vm1635 = vcmp.gt.f32.partialorder %v1571, 0.0
      %vm1636 = vcmp.gt.f32.partialorder %v1572, 0.0
      %vm1637 = vcmp.gt.f32.partialorder %v1573, 0.0
      %vm1638 = vcmp.gt.f32.partialorder %v1574, 0.0
      %vm1639 = vcmp.gt.f32.partialorder %v1575, 0.0
      %vm1640 = vcmp.gt.f32.partialorder %v1576, 0.0
      %vm1641 = vcmp.gt.f32.partialorder %v1577, 0.0
      %vm1642 = vcmp.gt.f32.partialorder %v1578, 0.0
      %vm1643 = vcmp.gt.f32.partialorder %v1579, 0.0
      %vm1644 = vcmp.gt.f32.partialorder %v1580, 0.0
      %vm1645 = vcmp.gt.f32.partialorder %v1581, 0.0
      %vm1646 = vcmp.gt.f32.partialorder %v1582, 0.0
      %vm1647 = vcmp.gt.f32.partialorder %v1583, 0.0
      %vm1648 = vcmp.gt.f32.partialorder %v1584, 0.0
      %vm1649 = vcmp.gt.f32.partialorder %v1585, 0.0
      %vm1650 = vcmp.gt.f32.partialorder %v1586, 0.0
      %vm1651 = vcmp.gt.f32.partialorder %v1587, 0.0
      %vm1652 = vcmp.gt.f32.partialorder %v1588, 0.0
      %vm1653 = vcmp.gt.f32.partialorder %v1589, 0.0
      %vm1654 = vcmp.gt.f32.partialorder %v1590, 0.0
      %vm1655 = vcmp.gt.f32.partialorder %v1591, 0.0
      %vm1656 = vcmp.gt.f32.partialorder %v1592, 0.0
      %vm1657 = vcmp.gt.f32.partialorder %v1593, 0.0
      %vm1658 = vcmp.gt.f32.partialorder %v1594, 0.0
      %vm1659 = vcmp.gt.f32.partialorder %v1595, 0.0
      %vm1660 = vcmp.gt.f32.partialorder %v1596, 0.0
      %vm1661 = vcmp.gt.f32.partialorder %v1597, 0.0
      %vm1662 = vcmp.gt.f32.partialorder %v1598, 0.0
      %vm1663 = vcmp.gt.f32.partialorder %v1599, 0.0
      %vm1664 = vcmp.gt.f32.partialorder %v1600, 0.0
      %vm1665 = vcmp.gt.f32.partialorder %v1601, 0.0
      %vm1666 = vcmp.gt.f32.partialorder %v1602, 0.0
      %vm1667 = vcmp.gt.f32.partialorder %v1603, 0.0
      %vm1668 = vcmp.gt.f32.partialorder %v1604, 0.0
      %vm1669 = vcmp.gt.f32.partialorder %v1605, 0.0
      %vm1670 = vcmp.gt.f32.partialorder %v1606, 0.0
      %vm1671 = vcmp.gt.f32.partialorder %v1607, 0.0
      %vm1672 = vcmp.gt.f32.partialorder %v1608, 0.0
      %vm1673 = vcmp.gt.f32.partialorder %v1609, 0.0
      %vm1674 = vcmp.gt.f32.partialorder %v1610, 0.0
      %vm1675 = vcmp.gt.f32.partialorder %v1611, 0.0
      %vm1676 = vcmp.gt.f32.partialorder %v1612, 0.0
      %vm1677 = vcmp.gt.f32.partialorder %v1613, 0.0
      %vm1678 = vcmp.gt.f32.partialorder %v1614, 0.0
      %vm1679 = vcmp.gt.f32.partialorder %v1615, 0.0
      %vm1680 = vcmp.gt.f32.partialorder %v1616, 0.0
      %vm1681 = vcmp.gt.f32.partialorder %v1617, 0.0
      %vm1682 = vcmp.gt.f32.partialorder %v1618, 0.0
      %vm1683 = vcmp.gt.f32.partialorder %v1619, 0.0
      %vm1684 = vcmp.gt.f32.partialorder %v1620, 0.0
      %vm1685 = vcmp.gt.f32.partialorder %v1621, 0.0
      %vm1686 = vcmp.gt.f32.partialorder %v1622, 0.0
      %vm1687 = vcmp.gt.f32.partialorder %v1623, 0.0
      %vm1688 = vcmp.gt.f32.partialorder %v1624, 0.0
      %vm1689 = vcmp.gt.f32.partialorder %v1625, 0.0
      %vm1690 = vcmp.gt.f32.partialorder %v1626, 0.0
      %vm1691 = vcmp.gt.f32.partialorder %v1627, 0.0
      %vm1692 = vcmp.gt.f32.partialorder %v1628, 0.0
      %vm1693 = vcmp.gt.f32.partialorder %v1629, 0.0
      %vm1694 = vcmp.gt.f32.partialorder %v1630, 0.0
      %vm1695 = vcmp.gt.f32.partialorder %v1631, 0.0
      %vm1696 = vcmp.gt.f32.partialorder %v1632, 0.0
      %vm1697 = vcmp.gt.f32.partialorder %v1633, 0.0
      %v1698 = vmul.f32 %v1570, 0.1
      %v1699 = vmul.f32 %v1571, 0.1
      %v1700 = vmul.f32 %v1572, 0.1
      %v1701 = vmul.f32 %v1573, 0.1
      %v1702 = vmul.f32 %v1574, 0.1
      %v1703 = vmul.f32 %v1575, 0.1
      %v1704 = vmul.f32 %v1576, 0.1
      %v1705 = vmul.f32 %v1577, 0.1
      %v1706 = vmul.f32 %v1578, 0.1
      %v1707 = vmul.f32 %v1579, 0.1
      %v1708 = vmul.f32 %v1580, 0.1
      %v1709 = vmul.f32 %v1581, 0.1
      %v1710 = vmul.f32 %v1582, 0.1
      %v1711 = vmul.f32 %v1583, 0.1
      %v1712 = vmul.f32 %v1584, 0.1
      %v1713 = vmul.f32 %v1585, 0.1
      %v1714 = vmul.f32 %v1586, 0.1
      %v1715 = vmul.f32 %v1587, 0.1
      %v1716 = vmul.f32 %v1588, 0.1
      %v1717 = vmul.f32 %v1589, 0.1
      %v1718 = vmul.f32 %v1590, 0.1
      %v1719 = vmul.f32 %v1591, 0.1
      %v1720 = vmul.f32 %v1592, 0.1
      %v1721 = vmul.f32 %v1593, 0.1
      %v1722 = vmul.f32 %v1594, 0.1
      %v1723 = vmul.f32 %v1595, 0.1
      %v1724 = vmul.f32 %v1596, 0.1
      %v1725 = vmul.f32 %v1597, 0.1
      %v1726 = vmul.f32 %v1598, 0.1
      %v1727 = vmul.f32 %v1599, 0.1
      %v1728 = vmul.f32 %v1600, 0.1
      %v1729 = vmul.f32 %v1601, 0.1
      %v1730 = vmul.f32 %v1602, 0.1
      %v1731 = vmul.f32 %v1603, 0.1
      %v1732 = vmul.f32 %v1604, 0.1
      %v1733 = vmul.f32 %v1605, 0.1
      %v1734 = vmul.f32 %v1606, 0.1
      %v1735 = vmul.f32 %v1607, 0.1
      %v1736 = vmul.f32 %v1608, 0.1
      %v1737 = vmul.f32 %v1609, 0.1
      %v1738 = vmul.f32 %v1610, 0.1
      %v1739 = vmul.f32 %v1611, 0.1
      %v1740 = vmul.f32 %v1612, 0.1
      %v1741 = vmul.f32 %v1613, 0.1
      %v1742 = vmul.f32 %v1614, 0.1
      %v1743 = vmul.f32 %v1615, 0.1
      %v1744 = vmul.f32 %v1616, 0.1
      %v1745 = vmul.f32 %v1617, 0.1
      %v1746 = vmul.f32 %v1618, 0.1
      %v1747 = vmul.f32 %v1619, 0.1
      %v1748 = vmul.f32 %v1620, 0.1
      %v1749 = vmul.f32 %v1621, 0.1
      %v1750 = vmul.f32 %v1622, 0.1
      %v1751 = vmul.f32 %v1623, 0.1
      %v1752 = vmul.f32 %v1624, 0.1
      %v1753 = vmul.f32 %v1625, 0.1
      %v1754 = vmul.f32 %v1626, 0.1
      %v1755 = vmul.f32 %v1627, 0.1
      %v1756 = vmul.f32 %v1628, 0.1
      %v1757 = vmul.f32 %v1629, 0.1
      %v1758 = vmul.f32 %v1630, 0.1
      %v1759 = vmul.f32 %v1631, 0.1
      %v1760 = vmul.f32 %v1632, 0.1
      %v1761 = vmul.f32 %v1633, 0.1
      %v1762 = vsel %vm1634, %v1570, %v1698
      %v1763 = vsel %vm1635, %v1571, %v1699
      %v1764 = vsel %vm1636, %v1572, %v1700
      %v1765 = vsel %vm1637, %v1573, %v1701
      %v1766 = vsel %vm1638, %v1574, %v1702
      %v1767 = vsel %vm1639, %v1575, %v1703
      %v1768 = vsel %vm1640, %v1576, %v1704
      %v1769 = vsel %vm1641, %v1577, %v1705
      %v1770 = vsel %vm1642, %v1578, %v1706
      %v1771 = vsel %vm1643, %v1579, %v1707
      %v1772 = vsel %vm1644, %v1580, %v1708
      %v1773 = vsel %vm1645, %v1581, %v1709
      %v1774 = vsel %vm1646, %v1582, %v1710
      %v1775 = vsel %vm1647, %v1583, %v1711
      %v1776 = vsel %vm1648, %v1584, %v1712
      %v1777 = vsel %vm1649, %v1585, %v1713
      %v1778 = vsel %vm1650, %v1586, %v1714
      %v1779 = vsel %vm1651, %v1587, %v1715
      %v1780 = vsel %vm1652, %v1588, %v1716
      %v1781 = vsel %vm1653, %v1589, %v1717
      %v1782 = vsel %vm1654, %v1590, %v1718
      %v1783 = vsel %vm1655, %v1591, %v1719
      %v1784 = vsel %vm1656, %v1592, %v1720
      %v1785 = vsel %vm1657, %v1593, %v1721
      %v1786 = vsel %vm1658, %v1594, %v1722
      %v1787 = vsel %vm1659, %v1595, %v1723
      %v1788 = vsel %vm1660, %v1596, %v1724
      %v1789 = vsel %vm1661, %v1597, %v1725
      %v1790 = vsel %vm1662, %v1598, %v1726
      %v1791 = vsel %vm1663, %v1599, %v1727
      %v1792 = vsel %vm1664, %v1600, %v1728
      %v1793 = vsel %vm1665, %v1601, %v1729
      %v1794 = vsel %vm1666, %v1602, %v1730
      %v1795 = vsel %vm1667, %v1603, %v1731
      %v1796 = vsel %vm1668, %v1604, %v1732
      %v1797 = vsel %vm1669, %v1605, %v1733
      %v1798 = vsel %vm1670, %v1606, %v1734
      %v1799 = vsel %vm1671, %v1607, %v1735
      %v1800 = vsel %vm1672, %v1608, %v1736
      %v1801 = vsel %vm1673, %v1609, %v1737
      %v1802 = vsel %vm1674, %v1610, %v1738
      %v1803 = vsel %vm1675, %v1611, %v1739
      %v1804 = vsel %vm1676, %v1612, %v1740
      %v1805 = vsel %vm1677, %v1613, %v1741
      %v1806 = vsel %vm1678, %v1614, %v1742
      %v1807 = vsel %vm1679, %v1615, %v1743
      %v1808 = vsel %vm1680, %v1616, %v1744
      %v1809 = vsel %vm1681, %v1617, %v1745
      %v1810 = vsel %vm1682, %v1618, %v1746
      %v1811 = vsel %vm1683, %v1619, %v1747
      %v1812 = vsel %vm1684, %v1620, %v1748
      %v1813 = vsel %vm1685, %v1621, %v1749
      %v1814 = vsel %vm1686, %v1622, %v1750
      %v1815 = vsel %vm1687, %v1623, %v1751
      %v1816 = vsel %vm1688, %v1624, %v1752
      %v1817 = vsel %vm1689, %v1625, %v1753
      %v1818 = vsel %vm1690, %v1626, %v1754
      %v1819 = vsel %vm1691, %v1627, %v1755
      %v1820 = vsel %vm1692, %v1628, %v1756
      %v1821 = vsel %vm1693, %v1629, %v1757
      %v1822 = vsel %vm1694, %v1630, %v1758
      %v1823 = vsel %vm1695, %v1631, %v1759
      %v1824 = vsel %vm1696, %v1632, %v1760
      %v1825 = vsel %vm1697, %v1633, %v1761
      %v1826 = vpack.c.bf16 %v1763, %v1762
      %v1827 = vpack.c.bf16 %v1765, %v1764
      %v1828 = vpack.c.bf16 %v1767, %v1766
      %v1829 = vpack.c.bf16 %v1769, %v1768
      %v1830 = vpack.c.bf16 %v1771, %v1770
      %v1831 = vpack.c.bf16 %v1773, %v1772
      %v1832 = vpack.c.bf16 %v1775, %v1774
      %v1833 = vpack.c.bf16 %v1777, %v1776
      %v1834 = vpack.c.bf16 %v1779, %v1778
      %v1835 = vpack.c.bf16 %v1781, %v1780
      %v1836 = vpack.c.bf16 %v1783, %v1782
      %v1837 = vpack.c.bf16 %v1785, %v1784
      %v1838 = vpack.c.bf16 %v1787, %v1786
      %v1839 = vpack.c.bf16 %v1789, %v1788
      %v1840 = vpack.c.bf16 %v1791, %v1790
      %v1841 = vpack.c.bf16 %v1793, %v1792
      %v1842 = vpack.c.bf16 %v1795, %v1794
      %v1843 = vpack.c.bf16 %v1797, %v1796
      %v1844 = vpack.c.bf16 %v1799, %v1798
      %v1845 = vpack.c.bf16 %v1801, %v1800
      %v1846 = vpack.c.bf16 %v1803, %v1802
      %v1847 = vpack.c.bf16 %v1805, %v1804
      %v1848 = vpack.c.bf16 %v1807, %v1806
      %v1849 = vpack.c.bf16 %v1809, %v1808
      %v1850 = vpack.c.bf16 %v1811, %v1810
      %v1851 = vpack.c.bf16 %v1813, %v1812
      %v1852 = vpack.c.bf16 %v1815, %v1814
      %v1853 = vpack.c.bf16 %v1817, %v1816
      %v1854 = vpack.c.bf16 %v1819, %v1818
      %v1855 = vpack.c.bf16 %v1821, %v1820
      %v1856 = vpack.c.bf16 %v1823, %v1822
      %v1857 = vpack.c.bf16 %v1825, %v1824
      %v1890 = vunpack.c.l.b16 %v1826
      %v1891 = vunpack.c.h.b16 %v1826
      %v1892 = vunpack.c.l.b16 %v1827
      %v1893 = vunpack.c.h.b16 %v1827
      %v1894 = vunpack.c.l.b16 %v1828
      %v1895 = vunpack.c.h.b16 %v1828
      %v1896 = vunpack.c.l.b16 %v1829
      %v1897 = vunpack.c.h.b16 %v1829
      %v1898 = vunpack.c.l.b16 %v1830
      %v1899 = vunpack.c.h.b16 %v1830
      %v1900 = vunpack.c.l.b16 %v1831
      %v1901 = vunpack.c.h.b16 %v1831
      %v1902 = vunpack.c.l.b16 %v1832
      %v1903 = vunpack.c.h.b16 %v1832
      %v1904 = vunpack.c.l.b16 %v1833
      %v1905 = vunpack.c.h.b16 %v1833
      %v1906 = vunpack.c.l.b16 %v1834
      %v1907 = vunpack.c.h.b16 %v1834
      %v1908 = vunpack.c.l.b16 %v1835
      %v1909 = vunpack.c.h.b16 %v1835
      %v1910 = vunpack.c.l.b16 %v1836
      %v1911 = vunpack.c.h.b16 %v1836
      %v1912 = vunpack.c.l.b16 %v1837
      %v1913 = vunpack.c.h.b16 %v1837
      %v1914 = vunpack.c.l.b16 %v1838
      %v1915 = vunpack.c.h.b16 %v1838
      %v1916 = vunpack.c.l.b16 %v1839
      %v1917 = vunpack.c.h.b16 %v1839
      %v1918 = vunpack.c.l.b16 %v1840
      %v1919 = vunpack.c.h.b16 %v1840
      %v1920 = vunpack.c.l.b16 %v1841
      %v1921 = vunpack.c.h.b16 %v1841
      %v1922 = vunpack.c.l.b16 %v1842
      %v1923 = vunpack.c.h.b16 %v1842
      %v1924 = vunpack.c.l.b16 %v1843
      %v1925 = vunpack.c.h.b16 %v1843
      %v1926 = vunpack.c.l.b16 %v1844
      %v1927 = vunpack.c.h.b16 %v1844
      %v1928 = vunpack.c.l.b16 %v1845
      %v1929 = vunpack.c.h.b16 %v1845
      %v1930 = vunpack.c.l.b16 %v1846
      %v1931 = vunpack.c.h.b16 %v1846
      %v1932 = vunpack.c.l.b16 %v1847
      %v1933 = vunpack.c.h.b16 %v1847
      %v1934 = vunpack.c.l.b16 %v1848
      %v1935 = vunpack.c.h.b16 %v1848
      %v1936 = vunpack.c.l.b16 %v1849
      %v1937 = vunpack.c.h.b16 %v1849
      %v1938 = vunpack.c.l.b16 %v1850
      %v1939 = vunpack.c.h.b16 %v1850
      %v1940 = vunpack.c.l.b16 %v1851
      %v1941 = vunpack.c.h.b16 %v1851
      %v1942 = vunpack.c.l.b16 %v1852
      %v1943 = vunpack.c.h.b16 %v1852
      %v1944 = vunpack.c.l.b16 %v1853
      %v1945 = vunpack.c.h.b16 %v1853
      %v1946 = vunpack.c.l.b16 %v1854
      %v1947 = vunpack.c.h.b16 %v1854
      %v1948 = vunpack.c.l.b16 %v1855
      %v1949 = vunpack.c.h.b16 %v1855
      %v1950 = vunpack.c.l.b16 %v1856
      %v1951 = vunpack.c.h.b16 %v1856
      %v1952 = vunpack.c.l.b16 %v1857
      %v1953 = vunpack.c.h.b16 %v1857
      %v1954 = vpack.c.b16 %v1890, %v1890
      %v1955 = vpack.c.b16 %v1891, %v1891
      %v1956 = vpack.c.b16 %v1892, %v1892
      %v1957 = vpack.c.b16 %v1893, %v1893
      %v1958 = vpack.c.b16 %v1894, %v1894
      %v1959 = vpack.c.b16 %v1895, %v1895
      %v1960 = vpack.c.b16 %v1896, %v1896
      %v1961 = vpack.c.b16 %v1897, %v1897
      %v1962 = vpack.c.b16 %v1898, %v1898
      %v1963 = vpack.c.b16 %v1899, %v1899
      %v1964 = vpack.c.b16 %v1900, %v1900
      %v1965 = vpack.c.b16 %v1901, %v1901
      %v1966 = vpack.c.b16 %v1902, %v1902
      %v1967 = vpack.c.b16 %v1903, %v1903
      %v1968 = vpack.c.b16 %v1904, %v1904
      %v1969 = vpack.c.b16 %v1905, %v1905
      %v1970 = vpack.c.b16 %v1906, %v1906
      %v1971 = vpack.c.b16 %v1907, %v1907
      %v1972 = vpack.c.b16 %v1908, %v1908
      %v1973 = vpack.c.b16 %v1909, %v1909
      %v1974 = vpack.c.b16 %v1910, %v1910
      %v1975 = vpack.c.b16 %v1911, %v1911
      %v1976 = vpack.c.b16 %v1912, %v1912
      %v1977 = vpack.c.b16 %v1913, %v1913
      %v1978 = vpack.c.b16 %v1914, %v1914
      %v1979 = vpack.c.b16 %v1915, %v1915
      %v1980 = vpack.c.b16 %v1916, %v1916
      %v1981 = vpack.c.b16 %v1917, %v1917
      %v1982 = vpack.c.b16 %v1918, %v1918
      %v1983 = vpack.c.b16 %v1919, %v1919
      %v1984 = vpack.c.b16 %v1920, %v1920
      %v1985 = vpack.c.b16 %v1921, %v1921
      %v1986 = vpack.c.b16 %v1922, %v1922
      %v1987 = vpack.c.b16 %v1923, %v1923
      %v1988 = vpack.c.b16 %v1924, %v1924
      %v1989 = vpack.c.b16 %v1925, %v1925
      %v1990 = vpack.c.b16 %v1926, %v1926
      %v1991 = vpack.c.b16 %v1927, %v1927
      %v1992 = vpack.c.b16 %v1928, %v1928
      %v1993 = vpack.c.b16 %v1929, %v1929
      %v1994 = vpack.c.b16 %v1930, %v1930
      %v1995 = vpack.c.b16 %v1931, %v1931
      %v1996 = vpack.c.b16 %v1932, %v1932
      %v1997 = vpack.c.b16 %v1933, %v1933
      %v1998 = vpack.c.b16 %v1934, %v1934
      %v1999 = vpack.c.b16 %v1935, %v1935
      %v2000 = vpack.c.b16 %v1936, %v1936
      %v2001 = vpack.c.b16 %v1937, %v1937
      %v2002 = vpack.c.b16 %v1938, %v1938
      %v2003 = vpack.c.b16 %v1939, %v1939
      %v2004 = vpack.c.b16 %v1940, %v1940
      %v2005 = vpack.c.b16 %v1941, %v1941
      %v2006 = vpack.c.b16 %v1942, %v1942
      %v2007 = vpack.c.b16 %v1943, %v1943
      %v2008 = vpack.c.b16 %v1944, %v1944
      %v2009 = vpack.c.b16 %v1945, %v1945
      %v2010 = vpack.c.b16 %v1946, %v1946
      %v2011 = vpack.c.b16 %v1947, %v1947
      %v2012 = vpack.c.b16 %v1948, %v1948
      %v2013 = vpack.c.b16 %v1949, %v1949
      %v2014 = vpack.c.b16 %v1950, %v1950
      %v2015 = vpack.c.b16 %v1951, %v1951
      %v2016 = vpack.c.b16 %v1952, %v1952
      %v2017 = vpack.c.b16 %v1953, %v1953
      %vm2018 = vsmask.f32 256
      %vm2019 = vsmask.f32 4368
      %vm2020 = vmor %vm2018, %vm2019
      %v2022 = vshrl.u32 %v1954, 16
      %v2024 = vrot.slane %v2022, 7
      %v2025 = vshll.u32 %v1954, 16
      %v2027 = vor.u32 %v2024, %v2025
      %v2028 = vrot.slane %v2024, 4
      %v2030 = vshrl.u32 %v1955, 16
      %v2032 = vrot.slane %v2030, 7
      %v2033 = vshll.u32 %v1955, 16
      %v2035 = vor.u32 %v2032, %v2033
      %v2036 = vsel %vm2020, %v2028, %v2035
      %v2037 = vrot.slane %v2032, 4
      %v2039 = vshrl.u32 %v1956, 16
      %v2041 = vrot.slane %v2039, 7
      %v2042 = vshll.u32 %v1956, 16
      %v2044 = vor.u32 %v2041, %v2042
      %v2045 = vrot.slane %v2041, 4
      %v2047 = vshrl.u32 %v1957, 16
      %v2049 = vrot.slane %v2047, 7
      %v2050 = vshll.u32 %v1957, 16
      %v2052 = vor.u32 %v2049, %v2050
      %v2053 = vsel %vm2020, %v2045, %v2052
      %v2054 = vrot.slane %v2049, 4
      %v2056 = vshrl.u32 %v1958, 16
      %v2058 = vrot.slane %v2056, 7
      %v2059 = vshll.u32 %v1958, 16
      %v2061 = vor.u32 %v2058, %v2059
      %v2062 = vrot.slane %v2058, 4
      %v2064 = vshrl.u32 %v1959, 16
      %v2066 = vrot.slane %v2064, 7
      %v2067 = vshll.u32 %v1959, 16
      %v2069 = vor.u32 %v2066, %v2067
      %v2070 = vsel %vm2020, %v2062, %v2069
      %v2071 = vrot.slane %v2066, 4
      %v2073 = vshrl.u32 %v1960, 16
      %v2075 = vrot.slane %v2073, 7
      %v2076 = vshll.u32 %v1960, 16
      %v2078 = vor.u32 %v2075, %v2076
      %v2079 = vrot.slane %v2075, 4
      %v2081 = vshrl.u32 %v1961, 16
      %v2083 = vrot.slane %v2081, 7
      %v2084 = vshll.u32 %v1961, 16
      %v2086 = vor.u32 %v2083, %v2084
      %v2087 = vsel %vm2020, %v2079, %v2086
      %v2088 = vrot.slane %v2083, 4
      %v2090 = vshrl.u32 %v1962, 16
      %v2092 = vrot.slane %v2090, 7
      %v2093 = vshll.u32 %v1962, 16
      %v2095 = vor.u32 %v2092, %v2093
      %v2096 = vrot.slane %v2092, 4
      %v2098 = vshrl.u32 %v1963, 16
      %v2100 = vrot.slane %v2098, 7
      %v2101 = vshll.u32 %v1963, 16
      %v2103 = vor.u32 %v2100, %v2101
      %v2104 = vsel %vm2020, %v2096, %v2103
      %v2105 = vrot.slane %v2100, 4
      %v2107 = vshrl.u32 %v1964, 16
      %v2109 = vrot.slane %v2107, 7
      %v2110 = vshll.u32 %v1964, 16
      %v2112 = vor.u32 %v2109, %v2110
      %v2113 = vrot.slane %v2109, 4
      %v2115 = vshrl.u32 %v1965, 16
      %v2117 = vrot.slane %v2115, 7
      %v2118 = vshll.u32 %v1965, 16
      %v2120 = vor.u32 %v2117, %v2118
      %v2121 = vsel %vm2020, %v2113, %v2120
      %v2122 = vrot.slane %v2117, 4
      %v2124 = vshrl.u32 %v1966, 16
      %v2126 = vrot.slane %v2124, 7
      %v2127 = vshll.u32 %v1966, 16
      %v2129 = vor.u32 %v2126, %v2127
      %v2130 = vrot.slane %v2126, 4
      %v2132 = vshrl.u32 %v1967, 16
      %v2134 = vrot.slane %v2132, 7
      %v2135 = vshll.u32 %v1967, 16
      %v2137 = vor.u32 %v2134, %v2135
      %v2138 = vsel %vm2020, %v2130, %v2137
      %v2139 = vrot.slane %v2134, 4
      %v2141 = vshrl.u32 %v1968, 16
      %v2143 = vrot.slane %v2141, 7
      %v2144 = vshll.u32 %v1968, 16
      %v2146 = vor.u32 %v2143, %v2144
      %v2147 = vrot.slane %v2143, 4
      %v2149 = vshrl.u32 %v1969, 16
      %v2151 = vrot.slane %v2149, 7
      %v2152 = vshll.u32 %v1969, 16
      %v2154 = vor.u32 %v2151, %v2152
      %v2155 = vsel %vm2020, %v2147, %v2154
      %v2156 = vrot.slane %v2151, 4
      %v2158 = vshrl.u32 %v1970, 16
      %v2160 = vrot.slane %v2158, 7
      %v2161 = vshll.u32 %v1970, 16
      %v2163 = vor.u32 %v2160, %v2161
      %v2164 = vrot.slane %v2160, 4
      %v2166 = vshrl.u32 %v1971, 16
      %v2168 = vrot.slane %v2166, 7
      %v2169 = vshll.u32 %v1971, 16
      %v2171 = vor.u32 %v2168, %v2169
      %v2172 = vsel %vm2020, %v2164, %v2171
      %v2173 = vrot.slane %v2168, 4
      %v2175 = vshrl.u32 %v1972, 16
      %v2177 = vrot.slane %v2175, 7
      %v2178 = vshll.u32 %v1972, 16
      %v2180 = vor.u32 %v2177, %v2178
      %v2181 = vrot.slane %v2177, 4
      %v2183 = vshrl.u32 %v1973, 16
      %v2185 = vrot.slane %v2183, 7
      %v2186 = vshll.u32 %v1973, 16
      %v2188 = vor.u32 %v2185, %v2186
      %v2189 = vsel %vm2020, %v2181, %v2188
      %v2190 = vrot.slane %v2185, 4
      %v2192 = vshrl.u32 %v1974, 16
      %v2194 = vrot.slane %v2192, 7
      %v2195 = vshll.u32 %v1974, 16
      %v2197 = vor.u32 %v2194, %v2195
      %v2198 = vrot.slane %v2194, 4
      %v2200 = vshrl.u32 %v1975, 16
      %v2202 = vrot.slane %v2200, 7
      %v2203 = vshll.u32 %v1975, 16
      %v2205 = vor.u32 %v2202, %v2203
      %v2206 = vsel %vm2020, %v2198, %v2205
      %v2207 = vrot.slane %v2202, 4
      %v2209 = vshrl.u32 %v1976, 16
      %v2211 = vrot.slane %v2209, 7
      %v2212 = vshll.u32 %v1976, 16
      %v2214 = vor.u32 %v2211, %v2212
      %v2215 = vrot.slane %v2211, 4
      %v2217 = vshrl.u32 %v1977, 16
      %v2219 = vrot.slane %v2217, 7
      %v2220 = vshll.u32 %v1977, 16
      %v2222 = vor.u32 %v2219, %v2220
      %v2223 = vsel %vm2020, %v2215, %v2222
      %v2224 = vrot.slane %v2219, 4
      %v2226 = vshrl.u32 %v1978, 16
      %v2228 = vrot.slane %v2226, 7
      %v2229 = vshll.u32 %v1978, 16
      %v2231 = vor.u32 %v2228, %v2229
      %v2232 = vrot.slane %v2228, 4
      %v2234 = vshrl.u32 %v1979, 16
      %v2236 = vrot.slane %v2234, 7
      %v2237 = vshll.u32 %v1979, 16
      %v2239 = vor.u32 %v2236, %v2237
      %v2240 = vsel %vm2020, %v2232, %v2239
      %v2241 = vrot.slane %v2236, 4
      %v2243 = vshrl.u32 %v1980, 16
      %v2245 = vrot.slane %v2243, 7
      %v2246 = vshll.u32 %v1980, 16
      %v2248 = vor.u32 %v2245, %v2246
      %v2249 = vrot.slane %v2245, 4
      %v2251 = vshrl.u32 %v1981, 16
      %v2253 = vrot.slane %v2251, 7
      %v2254 = vshll.u32 %v1981, 16
      %v2256 = vor.u32 %v2253, %v2254
      %v2257 = vsel %vm2020, %v2249, %v2256
      %v2258 = vrot.slane %v2253, 4
      %v2260 = vshrl.u32 %v1982, 16
      %v2262 = vrot.slane %v2260, 7
      %v2263 = vshll.u32 %v1982, 16
      %v2265 = vor.u32 %v2262, %v2263
      %v2266 = vrot.slane %v2262, 4
      %v2268 = vshrl.u32 %v1983, 16
      %v2270 = vrot.slane %v2268, 7
      %v2271 = vshll.u32 %v1983, 16
      %v2273 = vor.u32 %v2270, %v2271
      %v2274 = vsel %vm2020, %v2266, %v2273
      %v2275 = vrot.slane %v2270, 4
      %v2277 = vshrl.u32 %v1984, 16
      %v2279 = vrot.slane %v2277, 7
      %v2280 = vshll.u32 %v1984, 16
      %v2282 = vor.u32 %v2279, %v2280
      %v2283 = vrot.slane %v2279, 4
      %v2285 = vshrl.u32 %v1985, 16
      %v2287 = vrot.slane %v2285, 7
      %v2288 = vshll.u32 %v1985, 16
      %v2290 = vor.u32 %v2287, %v2288
      %v2291 = vsel %vm2020, %v2283, %v2290
      %v2292 = vrot.slane %v2287, 4
      %v2294 = vshrl.u32 %v1986, 16
      %v2296 = vrot.slane %v2294, 7
      %v2297 = vshll.u32 %v1986, 16
      %v2299 = vor.u32 %v2296, %v2297
      %v2300 = vrot.slane %v2296, 4
      %v2302 = vshrl.u32 %v1987, 16
      %v2304 = vrot.slane %v2302, 7
      %v2305 = vshll.u32 %v1987, 16
      %v2307 = vor.u32 %v2304, %v2305
      %v2308 = vsel %vm2020, %v2300, %v2307
      %v2309 = vrot.slane %v2304, 4
      %v2311 = vshrl.u32 %v1988, 16
      %v2313 = vrot.slane %v2311, 7
      %v2314 = vshll.u32 %v1988, 16
      %v2316 = vor.u32 %v2313, %v2314
      %v2317 = vrot.slane %v2313, 4
      %v2319 = vshrl.u32 %v1989, 16
      %v2321 = vrot.slane %v2319, 7
      %v2322 = vshll.u32 %v1989, 16
      %v2324 = vor.u32 %v2321, %v2322
      %v2325 = vsel %vm2020, %v2317, %v2324
      %v2326 = vrot.slane %v2321, 4
      %v2328 = vshrl.u32 %v1990, 16
      %v2330 = vrot.slane %v2328, 7
      %v2331 = vshll.u32 %v1990, 16
      %v2333 = vor.u32 %v2330, %v2331
      %v2334 = vrot.slane %v2330, 4
      %v2336 = vshrl.u32 %v1991, 16
      %v2338 = vrot.slane %v2336, 7
      %v2339 = vshll.u32 %v1991, 16
      %v2341 = vor.u32 %v2338, %v2339
      %v2342 = vsel %vm2020, %v2334, %v2341
      %v2343 = vrot.slane %v2338, 4
      %v2345 = vshrl.u32 %v1992, 16
      %v2347 = vrot.slane %v2345, 7
      %v2348 = vshll.u32 %v1992, 16
      %v2350 = vor.u32 %v2347, %v2348
      %v2351 = vrot.slane %v2347, 4
      %v2353 = vshrl.u32 %v1993, 16
      %v2355 = vrot.slane %v2353, 7
      %v2356 = vshll.u32 %v1993, 16
      %v2358 = vor.u32 %v2355, %v2356
      %v2359 = vsel %vm2020, %v2351, %v2358
      %v2360 = vrot.slane %v2355, 4
      %v2362 = vshrl.u32 %v1994, 16
      %v2364 = vrot.slane %v2362, 7
      %v2365 = vshll.u32 %v1994, 16
      %v2367 = vor.u32 %v2364, %v2365
      %v2368 = vrot.slane %v2364, 4
      %v2370 = vshrl.u32 %v1995, 16
      %v2372 = vrot.slane %v2370, 7
      %v2373 = vshll.u32 %v1995, 16
      %v2375 = vor.u32 %v2372, %v2373
      %v2376 = vsel %vm2020, %v2368, %v2375
      %v2377 = vrot.slane %v2372, 4
      %v2379 = vshrl.u32 %v1996, 16
      %v2381 = vrot.slane %v2379, 7
      %v2382 = vshll.u32 %v1996, 16
      %v2384 = vor.u32 %v2381, %v2382
      %v2385 = vrot.slane %v2381, 4
      %v2387 = vshrl.u32 %v1997, 16
      %v2389 = vrot.slane %v2387, 7
      %v2390 = vshll.u32 %v1997, 16
      %v2392 = vor.u32 %v2389, %v2390
      %v2393 = vsel %vm2020, %v2385, %v2392
      %v2394 = vrot.slane %v2389, 4
      %v2396 = vshrl.u32 %v1998, 16
      %v2398 = vrot.slane %v2396, 7
      %v2399 = vshll.u32 %v1998, 16
      %v2401 = vor.u32 %v2398, %v2399
      %v2402 = vrot.slane %v2398, 4
      %v2404 = vshrl.u32 %v1999, 16
      %v2406 = vrot.slane %v2404, 7
      %v2407 = vshll.u32 %v1999, 16
      %v2409 = vor.u32 %v2406, %v2407
      %v2410 = vsel %vm2020, %v2402, %v2409
      %v2411 = vrot.slane %v2406, 4
      %v2413 = vshrl.u32 %v2000, 16
      %v2415 = vrot.slane %v2413, 7
      %v2416 = vshll.u32 %v2000, 16
      %v2418 = vor.u32 %v2415, %v2416
      %v2419 = vrot.slane %v2415, 4
      %v2421 = vshrl.u32 %v2001, 16
      %v2423 = vrot.slane %v2421, 7
      %v2424 = vshll.u32 %v2001, 16
      %v2426 = vor.u32 %v2423, %v2424
      %v2427 = vsel %vm2020, %v2419, %v2426
      %v2428 = vrot.slane %v2423, 4
      %v2430 = vshrl.u32 %v2002, 16
      %v2432 = vrot.slane %v2430, 7
      %v2433 = vshll.u32 %v2002, 16
      %v2435 = vor.u32 %v2432, %v2433
      %v2436 = vrot.slane %v2432, 4
      %v2438 = vshrl.u32 %v2003, 16
      %v2440 = vrot.slane %v2438, 7
      %v2441 = vshll.u32 %v2003, 16
      %v2443 = vor.u32 %v2440, %v2441
      %v2444 = vsel %vm2020, %v2436, %v2443
      %v2445 = vrot.slane %v2440, 4
      %v2447 = vshrl.u32 %v2004, 16
      %v2449 = vrot.slane %v2447, 7
      %v2450 = vshll.u32 %v2004, 16
      %v2452 = vor.u32 %v2449, %v2450
      %v2453 = vrot.slane %v2449, 4
      %v2455 = vshrl.u32 %v2005, 16
      %v2457 = vrot.slane %v2455, 7
      %v2458 = vshll.u32 %v2005, 16
      %v2460 = vor.u32 %v2457, %v2458
      %v2461 = vsel %vm2020, %v2453, %v2460
      %v2462 = vrot.slane %v2457, 4
      %v2464 = vshrl.u32 %v2006, 16
      %v2466 = vrot.slane %v2464, 7
      %v2467 = vshll.u32 %v2006, 16
      %v2469 = vor.u32 %v2466, %v2467
      %v2470 = vrot.slane %v2466, 4
      %v2472 = vshrl.u32 %v2007, 16
      %v2474 = vrot.slane %v2472, 7
      %v2475 = vshll.u32 %v2007, 16
      %v2477 = vor.u32 %v2474, %v2475
      %v2478 = vsel %vm2020, %v2470, %v2477
      %v2479 = vrot.slane %v2474, 4
      %v2481 = vshrl.u32 %v2008, 16
      %v2483 = vrot.slane %v2481, 7
      %v2484 = vshll.u32 %v2008, 16
      %v2486 = vor.u32 %v2483, %v2484
      %v2487 = vrot.slane %v2483, 4
      %v2489 = vshrl.u32 %v2009, 16
      %v2491 = vrot.slane %v2489, 7
      %v2492 = vshll.u32 %v2009, 16
      %v2494 = vor.u32 %v2491, %v2492
      %v2495 = vsel %vm2020, %v2487, %v2494
      %v2496 = vrot.slane %v2491, 4
      %v2498 = vshrl.u32 %v2010, 16
      %v2500 = vrot.slane %v2498, 7
      %v2501 = vshll.u32 %v2010, 16
      %v2503 = vor.u32 %v2500, %v2501
      %v2504 = vrot.slane %v2500, 4
      %v2506 = vshrl.u32 %v2011, 16
      %v2508 = vrot.slane %v2506, 7
      %v2509 = vshll.u32 %v2011, 16
      %v2511 = vor.u32 %v2508, %v2509
      %v2512 = vsel %vm2020, %v2504, %v2511
      %v2513 = vrot.slane %v2508, 4
      %v2515 = vshrl.u32 %v2012, 16
      %v2517 = vrot.slane %v2515, 7
      %v2518 = vshll.u32 %v2012, 16
      %v2520 = vor.u32 %v2517, %v2518
      %v2521 = vrot.slane %v2517, 4
      %v2523 = vshrl.u32 %v2013, 16
      %v2525 = vrot.slane %v2523, 7
      %v2526 = vshll.u32 %v2013, 16
      %v2528 = vor.u32 %v2525, %v2526
      %v2529 = vsel %vm2020, %v2521, %v2528
      %v2530 = vrot.slane %v2525, 4
      %v2532 = vshrl.u32 %v2014, 16
      %v2534 = vrot.slane %v2532, 7
      %v2535 = vshll.u32 %v2014, 16
      %v2537 = vor.u32 %v2534, %v2535
      %v2538 = vrot.slane %v2534, 4
      %v2540 = vshrl.u32 %v2015, 16
      %v2542 = vrot.slane %v2540, 7
      %v2543 = vshll.u32 %v2015, 16
      %v2545 = vor.u32 %v2542, %v2543
      %v2546 = vsel %vm2020, %v2538, %v2545
      %v2547 = vrot.slane %v2542, 4
      %v2549 = vshrl.u32 %v2016, 16
      %v2551 = vrot.slane %v2549, 7
      %v2552 = vshll.u32 %v2016, 16
      %v2554 = vor.u32 %v2551, %v2552
      %v2555 = vrot.slane %v2551, 4
      %v2557 = vshrl.u32 %v2017, 16
      %v2559 = vrot.slane %v2557, 7
      %v2560 = vshll.u32 %v2017, 16
      %v2562 = vor.u32 %v2559, %v2560
      %v2563 = vsel %vm2020, %v2555, %v2562
      %v2564 = vrot.slane %v2559, 4
      %s2661 = scalar_lea.vmem [#allocation2], 12
      %vm2662 = vcmask 27648
      %vm2663 = vsmask.f32 7938
      %vm2664 = vmand %vm2662, %vm2663
      %v2665 = vld [vmem:[%s2661] sm:$0xf]
      %v2666 = vsel %vm2664, %v2027, %v2665
      %2667 = vst [vmem:[%s2661] sm:$0xf] %v2666
      %vm2668 = vcmask 27648
      %2669 = vst.msk [vmem:[%s2661 + $0x4] sm:$0xf] %vm2668, %v2036
      %vm2670 = vcmask 24576
      %vm2671 = vmand %vm2670, %vm2018
      %v2672 = vld [vmem:[%s2661 + $0x8] sm:$0x1]
      %v2673 = vsel %vm2671, %v2037, %v2672
      %2674 = vst [vmem:[%s2661 + $0x8] sm:$0x1] %v2673
      %v2675 = vld [vmem:[%s2661 + $0xc] sm:$0xf]
      %v2676 = vsel %vm2664, %v2044, %v2675
      %2677 = vst [vmem:[%s2661 + $0xc] sm:$0xf] %v2676
      %2678 = vst.msk [vmem:[%s2661 + $0x10] sm:$0xf] %vm2668, %v2053
      %v2679 = vld [vmem:[%s2661 + $0x14] sm:$0x1]
      %v2680 = vsel %vm2671, %v2054, %v2679
      %2681 = vst [vmem:[%s2661 + $0x14] sm:$0x1] %v2680
      %v2682 = vld [vmem:[%s2661 + $0x18] sm:$0xf]
      %v2683 = vsel %vm2664, %v2061, %v2682
      %2684 = vst [vmem:[%s2661 + $0x18] sm:$0xf] %v2683
      %2685 = vst.msk [vmem:[%s2661 + $0x1c] sm:$0xf] %vm2668, %v2070
      %v2686 = vld [vmem:[%s2661 + $0x20] sm:$0x1]
      %v2687 = vsel %vm2671, %v2071, %v2686
      %2688 = vst [vmem:[%s2661 + $0x20] sm:$0x1] %v2687
      %v2689 = vld [vmem:[%s2661 + $0x24] sm:$0xf]
      %v2690 = vsel %vm2664, %v2078, %v2689
      %2691 = vst [vmem:[%s2661 + $0x24] sm:$0xf] %v2690
      %2692 = vst.msk [vmem:[%s2661 + $0x28] sm:$0xf] %vm2668, %v2087
      %v2693 = vld [vmem:[%s2661 + $0x2c] sm:$0x1]
      %v2694 = vsel %vm2671, %v2088, %v2693
      %2695 = vst [vmem:[%s2661 + $0x2c] sm:$0x1] %v2694
      %v2696 = vld [vmem:[%s2661 + $0x30] sm:$0xf]
      %v2697 = vsel %vm2664, %v2095, %v2696
      %2698 = vst [vmem:[%s2661 + $0x30] sm:$0xf] %v2697
      %2699 = vst.msk [vmem:[%s2661 + $0x34] sm:$0xf] %vm2668, %v2104
      %v2700 = vld [vmem:[%s2661 + $0x38] sm:$0x1]
      %v2701 = vsel %vm2671, %v2105, %v2700
      %2702 = vst [vmem:[%s2661 + $0x38] sm:$0x1] %v2701
      %v2703 = vld [vmem:[%s2661 + $0x3c] sm:$0xf]
      %v2704 = vsel %vm2664, %v2112, %v2703
      %2705 = vst [vmem:[%s2661 + $0x3c] sm:$0xf] %v2704
      %2706 = vst.msk [vmem:[%s2661 + $0x40] sm:$0xf] %vm2668, %v2121
      %v2707 = vld [vmem:[%s2661 + $0x44] sm:$0x1]
      %v2708 = vsel %vm2671, %v2122, %v2707
      %2709 = vst [vmem:[%s2661 + $0x44] sm:$0x1] %v2708
      %v2710 = vld [vmem:[%s2661 + $0x48] sm:$0xf]
      %v2711 = vsel %vm2664, %v2129, %v2710
      %2712 = vst [vmem:[%s2661 + $0x48] sm:$0xf] %v2711
      %2713 = vst.msk [vmem:[%s2661 + $0x4c] sm:$0xf] %vm2668, %v2138
      %v2714 = vld [vmem:[%s2661 + $0x50] sm:$0x1]
      %v2715 = vsel %vm2671, %v2139, %v2714
      %2716 = vst [vmem:[%s2661 + $0x50] sm:$0x1] %v2715
      %v2717 = vld [vmem:[%s2661 + $0x54] sm:$0xf]
      %v2718 = vsel %vm2664, %v2146, %v2717
      %2719 = vst [vmem:[%s2661 + $0x54] sm:$0xf] %v2718
      %2720 = vst.msk [vmem:[%s2661 + $0x58] sm:$0xf] %vm2668, %v2155
      %v2721 = vld [vmem:[%s2661 + $0x5c] sm:$0x1]
      %v2722 = vsel %vm2671, %v2156, %v2721
      %2723 = vst [vmem:[%s2661 + $0x5c] sm:$0x1] %v2722
      %v2724 = vld [vmem:[%s2661 + $0x60] sm:$0xf]
      %v2725 = vsel %vm2664, %v2163, %v2724
      %2726 = vst [vmem:[%s2661 + $0x60] sm:$0xf] %v2725
      %2727 = vst.msk [vmem:[%s2661 + $0x64] sm:$0xf] %vm2668, %v2172
      %v2728 = vld [vmem:[%s2661 + $0x68] sm:$0x1]
      %v2729 = vsel %vm2671, %v2173, %v2728
      %2730 = vst [vmem:[%s2661 + $0x68] sm:$0x1] %v2729
      %v2731 = vld [vmem:[%s2661 + $0x6c] sm:$0xf]
      %v2732 = vsel %vm2664, %v2180, %v2731
      %2733 = vst [vmem:[%s2661 + $0x6c] sm:$0xf] %v2732
      %2734 = vst.msk [vmem:[%s2661 + $0x70] sm:$0xf] %vm2668, %v2189
      %v2735 = vld [vmem:[%s2661 + $0x74] sm:$0x1]
      %v2736 = vsel %vm2671, %v2190, %v2735
      %2737 = vst [vmem:[%s2661 + $0x74] sm:$0x1] %v2736
      %v2738 = vld [vmem:[%s2661 + $0x78] sm:$0xf]
      %v2739 = vsel %vm2664, %v2197, %v2738
      %2740 = vst [vmem:[%s2661 + $0x78] sm:$0xf] %v2739
      %2741 = vst.msk [vmem:[%s2661 + $0x7c] sm:$0xf] %vm2668, %v2206
      %v2742 = vld [vmem:[%s2661 + $0x80] sm:$0x1]
      %v2743 = vsel %vm2671, %v2207, %v2742
      %2744 = vst [vmem:[%s2661 + $0x80] sm:$0x1] %v2743
      %v2745 = vld [vmem:[%s2661 + $0x84] sm:$0xf]
      %v2746 = vsel %vm2664, %v2214, %v2745
      %2747 = vst [vmem:[%s2661 + $0x84] sm:$0xf] %v2746
      %2748 = vst.msk [vmem:[%s2661 + $0x88] sm:$0xf] %vm2668, %v2223
      %v2749 = vld [vmem:[%s2661 + $0x8c] sm:$0x1]
      %v2750 = vsel %vm2671, %v2224, %v2749
      %2751 = vst [vmem:[%s2661 + $0x8c] sm:$0x1] %v2750
      %v2752 = vld [vmem:[%s2661 + $0x90] sm:$0xf]
      %v2753 = vsel %vm2664, %v2231, %v2752
      %2754 = vst [vmem:[%s2661 + $0x90] sm:$0xf] %v2753
      %2755 = vst.msk [vmem:[%s2661 + $0x94] sm:$0xf] %vm2668, %v2240
      %v2756 = vld [vmem:[%s2661 + $0x98] sm:$0x1]
      %v2757 = vsel %vm2671, %v2241, %v2756
      %2758 = vst [vmem:[%s2661 + $0x98] sm:$0x1] %v2757
      %v2759 = vld [vmem:[%s2661 + $0x9c] sm:$0xf]
      %v2760 = vsel %vm2664, %v2248, %v2759
      %2761 = vst [vmem:[%s2661 + $0x9c] sm:$0xf] %v2760
      %2762 = vst.msk [vmem:[%s2661 + $0xa0] sm:$0xf] %vm2668, %v2257
      %v2763 = vld [vmem:[%s2661 + $0xa4] sm:$0x1]
      %v2764 = vsel %vm2671, %v2258, %v2763
      %2765 = vst [vmem:[%s2661 + $0xa4] sm:$0x1] %v2764
      %v2766 = vld [vmem:[%s2661 + $0xa8] sm:$0xf]
      %v2767 = vsel %vm2664, %v2265, %v2766
      %2768 = vst [vmem:[%s2661 + $0xa8] sm:$0xf] %v2767
      %2769 = vst.msk [vmem:[%s2661 + $0xac] sm:$0xf] %vm2668, %v2274
      %v2770 = vld [vmem:[%s2661 + $0xb0] sm:$0x1]
      %v2771 = vsel %vm2671, %v2275, %v2770
      %2772 = vst [vmem:[%s2661 + $0xb0] sm:$0x1] %v2771
      %v2773 = vld [vmem:[%s2661 + $0xb4] sm:$0xf]
      %v2774 = vsel %vm2664, %v2282, %v2773
      %2775 = vst [vmem:[%s2661 + $0xb4] sm:$0xf] %v2774
      %2776 = vst.msk [vmem:[%s2661 + $0xb8] sm:$0xf] %vm2668, %v2291
      %v2777 = vld [vmem:[%s2661 + $0xbc] sm:$0x1]
      %v2778 = vsel %vm2671, %v2292, %v2777
      %2779 = vst [vmem:[%s2661 + $0xbc] sm:$0x1] %v2778
      %v2780 = vld [vmem:[%s2661 + $0xd8] sm:$0xf]
      %v2781 = vsel %vm2664, %v2299, %v2780
      %2782 = vst [vmem:[%s2661 + $0xd8] sm:$0xf] %v2781
      %2783 = vst.msk [vmem:[%s2661 + $0xdc] sm:$0xf] %vm2668, %v2308
      %v2784 = vld [vmem:[%s2661 + $0xe0] sm:$0x1]
      %v2785 = vsel %vm2671, %v2309, %v2784
      %2786 = vst [vmem:[%s2661 + $0xe0] sm:$0x1] %v2785
      %v2787 = vld [vmem:[%s2661 + $0xe4] sm:$0xf]
      %v2788 = vsel %vm2664, %v2316, %v2787
      %2789 = vst [vmem:[%s2661 + $0xe4] sm:$0xf] %v2788
      %2790 = vst.msk [vmem:[%s2661 + $0xe8] sm:$0xf] %vm2668, %v2325
      %v2791 = vld [vmem:[%s2661 + $0xec] sm:$0x1]
      %v2792 = vsel %vm2671, %v2326, %v2791
      %2793 = vst [vmem:[%s2661 + $0xec] sm:$0x1] %v2792
      %v2794 = vld [vmem:[%s2661 + $0xf0] sm:$0xf]
      %v2795 = vsel %vm2664, %v2333, %v2794
      %2796 = vst [vmem:[%s2661 + $0xf0] sm:$0xf] %v2795
      %2797 = vst.msk [vmem:[%s2661 + $0xf4] sm:$0xf] %vm2668, %v2342
      %v2798 = vld [vmem:[%s2661 + $0xf8] sm:$0x1]
      %v2799 = vsel %vm2671, %v2343, %v2798
      %2800 = vst [vmem:[%s2661 + $0xf8] sm:$0x1] %v2799
      %v2801 = vld [vmem:[%s2661 + $0xfc] sm:$0xf]
      %v2802 = vsel %vm2664, %v2350, %v2801
      %2803 = vst [vmem:[%s2661 + $0xfc] sm:$0xf] %v2802
      %2804 = vst.msk [vmem:[%s2661 + $0x100] sm:$0xf] %vm2668, %v2359
      %v2805 = vld [vmem:[%s2661 + $0x104] sm:$0x1]
      %v2806 = vsel %vm2671, %v2360, %v2805
      %2807 = vst [vmem:[%s2661 + $0x104] sm:$0x1] %v2806
      %v2808 = vld [vmem:[%s2661 + $0x108] sm:$0xf]
      %v2809 = vsel %vm2664, %v2367, %v2808
      %2810 = vst [vmem:[%s2661 + $0x108] sm:$0xf] %v2809
      %2811 = vst.msk [vmem:[%s2661 + $0x10c] sm:$0xf] %vm2668, %v2376
      %v2812 = vld [vmem:[%s2661 + $0x110] sm:$0x1]
      %v2813 = vsel %vm2671, %v2377, %v2812
      %2814 = vst [vmem:[%s2661 + $0x110] sm:$0x1] %v2813
      %v2815 = vld [vmem:[%s2661 + $0x114] sm:$0xf]
      %v2816 = vsel %vm2664, %v2384, %v2815
      %2817 = vst [vmem:[%s2661 + $0x114] sm:$0xf] %v2816
      %2818 = vst.msk [vmem:[%s2661 + $0x118] sm:$0xf] %vm2668, %v2393
      %v2819 = vld [vmem:[%s2661 + $0x11c] sm:$0x1]
      %v2820 = vsel %vm2671, %v2394, %v2819
      %2821 = vst [vmem:[%s2661 + $0x11c] sm:$0x1] %v2820
      %v2822 = vld [vmem:[%s2661 + $0x120] sm:$0xf]
      %v2823 = vsel %vm2664, %v2401, %v2822
      %2824 = vst [vmem:[%s2661 + $0x120] sm:$0xf] %v2823
      %2825 = vst.msk [vmem:[%s2661 + $0x124] sm:$0xf] %vm2668, %v2410
      %v2826 = vld [vmem:[%s2661 + $0x128] sm:$0x1]
      %v2827 = vsel %vm2671, %v2411, %v2826
      %2828 = vst [vmem:[%s2661 + $0x128] sm:$0x1] %v2827
      %v2829 = vld [vmem:[%s2661 + $0x12c] sm:$0xf]
      %v2830 = vsel %vm2664, %v2418, %v2829
      %2831 = vst [vmem:[%s2661 + $0x12c] sm:$0xf] %v2830
      %2832 = vst.msk [vmem:[%s2661 + $0x130] sm:$0xf] %vm2668, %v2427
      %v2833 = vld [vmem:[%s2661 + $0x134] sm:$0x1]
      %v2834 = vsel %vm2671, %v2428, %v2833
      %2835 = vst [vmem:[%s2661 + $0x134] sm:$0x1] %v2834
      %v2836 = vld [vmem:[%s2661 + $0x138] sm:$0xf]
      %v2837 = vsel %vm2664, %v2435, %v2836
      %2838 = vst [vmem:[%s2661 + $0x138] sm:$0xf] %v2837
      %2839 = vst.msk [vmem:[%s2661 + $0x13c] sm:$0xf] %vm2668, %v2444
      %v2840 = vld [vmem:[%s2661 + $0x140] sm:$0x1]
      %v2841 = vsel %vm2671, %v2445, %v2840
      %2842 = vst [vmem:[%s2661 + $0x140] sm:$0x1] %v2841
      %v2843 = vld [vmem:[%s2661 + $0x144] sm:$0xf]
      %v2844 = vsel %vm2664, %v2452, %v2843
      %2845 = vst [vmem:[%s2661 + $0x144] sm:$0xf] %v2844
      %2846 = vst.msk [vmem:[%s2661 + $0x148] sm:$0xf] %vm2668, %v2461
      %v2847 = vld [vmem:[%s2661 + $0x14c] sm:$0x1]
      %v2848 = vsel %vm2671, %v2462, %v2847
      %2849 = vst [vmem:[%s2661 + $0x14c] sm:$0x1] %v2848
      %v2850 = vld [vmem:[%s2661 + $0x150] sm:$0xf]
      %v2851 = vsel %vm2664, %v2469, %v2850
      %2852 = vst [vmem:[%s2661 + $0x150] sm:$0xf] %v2851
      %2853 = vst.msk [vmem:[%s2661 + $0x154] sm:$0xf] %vm2668, %v2478
      %v2854 = vld [vmem:[%s2661 + $0x158] sm:$0x1]
      %v2855 = vsel %vm2671, %v2479, %v2854
      %2856 = vst [vmem:[%s2661 + $0x158] sm:$0x1] %v2855
      %v2857 = vld [vmem:[%s2661 + $0x15c] sm:$0xf]
      %v2858 = vsel %vm2664, %v2486, %v2857
      %2859 = vst [vmem:[%s2661 + $0x15c] sm:$0xf] %v2858
      %2860 = vst.msk [vmem:[%s2661 + $0x160] sm:$0xf] %vm2668, %v2495
      %v2861 = vld [vmem:[%s2661 + $0x164] sm:$0x1]
      %v2862 = vsel %vm2671, %v2496, %v2861
      %2863 = vst [vmem:[%s2661 + $0x164] sm:$0x1] %v2862
      %v2864 = vld [vmem:[%s2661 + $0x168] sm:$0xf]
      %v2865 = vsel %vm2664, %v2503, %v2864
      %2866 = vst [vmem:[%s2661 + $0x168] sm:$0xf] %v2865
      %2867 = vst.msk [vmem:[%s2661 + $0x16c] sm:$0xf] %vm2668, %v2512
      %v2868 = vld [vmem:[%s2661 + $0x170] sm:$0x1]
      %v2869 = vsel %vm2671, %v2513, %v2868
      %2870 = vst [vmem:[%s2661 + $0x170] sm:$0x1] %v2869
      %v2871 = vld [vmem:[%s2661 + $0x174] sm:$0xf]
      %v2872 = vsel %vm2664, %v2520, %v2871
      %2873 = vst [vmem:[%s2661 + $0x174] sm:$0xf] %v2872
      %2874 = vst.msk [vmem:[%s2661 + $0x178] sm:$0xf] %vm2668, %v2529
      %v2875 = vld [vmem:[%s2661 + $0x17c] sm:$0x1]
      %v2876 = vsel %vm2671, %v2530, %v2875
      %2877 = vst [vmem:[%s2661 + $0x17c] sm:$0x1] %v2876
      %v2878 = vld [vmem:[%s2661 + $0x180] sm:$0xf]
      %v2879 = vsel %vm2664, %v2537, %v2878
      %2880 = vst [vmem:[%s2661 + $0x180] sm:$0xf] %v2879
      %2881 = vst.msk [vmem:[%s2661 + $0x184] sm:$0xf] %vm2668, %v2546
      %v2882 = vld [vmem:[%s2661 + $0x188] sm:$0x1]
      %v2883 = vsel %vm2671, %v2547, %v2882
      %2884 = vst [vmem:[%s2661 + $0x188] sm:$0x1] %v2883
      %v2885 = vld [vmem:[%s2661 + $0x18c] sm:$0xf]
      %v2886 = vsel %vm2664, %v2554, %v2885
      %2887 = vst [vmem:[%s2661 + $0x18c] sm:$0xf] %v2886
      %2888 = vst.msk [vmem:[%s2661 + $0x190] sm:$0xf] %vm2668, %v2563
      %v2889 = vld [vmem:[%s2661 + $0x194] sm:$0x1]
      %v2890 = vsel %vm2671, %v2564, %v2889
      %2891 = vst [vmem:[%s2661 + $0x194] sm:$0x1] %v2890
      %v2892 = vld [vmem:[#allocation2] sm:$0xf]
      %v2893 = vld [vmem:[#allocation2 + $0x4] sm:$0xf]
      %v2894 = vld [vmem:[#allocation2 + $0x8] sm:$0x1]
      %v2895 = vld [vmem:[#allocation2 + $0xc] sm:$0xf]
      %v2896 = vld [vmem:[#allocation2 + $0x10] sm:$0xf]
      %v2897 = vld [vmem:[#allocation2 + $0x14] sm:$0x1]
      %v2898 = vld [vmem:[#allocation2 + $0x18] sm:$0xf]
      %v2899 = vld [vmem:[#allocation2 + $0x1c] sm:$0xf]
      %v2900 = vld [vmem:[#allocation2 + $0x20] sm:$0x1]
      %v2901 = vld [vmem:[#allocation2 + $0x24] sm:$0xf]
      %v2902 = vld [vmem:[#allocation2 + $0x28] sm:$0xf]
      %v2903 = vld [vmem:[#allocation2 + $0x2c] sm:$0x1]
      %v2904 = vld [vmem:[#allocation2 + $0x30] sm:$0xf]
      %v2905 = vld [vmem:[#allocation2 + $0x34] sm:$0xf]
      %v2906 = vld [vmem:[#allocation2 + $0x38] sm:$0x1]
      %v2907 = vld [vmem:[#allocation2 + $0x3c] sm:$0xf]
      %v2908 = vld [vmem:[#allocation2 + $0x40] sm:$0xf]
      %v2909 = vld [vmem:[#allocation2 + $0x44] sm:$0x1]
      %v2910 = vld [vmem:[#allocation2 + $0x48] sm:$0xf]
      %v2911 = vld [vmem:[#allocation2 + $0x4c] sm:$0xf]
      %v2912 = vld [vmem:[#allocation2 + $0x50] sm:$0x1]
      %v2913 = vld [vmem:[#allocation2 + $0x54] sm:$0xf]
      %v2914 = vld [vmem:[#allocation2 + $0x58] sm:$0xf]
      %v2915 = vld [vmem:[#allocation2 + $0x5c] sm:$0x1]
      %v2916 = vld [vmem:[#allocation2 + $0x60] sm:$0xf]
      %v2917 = vld [vmem:[#allocation2 + $0x64] sm:$0xf]
      %v2918 = vld [vmem:[#allocation2 + $0x68] sm:$0x1]
      %v2919 = vld [vmem:[#allocation2 + $0x6c] sm:$0xf]
      %v2920 = vld [vmem:[#allocation2 + $0x70] sm:$0xf]
      %v2921 = vld [vmem:[#allocation2 + $0x74] sm:$0x1]
      %v2922 = vld [vmem:[#allocation2 + $0x78] sm:$0xf]
      %v2923 = vld [vmem:[#allocation2 + $0x7c] sm:$0xf]
      %v2924 = vld [vmem:[#allocation2 + $0x80] sm:$0x1]
      %v2925 = vld [vmem:[#allocation2 + $0x84] sm:$0xf]
      %v2926 = vld [vmem:[#allocation2 + $0x88] sm:$0xf]
      %v2927 = vld [vmem:[#allocation2 + $0x8c] sm:$0x1]
      %v2928 = vld [vmem:[#allocation2 + $0x90] sm:$0xf]
      %v2929 = vld [vmem:[#allocation2 + $0x94] sm:$0xf]
      %v2930 = vld [vmem:[#allocation2 + $0x98] sm:$0x1]
      %v2931 = vld [vmem:[#allocation2 + $0x9c] sm:$0xf]
      %v2932 = vld [vmem:[#allocation2 + $0xa0] sm:$0xf]
      %v2933 = vld [vmem:[#allocation2 + $0xa4] sm:$0x1]
      %v2934 = vld [vmem:[#allocation2 + $0xa8] sm:$0xf]
      %v2935 = vld [vmem:[#allocation2 + $0xac] sm:$0xf]
      %v2936 = vld [vmem:[#allocation2 + $0xb0] sm:$0x1]
      %v2937 = vld [vmem:[#allocation2 + $0xb4] sm:$0xf]
      %v2938 = vld [vmem:[#allocation2 + $0xb8] sm:$0xf]
      %v2939 = vld [vmem:[#allocation2 + $0xbc] sm:$0x1]
      %v2940 = vld [vmem:[#allocation2 + $0xd8] sm:$0xf]
      %v2941 = vld [vmem:[#allocation2 + $0xdc] sm:$0xf]
      %v2942 = vld [vmem:[#allocation2 + $0xe0] sm:$0x1]
      %v2943 = vld [vmem:[#allocation2 + $0xe4] sm:$0xf]
      %v2944 = vld [vmem:[#allocation2 + $0xe8] sm:$0xf]
      %v2945 = vld [vmem:[#allocation2 + $0xec] sm:$0x1]
      %v2946 = vld [vmem:[#allocation2 + $0xf0] sm:$0xf]
      %v2947 = vld [vmem:[#allocation2 + $0xf4] sm:$0xf]
      %v2948 = vld [vmem:[#allocation2 + $0xf8] sm:$0x1]
      %v2949 = vld [vmem:[#allocation2 + $0xfc] sm:$0xf]
      %v2950 = vld [vmem:[#allocation2 + $0x100] sm:$0xf]
      %v2951 = vld [vmem:[#allocation2 + $0x104] sm:$0x1]
      %v2952 = vld [vmem:[#allocation2 + $0x108] sm:$0xf]
      %v2953 = vld [vmem:[#allocation2 + $0x10c] sm:$0xf]
      %v2954 = vld [vmem:[#allocation2 + $0x110] sm:$0x1]
      %v2955 = vld [vmem:[#allocation2 + $0x114] sm:$0xf]
      %v2956 = vld [vmem:[#allocation2 + $0x118] sm:$0xf]
      %v2957 = vld [vmem:[#allocation2 + $0x11c] sm:$0x1]
      %v2958 = vld [vmem:[#allocation2 + $0x120] sm:$0xf]
      %v2959 = vld [vmem:[#allocation2 + $0x124] sm:$0xf]
      %v2960 = vld [vmem:[#allocation2 + $0x128] sm:$0x1]
      %v2961 = vld [vmem:[#allocation2 + $0x12c] sm:$0xf]
      %v2962 = vld [vmem:[#allocation2 + $0x130] sm:$0xf]
      %v2963 = vld [vmem:[#allocation2 + $0x134] sm:$0x1]
      %v2964 = vld [vmem:[#allocation2 + $0x138] sm:$0xf]
      %v2965 = vld [vmem:[#allocation2 + $0x13c] sm:$0xf]
      %v2966 = vld [vmem:[#allocation2 + $0x140] sm:$0x1]
      %v2967 = vld [vmem:[#allocation2 + $0x144] sm:$0xf]
      %v2968 = vld [vmem:[#allocation2 + $0x148] sm:$0xf]
      %v2969 = vld [vmem:[#allocation2 + $0x14c] sm:$0x1]
      %v2970 = vld [vmem:[#allocation2 + $0x150] sm:$0xf]
      %v2971 = vld [vmem:[#allocation2 + $0x154] sm:$0xf]
      %v2972 = vld [vmem:[#allocation2 + $0x158] sm:$0x1]
      %v2973 = vld [vmem:[#allocation2 + $0x15c] sm:$0xf]
      %v2974 = vld [vmem:[#allocation2 + $0x160] sm:$0xf]
      %v2975 = vld [vmem:[#allocation2 + $0x164] sm:$0x1]
      %v2976 = vld [vmem:[#allocation2 + $0x168] sm:$0xf]
      %v2977 = vld [vmem:[#allocation2 + $0x16c] sm:$0xf]
      %v2978 = vld [vmem:[#allocation2 + $0x170] sm:$0x1]
      %v2979 = vld [vmem:[#allocation2 + $0x174] sm:$0xf]
      %v2980 = vld [vmem:[#allocation2 + $0x178] sm:$0xf]
      %v2981 = vld [vmem:[#allocation2 + $0x17c] sm:$0x1]
      %v2982 = vld [vmem:[#allocation2 + $0x180] sm:$0xf]
      %v2983 = vld [vmem:[#allocation2 + $0x184] sm:$0xf]
      %v2984 = vld [vmem:[#allocation2 + $0x188] sm:$0x1]
      %v2985 = vld [vmem:[#allocation2 + $0x18c] sm:$0xf]
      %v2986 = vld [vmem:[#allocation2 + $0x190] sm:$0xf]
      %v2987 = vld [vmem:[#allocation2 + $0x194] sm:$0x1]
      %v3052 = vunpack.c.l.b16 %v2892
      %v3053 = vunpack.c.l.b16 %v2893
      %v3054 = vunpack.c.l.b16 %v2895
      %v3055 = vunpack.c.l.b16 %v2896
      %v3056 = vunpack.c.l.b16 %v2898
      %v3057 = vunpack.c.l.b16 %v2899
      %v3058 = vunpack.c.l.b16 %v2901
      %v3059 = vunpack.c.l.b16 %v2902
      %v3060 = vunpack.c.l.b16 %v2904
      %v3061 = vunpack.c.l.b16 %v2905
      %v3062 = vunpack.c.l.b16 %v2907
      %v3063 = vunpack.c.l.b16 %v2908
      %v3064 = vunpack.c.l.b16 %v2910
      %v3065 = vunpack.c.l.b16 %v2911
      %v3066 = vunpack.c.l.b16 %v2913
      %v3067 = vunpack.c.l.b16 %v2914
      %v3068 = vunpack.c.l.b16 %v2916
      %v3069 = vunpack.c.l.b16 %v2917
      %v3070 = vunpack.c.l.b16 %v2919
      %v3071 = vunpack.c.l.b16 %v2920
      %v3072 = vunpack.c.l.b16 %v2922
      %v3073 = vunpack.c.l.b16 %v2923
      %v3074 = vunpack.c.l.b16 %v2925
      %v3075 = vunpack.c.l.b16 %v2926
      %v3076 = vunpack.c.l.b16 %v2928
      %v3077 = vunpack.c.l.b16 %v2929
      %v3078 = vunpack.c.l.b16 %v2931
      %v3079 = vunpack.c.l.b16 %v2932
      %v3080 = vunpack.c.l.b16 %v2934
      %v3081 = vunpack.c.l.b16 %v2935
      %v3082 = vunpack.c.l.b16 %v2937
      %v3083 = vunpack.c.l.b16 %v2938
      %v3084 = vunpack.c.l.b16 %v2940
      %v3085 = vunpack.c.l.b16 %v2941
      %v3086 = vunpack.c.l.b16 %v2943
      %v3087 = vunpack.c.l.b16 %v2944
      %v3088 = vunpack.c.l.b16 %v2946
      %v3089 = vunpack.c.l.b16 %v2947
      %v3090 = vunpack.c.l.b16 %v2949
      %v3091 = vunpack.c.l.b16 %v2950
      %v3092 = vunpack.c.l.b16 %v2952
      %v3093 = vunpack.c.l.b16 %v2953
      %v3094 = vunpack.c.l.b16 %v2955
      %v3095 = vunpack.c.l.b16 %v2956
      %v3096 = vunpack.c.l.b16 %v2958
      %v3097 = vunpack.c.l.b16 %v2959
      %v3098 = vunpack.c.l.b16 %v2961
      %v3099 = vunpack.c.l.b16 %v2962
      %v3100 = vunpack.c.l.b16 %v2964
      %v3101 = vunpack.c.l.b16 %v2965
      %v3102 = vunpack.c.l.b16 %v2967
      %v3103 = vunpack.c.l.b16 %v2968
      %v3104 = vunpack.c.l.b16 %v2970
      %v3105 = vunpack.c.l.b16 %v2971
      %v3106 = vunpack.c.l.b16 %v2973
      %v3107 = vunpack.c.l.b16 %v2974
      %v3108 = vunpack.c.l.b16 %v2976
      %v3109 = vunpack.c.l.b16 %v2977
      %v3110 = vunpack.c.l.b16 %v2979
      %v3111 = vunpack.c.l.b16 %v2980
      %v3112 = vunpack.c.l.b16 %v2982
      %v3113 = vunpack.c.l.b16 %v2983
      %v3114 = vunpack.c.l.b16 %v2985
      %v3115 = vunpack.c.l.b16 %v2986
      %v3116 = vpack.c.b16 %v3053, %v3052
      %v3117 = vpack.c.b16 %v3055, %v3054
      %v3118 = vpack.c.b16 %v3057, %v3056
      %v3119 = vpack.c.b16 %v3059, %v3058
      %v3120 = vpack.c.b16 %v3061, %v3060
      %v3121 = vpack.c.b16 %v3063, %v3062
      %v3122 = vpack.c.b16 %v3065, %v3064
      %v3123 = vpack.c.b16 %v3067, %v3066
      %v3124 = vpack.c.b16 %v3069, %v3068
      %v3125 = vpack.c.b16 %v3071, %v3070
      %v3126 = vpack.c.b16 %v3073, %v3072
      %v3127 = vpack.c.b16 %v3075, %v3074
      %v3128 = vpack.c.b16 %v3077, %v3076
      %v3129 = vpack.c.b16 %v3079, %v3078
      %v3130 = vpack.c.b16 %v3081, %v3080
      %v3131 = vpack.c.b16 %v3083, %v3082
      %v3132 = vpack.c.b16 %v3085, %v3084
      %v3133 = vpack.c.b16 %v3087, %v3086
      %v3134 = vpack.c.b16 %v3089, %v3088
      %v3135 = vpack.c.b16 %v3091, %v3090
      %v3136 = vpack.c.b16 %v3093, %v3092
      %v3137 = vpack.c.b16 %v3095, %v3094
      %v3138 = vpack.c.b16 %v3097, %v3096
      %v3139 = vpack.c.b16 %v3099, %v3098
      %v3140 = vpack.c.b16 %v3101, %v3100
      %v3141 = vpack.c.b16 %v3103, %v3102
      %v3142 = vpack.c.b16 %v3105, %v3104
      %v3143 = vpack.c.b16 %v3107, %v3106
      %v3144 = vpack.c.b16 %v3109, %v3108
      %v3145 = vpack.c.b16 %v3111, %v3110
      %v3146 = vpack.c.b16 %v3113, %v3112
      %v3147 = vpack.c.b16 %v3115, %v3114
      %v3180 = vunpack.c.l.b16 %v2894
      %v3181 = vunpack.c.l.b16 %v2897
      %v3182 = vunpack.c.l.b16 %v2900
      %v3183 = vunpack.c.l.b16 %v2903
      %v3184 = vunpack.c.l.b16 %v2906
      %v3185 = vunpack.c.l.b16 %v2909
      %v3186 = vunpack.c.l.b16 %v2912
      %v3187 = vunpack.c.l.b16 %v2915
      %v3188 = vunpack.c.l.b16 %v2918
      %v3189 = vunpack.c.l.b16 %v2921
      %v3190 = vunpack.c.l.b16 %v2924
      %v3191 = vunpack.c.l.b16 %v2927
      %v3192 = vunpack.c.l.b16 %v2930
      %v3193 = vunpack.c.l.b16 %v2933
      %v3194 = vunpack.c.l.b16 %v2936
      %v3195 = vunpack.c.l.b16 %v2939
      %v3196 = vunpack.c.l.b16 %v2942
      %v3197 = vunpack.c.l.b16 %v2945
      %v3198 = vunpack.c.l.b16 %v2948
      %v3199 = vunpack.c.l.b16 %v2951
      %v3200 = vunpack.c.l.b16 %v2954
      %v3201 = vunpack.c.l.b16 %v2957
      %v3202 = vunpack.c.l.b16 %v2960
      %v3203 = vunpack.c.l.b16 %v2963
      %v3204 = vunpack.c.l.b16 %v2966
      %v3205 = vunpack.c.l.b16 %v2969
      %v3206 = vunpack.c.l.b16 %v2972
      %v3207 = vunpack.c.l.b16 %v2975
      %v3208 = vunpack.c.l.b16 %v2978
      %v3209 = vunpack.c.l.b16 %v2981
      %v3210 = vunpack.c.l.b16 %v2984
      %v3211 = vunpack.c.l.b16 %v2987
      %v3212 = vpack.c.b16 %v3180, %v3180
      %v3213 = vpack.c.b16 %v3181, %v3181
      %v3214 = vpack.c.b16 %v3182, %v3182
      %v3215 = vpack.c.b16 %v3183, %v3183
      %v3216 = vpack.c.b16 %v3184, %v3184
      %v3217 = vpack.c.b16 %v3185, %v3185
      %v3218 = vpack.c.b16 %v3186, %v3186
      %v3219 = vpack.c.b16 %v3187, %v3187
      %v3220 = vpack.c.b16 %v3188, %v3188
      %v3221 = vpack.c.b16 %v3189, %v3189
      %v3222 = vpack.c.b16 %v3190, %v3190
      %v3223 = vpack.c.b16 %v3191, %v3191
      %v3224 = vpack.c.b16 %v3192, %v3192
      %v3225 = vpack.c.b16 %v3193, %v3193
      %v3226 = vpack.c.b16 %v3194, %v3194
      %v3227 = vpack.c.b16 %v3195, %v3195
      %v3228 = vpack.c.b16 %v3196, %v3196
      %v3229 = vpack.c.b16 %v3197, %v3197
      %v3230 = vpack.c.b16 %v3198, %v3198
      %v3231 = vpack.c.b16 %v3199, %v3199
      %v3232 = vpack.c.b16 %v3200, %v3200
      %v3233 = vpack.c.b16 %v3201, %v3201
      %v3234 = vpack.c.b16 %v3202, %v3202
      %v3235 = vpack.c.b16 %v3203, %v3203
      %v3236 = vpack.c.b16 %v3204, %v3204
      %v3237 = vpack.c.b16 %v3205, %v3205
      %v3238 = vpack.c.b16 %v3206, %v3206
      %v3239 = vpack.c.b16 %v3207, %v3207
      %v3240 = vpack.c.b16 %v3208, %v3208
      %v3241 = vpack.c.b16 %v3209, %v3209
      %v3242 = vpack.c.b16 %v3210, %v3210
      %v3243 = vpack.c.b16 %v3211, %v3211
      %vm3244 = vsmask.f32 7424
      %v3246 = vshrl.u32 %v3116, 16
      %v3248 = vshll.u32 %v3116, 16
      %v3250 = vrot.slane %v3248, 1
      %v3251 = vor.u32 %v3246, %v3250
      %v3253 = vshll.u32 %v3212, 16
      %v3255 = vrot.slane %v3253, 1
      %v3256 = vsel %vm3244, %v3251, %v3255
      %v3258 = vshrl.u32 %v3117, 16
      %v3260 = vshll.u32 %v3117, 16
      %v3262 = vrot.slane %v3260, 1
      %v3263 = vor.u32 %v3258, %v3262
      %v3265 = vshll.u32 %v3213, 16
      %v3267 = vrot.slane %v3265, 1
      %v3268 = vsel %vm3244, %v3263, %v3267
      %v3270 = vshrl.u32 %v3118, 16
      %v3272 = vshll.u32 %v3118, 16
      %v3274 = vrot.slane %v3272, 1
      %v3275 = vor.u32 %v3270, %v3274
      %v3277 = vshll.u32 %v3214, 16
      %v3279 = vrot.slane %v3277, 1
      %v3280 = vsel %vm3244, %v3275, %v3279
      %v3282 = vshrl.u32 %v3119, 16
      %v3284 = vshll.u32 %v3119, 16
      %v3286 = vrot.slane %v3284, 1
      %v3287 = vor.u32 %v3282, %v3286
      %v3289 = vshll.u32 %v3215, 16
      %v3291 = vrot.slane %v3289, 1
      %v3292 = vsel %vm3244, %v3287, %v3291
      %v3294 = vshrl.u32 %v3120, 16
      %v3296 = vshll.u32 %v3120, 16
      %v3298 = vrot.slane %v3296, 1
      %v3299 = vor.u32 %v3294, %v3298
      %v3301 = vshll.u32 %v3216, 16
      %v3303 = vrot.slane %v3301, 1
      %v3304 = vsel %vm3244, %v3299, %v3303
      %v3306 = vshrl.u32 %v3121, 16
      %v3308 = vshll.u32 %v3121, 16
      %v3310 = vrot.slane %v3308, 1
      %v3311 = vor.u32 %v3306, %v3310
      %v3313 = vshll.u32 %v3217, 16
      %v3315 = vrot.slane %v3313, 1
      %v3316 = vsel %vm3244, %v3311, %v3315
      %v3318 = vshrl.u32 %v3122, 16
      %v3320 = vshll.u32 %v3122, 16
      %v3322 = vrot.slane %v3320, 1
      %v3323 = vor.u32 %v3318, %v3322
      %v3325 = vshll.u32 %v3218, 16
      %v3327 = vrot.slane %v3325, 1
      %v3328 = vsel %vm3244, %v3323, %v3327
      %v3330 = vshrl.u32 %v3123, 16
      %v3332 = vshll.u32 %v3123, 16
      %v3334 = vrot.slane %v3332, 1
      %v3335 = vor.u32 %v3330, %v3334
      %v3337 = vshll.u32 %v3219, 16
      %v3339 = vrot.slane %v3337, 1
      %v3340 = vsel %vm3244, %v3335, %v3339
      %v3342 = vshrl.u32 %v3124, 16
      %v3344 = vshll.u32 %v3124, 16
      %v3346 = vrot.slane %v3344, 1
      %v3347 = vor.u32 %v3342, %v3346
      %v3349 = vshll.u32 %v3220, 16
      %v3351 = vrot.slane %v3349, 1
      %v3352 = vsel %vm3244, %v3347, %v3351
      %v3354 = vshrl.u32 %v3125, 16
      %v3356 = vshll.u32 %v3125, 16
      %v3358 = vrot.slane %v3356, 1
      %v3359 = vor.u32 %v3354, %v3358
      %v3361 = vshll.u32 %v3221, 16
      %v3363 = vrot.slane %v3361, 1
      %v3364 = vsel %vm3244, %v3359, %v3363
      %v3366 = vshrl.u32 %v3126, 16
      %v3368 = vshll.u32 %v3126, 16
      %v3370 = vrot.slane %v3368, 1
      %v3371 = vor.u32 %v3366, %v3370
      %v3373 = vshll.u32 %v3222, 16
      %v3375 = vrot.slane %v3373, 1
      %v3376 = vsel %vm3244, %v3371, %v3375
      %v3378 = vshrl.u32 %v3127, 16
      %v3380 = vshll.u32 %v3127, 16
      %v3382 = vrot.slane %v3380, 1
      %v3383 = vor.u32 %v3378, %v3382
      %v3385 = vshll.u32 %v3223, 16
      %v3387 = vrot.slane %v3385, 1
      %v3388 = vsel %vm3244, %v3383, %v3387
      %v3390 = vshrl.u32 %v3128, 16
      %v3392 = vshll.u32 %v3128, 16
      %v3394 = vrot.slane %v3392, 1
      %v3395 = vor.u32 %v3390, %v3394
      %v3397 = vshll.u32 %v3224, 16
      %v3399 = vrot.slane %v3397, 1
      %v3400 = vsel %vm3244, %v3395, %v3399
      %v3402 = vshrl.u32 %v3129, 16
      %v3404 = vshll.u32 %v3129, 16
      %v3406 = vrot.slane %v3404, 1
      %v3407 = vor.u32 %v3402, %v3406
      %v3409 = vshll.u32 %v3225, 16
      %v3411 = vrot.slane %v3409, 1
      %v3412 = vsel %vm3244, %v3407, %v3411
      %v3414 = vshrl.u32 %v3130, 16
      %v3416 = vshll.u32 %v3130, 16
      %v3418 = vrot.slane %v3416, 1
      %v3419 = vor.u32 %v3414, %v3418
      %v3421 = vshll.u32 %v3226, 16
      %v3423 = vrot.slane %v3421, 1
      %v3424 = vsel %vm3244, %v3419, %v3423
      %v3426 = vshrl.u32 %v3131, 16
      %v3428 = vshll.u32 %v3131, 16
      %v3430 = vrot.slane %v3428, 1
      %v3431 = vor.u32 %v3426, %v3430
      %v3433 = vshll.u32 %v3227, 16
      %v3435 = vrot.slane %v3433, 1
      %v3436 = vsel %vm3244, %v3431, %v3435
      %v3438 = vshrl.u32 %v3132, 16
      %v3440 = vshll.u32 %v3132, 16
      %v3442 = vrot.slane %v3440, 1
      %v3443 = vor.u32 %v3438, %v3442
      %v3445 = vshll.u32 %v3228, 16
      %v3447 = vrot.slane %v3445, 1
      %v3448 = vsel %vm3244, %v3443, %v3447
      %v3450 = vshrl.u32 %v3133, 16
      %v3452 = vshll.u32 %v3133, 16
      %v3454 = vrot.slane %v3452, 1
      %v3455 = vor.u32 %v3450, %v3454
      %v3457 = vshll.u32 %v3229, 16
      %v3459 = vrot.slane %v3457, 1
      %v3460 = vsel %vm3244, %v3455, %v3459
      %v3462 = vshrl.u32 %v3134, 16
      %v3464 = vshll.u32 %v3134, 16
      %v3466 = vrot.slane %v3464, 1
      %v3467 = vor.u32 %v3462, %v3466
      %v3469 = vshll.u32 %v3230, 16
      %v3471 = vrot.slane %v3469, 1
      %v3472 = vsel %vm3244, %v3467, %v3471
      %v3474 = vshrl.u32 %v3135, 16
      %v3476 = vshll.u32 %v3135, 16
      %v3478 = vrot.slane %v3476, 1
      %v3479 = vor.u32 %v3474, %v3478
      %v3481 = vshll.u32 %v3231, 16
      %v3483 = vrot.slane %v3481, 1
      %v3484 = vsel %vm3244, %v3479, %v3483
      %v3486 = vshrl.u32 %v3136, 16
      %v3488 = vshll.u32 %v3136, 16
      %v3490 = vrot.slane %v3488, 1
      %v3491 = vor.u32 %v3486, %v3490
      %v3493 = vshll.u32 %v3232, 16
      %v3495 = vrot.slane %v3493, 1
      %v3496 = vsel %vm3244, %v3491, %v3495
      %v3498 = vshrl.u32 %v3137, 16
      %v3500 = vshll.u32 %v3137, 16
      %v3502 = vrot.slane %v3500, 1
      %v3503 = vor.u32 %v3498, %v3502
      %v3505 = vshll.u32 %v3233, 16
      %v3507 = vrot.slane %v3505, 1
      %v3508 = vsel %vm3244, %v3503, %v3507
      %v3510 = vshrl.u32 %v3138, 16
      %v3512 = vshll.u32 %v3138, 16
      %v3514 = vrot.slane %v3512, 1
      %v3515 = vor.u32 %v3510, %v3514
      %v3517 = vshll.u32 %v3234, 16
      %v3519 = vrot.slane %v3517, 1
      %v3520 = vsel %vm3244, %v3515, %v3519
      %v3522 = vshrl.u32 %v3139, 16
      %v3524 = vshll.u32 %v3139, 16
      %v3526 = vrot.slane %v3524, 1
      %v3527 = vor.u32 %v3522, %v3526
      %v3529 = vshll.u32 %v3235, 16
      %v3531 = vrot.slane %v3529, 1
      %v3532 = vsel %vm3244, %v3527, %v3531
      %v3534 = vshrl.u32 %v3140, 16
      %v3536 = vshll.u32 %v3140, 16
      %v3538 = vrot.slane %v3536, 1
      %v3539 = vor.u32 %v3534, %v3538
      %v3541 = vshll.u32 %v3236, 16
      %v3543 = vrot.slane %v3541, 1
      %v3544 = vsel %vm3244, %v3539, %v3543
      %v3546 = vshrl.u32 %v3141, 16
      %v3548 = vshll.u32 %v3141, 16
      %v3550 = vrot.slane %v3548, 1
      %v3551 = vor.u32 %v3546, %v3550
      %v3553 = vshll.u32 %v3237, 16
      %v3555 = vrot.slane %v3553, 1
      %v3556 = vsel %vm3244, %v3551, %v3555
      %v3558 = vshrl.u32 %v3142, 16
      %v3560 = vshll.u32 %v3142, 16
      %v3562 = vrot.slane %v3560, 1
      %v3563 = vor.u32 %v3558, %v3562
      %v3565 = vshll.u32 %v3238, 16
      %v3567 = vrot.slane %v3565, 1
      %v3568 = vsel %vm3244, %v3563, %v3567
      %v3570 = vshrl.u32 %v3143, 16
      %v3572 = vshll.u32 %v3143, 16
      %v3574 = vrot.slane %v3572, 1
      %v3575 = vor.u32 %v3570, %v3574
      %v3577 = vshll.u32 %v3239, 16
      %v3579 = vrot.slane %v3577, 1
      %v3580 = vsel %vm3244, %v3575, %v3579
      %v3582 = vshrl.u32 %v3144, 16
      %v3584 = vshll.u32 %v3144, 16
      %v3586 = vrot.slane %v3584, 1
      %v3587 = vor.u32 %v3582, %v3586
      %v3589 = vshll.u32 %v3240, 16
      %v3591 = vrot.slane %v3589, 1
      %v3592 = vsel %vm3244, %v3587, %v3591
      %v3594 = vshrl.u32 %v3145, 16
      %v3596 = vshll.u32 %v3145, 16
      %v3598 = vrot.slane %v3596, 1
      %v3599 = vor.u32 %v3594, %v3598
      %v3601 = vshll.u32 %v3241, 16
      %v3603 = vrot.slane %v3601, 1
      %v3604 = vsel %vm3244, %v3599, %v3603
      %v3606 = vshrl.u32 %v3146, 16
      %v3608 = vshll.u32 %v3146, 16
      %v3610 = vrot.slane %v3608, 1
      %v3611 = vor.u32 %v3606, %v3610
      %v3613 = vshll.u32 %v3242, 16
      %v3615 = vrot.slane %v3613, 1
      %v3616 = vsel %vm3244, %v3611, %v3615
      %v3618 = vshrl.u32 %v3147, 16
      %v3620 = vshll.u32 %v3147, 16
      %v3622 = vrot.slane %v3620, 1
      %v3623 = vor.u32 %v3618, %v3622
      %v3625 = vshll.u32 %v3243, 16
      %v3627 = vrot.slane %v3625, 1
      %v3628 = vsel %vm3244, %v3623, %v3627
      %3629 = vrot.lane.b32.xlu0 %v3256, 4
      %v3630 = vpop.permute.xlu0 %3629
      %3631 = vrot.lane.b32.xlu0 %v3268, 4
      %v3632 = vpop.permute.xlu0 %3631
      %3633 = vrot.lane.b32.xlu0 %v3280, 4
      %v3634 = vpop.permute.xlu0 %3633
      %3635 = vrot.lane.b32.xlu0 %v3292, 4
      %v3636 = vpop.permute.xlu0 %3635
      %3637 = vrot.lane.b32.xlu0 %v3304, 4
      %v3638 = vpop.permute.xlu0 %3637
      %3639 = vrot.lane.b32.xlu0 %v3316, 4
      %v3640 = vpop.permute.xlu0 %3639
      %3641 = vrot.lane.b32.xlu0 %v3328, 4
      %v3642 = vpop.permute.xlu0 %3641
      %3643 = vrot.lane.b32.xlu0 %v3340, 4
      %v3644 = vpop.permute.xlu0 %3643
      %3645 = vrot.lane.b32.xlu0 %v3352, 4
      %v3646 = vpop.permute.xlu0 %3645
      %3647 = vrot.lane.b32.xlu0 %v3364, 4
      %v3648 = vpop.permute.xlu0 %3647
      %3649 = vrot.lane.b32.xlu0 %v3376, 4
      %v3650 = vpop.permute.xlu0 %3649
      %3651 = vrot.lane.b32.xlu0 %v3388, 4
      %v3652 = vpop.permute.xlu0 %3651
      %3653 = vrot.lane.b32.xlu0 %v3400, 4
      %v3654 = vpop.permute.xlu0 %3653
      %3655 = vrot.lane.b32.xlu0 %v3412, 4
      %v3656 = vpop.permute.xlu0 %3655
      %3657 = vrot.lane.b32.xlu0 %v3424, 4
      %v3658 = vpop.permute.xlu0 %3657
      %3659 = vrot.lane.b32.xlu0 %v3436, 4
      %v3660 = vpop.permute.xlu0 %3659
      %3661 = vrot.lane.b32.xlu0 %v3448, 4
      %v3662 = vpop.permute.xlu0 %3661
      %3663 = vrot.lane.b32.xlu0 %v3460, 4
      %v3664 = vpop.permute.xlu0 %3663
      %3665 = vrot.lane.b32.xlu0 %v3472, 4
      %v3666 = vpop.permute.xlu0 %3665
      %3667 = vrot.lane.b32.xlu0 %v3484, 4
      %v3668 = vpop.permute.xlu0 %3667
      %3669 = vrot.lane.b32.xlu0 %v3496, 4
      %v3670 = vpop.permute.xlu0 %3669
      %3671 = vrot.lane.b32.xlu0 %v3508, 4
      %v3672 = vpop.permute.xlu0 %3671
      %3673 = vrot.lane.b32.xlu0 %v3520, 4
      %v3674 = vpop.permute.xlu0 %3673
      %3675 = vrot.lane.b32.xlu0 %v3532, 4
      %v3676 = vpop.permute.xlu0 %3675
      %3677 = vrot.lane.b32.xlu0 %v3544, 4
      %v3678 = vpop.permute.xlu0 %3677
      %3679 = vrot.lane.b32.xlu0 %v3556, 4
      %v3680 = vpop.permute.xlu0 %3679
      %3681 = vrot.lane.b32.xlu0 %v3568, 4
      %v3682 = vpop.permute.xlu0 %3681
      %3683 = vrot.lane.b32.xlu0 %v3580, 4
      %v3684 = vpop.permute.xlu0 %3683
      %3685 = vrot.lane.b32.xlu0 %v3592, 4
      %v3686 = vpop.permute.xlu0 %3685
      %3687 = vrot.lane.b32.xlu0 %v3604, 4
      %v3688 = vpop.permute.xlu0 %3687
      %3689 = vrot.lane.b32.xlu0 %v3616, 4
      %v3690 = vpop.permute.xlu0 %3689
      %3691 = vrot.lane.b32.xlu0 %v3628, 4
      %v3692 = vpop.permute.xlu0 %3691
      %vm3693 = vcmask 1046528
      %v3694 = vrot.slane %v3116, 1
      %v3695 = vrot.slane %v3212, 1
      %v3696 = vsel %vm3693, %v3694, %v3695
      %v3697 = vrot.slane %v3117, 1
      %v3698 = vrot.slane %v3213, 1
      %v3699 = vsel %vm3693, %v3697, %v3698
      %v3700 = vrot.slane %v3118, 1
      %v3701 = vrot.slane %v3214, 1
      %v3702 = vsel %vm3693, %v3700, %v3701
      %v3703 = vrot.slane %v3119, 1
      %v3704 = vrot.slane %v3215, 1
      %v3705 = vsel %vm3693, %v3703, %v3704
      %v3706 = vrot.slane %v3120, 1
      %v3707 = vrot.slane %v3216, 1
      %v3708 = vsel %vm3693, %v3706, %v3707
      %v3709 = vrot.slane %v3121, 1
      %v3710 = vrot.slane %v3217, 1
      %v3711 = vsel %vm3693, %v3709, %v3710
      %v3712 = vrot.slane %v3122, 1
      %v3713 = vrot.slane %v3218, 1
      %v3714 = vsel %vm3693, %v3712, %v3713
      %v3715 = vrot.slane %v3123, 1
      %v3716 = vrot.slane %v3219, 1
      %v3717 = vsel %vm3693, %v3715, %v3716
      %v3718 = vrot.slane %v3124, 1
      %v3719 = vrot.slane %v3220, 1
      %v3720 = vsel %vm3693, %v3718, %v3719
      %v3721 = vrot.slane %v3125, 1
      %v3722 = vrot.slane %v3221, 1
      %v3723 = vsel %vm3693, %v3721, %v3722
      %v3724 = vrot.slane %v3126, 1
      %v3725 = vrot.slane %v3222, 1
      %v3726 = vsel %vm3693, %v3724, %v3725
      %v3727 = vrot.slane %v3127, 1
      %v3728 = vrot.slane %v3223, 1
      %v3729 = vsel %vm3693, %v3727, %v3728
      %v3730 = vrot.slane %v3128, 1
      %v3731 = vrot.slane %v3224, 1
      %v3732 = vsel %vm3693, %v3730, %v3731
      %v3733 = vrot.slane %v3129, 1
      %v3734 = vrot.slane %v3225, 1
      %v3735 = vsel %vm3693, %v3733, %v3734
      %v3736 = vrot.slane %v3130, 1
      %v3737 = vrot.slane %v3226, 1
      %v3738 = vsel %vm3693, %v3736, %v3737
      %v3739 = vrot.slane %v3131, 1
      %v3740 = vrot.slane %v3227, 1
      %v3741 = vsel %vm3693, %v3739, %v3740
      %v3742 = vrot.slane %v3132, 1
      %v3743 = vrot.slane %v3228, 1
      %v3744 = vsel %vm3693, %v3742, %v3743
      %v3745 = vrot.slane %v3133, 1
      %v3746 = vrot.slane %v3229, 1
      %v3747 = vsel %vm3693, %v3745, %v3746
      %v3748 = vrot.slane %v3134, 1
      %v3749 = vrot.slane %v3230, 1
      %v3750 = vsel %vm3693, %v3748, %v3749
      %v3751 = vrot.slane %v3135, 1
      %v3752 = vrot.slane %v3231, 1
      %v3753 = vsel %vm3693, %v3751, %v3752
      %v3754 = vrot.slane %v3136, 1
      %v3755 = vrot.slane %v3232, 1
      %v3756 = vsel %vm3693, %v3754, %v3755
      %v3757 = vrot.slane %v3137, 1
      %v3758 = vrot.slane %v3233, 1
      %v3759 = vsel %vm3693, %v3757, %v3758
      %v3760 = vrot.slane %v3138, 1
      %v3761 = vrot.slane %v3234, 1
      %v3762 = vsel %vm3693, %v3760, %v3761
      %v3763 = vrot.slane %v3139, 1
      %v3764 = vrot.slane %v3235, 1
      %v3765 = vsel %vm3693, %v3763, %v3764
      %v3766 = vrot.slane %v3140, 1
      %v3767 = vrot.slane %v3236, 1
      %v3768 = vsel %vm3693, %v3766, %v3767
      %v3769 = vrot.slane %v3141, 1
      %v3770 = vrot.slane %v3237, 1
      %v3771 = vsel %vm3693, %v3769, %v3770
      %v3772 = vrot.slane %v3142, 1
      %v3773 = vrot.slane %v3238, 1
      %v3774 = vsel %vm3693, %v3772, %v3773
      %v3775 = vrot.slane %v3143, 1
      %v3776 = vrot.slane %v3239, 1
      %v3777 = vsel %vm3693, %v3775, %v3776
      %v3778 = vrot.slane %v3144, 1
      %v3779 = vrot.slane %v3240, 1
      %v3780 = vsel %vm3693, %v3778, %v3779
      %v3781 = vrot.slane %v3145, 1
      %v3782 = vrot.slane %v3241, 1
      %v3783 = vsel %vm3693, %v3781, %v3782
      %v3784 = vrot.slane %v3146, 1
      %v3785 = vrot.slane %v3242, 1
      %v3786 = vsel %vm3693, %v3784, %v3785
      %v3787 = vrot.slane %v3147, 1
      %v3788 = vrot.slane %v3243, 1
      %v3789 = vsel %vm3693, %v3787, %v3788
      %3790 = vrot.lane.b32.xlu0 %v3696, 8
      %v3791 = vpop.permute.xlu0 %3790
      %3792 = vrot.lane.b32.xlu0 %v3699, 8
      %v3793 = vpop.permute.xlu0 %3792
      %3794 = vrot.lane.b32.xlu0 %v3702, 8
      %v3795 = vpop.permute.xlu0 %3794
      %3796 = vrot.lane.b32.xlu0 %v3705, 8
      %v3797 = vpop.permute.xlu0 %3796
      %3798 = vrot.lane.b32.xlu0 %v3708, 8
      %v3799 = vpop.permute.xlu0 %3798
      %3800 = vrot.lane.b32.xlu0 %v3711, 8
      %v3801 = vpop.permute.xlu0 %3800
      %3802 = vrot.lane.b32.xlu0 %v3714, 8
      %v3803 = vpop.permute.xlu0 %3802
      %3804 = vrot.lane.b32.xlu0 %v3717, 8
      %v3805 = vpop.permute.xlu0 %3804
      %3806 = vrot.lane.b32.xlu0 %v3720, 8
      %v3807 = vpop.permute.xlu0 %3806
      %3808 = vrot.lane.b32.xlu0 %v3723, 8
      %v3809 = vpop.permute.xlu0 %3808
      %3810 = vrot.lane.b32.xlu0 %v3726, 8
      %v3811 = vpop.permute.xlu0 %3810
      %3812 = vrot.lane.b32.xlu0 %v3729, 8
      %v3813 = vpop.permute.xlu0 %3812
      %3814 = vrot.lane.b32.xlu0 %v3732, 8
      %v3815 = vpop.permute.xlu0 %3814
      %3816 = vrot.lane.b32.xlu0 %v3735, 8
      %v3817 = vpop.permute.xlu0 %3816
      %3818 = vrot.lane.b32.xlu0 %v3738, 8
      %v3819 = vpop.permute.xlu0 %3818
      %3820 = vrot.lane.b32.xlu0 %v3741, 8
      %v3821 = vpop.permute.xlu0 %3820
      %3822 = vrot.lane.b32.xlu0 %v3744, 8
      %v3823 = vpop.permute.xlu0 %3822
      %3824 = vrot.lane.b32.xlu0 %v3747, 8
      %v3825 = vpop.permute.xlu0 %3824
      %3826 = vrot.lane.b32.xlu0 %v3750, 8
      %v3827 = vpop.permute.xlu0 %3826
      %3828 = vrot.lane.b32.xlu0 %v3753, 8
      %v3829 = vpop.permute.xlu0 %3828
      %3830 = vrot.lane.b32.xlu0 %v3756, 8
      %v3831 = vpop.permute.xlu0 %3830
      %3832 = vrot.lane.b32.xlu0 %v3759, 8
      %v3833 = vpop.permute.xlu0 %3832
      %3834 = vrot.lane.b32.xlu0 %v3762, 8
      %v3835 = vpop.permute.xlu0 %3834
      %3836 = vrot.lane.b32.xlu0 %v3765, 8
      %v3837 = vpop.permute.xlu0 %3836
      %3838 = vrot.lane.b32.xlu0 %v3768, 8
      %v3839 = vpop.permute.xlu0 %3838
      %3840 = vrot.lane.b32.xlu0 %v3771, 8
      %v3841 = vpop.permute.xlu0 %3840
      %3842 = vrot.lane.b32.xlu0 %v3774, 8
      %v3843 = vpop.permute.xlu0 %3842
      %3844 = vrot.lane.b32.xlu0 %v3777, 8
      %v3845 = vpop.permute.xlu0 %3844
      %3846 = vrot.lane.b32.xlu0 %v3780, 8
      %v3847 = vpop.permute.xlu0 %3846
      %3848 = vrot.lane.b32.xlu0 %v3783, 8
      %v3849 = vpop.permute.xlu0 %3848
      %3850 = vrot.lane.b32.xlu0 %v3786, 8
      %v3851 = vpop.permute.xlu0 %3850
      %3852 = vrot.lane.b32.xlu0 %v3789, 8
      %v3853 = vpop.permute.xlu0 %3852
      %v3855 = vsel %vm1154, %v3116, %v3630
      %v3857 = vsel %vm1154, %v3117, %v3632
      %v3859 = vsel %vm1154, %v3118, %v3634
      %v3861 = vsel %vm1154, %v3119, %v3636
      %v3863 = vsel %vm1154, %v3120, %v3638
      %v3865 = vsel %vm1154, %v3121, %v3640
      %v3867 = vsel %vm1154, %v3122, %v3642
      %v3869 = vsel %vm1154, %v3123, %v3644
      %v3871 = vsel %vm1154, %v3124, %v3646
      %v3873 = vsel %vm1154, %v3125, %v3648
      %v3875 = vsel %vm1154, %v3126, %v3650
      %v3877 = vsel %vm1154, %v3127, %v3652
      %v3879 = vsel %vm1154, %v3128, %v3654
      %v3881 = vsel %vm1154, %v3129, %v3656
      %v3883 = vsel %vm1154, %v3130, %v3658
      %v3885 = vsel %vm1154, %v3131, %v3660
      %v3887 = vsel %vm1154, %v3132, %v3662
      %v3889 = vsel %vm1154, %v3133, %v3664
      %v3891 = vsel %vm1154, %v3134, %v3666
      %v3893 = vsel %vm1154, %v3135, %v3668
      %v3895 = vsel %vm1154, %v3136, %v3670
      %v3897 = vsel %vm1154, %v3137, %v3672
      %v3899 = vsel %vm1154, %v3138, %v3674
      %v3901 = vsel %vm1154, %v3139, %v3676
      %v3903 = vsel %vm1154, %v3140, %v3678
      %v3905 = vsel %vm1154, %v3141, %v3680
      %v3907 = vsel %vm1154, %v3142, %v3682
      %v3909 = vsel %vm1154, %v3143, %v3684
      %v3911 = vsel %vm1154, %v3144, %v3686
      %v3913 = vsel %vm1154, %v3145, %v3688
      %v3915 = vsel %vm1154, %v3146, %v3690
      %v3917 = vsel %vm1154, %v3147, %v3692
      %v3919 = vsel %vm762, %v3855, %v3791
      %v3921 = vsel %vm762, %v3857, %v3793
      %v3923 = vsel %vm762, %v3859, %v3795
      %v3925 = vsel %vm762, %v3861, %v3797
      %v3927 = vsel %vm762, %v3863, %v3799
      %v3929 = vsel %vm762, %v3865, %v3801
      %v3931 = vsel %vm762, %v3867, %v3803
      %v3933 = vsel %vm762, %v3869, %v3805
      %v3935 = vsel %vm762, %v3871, %v3807
      %v3937 = vsel %vm762, %v3873, %v3809
      %v3939 = vsel %vm762, %v3875, %v3811
      %v3941 = vsel %vm762, %v3877, %v3813
      %v3943 = vsel %vm762, %v3879, %v3815
      %v3945 = vsel %vm762, %v3881, %v3817
      %v3947 = vsel %vm762, %v3883, %v3819
      %v3949 = vsel %vm762, %v3885, %v3821
      %v3951 = vsel %vm762, %v3887, %v3823
      %v3953 = vsel %vm762, %v3889, %v3825
      %v3955 = vsel %vm762, %v3891, %v3827
      %v3957 = vsel %vm762, %v3893, %v3829
      %v3959 = vsel %vm762, %v3895, %v3831
      %v3961 = vsel %vm762, %v3897, %v3833
      %v3963 = vsel %vm762, %v3899, %v3835
      %v3965 = vsel %vm762, %v3901, %v3837
      %v3967 = vsel %vm762, %v3903, %v3839
      %v3969 = vsel %vm762, %v3905, %v3841
      %v3971 = vsel %vm762, %v3907, %v3843
      %v3973 = vsel %vm762, %v3909, %v3845
      %v3975 = vsel %vm762, %v3911, %v3847
      %v3977 = vsel %vm762, %v3913, %v3849
      %v3979 = vsel %vm762, %v3915, %v3851
      %v3981 = vsel %vm762, %v3917, %v3853
      %v3982 = vld [vmem:[%s304] sm:$0xf]
      %v3983 = vld [vmem:[%s304 + $0x4] sm:$0x3]
      %v3984 = vld [vmem:[%s2661] sm:$0xf]
      %v3985 = vld [vmem:[%s2661 + $0x4] sm:$0xf]
      %v3986 = vld [vmem:[%s2661 + $0x8] sm:$0x1]
      %v3987 = vld [vmem:[%s2661 + $0xc] sm:$0xf]
      %v3988 = vld [vmem:[%s2661 + $0x10] sm:$0xf]
      %v3989 = vld [vmem:[%s2661 + $0x14] sm:$0x1]
      %v3990 = vld [vmem:[%s2661 + $0x18] sm:$0xf]
      %v3991 = vld [vmem:[%s2661 + $0x1c] sm:$0xf]
      %v3992 = vld [vmem:[%s2661 + $0x20] sm:$0x1]
      %v3993 = vld [vmem:[%s2661 + $0x24] sm:$0xf]
      %v3994 = vld [vmem:[%s2661 + $0x28] sm:$0xf]
      %v3995 = vld [vmem:[%s2661 + $0x2c] sm:$0x1]
      %v3996 = vld [vmem:[%s2661 + $0x30] sm:$0xf]
      %v3997 = vld [vmem:[%s2661 + $0x34] sm:$0xf]
      %v3998 = vld [vmem:[%s2661 + $0x38] sm:$0x1]
      %v3999 = vld [vmem:[%s2661 + $0x3c] sm:$0xf]
      %v4000 = vld [vmem:[%s2661 + $0x40] sm:$0xf]
      %v4001 = vld [vmem:[%s2661 + $0x44] sm:$0x1]
      %v4002 = vld [vmem:[%s2661 + $0x48] sm:$0xf]
      %v4003 = vld [vmem:[%s2661 + $0x4c] sm:$0xf]
      %v4004 = vld [vmem:[%s2661 + $0x50] sm:$0x1]
      %v4005 = vld [vmem:[%s2661 + $0x54] sm:$0xf]
      %v4006 = vld [vmem:[%s2661 + $0x58] sm:$0xf]
      %v4007 = vld [vmem:[%s2661 + $0x5c] sm:$0x1]
      %v4008 = vld [vmem:[%s2661 + $0x60] sm:$0xf]
      %v4009 = vld [vmem:[%s2661 + $0x64] sm:$0xf]
      %v4010 = vld [vmem:[%s2661 + $0x68] sm:$0x1]
      %v4011 = vld [vmem:[%s2661 + $0x6c] sm:$0xf]
      %v4012 = vld [vmem:[%s2661 + $0x70] sm:$0xf]
      %v4013 = vld [vmem:[%s2661 + $0x74] sm:$0x1]
      %v4014 = vld [vmem:[%s2661 + $0x78] sm:$0xf]
      %v4015 = vld [vmem:[%s2661 + $0x7c] sm:$0xf]
      %v4016 = vld [vmem:[%s2661 + $0x80] sm:$0x1]
      %v4017 = vld [vmem:[%s2661 + $0x84] sm:$0xf]
      %v4018 = vld [vmem:[%s2661 + $0x88] sm:$0xf]
      %v4019 = vld [vmem:[%s2661 + $0x8c] sm:$0x1]
      %v4020 = vld [vmem:[%s2661 + $0x90] sm:$0xf]
      %v4021 = vld [vmem:[%s2661 + $0x94] sm:$0xf]
      %v4022 = vld [vmem:[%s2661 + $0x98] sm:$0x1]
      %v4023 = vld [vmem:[%s2661 + $0x9c] sm:$0xf]
      %v4024 = vld [vmem:[%s2661 + $0xa0] sm:$0xf]
      %v4025 = vld [vmem:[%s2661 + $0xa4] sm:$0x1]
      %v4026 = vld [vmem:[%s2661 + $0xa8] sm:$0xf]
      %v4027 = vld [vmem:[%s2661 + $0xac] sm:$0xf]
      %v4028 = vld [vmem:[%s2661 + $0xb0] sm:$0x1]
      %v4029 = vld [vmem:[%s2661 + $0xb4] sm:$0xf]
      %v4030 = vld [vmem:[%s2661 + $0xb8] sm:$0xf]
      %v4031 = vld [vmem:[%s2661 + $0xbc] sm:$0x1]
      %v4032 = vld [vmem:[%s2661 + $0xd8] sm:$0xf]
      %v4033 = vld [vmem:[%s2661 + $0xdc] sm:$0xf]
      %v4034 = vld [vmem:[%s2661 + $0xe0] sm:$0x1]
      %v4035 = vld [vmem:[%s2661 + $0xe4] sm:$0xf]
      %v4036 = vld [vmem:[%s2661 + $0xe8] sm:$0xf]
      %v4037 = vld [vmem:[%s2661 + $0xec] sm:$0x1]
      %v4038 = vld [vmem:[%s2661 + $0xf0] sm:$0xf]
      %v4039 = vld [vmem:[%s2661 + $0xf4] sm:$0xf]
      %v4040 = vld [vmem:[%s2661 + $0xf8] sm:$0x1]
      %v4041 = vld [vmem:[%s2661 + $0xfc] sm:$0xf]
      %v4042 = vld [vmem:[%s2661 + $0x100] sm:$0xf]
      %v4043 = vld [vmem:[%s2661 + $0x104] sm:$0x1]
      %v4044 = vld [vmem:[%s2661 + $0x108] sm:$0xf]
      %v4045 = vld [vmem:[%s2661 + $0x10c] sm:$0xf]
      %v4046 = vld [vmem:[%s2661 + $0x110] sm:$0x1]
      %v4047 = vld [vmem:[%s2661 + $0x114] sm:$0xf]
      %v4048 = vld [vmem:[%s2661 + $0x118] sm:$0xf]
      %v4049 = vld [vmem:[%s2661 + $0x11c] sm:$0x1]
      %v4050 = vld [vmem:[%s2661 + $0x120] sm:$0xf]
      %v4051 = vld [vmem:[%s2661 + $0x124] sm:$0xf]
      %v4052 = vld [vmem:[%s2661 + $0x128] sm:$0x1]
      %v4053 = vld [vmem:[%s2661 + $0x12c] sm:$0xf]
      %v4054 = vld [vmem:[%s2661 + $0x130] sm:$0xf]
      %v4055 = vld [vmem:[%s2661 + $0x134] sm:$0x1]
      %v4056 = vld [vmem:[%s2661 + $0x138] sm:$0xf]
      %v4057 = vld [vmem:[%s2661 + $0x13c] sm:$0xf]
      %v4058 = vld [vmem:[%s2661 + $0x140] sm:$0x1]
      %v4059 = vld [vmem:[%s2661 + $0x144] sm:$0xf]
      %v4060 = vld [vmem:[%s2661 + $0x148] sm:$0xf]
      %v4061 = vld [vmem:[%s2661 + $0x14c] sm:$0x1]
      %v4062 = vld [vmem:[%s2661 + $0x150] sm:$0xf]
      %v4063 = vld [vmem:[%s2661 + $0x154] sm:$0xf]
      %v4064 = vld [vmem:[%s2661 + $0x158] sm:$0x1]
      %v4065 = vld [vmem:[%s2661 + $0x15c] sm:$0xf]
      %v4066 = vld [vmem:[%s2661 + $0x160] sm:$0xf]
      %v4067 = vld [vmem:[%s2661 + $0x164] sm:$0x1]
      %v4068 = vld [vmem:[%s2661 + $0x168] sm:$0xf]
      %v4069 = vld [vmem:[%s2661 + $0x16c] sm:$0xf]
      %v4070 = vld [vmem:[%s2661 + $0x170] sm:$0x1]
      %v4071 = vld [vmem:[%s2661 + $0x174] sm:$0xf]
      %v4072 = vld [vmem:[%s2661 + $0x178] sm:$0xf]
      %v4073 = vld [vmem:[%s2661 + $0x17c] sm:$0x1]
      %v4074 = vld [vmem:[%s2661 + $0x180] sm:$0xf]
      %v4075 = vld [vmem:[%s2661 + $0x184] sm:$0xf]
      %v4076 = vld [vmem:[%s2661 + $0x188] sm:$0x1]
      %v4077 = vld [vmem:[%s2661 + $0x18c] sm:$0xf]
      %v4078 = vld [vmem:[%s2661 + $0x190] sm:$0xf]
      %v4079 = vld [vmem:[%s2661 + $0x194] sm:$0x1]
      %v4144 = vunpack.c.l.b16 %v3984
      %v4145 = vunpack.c.l.b16 %v3985
      %v4146 = vunpack.c.l.b16 %v3987
      %v4147 = vunpack.c.l.b16 %v3988
      %v4148 = vunpack.c.l.b16 %v3990
      %v4149 = vunpack.c.l.b16 %v3991
      %v4150 = vunpack.c.l.b16 %v3993
      %v4151 = vunpack.c.l.b16 %v3994
      %v4152 = vunpack.c.l.b16 %v3996
      %v4153 = vunpack.c.l.b16 %v3997
      %v4154 = vunpack.c.l.b16 %v3999
      %v4155 = vunpack.c.l.b16 %v4000
      %v4156 = vunpack.c.l.b16 %v4002
      %v4157 = vunpack.c.l.b16 %v4003
      %v4158 = vunpack.c.l.b16 %v4005
      %v4159 = vunpack.c.l.b16 %v4006
      %v4160 = vunpack.c.l.b16 %v4008
      %v4161 = vunpack.c.l.b16 %v4009
      %v4162 = vunpack.c.l.b16 %v4011
      %v4163 = vunpack.c.l.b16 %v4012
      %v4164 = vunpack.c.l.b16 %v4014
      %v4165 = vunpack.c.l.b16 %v4015
      %v4166 = vunpack.c.l.b16 %v4017
      %v4167 = vunpack.c.l.b16 %v4018
      %v4168 = vunpack.c.l.b16 %v4020
      %v4169 = vunpack.c.l.b16 %v4021
      %v4170 = vunpack.c.l.b16 %v4023
      %v4171 = vunpack.c.l.b16 %v4024
      %v4172 = vunpack.c.l.b16 %v4026
      %v4173 = vunpack.c.l.b16 %v4027
      %v4174 = vunpack.c.l.b16 %v4029
      %v4175 = vunpack.c.l.b16 %v4030
      %v4176 = vunpack.c.l.b16 %v4032
      %v4177 = vunpack.c.l.b16 %v4033
      %v4178 = vunpack.c.l.b16 %v4035
      %v4179 = vunpack.c.l.b16 %v4036
      %v4180 = vunpack.c.l.b16 %v4038
      %v4181 = vunpack.c.l.b16 %v4039
      %v4182 = vunpack.c.l.b16 %v4041
      %v4183 = vunpack.c.l.b16 %v4042
      %v4184 = vunpack.c.l.b16 %v4044
      %v4185 = vunpack.c.l.b16 %v4045
      %v4186 = vunpack.c.l.b16 %v4047
      %v4187 = vunpack.c.l.b16 %v4048
      %v4188 = vunpack.c.l.b16 %v4050
      %v4189 = vunpack.c.l.b16 %v4051
      %v4190 = vunpack.c.l.b16 %v4053
      %v4191 = vunpack.c.l.b16 %v4054
      %v4192 = vunpack.c.l.b16 %v4056
      %v4193 = vunpack.c.l.b16 %v4057
      %v4194 = vunpack.c.l.b16 %v4059
      %v4195 = vunpack.c.l.b16 %v4060
      %v4196 = vunpack.c.l.b16 %v4062
      %v4197 = vunpack.c.l.b16 %v4063
      %v4198 = vunpack.c.l.b16 %v4065
      %v4199 = vunpack.c.l.b16 %v4066
      %v4200 = vunpack.c.l.b16 %v4068
      %v4201 = vunpack.c.l.b16 %v4069
      %v4202 = vunpack.c.l.b16 %v4071
      %v4203 = vunpack.c.l.b16 %v4072
      %v4204 = vunpack.c.l.b16 %v4074
      %v4205 = vunpack.c.l.b16 %v4075
      %v4206 = vunpack.c.l.b16 %v4077
      %v4207 = vunpack.c.l.b16 %v4078
      %v4208 = vpack.c.b16 %v4145, %v4144
      %v4209 = vpack.c.b16 %v4147, %v4146
      %v4210 = vpack.c.b16 %v4149, %v4148
      %v4211 = vpack.c.b16 %v4151, %v4150
      %v4212 = vpack.c.b16 %v4153, %v4152
      %v4213 = vpack.c.b16 %v4155, %v4154
      %v4214 = vpack.c.b16 %v4157, %v4156
      %v4215 = vpack.c.b16 %v4159, %v4158
      %v4216 = vpack.c.b16 %v4161, %v4160
      %v4217 = vpack.c.b16 %v4163, %v4162
      %v4218 = vpack.c.b16 %v4165, %v4164
      %v4219 = vpack.c.b16 %v4167, %v4166
      %v4220 = vpack.c.b16 %v4169, %v4168
      %v4221 = vpack.c.b16 %v4171, %v4170
      %v4222 = vpack.c.b16 %v4173, %v4172
      %v4223 = vpack.c.b16 %v4175, %v4174
      %v4224 = vpack.c.b16 %v4177, %v4176
      %v4225 = vpack.c.b16 %v4179, %v4178
      %v4226 = vpack.c.b16 %v4181, %v4180
      %v4227 = vpack.c.b16 %v4183, %v4182
      %v4228 = vpack.c.b16 %v4185, %v4184
      %v4229 = vpack.c.b16 %v4187, %v4186
      %v4230 = vpack.c.b16 %v4189, %v4188
      %v4231 = vpack.c.b16 %v4191, %v4190
      %v4232 = vpack.c.b16 %v4193, %v4192
      %v4233 = vpack.c.b16 %v4195, %v4194
      %v4234 = vpack.c.b16 %v4197, %v4196
      %v4235 = vpack.c.b16 %v4199, %v4198
      %v4236 = vpack.c.b16 %v4201, %v4200
      %v4237 = vpack.c.b16 %v4203, %v4202
      %v4238 = vpack.c.b16 %v4205, %v4204
      %v4239 = vpack.c.b16 %v4207, %v4206
      %v4272 = vunpack.c.l.b16 %v3986
      %v4273 = vunpack.c.l.b16 %v3989
      %v4274 = vunpack.c.l.b16 %v3992
      %v4275 = vunpack.c.l.b16 %v3995
      %v4276 = vunpack.c.l.b16 %v3998
      %v4277 = vunpack.c.l.b16 %v4001
      %v4278 = vunpack.c.l.b16 %v4004
      %v4279 = vunpack.c.l.b16 %v4007
      %v4280 = vunpack.c.l.b16 %v4010
      %v4281 = vunpack.c.l.b16 %v4013
      %v4282 = vunpack.c.l.b16 %v4016
      %v4283 = vunpack.c.l.b16 %v4019
      %v4284 = vunpack.c.l.b16 %v4022
      %v4285 = vunpack.c.l.b16 %v4025
      %v4286 = vunpack.c.l.b16 %v4028
      %v4287 = vunpack.c.l.b16 %v4031
      %v4288 = vunpack.c.l.b16 %v4034
      %v4289 = vunpack.c.l.b16 %v4037
      %v4290 = vunpack.c.l.b16 %v4040
      %v4291 = vunpack.c.l.b16 %v4043
      %v4292 = vunpack.c.l.b16 %v4046
      %v4293 = vunpack.c.l.b16 %v4049
      %v4294 = vunpack.c.l.b16 %v4052
      %v4295 = vunpack.c.l.b16 %v4055
      %v4296 = vunpack.c.l.b16 %v4058
      %v4297 = vunpack.c.l.b16 %v4061
      %v4298 = vunpack.c.l.b16 %v4064
      %v4299 = vunpack.c.l.b16 %v4067
      %v4300 = vunpack.c.l.b16 %v4070
      %v4301 = vunpack.c.l.b16 %v4073
      %v4302 = vunpack.c.l.b16 %v4076
      %v4303 = vunpack.c.l.b16 %v4079
      %v4304 = vpack.c.b16 %v4272, %v4272
      %v4305 = vpack.c.b16 %v4273, %v4273
      %v4306 = vpack.c.b16 %v4274, %v4274
      %v4307 = vpack.c.b16 %v4275, %v4275
      %v4308 = vpack.c.b16 %v4276, %v4276
      %v4309 = vpack.c.b16 %v4277, %v4277
      %v4310 = vpack.c.b16 %v4278, %v4278
      %v4311 = vpack.c.b16 %v4279, %v4279
      %v4312 = vpack.c.b16 %v4280, %v4280
      %v4313 = vpack.c.b16 %v4281, %v4281
      %v4314 = vpack.c.b16 %v4282, %v4282
      %v4315 = vpack.c.b16 %v4283, %v4283
      %v4316 = vpack.c.b16 %v4284, %v4284
      %v4317 = vpack.c.b16 %v4285, %v4285
      %v4318 = vpack.c.b16 %v4286, %v4286
      %v4319 = vpack.c.b16 %v4287, %v4287
      %v4320 = vpack.c.b16 %v4288, %v4288
      %v4321 = vpack.c.b16 %v4289, %v4289
      %v4322 = vpack.c.b16 %v4290, %v4290
      %v4323 = vpack.c.b16 %v4291, %v4291
      %v4324 = vpack.c.b16 %v4292, %v4292
      %v4325 = vpack.c.b16 %v4293, %v4293
      %v4326 = vpack.c.b16 %v4294, %v4294
      %v4327 = vpack.c.b16 %v4295, %v4295
      %v4328 = vpack.c.b16 %v4296, %v4296
      %v4329 = vpack.c.b16 %v4297, %v4297
      %v4330 = vpack.c.b16 %v4298, %v4298
      %v4331 = vpack.c.b16 %v4299, %v4299
      %v4332 = vpack.c.b16 %v4300, %v4300
      %v4333 = vpack.c.b16 %v4301, %v4301
      %v4334 = vpack.c.b16 %v4302, %v4302
      %v4335 = vpack.c.b16 %v4303, %v4303
      %v4337 = vshrl.u32 %v4208, 16
      %v4339 = vshll.u32 %v4208, 16
      %v4341 = vrot.slane %v4339, 1
      %v4342 = vor.u32 %v4337, %v4341
      %v4344 = vshll.u32 %v4304, 16
      %v4346 = vrot.slane %v4344, 1
      %v4347 = vsel %vm3244, %v4342, %v4346
      %v4349 = vshrl.u32 %v4209, 16
      %v4351 = vshll.u32 %v4209, 16
      %v4353 = vrot.slane %v4351, 1
      %v4354 = vor.u32 %v4349, %v4353
      %v4356 = vshll.u32 %v4305, 16
      %v4358 = vrot.slane %v4356, 1
      %v4359 = vsel %vm3244, %v4354, %v4358
      %v4361 = vshrl.u32 %v4210, 16
      %v4363 = vshll.u32 %v4210, 16
      %v4365 = vrot.slane %v4363, 1
      %v4366 = vor.u32 %v4361, %v4365
      %v4368 = vshll.u32 %v4306, 16
      %v4370 = vrot.slane %v4368, 1
      %v4371 = vsel %vm3244, %v4366, %v4370
      %v4373 = vshrl.u32 %v4211, 16
      %v4375 = vshll.u32 %v4211, 16
      %v4377 = vrot.slane %v4375, 1
      %v4378 = vor.u32 %v4373, %v4377
      %v4380 = vshll.u32 %v4307, 16
      %v4382 = vrot.slane %v4380, 1
      %v4383 = vsel %vm3244, %v4378, %v4382
      %v4385 = vshrl.u32 %v4212, 16
      %v4387 = vshll.u32 %v4212, 16
      %v4389 = vrot.slane %v4387, 1
      %v4390 = vor.u32 %v4385, %v4389
      %v4392 = vshll.u32 %v4308, 16
      %v4394 = vrot.slane %v4392, 1
      %v4395 = vsel %vm3244, %v4390, %v4394
      %v4397 = vshrl.u32 %v4213, 16
      %v4399 = vshll.u32 %v4213, 16
      %v4401 = vrot.slane %v4399, 1
      %v4402 = vor.u32 %v4397, %v4401
      %v4404 = vshll.u32 %v4309, 16
      %v4406 = vrot.slane %v4404, 1
      %v4407 = vsel %vm3244, %v4402, %v4406
      %v4409 = vshrl.u32 %v4214, 16
      %v4411 = vshll.u32 %v4214, 16
      %v4413 = vrot.slane %v4411, 1
      %v4414 = vor.u32 %v4409, %v4413
      %v4416 = vshll.u32 %v4310, 16
      %v4418 = vrot.slane %v4416, 1
      %v4419 = vsel %vm3244, %v4414, %v4418
      %v4421 = vshrl.u32 %v4215, 16
      %v4423 = vshll.u32 %v4215, 16
      %v4425 = vrot.slane %v4423, 1
      %v4426 = vor.u32 %v4421, %v4425
      %v4428 = vshll.u32 %v4311, 16
      %v4430 = vrot.slane %v4428, 1
      %v4431 = vsel %vm3244, %v4426, %v4430
      %v4433 = vshrl.u32 %v4216, 16
      %v4435 = vshll.u32 %v4216, 16
      %v4437 = vrot.slane %v4435, 1
      %v4438 = vor.u32 %v4433, %v4437
      %v4440 = vshll.u32 %v4312, 16
      %v4442 = vrot.slane %v4440, 1
      %v4443 = vsel %vm3244, %v4438, %v4442
      %v4445 = vshrl.u32 %v4217, 16
      %v4447 = vshll.u32 %v4217, 16
      %v4449 = vrot.slane %v4447, 1
      %v4450 = vor.u32 %v4445, %v4449
      %v4452 = vshll.u32 %v4313, 16
      %v4454 = vrot.slane %v4452, 1
      %v4455 = vsel %vm3244, %v4450, %v4454
      %v4457 = vshrl.u32 %v4218, 16
      %v4459 = vshll.u32 %v4218, 16
      %v4461 = vrot.slane %v4459, 1
      %v4462 = vor.u32 %v4457, %v4461
      %v4464 = vshll.u32 %v4314, 16
      %v4466 = vrot.slane %v4464, 1
      %v4467 = vsel %vm3244, %v4462, %v4466
      %v4469 = vshrl.u32 %v4219, 16
      %v4471 = vshll.u32 %v4219, 16
      %v4473 = vrot.slane %v4471, 1
      %v4474 = vor.u32 %v4469, %v4473
      %v4476 = vshll.u32 %v4315, 16
      %v4478 = vrot.slane %v4476, 1
      %v4479 = vsel %vm3244, %v4474, %v4478
      %v4481 = vshrl.u32 %v4220, 16
      %v4483 = vshll.u32 %v4220, 16
      %v4485 = vrot.slane %v4483, 1
      %v4486 = vor.u32 %v4481, %v4485
      %v4488 = vshll.u32 %v4316, 16
      %v4490 = vrot.slane %v4488, 1
      %v4491 = vsel %vm3244, %v4486, %v4490
      %v4493 = vshrl.u32 %v4221, 16
      %v4495 = vshll.u32 %v4221, 16
      %v4497 = vrot.slane %v4495, 1
      %v4498 = vor.u32 %v4493, %v4497
      %v4500 = vshll.u32 %v4317, 16
      %v4502 = vrot.slane %v4500, 1
      %v4503 = vsel %vm3244, %v4498, %v4502
      %v4505 = vshrl.u32 %v4222, 16
      %v4507 = vshll.u32 %v4222, 16
      %v4509 = vrot.slane %v4507, 1
      %v4510 = vor.u32 %v4505, %v4509
      %v4512 = vshll.u32 %v4318, 16
      %v4514 = vrot.slane %v4512, 1
      %v4515 = vsel %vm3244, %v4510, %v4514
      %v4517 = vshrl.u32 %v4223, 16
      %v4519 = vshll.u32 %v4223, 16
      %v4521 = vrot.slane %v4519, 1
      %v4522 = vor.u32 %v4517, %v4521
      %v4524 = vshll.u32 %v4319, 16
      %v4526 = vrot.slane %v4524, 1
      %v4527 = vsel %vm3244, %v4522, %v4526
      %v4529 = vshrl.u32 %v4224, 16
      %v4531 = vshll.u32 %v4224, 16
      %v4533 = vrot.slane %v4531, 1
      %v4534 = vor.u32 %v4529, %v4533
      %v4536 = vshll.u32 %v4320, 16
      %v4538 = vrot.slane %v4536, 1
      %v4539 = vsel %vm3244, %v4534, %v4538
      %v4541 = vshrl.u32 %v4225, 16
      %v4543 = vshll.u32 %v4225, 16
      %v4545 = vrot.slane %v4543, 1
      %v4546 = vor.u32 %v4541, %v4545
      %v4548 = vshll.u32 %v4321, 16
      %v4550 = vrot.slane %v4548, 1
      %v4551 = vsel %vm3244, %v4546, %v4550
      %v4553 = vshrl.u32 %v4226, 16
      %v4555 = vshll.u32 %v4226, 16
      %v4557 = vrot.slane %v4555, 1
      %v4558 = vor.u32 %v4553, %v4557
      %v4560 = vshll.u32 %v4322, 16
      %v4562 = vrot.slane %v4560, 1
      %v4563 = vsel %vm3244, %v4558, %v4562
      %v4565 = vshrl.u32 %v4227, 16
      %v4567 = vshll.u32 %v4227, 16
      %v4569 = vrot.slane %v4567, 1
      %v4570 = vor.u32 %v4565, %v4569
      %v4572 = vshll.u32 %v4323, 16
      %v4574 = vrot.slane %v4572, 1
      %v4575 = vsel %vm3244, %v4570, %v4574
      %v4577 = vshrl.u32 %v4228, 16
      %v4579 = vshll.u32 %v4228, 16
      %v4581 = vrot.slane %v4579, 1
      %v4582 = vor.u32 %v4577, %v4581
      %v4584 = vshll.u32 %v4324, 16
      %v4586 = vrot.slane %v4584, 1
      %v4587 = vsel %vm3244, %v4582, %v4586
      %v4589 = vshrl.u32 %v4229, 16
      %v4591 = vshll.u32 %v4229, 16
      %v4593 = vrot.slane %v4591, 1
      %v4594 = vor.u32 %v4589, %v4593
      %v4596 = vshll.u32 %v4325, 16
      %v4598 = vrot.slane %v4596, 1
      %v4599 = vsel %vm3244, %v4594, %v4598
      %v4601 = vshrl.u32 %v4230, 16
      %v4603 = vshll.u32 %v4230, 16
      %v4605 = vrot.slane %v4603, 1
      %v4606 = vor.u32 %v4601, %v4605
      %v4608 = vshll.u32 %v4326, 16
      %v4610 = vrot.slane %v4608, 1
      %v4611 = vsel %vm3244, %v4606, %v4610
      %v4613 = vshrl.u32 %v4231, 16
      %v4615 = vshll.u32 %v4231, 16
      %v4617 = vrot.slane %v4615, 1
      %v4618 = vor.u32 %v4613, %v4617
      %v4620 = vshll.u32 %v4327, 16
      %v4622 = vrot.slane %v4620, 1
      %v4623 = vsel %vm3244, %v4618, %v4622
      %v4625 = vshrl.u32 %v4232, 16
      %v4627 = vshll.u32 %v4232, 16
      %v4629 = vrot.slane %v4627, 1
      %v4630 = vor.u32 %v4625, %v4629
      %v4632 = vshll.u32 %v4328, 16
      %v4634 = vrot.slane %v4632, 1
      %v4635 = vsel %vm3244, %v4630, %v4634
      %v4637 = vshrl.u32 %v4233, 16
      %v4639 = vshll.u32 %v4233, 16
      %v4641 = vrot.slane %v4639, 1
      %v4642 = vor.u32 %v4637, %v4641
      %v4644 = vshll.u32 %v4329, 16
      %v4646 = vrot.slane %v4644, 1
      %v4647 = vsel %vm3244, %v4642, %v4646
      %v4649 = vshrl.u32 %v4234, 16
      %v4651 = vshll.u32 %v4234, 16
      %v4653 = vrot.slane %v4651, 1
      %v4654 = vor.u32 %v4649, %v4653
      %v4656 = vshll.u32 %v4330, 16
      %v4658 = vrot.slane %v4656, 1
      %v4659 = vsel %vm3244, %v4654, %v4658
      %v4661 = vshrl.u32 %v4235, 16
      %v4663 = vshll.u32 %v4235, 16
      %v4665 = vrot.slane %v4663, 1
      %v4666 = vor.u32 %v4661, %v4665
      %v4668 = vshll.u32 %v4331, 16
      %v4670 = vrot.slane %v4668, 1
      %v4671 = vsel %vm3244, %v4666, %v4670
      %v4673 = vshrl.u32 %v4236, 16
      %v4675 = vshll.u32 %v4236, 16
      %v4677 = vrot.slane %v4675, 1
      %v4678 = vor.u32 %v4673, %v4677
      %v4680 = vshll.u32 %v4332, 16
      %v4682 = vrot.slane %v4680, 1
      %v4683 = vsel %vm3244, %v4678, %v4682
      %v4685 = vshrl.u32 %v4237, 16
      %v4687 = vshll.u32 %v4237, 16
      %v4689 = vrot.slane %v4687, 1
      %v4690 = vor.u32 %v4685, %v4689
      %v4692 = vshll.u32 %v4333, 16
      %v4694 = vrot.slane %v4692, 1
      %v4695 = vsel %vm3244, %v4690, %v4694
      %v4697 = vshrl.u32 %v4238, 16
      %v4699 = vshll.u32 %v4238, 16
      %v4701 = vrot.slane %v4699, 1
      %v4702 = vor.u32 %v4697, %v4701
      %v4704 = vshll.u32 %v4334, 16
      %v4706 = vrot.slane %v4704, 1
      %v4707 = vsel %vm3244, %v4702, %v4706
      %v4709 = vshrl.u32 %v4239, 16
      %v4711 = vshll.u32 %v4239, 16
      %v4713 = vrot.slane %v4711, 1
      %v4714 = vor.u32 %v4709, %v4713
      %v4716 = vshll.u32 %v4335, 16
      %v4718 = vrot.slane %v4716, 1
      %v4719 = vsel %vm3244, %v4714, %v4718
      %4720 = vrot.lane.b32.xlu0 %v4347, 4
      %v4721 = vpop.permute.xlu0 %4720
      %4722 = vrot.lane.b32.xlu0 %v4359, 4
      %v4723 = vpop.permute.xlu0 %4722
      %4724 = vrot.lane.b32.xlu0 %v4371, 4
      %v4725 = vpop.permute.xlu0 %4724
      %4726 = vrot.lane.b32.xlu0 %v4383, 4
      %v4727 = vpop.permute.xlu0 %4726
      %4728 = vrot.lane.b32.xlu0 %v4395, 4
      %v4729 = vpop.permute.xlu0 %4728
      %4730 = vrot.lane.b32.xlu0 %v4407, 4
      %v4731 = vpop.permute.xlu0 %4730
      %4732 = vrot.lane.b32.xlu0 %v4419, 4
      %v4733 = vpop.permute.xlu0 %4732
      %4734 = vrot.lane.b32.xlu0 %v4431, 4
      %v4735 = vpop.permute.xlu0 %4734
      %4736 = vrot.lane.b32.xlu0 %v4443, 4
      %v4737 = vpop.permute.xlu0 %4736
      %4738 = vrot.lane.b32.xlu0 %v4455, 4
      %v4739 = vpop.permute.xlu0 %4738
      %4740 = vrot.lane.b32.xlu0 %v4467, 4
      %v4741 = vpop.permute.xlu0 %4740
      %4742 = vrot.lane.b32.xlu0 %v4479, 4
      %v4743 = vpop.permute.xlu0 %4742
      %4744 = vrot.lane.b32.xlu0 %v4491, 4
      %v4745 = vpop.permute.xlu0 %4744
      %4746 = vrot.lane.b32.xlu0 %v4503, 4
      %v4747 = vpop.permute.xlu0 %4746
      %4748 = vrot.lane.b32.xlu0 %v4515, 4
      %v4749 = vpop.permute.xlu0 %4748
      %4750 = vrot.lane.b32.xlu0 %v4527, 4
      %v4751 = vpop.permute.xlu0 %4750
      %4752 = vrot.lane.b32.xlu0 %v4539, 4
      %v4753 = vpop.permute.xlu0 %4752
      %4754 = vrot.lane.b32.xlu0 %v4551, 4
      %v4755 = vpop.permute.xlu0 %4754
      %4756 = vrot.lane.b32.xlu0 %v4563, 4
      %v4757 = vpop.permute.xlu0 %4756
      %4758 = vrot.lane.b32.xlu0 %v4575, 4
      %v4759 = vpop.permute.xlu0 %4758
      %4760 = vrot.lane.b32.xlu0 %v4587, 4
      %v4761 = vpop.permute.xlu0 %4760
      %4762 = vrot.lane.b32.xlu0 %v4599, 4
      %v4763 = vpop.permute.xlu0 %4762
      %4764 = vrot.lane.b32.xlu0 %v4611, 4
      %v4765 = vpop.permute.xlu0 %4764
      %4766 = vrot.lane.b32.xlu0 %v4623, 4
      %v4767 = vpop.permute.xlu0 %4766
      %4768 = vrot.lane.b32.xlu0 %v4635, 4
      %v4769 = vpop.permute.xlu0 %4768
      %4770 = vrot.lane.b32.xlu0 %v4647, 4
      %v4771 = vpop.permute.xlu0 %4770
      %4772 = vrot.lane.b32.xlu0 %v4659, 4
      %v4773 = vpop.permute.xlu0 %4772
      %4774 = vrot.lane.b32.xlu0 %v4671, 4
      %v4775 = vpop.permute.xlu0 %4774
      %4776 = vrot.lane.b32.xlu0 %v4683, 4
      %v4777 = vpop.permute.xlu0 %4776
      %4778 = vrot.lane.b32.xlu0 %v4695, 4
      %v4779 = vpop.permute.xlu0 %4778
      %4780 = vrot.lane.b32.xlu0 %v4707, 4
      %v4781 = vpop.permute.xlu0 %4780
      %4782 = vrot.lane.b32.xlu0 %v4719, 4
      %v4783 = vpop.permute.xlu0 %4782
      %v4784 = vrot.slane %v4208, 1
      %v4785 = vrot.slane %v4304, 1
      %v4786 = vsel %vm3693, %v4784, %v4785
      %v4787 = vrot.slane %v4209, 1
      %v4788 = vrot.slane %v4305, 1
      %v4789 = vsel %vm3693, %v4787, %v4788
      %v4790 = vrot.slane %v4210, 1
      %v4791 = vrot.slane %v4306, 1
      %v4792 = vsel %vm3693, %v4790, %v4791
      %v4793 = vrot.slane %v4211, 1
      %v4794 = vrot.slane %v4307, 1
      %v4795 = vsel %vm3693, %v4793, %v4794
      %v4796 = vrot.slane %v4212, 1
      %v4797 = vrot.slane %v4308, 1
      %v4798 = vsel %vm3693, %v4796, %v4797
      %v4799 = vrot.slane %v4213, 1
      %v4800 = vrot.slane %v4309, 1
      %v4801 = vsel %vm3693, %v4799, %v4800
      %v4802 = vrot.slane %v4214, 1
      %v4803 = vrot.slane %v4310, 1
      %v4804 = vsel %vm3693, %v4802, %v4803
      %v4805 = vrot.slane %v4215, 1
      %v4806 = vrot.slane %v4311, 1
      %v4807 = vsel %vm3693, %v4805, %v4806
      %v4808 = vrot.slane %v4216, 1
      %v4809 = vrot.slane %v4312, 1
      %v4810 = vsel %vm3693, %v4808, %v4809
      %v4811 = vrot.slane %v4217, 1
      %v4812 = vrot.slane %v4313, 1
      %v4813 = vsel %vm3693, %v4811, %v4812
      %v4814 = vrot.slane %v4218, 1
      %v4815 = vrot.slane %v4314, 1
      %v4816 = vsel %vm3693, %v4814, %v4815
      %v4817 = vrot.slane %v4219, 1
      %v4818 = vrot.slane %v4315, 1
      %v4819 = vsel %vm3693, %v4817, %v4818
      %v4820 = vrot.slane %v4220, 1
      %v4821 = vrot.slane %v4316, 1
      %v4822 = vsel %vm3693, %v4820, %v4821
      %v4823 = vrot.slane %v4221, 1
      %v4824 = vrot.slane %v4317, 1
      %v4825 = vsel %vm3693, %v4823, %v4824
      %v4826 = vrot.slane %v4222, 1
      %v4827 = vrot.slane %v4318, 1
      %v4828 = vsel %vm3693, %v4826, %v4827
      %v4829 = vrot.slane %v4223, 1
      %v4830 = vrot.slane %v4319, 1
      %v4831 = vsel %vm3693, %v4829, %v4830
      %v4832 = vrot.slane %v4224, 1
      %v4833 = vrot.slane %v4320, 1
      %v4834 = vsel %vm3693, %v4832, %v4833
      %v4835 = vrot.slane %v4225, 1
      %v4836 = vrot.slane %v4321, 1
      %v4837 = vsel %vm3693, %v4835, %v4836
      %v4838 = vrot.slane %v4226, 1
      %v4839 = vrot.slane %v4322, 1
      %v4840 = vsel %vm3693, %v4838, %v4839
      %v4841 = vrot.slane %v4227, 1
      %v4842 = vrot.slane %v4323, 1
      %v4843 = vsel %vm3693, %v4841, %v4842
      %v4844 = vrot.slane %v4228, 1
      %v4845 = vrot.slane %v4324, 1
      %v4846 = vsel %vm3693, %v4844, %v4845
      %v4847 = vrot.slane %v4229, 1
      %v4848 = vrot.slane %v4325, 1
      %v4849 = vsel %vm3693, %v4847, %v4848
      %v4850 = vrot.slane %v4230, 1
      %v4851 = vrot.slane %v4326, 1
      %v4852 = vsel %vm3693, %v4850, %v4851
      %v4853 = vrot.slane %v4231, 1
      %v4854 = vrot.slane %v4327, 1
      %v4855 = vsel %vm3693, %v4853, %v4854
      %v4856 = vrot.slane %v4232, 1
      %v4857 = vrot.slane %v4328, 1
      %v4858 = vsel %vm3693, %v4856, %v4857
      %v4859 = vrot.slane %v4233, 1
      %v4860 = vrot.slane %v4329, 1
      %v4861 = vsel %vm3693, %v4859, %v4860
      %v4862 = vrot.slane %v4234, 1
      %v4863 = vrot.slane %v4330, 1
      %v4864 = vsel %vm3693, %v4862, %v4863
      %v4865 = vrot.slane %v4235, 1
      %v4866 = vrot.slane %v4331, 1
      %v4867 = vsel %vm3693, %v4865, %v4866
      %v4868 = vrot.slane %v4236, 1
      %v4869 = vrot.slane %v4332, 1
      %v4870 = vsel %vm3693, %v4868, %v4869
      %v4871 = vrot.slane %v4237, 1
      %v4872 = vrot.slane %v4333, 1
      %v4873 = vsel %vm3693, %v4871, %v4872
      %v4874 = vrot.slane %v4238, 1
      %v4875 = vrot.slane %v4334, 1
      %v4876 = vsel %vm3693, %v4874, %v4875
      %v4877 = vrot.slane %v4239, 1
      %v4878 = vrot.slane %v4335, 1
      %v4879 = vsel %vm3693, %v4877, %v4878
      %4880 = vrot.lane.b32.xlu0 %v4786, 8
      %v4881 = vpop.permute.xlu0 %4880
      %4882 = vrot.lane.b32.xlu0 %v4789, 8
      %v4883 = vpop.permute.xlu0 %4882
      %4884 = vrot.lane.b32.xlu0 %v4792, 8
      %v4885 = vpop.permute.xlu0 %4884
      %4886 = vrot.lane.b32.xlu0 %v4795, 8
      %v4887 = vpop.permute.xlu0 %4886
      %4888 = vrot.lane.b32.xlu0 %v4798, 8
      %v4889 = vpop.permute.xlu0 %4888
      %4890 = vrot.lane.b32.xlu0 %v4801, 8
      %v4891 = vpop.permute.xlu0 %4890
      %4892 = vrot.lane.b32.xlu0 %v4804, 8
      %v4893 = vpop.permute.xlu0 %4892
      %4894 = vrot.lane.b32.xlu0 %v4807, 8
      %v4895 = vpop.permute.xlu0 %4894
      %4896 = vrot.lane.b32.xlu0 %v4810, 8
      %v4897 = vpop.permute.xlu0 %4896
      %4898 = vrot.lane.b32.xlu0 %v4813, 8
      %v4899 = vpop.permute.xlu0 %4898
      %4900 = vrot.lane.b32.xlu0 %v4816, 8
      %v4901 = vpop.permute.xlu0 %4900
      %4902 = vrot.lane.b32.xlu0 %v4819, 8
      %v4903 = vpop.permute.xlu0 %4902
      %4904 = vrot.lane.b32.xlu0 %v4822, 8
      %v4905 = vpop.permute.xlu0 %4904
      %4906 = vrot.lane.b32.xlu0 %v4825, 8
      %v4907 = vpop.permute.xlu0 %4906
      %4908 = vrot.lane.b32.xlu0 %v4828, 8
      %v4909 = vpop.permute.xlu0 %4908
      %4910 = vrot.lane.b32.xlu0 %v4831, 8
      %v4911 = vpop.permute.xlu0 %4910
      %4912 = vrot.lane.b32.xlu0 %v4834, 8
      %v4913 = vpop.permute.xlu0 %4912
      %4914 = vrot.lane.b32.xlu0 %v4837, 8
      %v4915 = vpop.permute.xlu0 %4914
      %4916 = vrot.lane.b32.xlu0 %v4840, 8
      %v4917 = vpop.permute.xlu0 %4916
      %4918 = vrot.lane.b32.xlu0 %v4843, 8
      %v4919 = vpop.permute.xlu0 %4918
      %4920 = vrot.lane.b32.xlu0 %v4846, 8
      %v4921 = vpop.permute.xlu0 %4920
      %4922 = vrot.lane.b32.xlu0 %v4849, 8
      %v4923 = vpop.permute.xlu0 %4922
      %4924 = vrot.lane.b32.xlu0 %v4852, 8
      %v4925 = vpop.permute.xlu0 %4924
      %4926 = vrot.lane.b32.xlu0 %v4855, 8
      %v4927 = vpop.permute.xlu0 %4926
      %4928 = vrot.lane.b32.xlu0 %v4858, 8
      %v4929 = vpop.permute.xlu0 %4928
      %4930 = vrot.lane.b32.xlu0 %v4861, 8
      %v4931 = vpop.permute.xlu0 %4930
      %4932 = vrot.lane.b32.xlu0 %v4864, 8
      %v4933 = vpop.permute.xlu0 %4932
      %4934 = vrot.lane.b32.xlu0 %v4867, 8
      %v4935 = vpop.permute.xlu0 %4934
      %4936 = vrot.lane.b32.xlu0 %v4870, 8
      %v4937 = vpop.permute.xlu0 %4936
      %4938 = vrot.lane.b32.xlu0 %v4873, 8
      %v4939 = vpop.permute.xlu0 %4938
      %4940 = vrot.lane.b32.xlu0 %v4876, 8
      %v4941 = vpop.permute.xlu0 %4940
      %4942 = vrot.lane.b32.xlu0 %v4879, 8
      %v4943 = vpop.permute.xlu0 %4942
      %v4945 = vsel %vm1154, %v4208, %v4721
      %v4947 = vsel %vm1154, %v4209, %v4723
      %v4949 = vsel %vm1154, %v4210, %v4725
      %v4951 = vsel %vm1154, %v4211, %v4727
      %v4953 = vsel %vm1154, %v4212, %v4729
      %v4955 = vsel %vm1154, %v4213, %v4731
      %v4957 = vsel %vm1154, %v4214, %v4733
      %v4959 = vsel %vm1154, %v4215, %v4735
      %v4961 = vsel %vm1154, %v4216, %v4737
      %v4963 = vsel %vm1154, %v4217, %v4739
      %v4965 = vsel %vm1154, %v4218, %v4741
      %v4967 = vsel %vm1154, %v4219, %v4743
      %v4969 = vsel %vm1154, %v4220, %v4745
      %v4971 = vsel %vm1154, %v4221, %v4747
      %v4973 = vsel %vm1154, %v4222, %v4749
      %v4975 = vsel %vm1154, %v4223, %v4751
      %v4977 = vsel %vm1154, %v4224, %v4753
      %v4979 = vsel %vm1154, %v4225, %v4755
      %v4981 = vsel %vm1154, %v4226, %v4757
      %v4983 = vsel %vm1154, %v4227, %v4759
      %v4985 = vsel %vm1154, %v4228, %v4761
      %v4987 = vsel %vm1154, %v4229, %v4763
      %v4989 = vsel %vm1154, %v4230, %v4765
      %v4991 = vsel %vm1154, %v4231, %v4767
      %v4993 = vsel %vm1154, %v4232, %v4769
      %v4995 = vsel %vm1154, %v4233, %v4771
      %v4997 = vsel %vm1154, %v4234, %v4773
      %v4999 = vsel %vm1154, %v4235, %v4775
      %v5001 = vsel %vm1154, %v4236, %v4777
      %v5003 = vsel %vm1154, %v4237, %v4779
      %v5005 = vsel %vm1154, %v4238, %v4781
      %v5007 = vsel %vm1154, %v4239, %v4783
      %v5009 = vsel %vm762, %v4945, %v4881
      %v5011 = vsel %vm762, %v4947, %v4883
      %v5013 = vsel %vm762, %v4949, %v4885
      %v5015 = vsel %vm762, %v4951, %v4887
      %v5017 = vsel %vm762, %v4953, %v4889
      %v5019 = vsel %vm762, %v4955, %v4891
      %v5021 = vsel %vm762, %v4957, %v4893
      %v5023 = vsel %vm762, %v4959, %v4895
      %v5025 = vsel %vm762, %v4961, %v4897
      %v5027 = vsel %vm762, %v4963, %v4899
      %v5029 = vsel %vm762, %v4965, %v4901
      %v5031 = vsel %vm762, %v4967, %v4903
      %v5033 = vsel %vm762, %v4969, %v4905
      %v5035 = vsel %vm762, %v4971, %v4907
      %v5037 = vsel %vm762, %v4973, %v4909
      %v5039 = vsel %vm762, %v4975, %v4911
      %v5041 = vsel %vm762, %v4977, %v4913
      %v5043 = vsel %vm762, %v4979, %v4915
      %v5045 = vsel %vm762, %v4981, %v4917
      %v5047 = vsel %vm762, %v4983, %v4919
      %v5049 = vsel %vm762, %v4985, %v4921
      %v5051 = vsel %vm762, %v4987, %v4923
      %v5053 = vsel %vm762, %v4989, %v4925
      %v5055 = vsel %vm762, %v4991, %v4927
      %v5057 = vsel %vm762, %v4993, %v4929
      %v5059 = vsel %vm762, %v4995, %v4931
      %v5061 = vsel %vm762, %v4997, %v4933
      %v5063 = vsel %vm762, %v4999, %v4935
      %v5065 = vsel %vm762, %v5001, %v4937
      %v5067 = vsel %vm762, %v5003, %v4939
      %v5069 = vsel %vm762, %v5005, %v4941
      %v5071 = vsel %vm762, %v5007, %v4943
      %s5072 = scalar_lea.vmem %s304, 8
      %v5073 = vld [vmem:[%s5072] sm:$0xf]
      %v5074 = vld [vmem:[%s5072 + $0x4] sm:$0x3]
      %v5077 = vunpack.c.l.b16 %v5073
      %v5078 = vunpack.c.l.b16 %v5074
      %v5079 = vpack.c.b16 %v5078, %v5077
      %vm5080 = vcmask 97280
      %v5081 = vsel %vm5080, %v5009, 0
      %v5083 = vsel %vm5080, %v5011, 0
      %v5085 = vsel %vm5080, %v5013, 0
      %v5087 = vsel %vm5080, %v5015, 0
      %v5089 = vsel %vm5080, %v5017, 0
      %v5091 = vsel %vm5080, %v5019, 0
      %v5093 = vsel %vm5080, %v5021, 0
      %v5095 = vsel %vm5080, %v5023, 0
      %v5097 = vsel %vm5080, %v5025, 0
      %v5099 = vsel %vm5080, %v5027, 0
      %v5101 = vsel %vm5080, %v5029, 0
      %v5103 = vsel %vm5080, %v5031, 0
      %v5105 = vsel %vm5080, %v5033, 0
      %v5107 = vsel %vm5080, %v5035, 0
      %v5109 = vsel %vm5080, %v5037, 0
      %v5111 = vsel %vm5080, %v5039, 0
      %v5113 = vsel %vm5080, %v5041, 0
      %v5115 = vsel %vm5080, %v5043, 0
      %v5117 = vsel %vm5080, %v5045, 0
      %v5119 = vsel %vm5080, %v5047, 0
      %v5121 = vsel %vm5080, %v5049, 0
      %v5123 = vsel %vm5080, %v5051, 0
      %v5125 = vsel %vm5080, %v5053, 0
      %v5127 = vsel %vm5080, %v5055, 0
      %v5129 = vsel %vm5080, %v5057, 0
      %v5131 = vsel %vm5080, %v5059, 0
      %v5133 = vsel %vm5080, %v5061, 0
      %v5135 = vsel %vm5080, %v5063, 0
      %v5137 = vsel %vm5080, %v5065, 0
      %v5139 = vsel %vm5080, %v5067, 0
      %v5141 = vsel %vm5080, %v5069, 0
      %v5143 = vsel %vm5080, %v5071, 0
      %vm5145 = vcmask 1045504
      %v5147 = vsel %vm5145, %v5079, 0
      %5149 = vmatprep.subr.bf16.mxu0 0
      %5150 = vmatpush1.bf16.msra.mxu0 0
      %5151 = vmatprep.subr.bf16.mxu0 0
      %5152 = vmatpush1.bf16.msra.mxu0 0
      %5153 = vmatprep.subr.bf16.mxu0 0
      %5154 = vmatpush1.bf16.msra.mxu0 0
      %5155 = vmatprep.subr.bf16.mxu0 0
      %5156 = vmatpush1.bf16.msra.mxu0 0
      %5157 = vmatprep.subr.bf16.mxu0 0
      %5158 = vmatpush1.bf16.msra.mxu0 0
      %5159 = vmatprep.subr.bf16.mxu0 0
      %5160 = vmatpush1.bf16.msra.mxu0 0
      %5161 = vmatprep.subr.bf16.mxu0 0
      %5162 = vmatpush1.bf16.msra.mxu0 0
      %5163 = vmatprep.subr.bf16.mxu0 0
      %5164 = vmatpush1.bf16.msra.mxu0 %v5147
      %5165 = vmatprep.subr.bf16.mxu0 0
      %5166 = vmatpush2.bf16.msra.mxu0 0
      %5167 = vmatprep.subr.bf16.mxu0 0
      %5168 = vmatpush2.bf16.msra.mxu0 0
      %5169 = vmatprep.subr.bf16.mxu0 0
      %5170 = vmatpush2.bf16.msra.mxu0 0
      %5171 = vmatprep.subr.bf16.mxu0 0
      %5172 = vmatpush2.bf16.msra.mxu0 0
      %5173 = vmatprep.subr.bf16.mxu0 0
      %5174 = vmatpush2.bf16.msra.mxu0 0
      %5175 = vmatprep.subr.bf16.mxu0 0
      %5176 = vmatpush2.bf16.msra.mxu0 0
      %5177 = vmatprep.subr.bf16.mxu0 0
      %5178 = vmatpush2.bf16.msra.mxu0 0
      %5179 = vmatprep.subr.bf16.mxu0 0
      %5180 = vmatpush2.bf16.msra.mxu0 0
      %5181 = vmatprep.mubr.bf16.mxu0 0
      %5182 = vmatmul.mubr.bf16.gmra.mxu0 %v5081
      %v5183 = vpop.f32.mrf.mxu0
      %v5184 = vadd.f32 0.0, %v5183
      %v5185 = vpop.f32.mrf.mxu0
      %v5186 = vpop.f32.mrf.mxu0
      %v5187 = vadd.f32 0.0, %v5186
      %v5188 = vpop.f32.mrf.mxu0
      %5189 = vmatprep.mubr.bf16.mxu0 0
      %5190 = vmatmul.mubr.bf16.gmra.mxu0 %v5083
      %v5191 = vpop.f32.mrf.mxu0
      %v5192 = vadd.f32 0.0, %v5191
      %v5193 = vpop.f32.mrf.mxu0
      %v5194 = vpop.f32.mrf.mxu0
      %v5195 = vadd.f32 0.0, %v5194
      %v5196 = vpop.f32.mrf.mxu0
      %5197 = vmatprep.mubr.bf16.mxu0 0
      %5198 = vmatmul.mubr.bf16.gmra.mxu0 %v5085
      %v5199 = vpop.f32.mrf.mxu0
      %v5200 = vadd.f32 0.0, %v5199
      %v5201 = vpop.f32.mrf.mxu0
      %v5202 = vpop.f32.mrf.mxu0
      %v5203 = vadd.f32 0.0, %v5202
      %v5204 = vpop.f32.mrf.mxu0
      %5205 = vmatprep.mubr.bf16.mxu0 0
      %5206 = vmatmul.mubr.bf16.gmra.mxu0 %v5087
      %v5207 = vpop.f32.mrf.mxu0
      %v5208 = vadd.f32 0.0, %v5207
      %v5209 = vpop.f32.mrf.mxu0
      %v5210 = vpop.f32.mrf.mxu0
      %v5211 = vadd.f32 0.0, %v5210
      %v5212 = vpop.f32.mrf.mxu0
      %5213 = vmatprep.mubr.bf16.mxu0 0
      %5214 = vmatmul.mubr.bf16.gmra.mxu0 %v5089
      %v5215 = vpop.f32.mrf.mxu0
      %v5216 = vadd.f32 0.0, %v5215
      %v5217 = vpop.f32.mrf.mxu0
      %v5218 = vpop.f32.mrf.mxu0
      %v5219 = vadd.f32 0.0, %v5218
      %v5220 = vpop.f32.mrf.mxu0
      %5221 = vmatprep.mubr.bf16.mxu0 0
      %5222 = vmatmul.mubr.bf16.gmra.mxu0 %v5091
      %v5223 = vpop.f32.mrf.mxu0
      %v5224 = vadd.f32 0.0, %v5223
      %v5225 = vpop.f32.mrf.mxu0
      %v5226 = vpop.f32.mrf.mxu0
      %v5227 = vadd.f32 0.0, %v5226
      %v5228 = vpop.f32.mrf.mxu0
      %5229 = vmatprep.mubr.bf16.mxu0 0
      %5230 = vmatmul.mubr.bf16.gmra.mxu0 %v5093
      %v5231 = vpop.f32.mrf.mxu0
      %v5232 = vadd.f32 0.0, %v5231
      %v5233 = vpop.f32.mrf.mxu0
      %v5234 = vpop.f32.mrf.mxu0
      %v5235 = vadd.f32 0.0, %v5234
      %v5236 = vpop.f32.mrf.mxu0
      %5237 = vmatprep.mubr.bf16.mxu0 0
      %5238 = vmatmul.mubr.bf16.gmra.mxu0 %v5095
      %v5239 = vpop.f32.mrf.mxu0
      %v5240 = vadd.f32 0.0, %v5239
      %v5241 = vpop.f32.mrf.mxu0
      %v5242 = vpop.f32.mrf.mxu0
      %v5243 = vadd.f32 0.0, %v5242
      %v5244 = vpop.f32.mrf.mxu0
      %5245 = vmatprep.mubr.bf16.mxu0 0
      %5246 = vmatmul.mubr.bf16.gmra.mxu0 %v5097
      %v5247 = vpop.f32.mrf.mxu0
      %v5248 = vadd.f32 0.0, %v5247
      %v5249 = vpop.f32.mrf.mxu0
      %v5250 = vpop.f32.mrf.mxu0
      %v5251 = vadd.f32 0.0, %v5250
      %v5252 = vpop.f32.mrf.mxu0
      %5253 = vmatprep.mubr.bf16.mxu0 0
      %5254 = vmatmul.mubr.bf16.gmra.mxu0 %v5099
      %v5255 = vpop.f32.mrf.mxu0
      %v5256 = vadd.f32 0.0, %v5255
      %v5257 = vpop.f32.mrf.mxu0
      %v5258 = vpop.f32.mrf.mxu0
      %v5259 = vadd.f32 0.0, %v5258
      %v5260 = vpop.f32.mrf.mxu0
      %5261 = vmatprep.mubr.bf16.mxu0 0
      %5262 = vmatmul.mubr.bf16.gmra.mxu0 %v5101
      %v5263 = vpop.f32.mrf.mxu0
      %v5264 = vadd.f32 0.0, %v5263
      %v5265 = vpop.f32.mrf.mxu0
      %v5266 = vpop.f32.mrf.mxu0
      %v5267 = vadd.f32 0.0, %v5266
      %v5268 = vpop.f32.mrf.mxu0
      %5269 = vmatprep.mubr.bf16.mxu0 0
      %5270 = vmatmul.mubr.bf16.gmra.mxu0 %v5103
      %v5271 = vpop.f32.mrf.mxu0
      %v5272 = vadd.f32 0.0, %v5271
      %v5273 = vpop.f32.mrf.mxu0
      %v5274 = vpop.f32.mrf.mxu0
      %v5275 = vadd.f32 0.0, %v5274
      %v5276 = vpop.f32.mrf.mxu0
      %5277 = vmatprep.mubr.bf16.mxu0 0
      %5278 = vmatmul.mubr.bf16.gmra.mxu0 %v5105
      %v5279 = vpop.f32.mrf.mxu0
      %v5280 = vadd.f32 0.0, %v5279
      %v5281 = vpop.f32.mrf.mxu0
      %v5282 = vpop.f32.mrf.mxu0
      %v5283 = vadd.f32 0.0, %v5282
      %v5284 = vpop.f32.mrf.mxu0
      %5285 = vmatprep.mubr.bf16.mxu0 0
      %5286 = vmatmul.mubr.bf16.gmra.mxu0 %v5107
      %v5287 = vpop.f32.mrf.mxu0
      %v5288 = vadd.f32 0.0, %v5287
      %v5289 = vpop.f32.mrf.mxu0
      %v5290 = vpop.f32.mrf.mxu0
      %v5291 = vadd.f32 0.0, %v5290
      %v5292 = vpop.f32.mrf.mxu0
      %5293 = vmatprep.mubr.bf16.mxu0 0
      %5294 = vmatmul.mubr.bf16.gmra.mxu0 %v5109
      %v5295 = vpop.f32.mrf.mxu0
      %v5296 = vadd.f32 0.0, %v5295
      %v5297 = vpop.f32.mrf.mxu0
      %v5298 = vpop.f32.mrf.mxu0
      %v5299 = vadd.f32 0.0, %v5298
      %v5300 = vpop.f32.mrf.mxu0
      %5301 = vmatprep.mubr.bf16.mxu0 0
      %5302 = vmatmul.mubr.bf16.gmra.mxu0 %v5111
      %v5303 = vpop.f32.mrf.mxu0
      %v5304 = vadd.f32 0.0, %v5303
      %v5305 = vpop.f32.mrf.mxu0
      %v5306 = vpop.f32.mrf.mxu0
      %v5307 = vadd.f32 0.0, %v5306
      %v5308 = vpop.f32.mrf.mxu0
      %5309 = vmatprep.mubr.bf16.mxu0 0
      %5310 = vmatmul.mubr.bf16.gmra.mxu0 %v5113
      %v5311 = vpop.f32.mrf.mxu0
      %v5312 = vadd.f32 0.0, %v5311
      %v5313 = vpop.f32.mrf.mxu0
      %v5314 = vpop.f32.mrf.mxu0
      %v5315 = vadd.f32 0.0, %v5314
      %v5316 = vpop.f32.mrf.mxu0
      %5317 = vmatprep.mubr.bf16.mxu0 0
      %5318 = vmatmul.mubr.bf16.gmra.mxu0 %v5115
      %v5319 = vpop.f32.mrf.mxu0
      %v5320 = vadd.f32 0.0, %v5319
      %v5321 = vpop.f32.mrf.mxu0
      %v5322 = vpop.f32.mrf.mxu0
      %v5323 = vadd.f32 0.0, %v5322
      %v5324 = vpop.f32.mrf.mxu0
      %5325 = vmatprep.mubr.bf16.mxu0 0
      %5326 = vmatmul.mubr.bf16.gmra.mxu0 %v5117
      %v5327 = vpop.f32.mrf.mxu0
      %v5328 = vadd.f32 0.0, %v5327
      %v5329 = vpop.f32.mrf.mxu0
      %v5330 = vpop.f32.mrf.mxu0
      %v5331 = vadd.f32 0.0, %v5330
      %v5332 = vpop.f32.mrf.mxu0
      %5333 = vmatprep.mubr.bf16.mxu0 0
      %5334 = vmatmul.mubr.bf16.gmra.mxu0 %v5119
      %v5335 = vpop.f32.mrf.mxu0
      %v5336 = vadd.f32 0.0, %v5335
      %v5337 = vpop.f32.mrf.mxu0
      %v5338 = vpop.f32.mrf.mxu0
      %v5339 = vadd.f32 0.0, %v5338
      %v5340 = vpop.f32.mrf.mxu0
      %5341 = vmatprep.mubr.bf16.mxu0 0
      %5342 = vmatmul.mubr.bf16.gmra.mxu0 %v5121
      %v5343 = vpop.f32.mrf.mxu0
      %v5344 = vadd.f32 0.0, %v5343
      %v5345 = vpop.f32.mrf.mxu0
      %v5346 = vpop.f32.mrf.mxu0
      %v5347 = vadd.f32 0.0, %v5346
      %v5348 = vpop.f32.mrf.mxu0
      %5349 = vmatprep.mubr.bf16.mxu0 0
      %5350 = vmatmul.mubr.bf16.gmra.mxu0 %v5123
      %v5351 = vpop.f32.mrf.mxu0
      %v5352 = vadd.f32 0.0, %v5351
      %v5353 = vpop.f32.mrf.mxu0
      %v5354 = vpop.f32.mrf.mxu0
      %v5355 = vadd.f32 0.0, %v5354
      %v5356 = vpop.f32.mrf.mxu0
      %5357 = vmatprep.mubr.bf16.mxu0 0
      %5358 = vmatmul.mubr.bf16.gmra.mxu0 %v5125
      %v5359 = vpop.f32.mrf.mxu0
      %v5360 = vadd.f32 0.0, %v5359
      %v5361 = vpop.f32.mrf.mxu0
      %v5362 = vpop.f32.mrf.mxu0
      %v5363 = vadd.f32 0.0, %v5362
      %v5364 = vpop.f32.mrf.mxu0
      %5365 = vmatprep.mubr.bf16.mxu0 0
      %5366 = vmatmul.mubr.bf16.gmra.mxu0 %v5127
      %v5367 = vpop.f32.mrf.mxu0
      %v5368 = vadd.f32 0.0, %v5367
      %v5369 = vpop.f32.mrf.mxu0
      %v5370 = vpop.f32.mrf.mxu0
      %v5371 = vadd.f32 0.0, %v5370
      %v5372 = vpop.f32.mrf.mxu0
      %5373 = vmatprep.mubr.bf16.mxu0 0
      %5374 = vmatmul.mubr.bf16.gmra.mxu0 %v5129
      %v5375 = vpop.f32.mrf.mxu0
      %v5376 = vadd.f32 0.0, %v5375
      %v5377 = vpop.f32.mrf.mxu0
      %v5378 = vpop.f32.mrf.mxu0
      %v5379 = vadd.f32 0.0, %v5378
      %v5380 = vpop.f32.mrf.mxu0
      %5381 = vmatprep.mubr.bf16.mxu0 0
      %5382 = vmatmul.mubr.bf16.gmra.mxu0 %v5131
      %v5383 = vpop.f32.mrf.mxu0
      %v5384 = vadd.f32 0.0, %v5383
      %v5385 = vpop.f32.mrf.mxu0
      %v5386 = vpop.f32.mrf.mxu0
      %v5387 = vadd.f32 0.0, %v5386
      %v5388 = vpop.f32.mrf.mxu0
      %5389 = vmatprep.mubr.bf16.mxu0 0
      %5390 = vmatmul.mubr.bf16.gmra.mxu0 %v5133
      %v5391 = vpop.f32.mrf.mxu0
      %v5392 = vadd.f32 0.0, %v5391
      %v5393 = vpop.f32.mrf.mxu0
      %v5394 = vpop.f32.mrf.mxu0
      %v5395 = vadd.f32 0.0, %v5394
      %v5396 = vpop.f32.mrf.mxu0
      %5397 = vmatprep.mubr.bf16.mxu0 0
      %5398 = vmatmul.mubr.bf16.gmra.mxu0 %v5135
      %v5399 = vpop.f32.mrf.mxu0
      %v5400 = vadd.f32 0.0, %v5399
      %v5401 = vpop.f32.mrf.mxu0
      %v5402 = vpop.f32.mrf.mxu0
      %v5403 = vadd.f32 0.0, %v5402
      %v5404 = vpop.f32.mrf.mxu0
      %5405 = vmatprep.mubr.bf16.mxu0 0
      %5406 = vmatmul.mubr.bf16.gmra.mxu0 %v5137
      %v5407 = vpop.f32.mrf.mxu0
      %v5408 = vadd.f32 0.0, %v5407
      %v5409 = vpop.f32.mrf.mxu0
      %v5410 = vpop.f32.mrf.mxu0
      %v5411 = vadd.f32 0.0, %v5410
      %v5412 = vpop.f32.mrf.mxu0
      %5413 = vmatprep.mubr.bf16.mxu0 0
      %5414 = vmatmul.mubr.bf16.gmra.mxu0 %v5139
      %v5415 = vpop.f32.mrf.mxu0
      %v5416 = vadd.f32 0.0, %v5415
      %v5417 = vpop.f32.mrf.mxu0
      %v5418 = vpop.f32.mrf.mxu0
      %v5419 = vadd.f32 0.0, %v5418
      %v5420 = vpop.f32.mrf.mxu0
      %5421 = vmatprep.mubr.bf16.mxu0 0
      %5422 = vmatmul.mubr.bf16.gmra.mxu0 %v5141
      %v5423 = vpop.f32.mrf.mxu0
      %v5424 = vadd.f32 0.0, %v5423
      %v5425 = vpop.f32.mrf.mxu0
      %v5426 = vpop.f32.mrf.mxu0
      %v5427 = vadd.f32 0.0, %v5426
      %v5428 = vpop.f32.mrf.mxu0
      %5429 = vmatprep.mubr.bf16.mxu0 0
      %5430 = vmatmul.mubr.bf16.gmra.mxu0 %v5143
      %v5431 = vpop.f32.mrf.mxu0
      %v5432 = vadd.f32 0.0, %v5431
      %v5433 = vpop.f32.mrf.mxu0
      %v5434 = vpop.f32.mrf.mxu0
      %v5435 = vadd.f32 0.0, %v5434
      %v5436 = vpop.f32.mrf.mxu0
      %5437 = vdwg.mxu0
      %v5440 = vunpack.c.l.b16 %v3982
      %v5441 = vunpack.c.l.b16 %v3983
      %v5442 = vpack.c.b16 %v5441, %v5440
      %v5443 = vsel %vm5080, %v3919, 0
      %v5445 = vsel %vm5080, %v3921, 0
      %v5447 = vsel %vm5080, %v3923, 0
      %v5449 = vsel %vm5080, %v3925, 0
      %v5451 = vsel %vm5080, %v3927, 0
      %v5453 = vsel %vm5080, %v3929, 0
      %v5455 = vsel %vm5080, %v3931, 0
      %v5457 = vsel %vm5080, %v3933, 0
      %v5459 = vsel %vm5080, %v3935, 0
      %v5461 = vsel %vm5080, %v3937, 0
      %v5463 = vsel %vm5080, %v3939, 0
      %v5465 = vsel %vm5080, %v3941, 0
      %v5467 = vsel %vm5080, %v3943, 0
      %v5469 = vsel %vm5080, %v3945, 0
      %v5471 = vsel %vm5080, %v3947, 0
      %v5473 = vsel %vm5080, %v3949, 0
      %v5475 = vsel %vm5080, %v3951, 0
      %v5477 = vsel %vm5080, %v3953, 0
      %v5479 = vsel %vm5080, %v3955, 0
      %v5481 = vsel %vm5080, %v3957, 0
      %v5483 = vsel %vm5080, %v3959, 0
      %v5485 = vsel %vm5080, %v3961, 0
      %v5487 = vsel %vm5080, %v3963, 0
      %v5489 = vsel %vm5080, %v3965, 0
      %v5491 = vsel %vm5080, %v3967, 0
      %v5493 = vsel %vm5080, %v3969, 0
      %v5495 = vsel %vm5080, %v3971, 0
      %v5497 = vsel %vm5080, %v3973, 0
      %v5499 = vsel %vm5080, %v3975, 0
      %v5501 = vsel %vm5080, %v3977, 0
      %v5503 = vsel %vm5080, %v3979, 0
      %v5505 = vsel %vm5080, %v3981, 0
      %v5508 = vsel %vm5145, %v5442, 0
      %5510 = vmatprep.subr.bf16.mxu0 0
      %5511 = vmatpush1.bf16.msra.mxu0 0
      %5512 = vmatprep.subr.bf16.mxu0 0
      %5513 = vmatpush1.bf16.msra.mxu0 0
      %5514 = vmatprep.subr.bf16.mxu0 0
      %5515 = vmatpush1.bf16.msra.mxu0 0
      %5516 = vmatprep.subr.bf16.mxu0 0
      %5517 = vmatpush1.bf16.msra.mxu0 0
      %5518 = vmatprep.subr.bf16.mxu0 0
      %5519 = vmatpush1.bf16.msra.mxu0 0
      %5520 = vmatprep.subr.bf16.mxu0 0
      %5521 = vmatpush1.bf16.msra.mxu0 0
      %5522 = vmatprep.subr.bf16.mxu0 0
      %5523 = vmatpush1.bf16.msra.mxu0 0
      %5524 = vmatprep.subr.bf16.mxu0 0
      %5525 = vmatpush1.bf16.msra.mxu0 %v5508
      %5526 = vmatprep.subr.bf16.mxu0 0
      %5527 = vmatpush2.bf16.msra.mxu0 0
      %5528 = vmatprep.subr.bf16.mxu0 0
      %5529 = vmatpush2.bf16.msra.mxu0 0
      %5530 = vmatprep.subr.bf16.mxu0 0
      %5531 = vmatpush2.bf16.msra.mxu0 0
      %5532 = vmatprep.subr.bf16.mxu0 0
      %5533 = vmatpush2.bf16.msra.mxu0 0
      %5534 = vmatprep.subr.bf16.mxu0 0
      %5535 = vmatpush2.bf16.msra.mxu0 0
      %5536 = vmatprep.subr.bf16.mxu0 0
      %5537 = vmatpush2.bf16.msra.mxu0 0
      %5538 = vmatprep.subr.bf16.mxu0 0
      %5539 = vmatpush2.bf16.msra.mxu0 0
      %5540 = vmatprep.subr.bf16.mxu0 0
      %5541 = vmatpush2.bf16.msra.mxu0 0
      %5542 = vmatprep.mubr.bf16.mxu0 0
      %5543 = vmatmul.mubr.bf16.gmra.mxu0 %v5443
      %v5544 = vpop.f32.mrf.mxu0
      %v5545 = vadd.f32 %v5184, %v5544
      %v5546 = vpop.f32.mrf.mxu0
      %v5547 = vpop.f32.mrf.mxu0
      %v5548 = vadd.f32 %v5187, %v5547
      %v5549 = vpop.f32.mrf.mxu0
      %5550 = vmatprep.mubr.bf16.mxu0 0
      %5551 = vmatmul.mubr.bf16.gmra.mxu0 %v5445
      %v5552 = vpop.f32.mrf.mxu0
      %v5553 = vadd.f32 %v5192, %v5552
      %v5554 = vpop.f32.mrf.mxu0
      %v5555 = vpop.f32.mrf.mxu0
      %v5556 = vadd.f32 %v5195, %v5555
      %v5557 = vpop.f32.mrf.mxu0
      %5558 = vmatprep.mubr.bf16.mxu0 0
      %5559 = vmatmul.mubr.bf16.gmra.mxu0 %v5447
      %v5560 = vpop.f32.mrf.mxu0
      %v5561 = vadd.f32 %v5200, %v5560
      %v5562 = vpop.f32.mrf.mxu0
      %v5563 = vpop.f32.mrf.mxu0
      %v5564 = vadd.f32 %v5203, %v5563
      %v5565 = vpop.f32.mrf.mxu0
      %5566 = vmatprep.mubr.bf16.mxu0 0
      %5567 = vmatmul.mubr.bf16.gmra.mxu0 %v5449
      %v5568 = vpop.f32.mrf.mxu0
      %v5569 = vadd.f32 %v5208, %v5568
      %v5570 = vpop.f32.mrf.mxu0
      %v5571 = vpop.f32.mrf.mxu0
      %v5572 = vadd.f32 %v5211, %v5571
      %v5573 = vpop.f32.mrf.mxu0
      %5574 = vmatprep.mubr.bf16.mxu0 0
      %5575 = vmatmul.mubr.bf16.gmra.mxu0 %v5451
      %v5576 = vpop.f32.mrf.mxu0
      %v5577 = vadd.f32 %v5216, %v5576
      %v5578 = vpop.f32.mrf.mxu0
      %v5579 = vpop.f32.mrf.mxu0
      %v5580 = vadd.f32 %v5219, %v5579
      %v5581 = vpop.f32.mrf.mxu0
      %5582 = vmatprep.mubr.bf16.mxu0 0
      %5583 = vmatmul.mubr.bf16.gmra.mxu0 %v5453
      %v5584 = vpop.f32.mrf.mxu0
      %v5585 = vadd.f32 %v5224, %v5584
      %v5586 = vpop.f32.mrf.mxu0
      %v5587 = vpop.f32.mrf.mxu0
      %v5588 = vadd.f32 %v5227, %v5587
      %v5589 = vpop.f32.mrf.mxu0
      %5590 = vmatprep.mubr.bf16.mxu0 0
      %5591 = vmatmul.mubr.bf16.gmra.mxu0 %v5455
      %v5592 = vpop.f32.mrf.mxu0
      %v5593 = vadd.f32 %v5232, %v5592
      %v5594 = vpop.f32.mrf.mxu0
      %v5595 = vpop.f32.mrf.mxu0
      %v5596 = vadd.f32 %v5235, %v5595
      %v5597 = vpop.f32.mrf.mxu0
      %5598 = vmatprep.mubr.bf16.mxu0 0
      %5599 = vmatmul.mubr.bf16.gmra.mxu0 %v5457
      %v5600 = vpop.f32.mrf.mxu0
      %v5601 = vadd.f32 %v5240, %v5600
      %v5602 = vpop.f32.mrf.mxu0
      %v5603 = vpop.f32.mrf.mxu0
      %v5604 = vadd.f32 %v5243, %v5603
      %v5605 = vpop.f32.mrf.mxu0
      %5606 = vmatprep.mubr.bf16.mxu0 0
      %5607 = vmatmul.mubr.bf16.gmra.mxu0 %v5459
      %v5608 = vpop.f32.mrf.mxu0
      %v5609 = vadd.f32 %v5248, %v5608
      %v5610 = vpop.f32.mrf.mxu0
      %v5611 = vpop.f32.mrf.mxu0
      %v5612 = vadd.f32 %v5251, %v5611
      %v5613 = vpop.f32.mrf.mxu0
      %5614 = vmatprep.mubr.bf16.mxu0 0
      %5615 = vmatmul.mubr.bf16.gmra.mxu0 %v5461
      %v5616 = vpop.f32.mrf.mxu0
      %v5617 = vadd.f32 %v5256, %v5616
      %v5618 = vpop.f32.mrf.mxu0
      %v5619 = vpop.f32.mrf.mxu0
      %v5620 = vadd.f32 %v5259, %v5619
      %v5621 = vpop.f32.mrf.mxu0
      %5622 = vmatprep.mubr.bf16.mxu0 0
      %5623 = vmatmul.mubr.bf16.gmra.mxu0 %v5463
      %v5624 = vpop.f32.mrf.mxu0
      %v5625 = vadd.f32 %v5264, %v5624
      %v5626 = vpop.f32.mrf.mxu0
      %v5627 = vpop.f32.mrf.mxu0
      %v5628 = vadd.f32 %v5267, %v5627
      %v5629 = vpop.f32.mrf.mxu0
      %5630 = vmatprep.mubr.bf16.mxu0 0
      %5631 = vmatmul.mubr.bf16.gmra.mxu0 %v5465
      %v5632 = vpop.f32.mrf.mxu0
      %v5633 = vadd.f32 %v5272, %v5632
      %v5634 = vpop.f32.mrf.mxu0
      %v5635 = vpop.f32.mrf.mxu0
      %v5636 = vadd.f32 %v5275, %v5635
      %v5637 = vpop.f32.mrf.mxu0
      %5638 = vmatprep.mubr.bf16.mxu0 0
      %5639 = vmatmul.mubr.bf16.gmra.mxu0 %v5467
      %v5640 = vpop.f32.mrf.mxu0
      %v5641 = vadd.f32 %v5280, %v5640
      %v5642 = vpop.f32.mrf.mxu0
      %v5643 = vpop.f32.mrf.mxu0
      %v5644 = vadd.f32 %v5283, %v5643
      %v5645 = vpop.f32.mrf.mxu0
      %5646 = vmatprep.mubr.bf16.mxu0 0
      %5647 = vmatmul.mubr.bf16.gmra.mxu0 %v5469
      %v5648 = vpop.f32.mrf.mxu0
      %v5649 = vadd.f32 %v5288, %v5648
      %v5650 = vpop.f32.mrf.mxu0
      %v5651 = vpop.f32.mrf.mxu0
      %v5652 = vadd.f32 %v5291, %v5651
      %v5653 = vpop.f32.mrf.mxu0
      %5654 = vmatprep.mubr.bf16.mxu0 0
      %5655 = vmatmul.mubr.bf16.gmra.mxu0 %v5471
      %v5656 = vpop.f32.mrf.mxu0
      %v5657 = vadd.f32 %v5296, %v5656
      %v5658 = vpop.f32.mrf.mxu0
      %v5659 = vpop.f32.mrf.mxu0
      %v5660 = vadd.f32 %v5299, %v5659
      %v5661 = vpop.f32.mrf.mxu0
      %5662 = vmatprep.mubr.bf16.mxu0 0
      %5663 = vmatmul.mubr.bf16.gmra.mxu0 %v5473
      %v5664 = vpop.f32.mrf.mxu0
      %v5665 = vadd.f32 %v5304, %v5664
      %v5666 = vpop.f32.mrf.mxu0
      %v5667 = vpop.f32.mrf.mxu0
      %v5668 = vadd.f32 %v5307, %v5667
      %v5669 = vpop.f32.mrf.mxu0
      %5670 = vmatprep.mubr.bf16.mxu0 0
      %5671 = vmatmul.mubr.bf16.gmra.mxu0 %v5475
      %v5672 = vpop.f32.mrf.mxu0
      %v5673 = vadd.f32 %v5312, %v5672
      %v5674 = vpop.f32.mrf.mxu0
      %v5675 = vpop.f32.mrf.mxu0
      %v5676 = vadd.f32 %v5315, %v5675
      %v5677 = vpop.f32.mrf.mxu0
      %5678 = vmatprep.mubr.bf16.mxu0 0
      %5679 = vmatmul.mubr.bf16.gmra.mxu0 %v5477
      %v5680 = vpop.f32.mrf.mxu0
      %v5681 = vadd.f32 %v5320, %v5680
      %v5682 = vpop.f32.mrf.mxu0
      %v5683 = vpop.f32.mrf.mxu0
      %v5684 = vadd.f32 %v5323, %v5683
      %v5685 = vpop.f32.mrf.mxu0
      %5686 = vmatprep.mubr.bf16.mxu0 0
      %5687 = vmatmul.mubr.bf16.gmra.mxu0 %v5479
      %v5688 = vpop.f32.mrf.mxu0
      %v5689 = vadd.f32 %v5328, %v5688
      %v5690 = vpop.f32.mrf.mxu0
      %v5691 = vpop.f32.mrf.mxu0
      %v5692 = vadd.f32 %v5331, %v5691
      %v5693 = vpop.f32.mrf.mxu0
      %5694 = vmatprep.mubr.bf16.mxu0 0
      %5695 = vmatmul.mubr.bf16.gmra.mxu0 %v5481
      %v5696 = vpop.f32.mrf.mxu0
      %v5697 = vadd.f32 %v5336, %v5696
      %v5698 = vpop.f32.mrf.mxu0
      %v5699 = vpop.f32.mrf.mxu0
      %v5700 = vadd.f32 %v5339, %v5699
      %v5701 = vpop.f32.mrf.mxu0
      %5702 = vmatprep.mubr.bf16.mxu0 0
      %5703 = vmatmul.mubr.bf16.gmra.mxu0 %v5483
      %v5704 = vpop.f32.mrf.mxu0
      %v5705 = vadd.f32 %v5344, %v5704
      %v5706 = vpop.f32.mrf.mxu0
      %v5707 = vpop.f32.mrf.mxu0
      %v5708 = vadd.f32 %v5347, %v5707
      %v5709 = vpop.f32.mrf.mxu0
      %5710 = vmatprep.mubr.bf16.mxu0 0
      %5711 = vmatmul.mubr.bf16.gmra.mxu0 %v5485
      %v5712 = vpop.f32.mrf.mxu0
      %v5713 = vadd.f32 %v5352, %v5712
      %v5714 = vpop.f32.mrf.mxu0
      %v5715 = vpop.f32.mrf.mxu0
      %v5716 = vadd.f32 %v5355, %v5715
      %v5717 = vpop.f32.mrf.mxu0
      %5718 = vmatprep.mubr.bf16.mxu0 0
      %5719 = vmatmul.mubr.bf16.gmra.mxu0 %v5487
      %v5720 = vpop.f32.mrf.mxu0
      %v5721 = vadd.f32 %v5360, %v5720
      %v5722 = vpop.f32.mrf.mxu0
      %v5723 = vpop.f32.mrf.mxu0
      %v5724 = vadd.f32 %v5363, %v5723
      %v5725 = vpop.f32.mrf.mxu0
      %5726 = vmatprep.mubr.bf16.mxu0 0
      %5727 = vmatmul.mubr.bf16.gmra.mxu0 %v5489
      %v5728 = vpop.f32.mrf.mxu0
      %v5729 = vadd.f32 %v5368, %v5728
      %v5730 = vpop.f32.mrf.mxu0
      %v5731 = vpop.f32.mrf.mxu0
      %v5732 = vadd.f32 %v5371, %v5731
      %v5733 = vpop.f32.mrf.mxu0
      %5734 = vmatprep.mubr.bf16.mxu0 0
      %5735 = vmatmul.mubr.bf16.gmra.mxu0 %v5491
      %v5736 = vpop.f32.mrf.mxu0
      %v5737 = vadd.f32 %v5376, %v5736
      %v5738 = vpop.f32.mrf.mxu0
      %v5739 = vpop.f32.mrf.mxu0
      %v5740 = vadd.f32 %v5379, %v5739
      %v5741 = vpop.f32.mrf.mxu0
      %5742 = vmatprep.mubr.bf16.mxu0 0
      %5743 = vmatmul.mubr.bf16.gmra.mxu0 %v5493
      %v5744 = vpop.f32.mrf.mxu0
      %v5745 = vadd.f32 %v5384, %v5744
      %v5746 = vpop.f32.mrf.mxu0
      %v5747 = vpop.f32.mrf.mxu0
      %v5748 = vadd.f32 %v5387, %v5747
      %v5749 = vpop.f32.mrf.mxu0
      %5750 = vmatprep.mubr.bf16.mxu0 0
      %5751 = vmatmul.mubr.bf16.gmra.mxu0 %v5495
      %v5752 = vpop.f32.mrf.mxu0
      %v5753 = vadd.f32 %v5392, %v5752
      %v5754 = vpop.f32.mrf.mxu0
      %v5755 = vpop.f32.mrf.mxu0
      %v5756 = vadd.f32 %v5395, %v5755
      %v5757 = vpop.f32.mrf.mxu0
      %5758 = vmatprep.mubr.bf16.mxu0 0
      %5759 = vmatmul.mubr.bf16.gmra.mxu0 %v5497
      %v5760 = vpop.f32.mrf.mxu0
      %v5761 = vadd.f32 %v5400, %v5760
      %v5762 = vpop.f32.mrf.mxu0
      %v5763 = vpop.f32.mrf.mxu0
      %v5764 = vadd.f32 %v5403, %v5763
      %v5765 = vpop.f32.mrf.mxu0
      %5766 = vmatprep.mubr.bf16.mxu0 0
      %5767 = vmatmul.mubr.bf16.gmra.mxu0 %v5499
      %v5768 = vpop.f32.mrf.mxu0
      %v5769 = vadd.f32 %v5408, %v5768
      %v5770 = vpop.f32.mrf.mxu0
      %v5771 = vpop.f32.mrf.mxu0
      %v5772 = vadd.f32 %v5411, %v5771
      %v5773 = vpop.f32.mrf.mxu0
      %5774 = vmatprep.mubr.bf16.mxu0 0
      %5775 = vmatmul.mubr.bf16.gmra.mxu0 %v5501
      %v5776 = vpop.f32.mrf.mxu0
      %v5777 = vadd.f32 %v5416, %v5776
      %v5778 = vpop.f32.mrf.mxu0
      %v5779 = vpop.f32.mrf.mxu0
      %v5780 = vadd.f32 %v5419, %v5779
      %v5781 = vpop.f32.mrf.mxu0
      %5782 = vmatprep.mubr.bf16.mxu0 0
      %5783 = vmatmul.mubr.bf16.gmra.mxu0 %v5503
      %v5784 = vpop.f32.mrf.mxu0
      %v5785 = vadd.f32 %v5424, %v5784
      %v5786 = vpop.f32.mrf.mxu0
      %v5787 = vpop.f32.mrf.mxu0
      %v5788 = vadd.f32 %v5427, %v5787
      %v5789 = vpop.f32.mrf.mxu0
      %5790 = vmatprep.mubr.bf16.mxu0 0
      %5791 = vmatmul.mubr.bf16.gmra.mxu0 %v5505
      %v5792 = vpop.f32.mrf.mxu0
      %v5793 = vadd.f32 %v5432, %v5792
      %v5794 = vpop.f32.mrf.mxu0
      %v5795 = vpop.f32.mrf.mxu0
      %v5796 = vadd.f32 %v5435, %v5795
      %v5797 = vpop.f32.mrf.mxu0
      %5798 = vdwg.mxu0
      %s5799 = scalar_lea.vmem [#allocation2], 24
      %v5800 = vld [vmem:[%s5799] sm:$0xf]
      %v5801 = vld [vmem:[%s5799 + $0x4] sm:$0xf]
      %v5802 = vld [vmem:[%s5799 + $0x8] sm:$0x1]
      %v5803 = vld [vmem:[%s5799 + $0xc] sm:$0xf]
      %v5804 = vld [vmem:[%s5799 + $0x10] sm:$0xf]
      %v5805 = vld [vmem:[%s5799 + $0x14] sm:$0x1]
      %v5806 = vld [vmem:[%s5799 + $0x18] sm:$0xf]
      %v5807 = vld [vmem:[%s5799 + $0x1c] sm:$0xf]
      %v5808 = vld [vmem:[%s5799 + $0x20] sm:$0x1]
      %v5809 = vld [vmem:[%s5799 + $0x24] sm:$0xf]
      %v5810 = vld [vmem:[%s5799 + $0x28] sm:$0xf]
      %v5811 = vld [vmem:[%s5799 + $0x2c] sm:$0x1]
      %v5812 = vld [vmem:[%s5799 + $0x30] sm:$0xf]
      %v5813 = vld [vmem:[%s5799 + $0x34] sm:$0xf]
      %v5814 = vld [vmem:[%s5799 + $0x38] sm:$0x1]
      %v5815 = vld [vmem:[%s5799 + $0x3c] sm:$0xf]
      %v5816 = vld [vmem:[%s5799 + $0x40] sm:$0xf]
      %v5817 = vld [vmem:[%s5799 + $0x44] sm:$0x1]
      %v5818 = vld [vmem:[%s5799 + $0x48] sm:$0xf]
      %v5819 = vld [vmem:[%s5799 + $0x4c] sm:$0xf]
      %v5820 = vld [vmem:[%s5799 + $0x50] sm:$0x1]
      %v5821 = vld [vmem:[%s5799 + $0x54] sm:$0xf]
      %v5822 = vld [vmem:[%s5799 + $0x58] sm:$0xf]
      %v5823 = vld [vmem:[%s5799 + $0x5c] sm:$0x1]
      %v5824 = vld [vmem:[%s5799 + $0x60] sm:$0xf]
      %v5825 = vld [vmem:[%s5799 + $0x64] sm:$0xf]
      %v5826 = vld [vmem:[%s5799 + $0x68] sm:$0x1]
      %v5827 = vld [vmem:[%s5799 + $0x6c] sm:$0xf]
      %v5828 = vld [vmem:[%s5799 + $0x70] sm:$0xf]
      %v5829 = vld [vmem:[%s5799 + $0x74] sm:$0x1]
      %v5830 = vld [vmem:[%s5799 + $0x78] sm:$0xf]
      %v5831 = vld [vmem:[%s5799 + $0x7c] sm:$0xf]
      %v5832 = vld [vmem:[%s5799 + $0x80] sm:$0x1]
      %v5833 = vld [vmem:[%s5799 + $0x84] sm:$0xf]
      %v5834 = vld [vmem:[%s5799 + $0x88] sm:$0xf]
      %v5835 = vld [vmem:[%s5799 + $0x8c] sm:$0x1]
      %v5836 = vld [vmem:[%s5799 + $0x90] sm:$0xf]
      %v5837 = vld [vmem:[%s5799 + $0x94] sm:$0xf]
      %v5838 = vld [vmem:[%s5799 + $0x98] sm:$0x1]
      %v5839 = vld [vmem:[%s5799 + $0x9c] sm:$0xf]
      %v5840 = vld [vmem:[%s5799 + $0xa0] sm:$0xf]
      %v5841 = vld [vmem:[%s5799 + $0xa4] sm:$0x1]
      %v5842 = vld [vmem:[%s5799 + $0xa8] sm:$0xf]
      %v5843 = vld [vmem:[%s5799 + $0xac] sm:$0xf]
      %v5844 = vld [vmem:[%s5799 + $0xb0] sm:$0x1]
      %v5845 = vld [vmem:[%s5799 + $0xb4] sm:$0xf]
      %v5846 = vld [vmem:[%s5799 + $0xb8] sm:$0xf]
      %v5847 = vld [vmem:[%s5799 + $0xbc] sm:$0x1]
      %v5848 = vld [vmem:[%s5799 + $0xd8] sm:$0xf]
      %v5849 = vld [vmem:[%s5799 + $0xdc] sm:$0xf]
      %v5850 = vld [vmem:[%s5799 + $0xe0] sm:$0x1]
      %v5851 = vld [vmem:[%s5799 + $0xe4] sm:$0xf]
      %v5852 = vld [vmem:[%s5799 + $0xe8] sm:$0xf]
      %v5853 = vld [vmem:[%s5799 + $0xec] sm:$0x1]
      %v5854 = vld [vmem:[%s5799 + $0xf0] sm:$0xf]
      %v5855 = vld [vmem:[%s5799 + $0xf4] sm:$0xf]
      %v5856 = vld [vmem:[%s5799 + $0xf8] sm:$0x1]
      %v5857 = vld [vmem:[%s5799 + $0xfc] sm:$0xf]
      %v5858 = vld [vmem:[%s5799 + $0x100] sm:$0xf]
      %v5859 = vld [vmem:[%s5799 + $0x104] sm:$0x1]
      %v5860 = vld [vmem:[%s5799 + $0x108] sm:$0xf]
      %v5861 = vld [vmem:[%s5799 + $0x10c] sm:$0xf]
      %v5862 = vld [vmem:[%s5799 + $0x110] sm:$0x1]
      %v5863 = vld [vmem:[%s5799 + $0x114] sm:$0xf]
      %v5864 = vld [vmem:[%s5799 + $0x118] sm:$0xf]
      %v5865 = vld [vmem:[%s5799 + $0x11c] sm:$0x1]
      %v5866 = vld [vmem:[%s5799 + $0x120] sm:$0xf]
      %v5867 = vld [vmem:[%s5799 + $0x124] sm:$0xf]
      %v5868 = vld [vmem:[%s5799 + $0x128] sm:$0x1]
      %v5869 = vld [vmem:[%s5799 + $0x12c] sm:$0xf]
      %v5870 = vld [vmem:[%s5799 + $0x130] sm:$0xf]
      %v5871 = vld [vmem:[%s5799 + $0x134] sm:$0x1]
      %v5872 = vld [vmem:[%s5799 + $0x138] sm:$0xf]
      %v5873 = vld [vmem:[%s5799 + $0x13c] sm:$0xf]
      %v5874 = vld [vmem:[%s5799 + $0x140] sm:$0x1]
      %v5875 = vld [vmem:[%s5799 + $0x144] sm:$0xf]
      %v5876 = vld [vmem:[%s5799 + $0x148] sm:$0xf]
      %v5877 = vld [vmem:[%s5799 + $0x14c] sm:$0x1]
      %v5878 = vld [vmem:[%s5799 + $0x150] sm:$0xf]
      %v5879 = vld [vmem:[%s5799 + $0x154] sm:$0xf]
      %v5880 = vld [vmem:[%s5799 + $0x158] sm:$0x1]
      %v5881 = vld [vmem:[%s5799 + $0x15c] sm:$0xf]
      %v5882 = vld [vmem:[%s5799 + $0x160] sm:$0xf]
      %v5883 = vld [vmem:[%s5799 + $0x164] sm:$0x1]
      %v5884 = vld [vmem:[%s5799 + $0x168] sm:$0xf]
      %v5885 = vld [vmem:[%s5799 + $0x16c] sm:$0xf]
      %v5886 = vld [vmem:[%s5799 + $0x170] sm:$0x1]
      %v5887 = vld [vmem:[%s5799 + $0x174] sm:$0xf]
      %v5888 = vld [vmem:[%s5799 + $0x178] sm:$0xf]
      %v5889 = vld [vmem:[%s5799 + $0x17c] sm:$0x1]
      %v5890 = vld [vmem:[%s5799 + $0x180] sm:$0xf]
      %v5891 = vld [vmem:[%s5799 + $0x184] sm:$0xf]
      %v5892 = vld [vmem:[%s5799 + $0x188] sm:$0x1]
      %v5893 = vld [vmem:[%s5799 + $0x18c] sm:$0xf]
      %v5894 = vld [vmem:[%s5799 + $0x190] sm:$0xf]
      %v5895 = vld [vmem:[%s5799 + $0x194] sm:$0x1]
      %v5960 = vunpack.c.l.b16 %v5800
      %v5961 = vunpack.c.l.b16 %v5801
      %v5962 = vunpack.c.l.b16 %v5803
      %v5963 = vunpack.c.l.b16 %v5804
      %v5964 = vunpack.c.l.b16 %v5806
      %v5965 = vunpack.c.l.b16 %v5807
      %v5966 = vunpack.c.l.b16 %v5809
      %v5967 = vunpack.c.l.b16 %v5810
      %v5968 = vunpack.c.l.b16 %v5812
      %v5969 = vunpack.c.l.b16 %v5813
      %v5970 = vunpack.c.l.b16 %v5815
      %v5971 = vunpack.c.l.b16 %v5816
      %v5972 = vunpack.c.l.b16 %v5818
      %v5973 = vunpack.c.l.b16 %v5819
      %v5974 = vunpack.c.l.b16 %v5821
      %v5975 = vunpack.c.l.b16 %v5822
      %v5976 = vunpack.c.l.b16 %v5824
      %v5977 = vunpack.c.l.b16 %v5825
      %v5978 = vunpack.c.l.b16 %v5827
      %v5979 = vunpack.c.l.b16 %v5828
      %v5980 = vunpack.c.l.b16 %v5830
      %v5981 = vunpack.c.l.b16 %v5831
      %v5982 = vunpack.c.l.b16 %v5833
      %v5983 = vunpack.c.l.b16 %v5834
      %v5984 = vunpack.c.l.b16 %v5836
      %v5985 = vunpack.c.l.b16 %v5837
      %v5986 = vunpack.c.l.b16 %v5839
      %v5987 = vunpack.c.l.b16 %v5840
      %v5988 = vunpack.c.l.b16 %v5842
      %v5989 = vunpack.c.l.b16 %v5843
      %v5990 = vunpack.c.l.b16 %v5845
      %v5991 = vunpack.c.l.b16 %v5846
      %v5992 = vunpack.c.l.b16 %v5848
      %v5993 = vunpack.c.l.b16 %v5849
      %v5994 = vunpack.c.l.b16 %v5851
      %v5995 = vunpack.c.l.b16 %v5852
      %v5996 = vunpack.c.l.b16 %v5854
      %v5997 = vunpack.c.l.b16 %v5855
      %v5998 = vunpack.c.l.b16 %v5857
      %v5999 = vunpack.c.l.b16 %v5858
      %v6000 = vunpack.c.l.b16 %v5860
      %v6001 = vunpack.c.l.b16 %v5861
      %v6002 = vunpack.c.l.b16 %v5863
      %v6003 = vunpack.c.l.b16 %v5864
      %v6004 = vunpack.c.l.b16 %v5866
      %v6005 = vunpack.c.l.b16 %v5867
      %v6006 = vunpack.c.l.b16 %v5869
      %v6007 = vunpack.c.l.b16 %v5870
      %v6008 = vunpack.c.l.b16 %v5872
      %v6009 = vunpack.c.l.b16 %v5873
      %v6010 = vunpack.c.l.b16 %v5875
      %v6011 = vunpack.c.l.b16 %v5876
      %v6012 = vunpack.c.l.b16 %v5878
      %v6013 = vunpack.c.l.b16 %v5879
      %v6014 = vunpack.c.l.b16 %v5881
      %v6015 = vunpack.c.l.b16 %v5882
      %v6016 = vunpack.c.l.b16 %v5884
      %v6017 = vunpack.c.l.b16 %v5885
      %v6018 = vunpack.c.l.b16 %v5887
      %v6019 = vunpack.c.l.b16 %v5888
      %v6020 = vunpack.c.l.b16 %v5890
      %v6021 = vunpack.c.l.b16 %v5891
      %v6022 = vunpack.c.l.b16 %v5893
      %v6023 = vunpack.c.l.b16 %v5894
      %v6024 = vpack.c.b16 %v5961, %v5960
      %v6025 = vpack.c.b16 %v5963, %v5962
      %v6026 = vpack.c.b16 %v5965, %v5964
      %v6027 = vpack.c.b16 %v5967, %v5966
      %v6028 = vpack.c.b16 %v5969, %v5968
      %v6029 = vpack.c.b16 %v5971, %v5970
      %v6030 = vpack.c.b16 %v5973, %v5972
      %v6031 = vpack.c.b16 %v5975, %v5974
      %v6032 = vpack.c.b16 %v5977, %v5976
      %v6033 = vpack.c.b16 %v5979, %v5978
      %v6034 = vpack.c.b16 %v5981, %v5980
      %v6035 = vpack.c.b16 %v5983, %v5982
      %v6036 = vpack.c.b16 %v5985, %v5984
      %v6037 = vpack.c.b16 %v5987, %v5986
      %v6038 = vpack.c.b16 %v5989, %v5988
      %v6039 = vpack.c.b16 %v5991, %v5990
      %v6040 = vpack.c.b16 %v5993, %v5992
      %v6041 = vpack.c.b16 %v5995, %v5994
      %v6042 = vpack.c.b16 %v5997, %v5996
      %v6043 = vpack.c.b16 %v5999, %v5998
      %v6044 = vpack.c.b16 %v6001, %v6000
      %v6045 = vpack.c.b16 %v6003, %v6002
      %v6046 = vpack.c.b16 %v6005, %v6004
      %v6047 = vpack.c.b16 %v6007, %v6006
      %v6048 = vpack.c.b16 %v6009, %v6008
      %v6049 = vpack.c.b16 %v6011, %v6010
      %v6050 = vpack.c.b16 %v6013, %v6012
      %v6051 = vpack.c.b16 %v6015, %v6014
      %v6052 = vpack.c.b16 %v6017, %v6016
      %v6053 = vpack.c.b16 %v6019, %v6018
      %v6054 = vpack.c.b16 %v6021, %v6020
      %v6055 = vpack.c.b16 %v6023, %v6022
      %v6088 = vunpack.c.l.b16 %v5802
      %v6089 = vunpack.c.l.b16 %v5805
      %v6090 = vunpack.c.l.b16 %v5808
      %v6091 = vunpack.c.l.b16 %v5811
      %v6092 = vunpack.c.l.b16 %v5814
      %v6093 = vunpack.c.l.b16 %v5817
      %v6094 = vunpack.c.l.b16 %v5820
      %v6095 = vunpack.c.l.b16 %v5823
      %v6096 = vunpack.c.l.b16 %v5826
      %v6097 = vunpack.c.l.b16 %v5829
      %v6098 = vunpack.c.l.b16 %v5832
      %v6099 = vunpack.c.l.b16 %v5835
      %v6100 = vunpack.c.l.b16 %v5838
      %v6101 = vunpack.c.l.b16 %v5841
      %v6102 = vunpack.c.l.b16 %v5844
      %v6103 = vunpack.c.l.b16 %v5847
      %v6104 = vunpack.c.l.b16 %v5850
      %v6105 = vunpack.c.l.b16 %v5853
      %v6106 = vunpack.c.l.b16 %v5856
      %v6107 = vunpack.c.l.b16 %v5859
      %v6108 = vunpack.c.l.b16 %v5862
      %v6109 = vunpack.c.l.b16 %v5865
      %v6110 = vunpack.c.l.b16 %v5868
      %v6111 = vunpack.c.l.b16 %v5871
      %v6112 = vunpack.c.l.b16 %v5874
      %v6113 = vunpack.c.l.b16 %v5877
      %v6114 = vunpack.c.l.b16 %v5880
      %v6115 = vunpack.c.l.b16 %v5883
      %v6116 = vunpack.c.l.b16 %v5886
      %v6117 = vunpack.c.l.b16 %v5889
      %v6118 = vunpack.c.l.b16 %v5892
      %v6119 = vunpack.c.l.b16 %v5895
      %v6120 = vpack.c.b16 %v6088, %v6088
      %v6121 = vpack.c.b16 %v6089, %v6089
      %v6122 = vpack.c.b16 %v6090, %v6090
      %v6123 = vpack.c.b16 %v6091, %v6091
      %v6124 = vpack.c.b16 %v6092, %v6092
      %v6125 = vpack.c.b16 %v6093, %v6093
      %v6126 = vpack.c.b16 %v6094, %v6094
      %v6127 = vpack.c.b16 %v6095, %v6095
      %v6128 = vpack.c.b16 %v6096, %v6096
      %v6129 = vpack.c.b16 %v6097, %v6097
      %v6130 = vpack.c.b16 %v6098, %v6098
      %v6131 = vpack.c.b16 %v6099, %v6099
      %v6132 = vpack.c.b16 %v6100, %v6100
      %v6133 = vpack.c.b16 %v6101, %v6101
      %v6134 = vpack.c.b16 %v6102, %v6102
      %v6135 = vpack.c.b16 %v6103, %v6103
      %v6136 = vpack.c.b16 %v6104, %v6104
      %v6137 = vpack.c.b16 %v6105, %v6105
      %v6138 = vpack.c.b16 %v6106, %v6106
      %v6139 = vpack.c.b16 %v6107, %v6107
      %v6140 = vpack.c.b16 %v6108, %v6108
      %v6141 = vpack.c.b16 %v6109, %v6109
      %v6142 = vpack.c.b16 %v6110, %v6110
      %v6143 = vpack.c.b16 %v6111, %v6111
      %v6144 = vpack.c.b16 %v6112, %v6112
      %v6145 = vpack.c.b16 %v6113, %v6113
      %v6146 = vpack.c.b16 %v6114, %v6114
      %v6147 = vpack.c.b16 %v6115, %v6115
      %v6148 = vpack.c.b16 %v6116, %v6116
      %v6149 = vpack.c.b16 %v6117, %v6117
      %v6150 = vpack.c.b16 %v6118, %v6118
      %v6151 = vpack.c.b16 %v6119, %v6119
      %v6153 = vshrl.u32 %v6024, 16
      %v6155 = vshll.u32 %v6024, 16
      %v6157 = vrot.slane %v6155, 1
      %v6158 = vor.u32 %v6153, %v6157
      %v6160 = vshll.u32 %v6120, 16
      %v6162 = vrot.slane %v6160, 1
      %v6163 = vsel %vm3244, %v6158, %v6162
      %v6165 = vshrl.u32 %v6025, 16
      %v6167 = vshll.u32 %v6025, 16
      %v6169 = vrot.slane %v6167, 1
      %v6170 = vor.u32 %v6165, %v6169
      %v6172 = vshll.u32 %v6121, 16
      %v6174 = vrot.slane %v6172, 1
      %v6175 = vsel %vm3244, %v6170, %v6174
      %v6177 = vshrl.u32 %v6026, 16
      %v6179 = vshll.u32 %v6026, 16
      %v6181 = vrot.slane %v6179, 1
      %v6182 = vor.u32 %v6177, %v6181
      %v6184 = vshll.u32 %v6122, 16
      %v6186 = vrot.slane %v6184, 1
      %v6187 = vsel %vm3244, %v6182, %v6186
      %v6189 = vshrl.u32 %v6027, 16
      %v6191 = vshll.u32 %v6027, 16
      %v6193 = vrot.slane %v6191, 1
      %v6194 = vor.u32 %v6189, %v6193
      %v6196 = vshll.u32 %v6123, 16
      %v6198 = vrot.slane %v6196, 1
      %v6199 = vsel %vm3244, %v6194, %v6198
      %v6201 = vshrl.u32 %v6028, 16
      %v6203 = vshll.u32 %v6028, 16
      %v6205 = vrot.slane %v6203, 1
      %v6206 = vor.u32 %v6201, %v6205
      %v6208 = vshll.u32 %v6124, 16
      %v6210 = vrot.slane %v6208, 1
      %v6211 = vsel %vm3244, %v6206, %v6210
      %v6213 = vshrl.u32 %v6029, 16
      %v6215 = vshll.u32 %v6029, 16
      %v6217 = vrot.slane %v6215, 1
      %v6218 = vor.u32 %v6213, %v6217
      %v6220 = vshll.u32 %v6125, 16
      %v6222 = vrot.slane %v6220, 1
      %v6223 = vsel %vm3244, %v6218, %v6222
      %v6225 = vshrl.u32 %v6030, 16
      %v6227 = vshll.u32 %v6030, 16
      %v6229 = vrot.slane %v6227, 1
      %v6230 = vor.u32 %v6225, %v6229
      %v6232 = vshll.u32 %v6126, 16
      %v6234 = vrot.slane %v6232, 1
      %v6235 = vsel %vm3244, %v6230, %v6234
      %v6237 = vshrl.u32 %v6031, 16
      %v6239 = vshll.u32 %v6031, 16
      %v6241 = vrot.slane %v6239, 1
      %v6242 = vor.u32 %v6237, %v6241
      %v6244 = vshll.u32 %v6127, 16
      %v6246 = vrot.slane %v6244, 1
      %v6247 = vsel %vm3244, %v6242, %v6246
      %v6249 = vshrl.u32 %v6032, 16
      %v6251 = vshll.u32 %v6032, 16
      %v6253 = vrot.slane %v6251, 1
      %v6254 = vor.u32 %v6249, %v6253
      %v6256 = vshll.u32 %v6128, 16
      %v6258 = vrot.slane %v6256, 1
      %v6259 = vsel %vm3244, %v6254, %v6258
      %v6261 = vshrl.u32 %v6033, 16
      %v6263 = vshll.u32 %v6033, 16
      %v6265 = vrot.slane %v6263, 1
      %v6266 = vor.u32 %v6261, %v6265
      %v6268 = vshll.u32 %v6129, 16
      %v6270 = vrot.slane %v6268, 1
      %v6271 = vsel %vm3244, %v6266, %v6270
      %v6273 = vshrl.u32 %v6034, 16
      %v6275 = vshll.u32 %v6034, 16
      %v6277 = vrot.slane %v6275, 1
      %v6278 = vor.u32 %v6273, %v6277
      %v6280 = vshll.u32 %v6130, 16
      %v6282 = vrot.slane %v6280, 1
      %v6283 = vsel %vm3244, %v6278, %v6282
      %v6285 = vshrl.u32 %v6035, 16
      %v6287 = vshll.u32 %v6035, 16
      %v6289 = vrot.slane %v6287, 1
      %v6290 = vor.u32 %v6285, %v6289
      %v6292 = vshll.u32 %v6131, 16
      %v6294 = vrot.slane %v6292, 1
      %v6295 = vsel %vm3244, %v6290, %v6294
      %v6297 = vshrl.u32 %v6036, 16
      %v6299 = vshll.u32 %v6036, 16
      %v6301 = vrot.slane %v6299, 1
      %v6302 = vor.u32 %v6297, %v6301
      %v6304 = vshll.u32 %v6132, 16
      %v6306 = vrot.slane %v6304, 1
      %v6307 = vsel %vm3244, %v6302, %v6306
      %v6309 = vshrl.u32 %v6037, 16
      %v6311 = vshll.u32 %v6037, 16
      %v6313 = vrot.slane %v6311, 1
      %v6314 = vor.u32 %v6309, %v6313
      %v6316 = vshll.u32 %v6133, 16
      %v6318 = vrot.slane %v6316, 1
      %v6319 = vsel %vm3244, %v6314, %v6318
      %v6321 = vshrl.u32 %v6038, 16
      %v6323 = vshll.u32 %v6038, 16
      %v6325 = vrot.slane %v6323, 1
      %v6326 = vor.u32 %v6321, %v6325
      %v6328 = vshll.u32 %v6134, 16
      %v6330 = vrot.slane %v6328, 1
      %v6331 = vsel %vm3244, %v6326, %v6330
      %v6333 = vshrl.u32 %v6039, 16
      %v6335 = vshll.u32 %v6039, 16
      %v6337 = vrot.slane %v6335, 1
      %v6338 = vor.u32 %v6333, %v6337
      %v6340 = vshll.u32 %v6135, 16
      %v6342 = vrot.slane %v6340, 1
      %v6343 = vsel %vm3244, %v6338, %v6342
      %v6345 = vshrl.u32 %v6040, 16
      %v6347 = vshll.u32 %v6040, 16
      %v6349 = vrot.slane %v6347, 1
      %v6350 = vor.u32 %v6345, %v6349
      %v6352 = vshll.u32 %v6136, 16
      %v6354 = vrot.slane %v6352, 1
      %v6355 = vsel %vm3244, %v6350, %v6354
      %v6357 = vshrl.u32 %v6041, 16
      %v6359 = vshll.u32 %v6041, 16
      %v6361 = vrot.slane %v6359, 1
      %v6362 = vor.u32 %v6357, %v6361
      %v6364 = vshll.u32 %v6137, 16
      %v6366 = vrot.slane %v6364, 1
      %v6367 = vsel %vm3244, %v6362, %v6366
      %v6369 = vshrl.u32 %v6042, 16
      %v6371 = vshll.u32 %v6042, 16
      %v6373 = vrot.slane %v6371, 1
      %v6374 = vor.u32 %v6369, %v6373
      %v6376 = vshll.u32 %v6138, 16
      %v6378 = vrot.slane %v6376, 1
      %v6379 = vsel %vm3244, %v6374, %v6378
      %v6381 = vshrl.u32 %v6043, 16
      %v6383 = vshll.u32 %v6043, 16
      %v6385 = vrot.slane %v6383, 1
      %v6386 = vor.u32 %v6381, %v6385
      %v6388 = vshll.u32 %v6139, 16
      %v6390 = vrot.slane %v6388, 1
      %v6391 = vsel %vm3244, %v6386, %v6390
      %v6393 = vshrl.u32 %v6044, 16
      %v6395 = vshll.u32 %v6044, 16
      %v6397 = vrot.slane %v6395, 1
      %v6398 = vor.u32 %v6393, %v6397
      %v6400 = vshll.u32 %v6140, 16
      %v6402 = vrot.slane %v6400, 1
      %v6403 = vsel %vm3244, %v6398, %v6402
      %v6405 = vshrl.u32 %v6045, 16
      %v6407 = vshll.u32 %v6045, 16
      %v6409 = vrot.slane %v6407, 1
      %v6410 = vor.u32 %v6405, %v6409
      %v6412 = vshll.u32 %v6141, 16
      %v6414 = vrot.slane %v6412, 1
      %v6415 = vsel %vm3244, %v6410, %v6414
      %v6417 = vshrl.u32 %v6046, 16
      %v6419 = vshll.u32 %v6046, 16
      %v6421 = vrot.slane %v6419, 1
      %v6422 = vor.u32 %v6417, %v6421
      %v6424 = vshll.u32 %v6142, 16
      %v6426 = vrot.slane %v6424, 1
      %v6427 = vsel %vm3244, %v6422, %v6426
      %v6429 = vshrl.u32 %v6047, 16
      %v6431 = vshll.u32 %v6047, 16
      %v6433 = vrot.slane %v6431, 1
      %v6434 = vor.u32 %v6429, %v6433
      %v6436 = vshll.u32 %v6143, 16
      %v6438 = vrot.slane %v6436, 1
      %v6439 = vsel %vm3244, %v6434, %v6438
      %v6441 = vshrl.u32 %v6048, 16
      %v6443 = vshll.u32 %v6048, 16
      %v6445 = vrot.slane %v6443, 1
      %v6446 = vor.u32 %v6441, %v6445
      %v6448 = vshll.u32 %v6144, 16
      %v6450 = vrot.slane %v6448, 1
      %v6451 = vsel %vm3244, %v6446, %v6450
      %v6453 = vshrl.u32 %v6049, 16
      %v6455 = vshll.u32 %v6049, 16
      %v6457 = vrot.slane %v6455, 1
      %v6458 = vor.u32 %v6453, %v6457
      %v6460 = vshll.u32 %v6145, 16
      %v6462 = vrot.slane %v6460, 1
      %v6463 = vsel %vm3244, %v6458, %v6462
      %v6465 = vshrl.u32 %v6050, 16
      %v6467 = vshll.u32 %v6050, 16
      %v6469 = vrot.slane %v6467, 1
      %v6470 = vor.u32 %v6465, %v6469
      %v6472 = vshll.u32 %v6146, 16
      %v6474 = vrot.slane %v6472, 1
      %v6475 = vsel %vm3244, %v6470, %v6474
      %v6477 = vshrl.u32 %v6051, 16
      %v6479 = vshll.u32 %v6051, 16
      %v6481 = vrot.slane %v6479, 1
      %v6482 = vor.u32 %v6477, %v6481
      %v6484 = vshll.u32 %v6147, 16
      %v6486 = vrot.slane %v6484, 1
      %v6487 = vsel %vm3244, %v6482, %v6486
      %v6489 = vshrl.u32 %v6052, 16
      %v6491 = vshll.u32 %v6052, 16
      %v6493 = vrot.slane %v6491, 1
      %v6494 = vor.u32 %v6489, %v6493
      %v6496 = vshll.u32 %v6148, 16
      %v6498 = vrot.slane %v6496, 1
      %v6499 = vsel %vm3244, %v6494, %v6498
      %v6501 = vshrl.u32 %v6053, 16
      %v6503 = vshll.u32 %v6053, 16
      %v6505 = vrot.slane %v6503, 1
      %v6506 = vor.u32 %v6501, %v6505
      %v6508 = vshll.u32 %v6149, 16
      %v6510 = vrot.slane %v6508, 1
      %v6511 = vsel %vm3244, %v6506, %v6510
      %v6513 = vshrl.u32 %v6054, 16
      %v6515 = vshll.u32 %v6054, 16
      %v6517 = vrot.slane %v6515, 1
      %v6518 = vor.u32 %v6513, %v6517
      %v6520 = vshll.u32 %v6150, 16
      %v6522 = vrot.slane %v6520, 1
      %v6523 = vsel %vm3244, %v6518, %v6522
      %v6525 = vshrl.u32 %v6055, 16
      %v6527 = vshll.u32 %v6055, 16
      %v6529 = vrot.slane %v6527, 1
      %v6530 = vor.u32 %v6525, %v6529
      %v6532 = vshll.u32 %v6151, 16
      %v6534 = vrot.slane %v6532, 1
      %v6535 = vsel %vm3244, %v6530, %v6534
      %6536 = vrot.lane.b32.xlu0 %v6163, 4
      %v6537 = vpop.permute.xlu0 %6536
      %6538 = vrot.lane.b32.xlu0 %v6175, 4
      %v6539 = vpop.permute.xlu0 %6538
      %6540 = vrot.lane.b32.xlu0 %v6187, 4
      %v6541 = vpop.permute.xlu0 %6540
      %6542 = vrot.lane.b32.xlu0 %v6199, 4
      %v6543 = vpop.permute.xlu0 %6542
      %6544 = vrot.lane.b32.xlu0 %v6211, 4
      %v6545 = vpop.permute.xlu0 %6544
      %6546 = vrot.lane.b32.xlu0 %v6223, 4
      %v6547 = vpop.permute.xlu0 %6546
      %6548 = vrot.lane.b32.xlu0 %v6235, 4
      %v6549 = vpop.permute.xlu0 %6548
      %6550 = vrot.lane.b32.xlu0 %v6247, 4
      %v6551 = vpop.permute.xlu0 %6550
      %6552 = vrot.lane.b32.xlu0 %v6259, 4
      %v6553 = vpop.permute.xlu0 %6552
      %6554 = vrot.lane.b32.xlu0 %v6271, 4
      %v6555 = vpop.permute.xlu0 %6554
      %6556 = vrot.lane.b32.xlu0 %v6283, 4
      %v6557 = vpop.permute.xlu0 %6556
      %6558 = vrot.lane.b32.xlu0 %v6295, 4
      %v6559 = vpop.permute.xlu0 %6558
      %6560 = vrot.lane.b32.xlu0 %v6307, 4
      %v6561 = vpop.permute.xlu0 %6560
      %6562 = vrot.lane.b32.xlu0 %v6319, 4
      %v6563 = vpop.permute.xlu0 %6562
      %6564 = vrot.lane.b32.xlu0 %v6331, 4
      %v6565 = vpop.permute.xlu0 %6564
      %6566 = vrot.lane.b32.xlu0 %v6343, 4
      %v6567 = vpop.permute.xlu0 %6566
      %6568 = vrot.lane.b32.xlu0 %v6355, 4
      %v6569 = vpop.permute.xlu0 %6568
      %6570 = vrot.lane.b32.xlu0 %v6367, 4
      %v6571 = vpop.permute.xlu0 %6570
      %6572 = vrot.lane.b32.xlu0 %v6379, 4
      %v6573 = vpop.permute.xlu0 %6572
      %6574 = vrot.lane.b32.xlu0 %v6391, 4
      %v6575 = vpop.permute.xlu0 %6574
      %6576 = vrot.lane.b32.xlu0 %v6403, 4
      %v6577 = vpop.permute.xlu0 %6576
      %6578 = vrot.lane.b32.xlu0 %v6415, 4
      %v6579 = vpop.permute.xlu0 %6578
      %6580 = vrot.lane.b32.xlu0 %v6427, 4
      %v6581 = vpop.permute.xlu0 %6580
      %6582 = vrot.lane.b32.xlu0 %v6439, 4
      %v6583 = vpop.permute.xlu0 %6582
      %6584 = vrot.lane.b32.xlu0 %v6451, 4
      %v6585 = vpop.permute.xlu0 %6584
      %6586 = vrot.lane.b32.xlu0 %v6463, 4
      %v6587 = vpop.permute.xlu0 %6586
      %6588 = vrot.lane.b32.xlu0 %v6475, 4
      %v6589 = vpop.permute.xlu0 %6588
      %6590 = vrot.lane.b32.xlu0 %v6487, 4
      %v6591 = vpop.permute.xlu0 %6590
      %6592 = vrot.lane.b32.xlu0 %v6499, 4
      %v6593 = vpop.permute.xlu0 %6592
      %6594 = vrot.lane.b32.xlu0 %v6511, 4
      %v6595 = vpop.permute.xlu0 %6594
      %6596 = vrot.lane.b32.xlu0 %v6523, 4
      %v6597 = vpop.permute.xlu0 %6596
      %6598 = vrot.lane.b32.xlu0 %v6535, 4
      %v6599 = vpop.permute.xlu0 %6598
      %v6600 = vrot.slane %v6024, 1
      %v6601 = vrot.slane %v6120, 1
      %v6602 = vsel %vm3693, %v6600, %v6601
      %v6603 = vrot.slane %v6025, 1
      %v6604 = vrot.slane %v6121, 1
      %v6605 = vsel %vm3693, %v6603, %v6604
      %v6606 = vrot.slane %v6026, 1
      %v6607 = vrot.slane %v6122, 1
      %v6608 = vsel %vm3693, %v6606, %v6607
      %v6609 = vrot.slane %v6027, 1
      %v6610 = vrot.slane %v6123, 1
      %v6611 = vsel %vm3693, %v6609, %v6610
      %v6612 = vrot.slane %v6028, 1
      %v6613 = vrot.slane %v6124, 1
      %v6614 = vsel %vm3693, %v6612, %v6613
      %v6615 = vrot.slane %v6029, 1
      %v6616 = vrot.slane %v6125, 1
      %v6617 = vsel %vm3693, %v6615, %v6616
      %v6618 = vrot.slane %v6030, 1
      %v6619 = vrot.slane %v6126, 1
      %v6620 = vsel %vm3693, %v6618, %v6619
      %v6621 = vrot.slane %v6031, 1
      %v6622 = vrot.slane %v6127, 1
      %v6623 = vsel %vm3693, %v6621, %v6622
      %v6624 = vrot.slane %v6032, 1
      %v6625 = vrot.slane %v6128, 1
      %v6626 = vsel %vm3693, %v6624, %v6625
      %v6627 = vrot.slane %v6033, 1
      %v6628 = vrot.slane %v6129, 1
      %v6629 = vsel %vm3693, %v6627, %v6628
      %v6630 = vrot.slane %v6034, 1
      %v6631 = vrot.slane %v6130, 1
      %v6632 = vsel %vm3693, %v6630, %v6631
      %v6633 = vrot.slane %v6035, 1
      %v6634 = vrot.slane %v6131, 1
      %v6635 = vsel %vm3693, %v6633, %v6634
      %v6636 = vrot.slane %v6036, 1
      %v6637 = vrot.slane %v6132, 1
      %v6638 = vsel %vm3693, %v6636, %v6637
      %v6639 = vrot.slane %v6037, 1
      %v6640 = vrot.slane %v6133, 1
      %v6641 = vsel %vm3693, %v6639, %v6640
      %v6642 = vrot.slane %v6038, 1
      %v6643 = vrot.slane %v6134, 1
      %v6644 = vsel %vm3693, %v6642, %v6643
      %v6645 = vrot.slane %v6039, 1
      %v6646 = vrot.slane %v6135, 1
      %v6647 = vsel %vm3693, %v6645, %v6646
      %v6648 = vrot.slane %v6040, 1
      %v6649 = vrot.slane %v6136, 1
      %v6650 = vsel %vm3693, %v6648, %v6649
      %v6651 = vrot.slane %v6041, 1
      %v6652 = vrot.slane %v6137, 1
      %v6653 = vsel %vm3693, %v6651, %v6652
      %v6654 = vrot.slane %v6042, 1
      %v6655 = vrot.slane %v6138, 1
      %v6656 = vsel %vm3693, %v6654, %v6655
      %v6657 = vrot.slane %v6043, 1
      %v6658 = vrot.slane %v6139, 1
      %v6659 = vsel %vm3693, %v6657, %v6658
      %v6660 = vrot.slane %v6044, 1
      %v6661 = vrot.slane %v6140, 1
      %v6662 = vsel %vm3693, %v6660, %v6661
      %v6663 = vrot.slane %v6045, 1
      %v6664 = vrot.slane %v6141, 1
      %v6665 = vsel %vm3693, %v6663, %v6664
      %v6666 = vrot.slane %v6046, 1
      %v6667 = vrot.slane %v6142, 1
      %v6668 = vsel %vm3693, %v6666, %v6667
      %v6669 = vrot.slane %v6047, 1
      %v6670 = vrot.slane %v6143, 1
      %v6671 = vsel %vm3693, %v6669, %v6670
      %v6672 = vrot.slane %v6048, 1
      %v6673 = vrot.slane %v6144, 1
      %v6674 = vsel %vm3693, %v6672, %v6673
      %v6675 = vrot.slane %v6049, 1
      %v6676 = vrot.slane %v6145, 1
      %v6677 = vsel %vm3693, %v6675, %v6676
      %v6678 = vrot.slane %v6050, 1
      %v6679 = vrot.slane %v6146, 1
      %v6680 = vsel %vm3693, %v6678, %v6679
      %v6681 = vrot.slane %v6051, 1
      %v6682 = vrot.slane %v6147, 1
      %v6683 = vsel %vm3693, %v6681, %v6682
      %v6684 = vrot.slane %v6052, 1
      %v6685 = vrot.slane %v6148, 1
      %v6686 = vsel %vm3693, %v6684, %v6685
      %v6687 = vrot.slane %v6053, 1
      %v6688 = vrot.slane %v6149, 1
      %v6689 = vsel %vm3693, %v6687, %v6688
      %v6690 = vrot.slane %v6054, 1
      %v6691 = vrot.slane %v6150, 1
      %v6692 = vsel %vm3693, %v6690, %v6691
      %v6693 = vrot.slane %v6055, 1
      %v6694 = vrot.slane %v6151, 1
      %v6695 = vsel %vm3693, %v6693, %v6694
      %6696 = vrot.lane.b32.xlu0 %v6602, 8
      %v6697 = vpop.permute.xlu0 %6696
      %6698 = vrot.lane.b32.xlu0 %v6605, 8
      %v6699 = vpop.permute.xlu0 %6698
      %6700 = vrot.lane.b32.xlu0 %v6608, 8
      %v6701 = vpop.permute.xlu0 %6700
      %6702 = vrot.lane.b32.xlu0 %v6611, 8
      %v6703 = vpop.permute.xlu0 %6702
      %6704 = vrot.lane.b32.xlu0 %v6614, 8
      %v6705 = vpop.permute.xlu0 %6704
      %6706 = vrot.lane.b32.xlu0 %v6617, 8
      %v6707 = vpop.permute.xlu0 %6706
      %6708 = vrot.lane.b32.xlu0 %v6620, 8
      %v6709 = vpop.permute.xlu0 %6708
      %6710 = vrot.lane.b32.xlu0 %v6623, 8
      %v6711 = vpop.permute.xlu0 %6710
      %6712 = vrot.lane.b32.xlu0 %v6626, 8
      %v6713 = vpop.permute.xlu0 %6712
      %6714 = vrot.lane.b32.xlu0 %v6629, 8
      %v6715 = vpop.permute.xlu0 %6714
      %6716 = vrot.lane.b32.xlu0 %v6632, 8
      %v6717 = vpop.permute.xlu0 %6716
      %6718 = vrot.lane.b32.xlu0 %v6635, 8
      %v6719 = vpop.permute.xlu0 %6718
      %6720 = vrot.lane.b32.xlu0 %v6638, 8
      %v6721 = vpop.permute.xlu0 %6720
      %6722 = vrot.lane.b32.xlu0 %v6641, 8
      %v6723 = vpop.permute.xlu0 %6722
      %6724 = vrot.lane.b32.xlu0 %v6644, 8
      %v6725 = vpop.permute.xlu0 %6724
      %6726 = vrot.lane.b32.xlu0 %v6647, 8
      %v6727 = vpop.permute.xlu0 %6726
      %6728 = vrot.lane.b32.xlu0 %v6650, 8
      %v6729 = vpop.permute.xlu0 %6728
      %6730 = vrot.lane.b32.xlu0 %v6653, 8
      %v6731 = vpop.permute.xlu0 %6730
      %6732 = vrot.lane.b32.xlu0 %v6656, 8
      %v6733 = vpop.permute.xlu0 %6732
      %6734 = vrot.lane.b32.xlu0 %v6659, 8
      %v6735 = vpop.permute.xlu0 %6734
      %6736 = vrot.lane.b32.xlu0 %v6662, 8
      %v6737 = vpop.permute.xlu0 %6736
      %6738 = vrot.lane.b32.xlu0 %v6665, 8
      %v6739 = vpop.permute.xlu0 %6738
      %6740 = vrot.lane.b32.xlu0 %v6668, 8
      %v6741 = vpop.permute.xlu0 %6740
      %6742 = vrot.lane.b32.xlu0 %v6671, 8
      %v6743 = vpop.permute.xlu0 %6742
      %6744 = vrot.lane.b32.xlu0 %v6674, 8
      %v6745 = vpop.permute.xlu0 %6744
      %6746 = vrot.lane.b32.xlu0 %v6677, 8
      %v6747 = vpop.permute.xlu0 %6746
      %6748 = vrot.lane.b32.xlu0 %v6680, 8
      %v6749 = vpop.permute.xlu0 %6748
      %6750 = vrot.lane.b32.xlu0 %v6683, 8
      %v6751 = vpop.permute.xlu0 %6750
      %6752 = vrot.lane.b32.xlu0 %v6686, 8
      %v6753 = vpop.permute.xlu0 %6752
      %6754 = vrot.lane.b32.xlu0 %v6689, 8
      %v6755 = vpop.permute.xlu0 %6754
      %6756 = vrot.lane.b32.xlu0 %v6692, 8
      %v6757 = vpop.permute.xlu0 %6756
      %6758 = vrot.lane.b32.xlu0 %v6695, 8
      %v6759 = vpop.permute.xlu0 %6758
      %v6761 = vsel %vm1154, %v6024, %v6537
      %v6763 = vsel %vm1154, %v6025, %v6539
      %v6765 = vsel %vm1154, %v6026, %v6541
      %v6767 = vsel %vm1154, %v6027, %v6543
      %v6769 = vsel %vm1154, %v6028, %v6545
      %v6771 = vsel %vm1154, %v6029, %v6547
      %v6773 = vsel %vm1154, %v6030, %v6549
      %v6775 = vsel %vm1154, %v6031, %v6551
      %v6777 = vsel %vm1154, %v6032, %v6553
      %v6779 = vsel %vm1154, %v6033, %v6555
      %v6781 = vsel %vm1154, %v6034, %v6557
      %v6783 = vsel %vm1154, %v6035, %v6559
      %v6785 = vsel %vm1154, %v6036, %v6561
      %v6787 = vsel %vm1154, %v6037, %v6563
      %v6789 = vsel %vm1154, %v6038, %v6565
      %v6791 = vsel %vm1154, %v6039, %v6567
      %v6793 = vsel %vm1154, %v6040, %v6569
      %v6795 = vsel %vm1154, %v6041, %v6571
      %v6797 = vsel %vm1154, %v6042, %v6573
      %v6799 = vsel %vm1154, %v6043, %v6575
      %v6801 = vsel %vm1154, %v6044, %v6577
      %v6803 = vsel %vm1154, %v6045, %v6579
      %v6805 = vsel %vm1154, %v6046, %v6581
      %v6807 = vsel %vm1154, %v6047, %v6583
      %v6809 = vsel %vm1154, %v6048, %v6585
      %v6811 = vsel %vm1154, %v6049, %v6587
      %v6813 = vsel %vm1154, %v6050, %v6589
      %v6815 = vsel %vm1154, %v6051, %v6591
      %v6817 = vsel %vm1154, %v6052, %v6593
      %v6819 = vsel %vm1154, %v6053, %v6595
      %v6821 = vsel %vm1154, %v6054, %v6597
      %v6823 = vsel %vm1154, %v6055, %v6599
      %v6825 = vsel %vm762, %v6761, %v6697
      %v6827 = vsel %vm762, %v6763, %v6699
      %v6829 = vsel %vm762, %v6765, %v6701
      %v6831 = vsel %vm762, %v6767, %v6703
      %v6833 = vsel %vm762, %v6769, %v6705
      %v6835 = vsel %vm762, %v6771, %v6707
      %v6837 = vsel %vm762, %v6773, %v6709
      %v6839 = vsel %vm762, %v6775, %v6711
      %v6841 = vsel %vm762, %v6777, %v6713
      %v6843 = vsel %vm762, %v6779, %v6715
      %v6845 = vsel %vm762, %v6781, %v6717
      %v6847 = vsel %vm762, %v6783, %v6719
      %v6849 = vsel %vm762, %v6785, %v6721
      %v6851 = vsel %vm762, %v6787, %v6723
      %v6853 = vsel %vm762, %v6789, %v6725
      %v6855 = vsel %vm762, %v6791, %v6727
      %v6857 = vsel %vm762, %v6793, %v6729
      %v6859 = vsel %vm762, %v6795, %v6731
      %v6861 = vsel %vm762, %v6797, %v6733
      %v6863 = vsel %vm762, %v6799, %v6735
      %v6865 = vsel %vm762, %v6801, %v6737
      %v6867 = vsel %vm762, %v6803, %v6739
      %v6869 = vsel %vm762, %v6805, %v6741
      %v6871 = vsel %vm762, %v6807, %v6743
      %v6873 = vsel %vm762, %v6809, %v6745
      %v6875 = vsel %vm762, %v6811, %v6747
      %v6877 = vsel %vm762, %v6813, %v6749
      %v6879 = vsel %vm762, %v6815, %v6751
      %v6881 = vsel %vm762, %v6817, %v6753
      %v6883 = vsel %vm762, %v6819, %v6755
      %v6885 = vsel %vm762, %v6821, %v6757
      %v6887 = vsel %vm762, %v6823, %v6759
      %s6888 = scalar_lea.vmem %s304, 16
      %v6889 = vld [vmem:[%s6888] sm:$0xf]
      %v6890 = vld [vmem:[%s6888 + $0x4] sm:$0x3]
      %v6893 = vunpack.c.l.b16 %v6889
      %v6894 = vunpack.c.l.b16 %v6890
      %v6895 = vpack.c.b16 %v6894, %v6893
      %v6896 = vsel %vm5080, %v6825, 0
      %v6898 = vsel %vm5080, %v6827, 0
      %v6900 = vsel %vm5080, %v6829, 0
      %v6902 = vsel %vm5080, %v6831, 0
      %v6904 = vsel %vm5080, %v6833, 0
      %v6906 = vsel %vm5080, %v6835, 0
      %v6908 = vsel %vm5080, %v6837, 0
      %v6910 = vsel %vm5080, %v6839, 0
      %v6912 = vsel %vm5080, %v6841, 0
      %v6914 = vsel %vm5080, %v6843, 0
      %v6916 = vsel %vm5080, %v6845, 0
      %v6918 = vsel %vm5080, %v6847, 0
      %v6920 = vsel %vm5080, %v6849, 0
      %v6922 = vsel %vm5080, %v6851, 0
      %v6924 = vsel %vm5080, %v6853, 0
      %v6926 = vsel %vm5080, %v6855, 0
      %v6928 = vsel %vm5080, %v6857, 0
      %v6930 = vsel %vm5080, %v6859, 0
      %v6932 = vsel %vm5080, %v6861, 0
      %v6934 = vsel %vm5080, %v6863, 0
      %v6936 = vsel %vm5080, %v6865, 0
      %v6938 = vsel %vm5080, %v6867, 0
      %v6940 = vsel %vm5080, %v6869, 0
      %v6942 = vsel %vm5080, %v6871, 0
      %v6944 = vsel %vm5080, %v6873, 0
      %v6946 = vsel %vm5080, %v6875, 0
      %v6948 = vsel %vm5080, %v6877, 0
      %v6950 = vsel %vm5080, %v6879, 0
      %v6952 = vsel %vm5080, %v6881, 0
      %v6954 = vsel %vm5080, %v6883, 0
      %v6956 = vsel %vm5080, %v6885, 0
      %v6958 = vsel %vm5080, %v6887, 0
      %v6961 = vsel %vm5145, %v6895, 0
      %6963 = vmatprep.subr.bf16.mxu0 0
      %6964 = vmatpush1.bf16.msra.mxu0 0
      %6965 = vmatprep.subr.bf16.mxu0 0
      %6966 = vmatpush1.bf16.msra.mxu0 0
      %6967 = vmatprep.subr.bf16.mxu0 0
      %6968 = vmatpush1.bf16.msra.mxu0 0
      %6969 = vmatprep.subr.bf16.mxu0 0
      %6970 = vmatpush1.bf16.msra.mxu0 0
      %6971 = vmatprep.subr.bf16.mxu0 0
      %6972 = vmatpush1.bf16.msra.mxu0 0
      %6973 = vmatprep.subr.bf16.mxu0 0
      %6974 = vmatpush1.bf16.msra.mxu0 0
      %6975 = vmatprep.subr.bf16.mxu0 0
      %6976 = vmatpush1.bf16.msra.mxu0 0
      %6977 = vmatprep.subr.bf16.mxu0 0
      %6978 = vmatpush1.bf16.msra.mxu0 %v6961
      %6979 = vmatprep.subr.bf16.mxu0 0
      %6980 = vmatpush2.bf16.msra.mxu0 0
      %6981 = vmatprep.subr.bf16.mxu0 0
      %6982 = vmatpush2.bf16.msra.mxu0 0
      %6983 = vmatprep.subr.bf16.mxu0 0
      %6984 = vmatpush2.bf16.msra.mxu0 0
      %6985 = vmatprep.subr.bf16.mxu0 0
      %6986 = vmatpush2.bf16.msra.mxu0 0
      %6987 = vmatprep.subr.bf16.mxu0 0
      %6988 = vmatpush2.bf16.msra.mxu0 0
      %6989 = vmatprep.subr.bf16.mxu0 0
      %6990 = vmatpush2.bf16.msra.mxu0 0
      %6991 = vmatprep.subr.bf16.mxu0 0
      %6992 = vmatpush2.bf16.msra.mxu0 0
      %6993 = vmatprep.subr.bf16.mxu0 0
      %6994 = vmatpush2.bf16.msra.mxu0 0
      %6995 = vmatprep.mubr.bf16.mxu0 0
      %6996 = vmatmul.mubr.bf16.gmra.mxu0 %v6896
      %v6997 = vpop.f32.mrf.mxu0
      %v6998 = vadd.f32 0.0, %v6997
      %v6999 = vpop.f32.mrf.mxu0
      %v7000 = vpop.f32.mrf.mxu0
      %v7001 = vadd.f32 0.0, %v7000
      %v7002 = vpop.f32.mrf.mxu0
      %7003 = vmatprep.mubr.bf16.mxu0 0
      %7004 = vmatmul.mubr.bf16.gmra.mxu0 %v6898
      %v7005 = vpop.f32.mrf.mxu0
      %v7006 = vadd.f32 0.0, %v7005
      %v7007 = vpop.f32.mrf.mxu0
      %v7008 = vpop.f32.mrf.mxu0
      %v7009 = vadd.f32 0.0, %v7008
      %v7010 = vpop.f32.mrf.mxu0
      %7011 = vmatprep.mubr.bf16.mxu0 0
      %7012 = vmatmul.mubr.bf16.gmra.mxu0 %v6900
      %v7013 = vpop.f32.mrf.mxu0
      %v7014 = vadd.f32 0.0, %v7013
      %v7015 = vpop.f32.mrf.mxu0
      %v7016 = vpop.f32.mrf.mxu0
      %v7017 = vadd.f32 0.0, %v7016
      %v7018 = vpop.f32.mrf.mxu0
      %7019 = vmatprep.mubr.bf16.mxu0 0
      %7020 = vmatmul.mubr.bf16.gmra.mxu0 %v6902
      %v7021 = vpop.f32.mrf.mxu0
      %v7022 = vadd.f32 0.0, %v7021
      %v7023 = vpop.f32.mrf.mxu0
      %v7024 = vpop.f32.mrf.mxu0
      %v7025 = vadd.f32 0.0, %v7024
      %v7026 = vpop.f32.mrf.mxu0
      %7027 = vmatprep.mubr.bf16.mxu0 0
      %7028 = vmatmul.mubr.bf16.gmra.mxu0 %v6904
      %v7029 = vpop.f32.mrf.mxu0
      %v7030 = vadd.f32 0.0, %v7029
      %v7031 = vpop.f32.mrf.mxu0
      %v7032 = vpop.f32.mrf.mxu0
      %v7033 = vadd.f32 0.0, %v7032
      %v7034 = vpop.f32.mrf.mxu0
      %7035 = vmatprep.mubr.bf16.mxu0 0
      %7036 = vmatmul.mubr.bf16.gmra.mxu0 %v6906
      %v7037 = vpop.f32.mrf.mxu0
      %v7038 = vadd.f32 0.0, %v7037
      %v7039 = vpop.f32.mrf.mxu0
      %v7040 = vpop.f32.mrf.mxu0
      %v7041 = vadd.f32 0.0, %v7040
      %v7042 = vpop.f32.mrf.mxu0
      %7043 = vmatprep.mubr.bf16.mxu0 0
      %7044 = vmatmul.mubr.bf16.gmra.mxu0 %v6908
      %v7045 = vpop.f32.mrf.mxu0
      %v7046 = vadd.f32 0.0, %v7045
      %v7047 = vpop.f32.mrf.mxu0
      %v7048 = vpop.f32.mrf.mxu0
      %v7049 = vadd.f32 0.0, %v7048
      %v7050 = vpop.f32.mrf.mxu0
      %7051 = vmatprep.mubr.bf16.mxu0 0
      %7052 = vmatmul.mubr.bf16.gmra.mxu0 %v6910
      %v7053 = vpop.f32.mrf.mxu0
      %v7054 = vadd.f32 0.0, %v7053
      %v7055 = vpop.f32.mrf.mxu0
      %v7056 = vpop.f32.mrf.mxu0
      %v7057 = vadd.f32 0.0, %v7056
      %v7058 = vpop.f32.mrf.mxu0
      %7059 = vmatprep.mubr.bf16.mxu0 0
      %7060 = vmatmul.mubr.bf16.gmra.mxu0 %v6912
      %v7061 = vpop.f32.mrf.mxu0
      %v7062 = vadd.f32 0.0, %v7061
      %v7063 = vpop.f32.mrf.mxu0
      %v7064 = vpop.f32.mrf.mxu0
      %v7065 = vadd.f32 0.0, %v7064
      %v7066 = vpop.f32.mrf.mxu0
      %7067 = vmatprep.mubr.bf16.mxu0 0
      %7068 = vmatmul.mubr.bf16.gmra.mxu0 %v6914
      %v7069 = vpop.f32.mrf.mxu0
      %v7070 = vadd.f32 0.0, %v7069
      %v7071 = vpop.f32.mrf.mxu0
      %v7072 = vpop.f32.mrf.mxu0
      %v7073 = vadd.f32 0.0, %v7072
      %v7074 = vpop.f32.mrf.mxu0
      %7075 = vmatprep.mubr.bf16.mxu0 0
      %7076 = vmatmul.mubr.bf16.gmra.mxu0 %v6916
      %v7077 = vpop.f32.mrf.mxu0
      %v7078 = vadd.f32 0.0, %v7077
      %v7079 = vpop.f32.mrf.mxu0
      %v7080 = vpop.f32.mrf.mxu0
      %v7081 = vadd.f32 0.0, %v7080
      %v7082 = vpop.f32.mrf.mxu0
      %7083 = vmatprep.mubr.bf16.mxu0 0
      %7084 = vmatmul.mubr.bf16.gmra.mxu0 %v6918
      %v7085 = vpop.f32.mrf.mxu0
      %v7086 = vadd.f32 0.0, %v7085
      %v7087 = vpop.f32.mrf.mxu0
      %v7088 = vpop.f32.mrf.mxu0
      %v7089 = vadd.f32 0.0, %v7088
      %v7090 = vpop.f32.mrf.mxu0
      %7091 = vmatprep.mubr.bf16.mxu0 0
      %7092 = vmatmul.mubr.bf16.gmra.mxu0 %v6920
      %v7093 = vpop.f32.mrf.mxu0
      %v7094 = vadd.f32 0.0, %v7093
      %v7095 = vpop.f32.mrf.mxu0
      %v7096 = vpop.f32.mrf.mxu0
      %v7097 = vadd.f32 0.0, %v7096
      %v7098 = vpop.f32.mrf.mxu0
      %7099 = vmatprep.mubr.bf16.mxu0 0
      %7100 = vmatmul.mubr.bf16.gmra.mxu0 %v6922
      %v7101 = vpop.f32.mrf.mxu0
      %v7102 = vadd.f32 0.0, %v7101
      %v7103 = vpop.f32.mrf.mxu0
      %v7104 = vpop.f32.mrf.mxu0
      %v7105 = vadd.f32 0.0, %v7104
      %v7106 = vpop.f32.mrf.mxu0
      %7107 = vmatprep.mubr.bf16.mxu0 0
      %7108 = vmatmul.mubr.bf16.gmra.mxu0 %v6924
      %v7109 = vpop.f32.mrf.mxu0
      %v7110 = vadd.f32 0.0, %v7109
      %v7111 = vpop.f32.mrf.mxu0
      %v7112 = vpop.f32.mrf.mxu0
      %v7113 = vadd.f32 0.0, %v7112
      %v7114 = vpop.f32.mrf.mxu0
      %7115 = vmatprep.mubr.bf16.mxu0 0
      %7116 = vmatmul.mubr.bf16.gmra.mxu0 %v6926
      %v7117 = vpop.f32.mrf.mxu0
      %v7118 = vadd.f32 0.0, %v7117
      %v7119 = vpop.f32.mrf.mxu0
      %v7120 = vpop.f32.mrf.mxu0
      %v7121 = vadd.f32 0.0, %v7120
      %v7122 = vpop.f32.mrf.mxu0
      %7123 = vmatprep.mubr.bf16.mxu0 0
      %7124 = vmatmul.mubr.bf16.gmra.mxu0 %v6928
      %v7125 = vpop.f32.mrf.mxu0
      %v7126 = vadd.f32 0.0, %v7125
      %v7127 = vpop.f32.mrf.mxu0
      %v7128 = vpop.f32.mrf.mxu0
      %v7129 = vadd.f32 0.0, %v7128
      %v7130 = vpop.f32.mrf.mxu0
      %7131 = vmatprep.mubr.bf16.mxu0 0
      %7132 = vmatmul.mubr.bf16.gmra.mxu0 %v6930
      %v7133 = vpop.f32.mrf.mxu0
      %v7134 = vadd.f32 0.0, %v7133
      %v7135 = vpop.f32.mrf.mxu0
      %v7136 = vpop.f32.mrf.mxu0
      %v7137 = vadd.f32 0.0, %v7136
      %v7138 = vpop.f32.mrf.mxu0
      %7139 = vmatprep.mubr.bf16.mxu0 0
      %7140 = vmatmul.mubr.bf16.gmra.mxu0 %v6932
      %v7141 = vpop.f32.mrf.mxu0
      %v7142 = vadd.f32 0.0, %v7141
      %v7143 = vpop.f32.mrf.mxu0
      %v7144 = vpop.f32.mrf.mxu0
      %v7145 = vadd.f32 0.0, %v7144
      %v7146 = vpop.f32.mrf.mxu0
      %7147 = vmatprep.mubr.bf16.mxu0 0
      %7148 = vmatmul.mubr.bf16.gmra.mxu0 %v6934
      %v7149 = vpop.f32.mrf.mxu0
      %v7150 = vadd.f32 0.0, %v7149
      %v7151 = vpop.f32.mrf.mxu0
      %v7152 = vpop.f32.mrf.mxu0
      %v7153 = vadd.f32 0.0, %v7152
      %v7154 = vpop.f32.mrf.mxu0
      %7155 = vmatprep.mubr.bf16.mxu0 0
      %7156 = vmatmul.mubr.bf16.gmra.mxu0 %v6936
      %v7157 = vpop.f32.mrf.mxu0
      %v7158 = vadd.f32 0.0, %v7157
      %v7159 = vpop.f32.mrf.mxu0
      %v7160 = vpop.f32.mrf.mxu0
      %v7161 = vadd.f32 0.0, %v7160
      %v7162 = vpop.f32.mrf.mxu0
      %7163 = vmatprep.mubr.bf16.mxu0 0
      %7164 = vmatmul.mubr.bf16.gmra.mxu0 %v6938
      %v7165 = vpop.f32.mrf.mxu0
      %v7166 = vadd.f32 0.0, %v7165
      %v7167 = vpop.f32.mrf.mxu0
      %v7168 = vpop.f32.mrf.mxu0
      %v7169 = vadd.f32 0.0, %v7168
      %v7170 = vpop.f32.mrf.mxu0
      %7171 = vmatprep.mubr.bf16.mxu0 0
      %7172 = vmatmul.mubr.bf16.gmra.mxu0 %v6940
      %v7173 = vpop.f32.mrf.mxu0
      %v7174 = vadd.f32 0.0, %v7173
      %v7175 = vpop.f32.mrf.mxu0
      %v7176 = vpop.f32.mrf.mxu0
      %v7177 = vadd.f32 0.0, %v7176
      %v7178 = vpop.f32.mrf.mxu0
      %7179 = vmatprep.mubr.bf16.mxu0 0
      %7180 = vmatmul.mubr.bf16.gmra.mxu0 %v6942
      %v7181 = vpop.f32.mrf.mxu0
      %v7182 = vadd.f32 0.0, %v7181
      %v7183 = vpop.f32.mrf.mxu0
      %v7184 = vpop.f32.mrf.mxu0
      %v7185 = vadd.f32 0.0, %v7184
      %v7186 = vpop.f32.mrf.mxu0
      %7187 = vmatprep.mubr.bf16.mxu0 0
      %7188 = vmatmul.mubr.bf16.gmra.mxu0 %v6944
      %v7189 = vpop.f32.mrf.mxu0
      %v7190 = vadd.f32 0.0, %v7189
      %v7191 = vpop.f32.mrf.mxu0
      %v7192 = vpop.f32.mrf.mxu0
      %v7193 = vadd.f32 0.0, %v7192
      %v7194 = vpop.f32.mrf.mxu0
      %7195 = vmatprep.mubr.bf16.mxu0 0
      %7196 = vmatmul.mubr.bf16.gmra.mxu0 %v6946
      %v7197 = vpop.f32.mrf.mxu0
      %v7198 = vadd.f32 0.0, %v7197
      %v7199 = vpop.f32.mrf.mxu0
      %v7200 = vpop.f32.mrf.mxu0
      %v7201 = vadd.f32 0.0, %v7200
      %v7202 = vpop.f32.mrf.mxu0
      %7203 = vmatprep.mubr.bf16.mxu0 0
      %7204 = vmatmul.mubr.bf16.gmra.mxu0 %v6948
      %v7205 = vpop.f32.mrf.mxu0
      %v7206 = vadd.f32 0.0, %v7205
      %v7207 = vpop.f32.mrf.mxu0
      %v7208 = vpop.f32.mrf.mxu0
      %v7209 = vadd.f32 0.0, %v7208
      %v7210 = vpop.f32.mrf.mxu0
      %7211 = vmatprep.mubr.bf16.mxu0 0
      %7212 = vmatmul.mubr.bf16.gmra.mxu0 %v6950
      %v7213 = vpop.f32.mrf.mxu0
      %v7214 = vadd.f32 0.0, %v7213
      %v7215 = vpop.f32.mrf.mxu0
      %v7216 = vpop.f32.mrf.mxu0
      %v7217 = vadd.f32 0.0, %v7216
      %v7218 = vpop.f32.mrf.mxu0
      %7219 = vmatprep.mubr.bf16.mxu0 0
      %7220 = vmatmul.mubr.bf16.gmra.mxu0 %v6952
      %v7221 = vpop.f32.mrf.mxu0
      %v7222 = vadd.f32 0.0, %v7221
      %v7223 = vpop.f32.mrf.mxu0
      %v7224 = vpop.f32.mrf.mxu0
      %v7225 = vadd.f32 0.0, %v7224
      %v7226 = vpop.f32.mrf.mxu0
      %7227 = vmatprep.mubr.bf16.mxu0 0
      %7228 = vmatmul.mubr.bf16.gmra.mxu0 %v6954
      %v7229 = vpop.f32.mrf.mxu0
      %v7230 = vadd.f32 0.0, %v7229
      %v7231 = vpop.f32.mrf.mxu0
      %v7232 = vpop.f32.mrf.mxu0
      %v7233 = vadd.f32 0.0, %v7232
      %v7234 = vpop.f32.mrf.mxu0
      %7235 = vmatprep.mubr.bf16.mxu0 0
      %7236 = vmatmul.mubr.bf16.gmra.mxu0 %v6956
      %v7237 = vpop.f32.mrf.mxu0
      %v7238 = vadd.f32 0.0, %v7237
      %v7239 = vpop.f32.mrf.mxu0
      %v7240 = vpop.f32.mrf.mxu0
      %v7241 = vadd.f32 0.0, %v7240
      %v7242 = vpop.f32.mrf.mxu0
      %7243 = vmatprep.mubr.bf16.mxu0 0
      %7244 = vmatmul.mubr.bf16.gmra.mxu0 %v6958
      %v7245 = vpop.f32.mrf.mxu0
      %v7246 = vadd.f32 0.0, %v7245
      %v7247 = vpop.f32.mrf.mxu0
      %v7248 = vpop.f32.mrf.mxu0
      %v7249 = vadd.f32 0.0, %v7248
      %v7250 = vpop.f32.mrf.mxu0
      %7251 = vdwg.mxu0
      %v7252 = vadd.f32 %v5545, %v6998
      %v7253 = vadd.f32 %v5548, %v7001
      %v7254 = vadd.f32 %v5553, %v7006
      %v7255 = vadd.f32 %v5556, %v7009
      %v7256 = vadd.f32 %v5561, %v7014
      %v7257 = vadd.f32 %v5564, %v7017
      %v7258 = vadd.f32 %v5569, %v7022
      %v7259 = vadd.f32 %v5572, %v7025
      %v7260 = vadd.f32 %v5577, %v7030
      %v7261 = vadd.f32 %v5580, %v7033
      %v7262 = vadd.f32 %v5585, %v7038
      %v7263 = vadd.f32 %v5588, %v7041
      %v7264 = vadd.f32 %v5593, %v7046
      %v7265 = vadd.f32 %v5596, %v7049
      %v7266 = vadd.f32 %v5601, %v7054
      %v7267 = vadd.f32 %v5604, %v7057
      %v7268 = vadd.f32 %v5609, %v7062
      %v7269 = vadd.f32 %v5612, %v7065
      %v7270 = vadd.f32 %v5617, %v7070
      %v7271 = vadd.f32 %v5620, %v7073
      %v7272 = vadd.f32 %v5625, %v7078
      %v7273 = vadd.f32 %v5628, %v7081
      %v7274 = vadd.f32 %v5633, %v7086
      %v7275 = vadd.f32 %v5636, %v7089
      %v7276 = vadd.f32 %v5641, %v7094
      %v7277 = vadd.f32 %v5644, %v7097
      %v7278 = vadd.f32 %v5649, %v7102
      %v7279 = vadd.f32 %v5652, %v7105
      %v7280 = vadd.f32 %v5657, %v7110
      %v7281 = vadd.f32 %v5660, %v7113
      %v7282 = vadd.f32 %v5665, %v7118
      %v7283 = vadd.f32 %v5668, %v7121
      %v7284 = vadd.f32 %v5673, %v7126
      %v7285 = vadd.f32 %v5676, %v7129
      %v7286 = vadd.f32 %v5681, %v7134
      %v7287 = vadd.f32 %v5684, %v7137
      %v7288 = vadd.f32 %v5689, %v7142
      %v7289 = vadd.f32 %v5692, %v7145
      %v7290 = vadd.f32 %v5697, %v7150
      %v7291 = vadd.f32 %v5700, %v7153
      %v7292 = vadd.f32 %v5705, %v7158
      %v7293 = vadd.f32 %v5708, %v7161
      %v7294 = vadd.f32 %v5713, %v7166
      %v7295 = vadd.f32 %v5716, %v7169
      %v7296 = vadd.f32 %v5721, %v7174
      %v7297 = vadd.f32 %v5724, %v7177
      %v7298 = vadd.f32 %v5729, %v7182
      %v7299 = vadd.f32 %v5732, %v7185
      %v7300 = vadd.f32 %v5737, %v7190
      %v7301 = vadd.f32 %v5740, %v7193
      %v7302 = vadd.f32 %v5745, %v7198
      %v7303 = vadd.f32 %v5748, %v7201
      %v7304 = vadd.f32 %v5753, %v7206
      %v7305 = vadd.f32 %v5756, %v7209
      %v7306 = vadd.f32 %v5761, %v7214
      %v7307 = vadd.f32 %v5764, %v7217
      %v7308 = vadd.f32 %v5769, %v7222
      %v7309 = vadd.f32 %v5772, %v7225
      %v7310 = vadd.f32 %v5777, %v7230
      %v7311 = vadd.f32 %v5780, %v7233
      %v7312 = vadd.f32 %v5785, %v7238
      %v7313 = vadd.f32 %v5788, %v7241
      %v7314 = vadd.f32 %v5793, %v7246
      %v7315 = vadd.f32 %v5796, %v7249
      %v7316 = vld [vmem:[%s307] sm:$0x1]
      %v7317 = vld [vmem:[%s310] sm:$0x1]
      %v7318 = vsel %vm762, %v7252, 0.0
      %v7319 = vsel %vm762, %v7253, 0.0
      %v7320 = vadd.f32 %v7318, %v7319
      %v7321 = vsel %vm762, %v7254, 0.0
      %v7322 = vadd.f32 %v7320, %v7321
      %v7323 = vsel %vm762, %v7255, 0.0
      %v7324 = vadd.f32 %v7322, %v7323
      %v7325 = vsel %vm762, %v7256, 0.0
      %v7326 = vadd.f32 %v7324, %v7325
      %v7327 = vsel %vm762, %v7257, 0.0
      %v7328 = vadd.f32 %v7326, %v7327
      %v7329 = vsel %vm762, %v7258, 0.0
      %v7330 = vadd.f32 %v7328, %v7329
      %v7331 = vsel %vm762, %v7259, 0.0
      %v7332 = vadd.f32 %v7330, %v7331
      %v7333 = vsel %vm762, %v7260, 0.0
      %v7334 = vadd.f32 %v7332, %v7333
      %v7335 = vsel %vm762, %v7261, 0.0
      %v7336 = vadd.f32 %v7334, %v7335
      %v7337 = vsel %vm762, %v7262, 0.0
      %v7338 = vadd.f32 %v7336, %v7337
      %v7339 = vsel %vm762, %v7263, 0.0
      %v7340 = vadd.f32 %v7338, %v7339
      %v7341 = vsel %vm762, %v7264, 0.0
      %v7342 = vadd.f32 %v7340, %v7341
      %v7343 = vsel %vm762, %v7265, 0.0
      %v7344 = vadd.f32 %v7342, %v7343
      %v7345 = vsel %vm762, %v7266, 0.0
      %v7346 = vadd.f32 %v7344, %v7345
      %v7347 = vsel %vm762, %v7267, 0.0
      %v7348 = vadd.f32 %v7346, %v7347
      %v7349 = vsel %vm762, %v7268, 0.0
      %v7350 = vadd.f32 %v7348, %v7349
      %v7351 = vsel %vm762, %v7269, 0.0
      %v7352 = vadd.f32 %v7350, %v7351
      %v7353 = vsel %vm762, %v7270, 0.0
      %v7354 = vadd.f32 %v7352, %v7353
      %v7355 = vsel %vm762, %v7271, 0.0
      %v7356 = vadd.f32 %v7354, %v7355
      %v7357 = vsel %vm762, %v7272, 0.0
      %v7358 = vadd.f32 %v7356, %v7357
      %v7359 = vsel %vm762, %v7273, 0.0
      %v7360 = vadd.f32 %v7358, %v7359
      %v7361 = vsel %vm762, %v7274, 0.0
      %v7362 = vadd.f32 %v7360, %v7361
      %v7363 = vsel %vm762, %v7275, 0.0
      %v7364 = vadd.f32 %v7362, %v7363
      %v7365 = vsel %vm762, %v7276, 0.0
      %v7366 = vadd.f32 %v7364, %v7365
      %v7367 = vsel %vm762, %v7277, 0.0
      %v7368 = vadd.f32 %v7366, %v7367
      %v7369 = vsel %vm762, %v7278, 0.0
      %v7370 = vadd.f32 %v7368, %v7369
      %v7371 = vsel %vm762, %v7279, 0.0
      %v7372 = vadd.f32 %v7370, %v7371
      %v7373 = vsel %vm762, %v7280, 0.0
      %v7374 = vadd.f32 %v7372, %v7373
      %v7375 = vsel %vm762, %v7281, 0.0
      %v7376 = vadd.f32 %v7374, %v7375
      %v7377 = vsel %vm762, %v7282, 0.0
      %v7378 = vadd.f32 %v7376, %v7377
      %v7379 = vsel %vm762, %v7283, 0.0
      %v7380 = vadd.f32 %v7378, %v7379
      %v7381 = vsel %vm762, %v7284, 0.0
      %v7382 = vadd.f32 %v7380, %v7381
      %v7383 = vsel %vm762, %v7285, 0.0
      %v7384 = vadd.f32 %v7382, %v7383
      %v7385 = vsel %vm762, %v7286, 0.0
      %v7386 = vadd.f32 %v7384, %v7385
      %v7387 = vsel %vm762, %v7287, 0.0
      %v7388 = vadd.f32 %v7386, %v7387
      %v7389 = vsel %vm762, %v7288, 0.0
      %v7390 = vadd.f32 %v7388, %v7389
      %v7391 = vsel %vm762, %v7289, 0.0
      %v7392 = vadd.f32 %v7390, %v7391
      %v7393 = vsel %vm762, %v7290, 0.0
      %v7394 = vadd.f32 %v7392, %v7393
      %v7395 = vsel %vm762, %v7291, 0.0
      %v7396 = vadd.f32 %v7394, %v7395
      %v7397 = vsel %vm762, %v7292, 0.0
      %v7398 = vadd.f32 %v7396, %v7397
      %v7399 = vsel %vm762, %v7293, 0.0
      %v7400 = vadd.f32 %v7398, %v7399
      %v7401 = vsel %vm762, %v7294, 0.0
      %v7402 = vadd.f32 %v7400, %v7401
      %v7403 = vsel %vm762, %v7295, 0.0
      %v7404 = vadd.f32 %v7402, %v7403
      %v7405 = vsel %vm762, %v7296, 0.0
      %v7406 = vadd.f32 %v7404, %v7405
      %v7407 = vsel %vm762, %v7297, 0.0
      %v7408 = vadd.f32 %v7406, %v7407
      %v7409 = vsel %vm762, %v7298, 0.0
      %v7410 = vadd.f32 %v7408, %v7409
      %v7411 = vsel %vm762, %v7299, 0.0
      %v7412 = vadd.f32 %v7410, %v7411
      %v7413 = vsel %vm762, %v7300, 0.0
      %v7414 = vadd.f32 %v7412, %v7413
      %v7415 = vsel %vm762, %v7301, 0.0
      %v7416 = vadd.f32 %v7414, %v7415
      %v7417 = vsel %vm762, %v7302, 0.0
      %v7418 = vadd.f32 %v7416, %v7417
      %v7419 = vsel %vm762, %v7303, 0.0
      %v7420 = vadd.f32 %v7418, %v7419
      %v7421 = vsel %vm762, %v7304, 0.0
      %v7422 = vadd.f32 %v7420, %v7421
      %v7423 = vsel %vm762, %v7305, 0.0
      %v7424 = vadd.f32 %v7422, %v7423
      %v7425 = vsel %vm762, %v7306, 0.0
      %v7426 = vadd.f32 %v7424, %v7425
      %v7427 = vsel %vm762, %v7307, 0.0
      %v7428 = vadd.f32 %v7426, %v7427
      %v7429 = vsel %vm762, %v7308, 0.0
      %v7430 = vadd.f32 %v7428, %v7429
      %v7431 = vsel %vm762, %v7309, 0.0
      %v7432 = vadd.f32 %v7430, %v7431
      %v7433 = vsel %vm762, %v7310, 0.0
      %v7434 = vadd.f32 %v7432, %v7433
      %v7435 = vsel %vm762, %v7311, 0.0
      %v7436 = vadd.f32 %v7434, %v7435
      %v7437 = vsel %vm762, %v7312, 0.0
      %v7438 = vadd.f32 %v7436, %v7437
      %v7439 = vsel %vm762, %v7313, 0.0
      %v7440 = vadd.f32 %v7438, %v7439
      %v7441 = vsel %vm762, %v7314, 0.0
      %v7442 = vadd.f32 %v7440, %v7441
      %v7443 = vsel %vm762, %v7315, 0.0
      %v7444 = vadd.f32 %v7442, %v7443
      %v7445 = vrot.slane %v7444, 4
      %v7446 = vadd.f32 %v7444, %v7445
      %v7447 = vrot.slane %v7446, 2
      %v7448 = vadd.f32 %v7446, %v7447
      %v7449 = vrot.slane %v7448, 1
      %v7450 = vadd.f32 %v7448, %v7449
      %v7451 = vmul.f32 %v7252, %v7252
      %v7452 = vmul.f32 %v7253, %v7253
      %v7453 = vmul.f32 %v7254, %v7254
      %v7454 = vmul.f32 %v7255, %v7255
      %v7455 = vmul.f32 %v7256, %v7256
      %v7456 = vmul.f32 %v7257, %v7257
      %v7457 = vmul.f32 %v7258, %v7258
      %v7458 = vmul.f32 %v7259, %v7259
      %v7459 = vmul.f32 %v7260, %v7260
      %v7460 = vmul.f32 %v7261, %v7261
      %v7461 = vmul.f32 %v7262, %v7262
      %v7462 = vmul.f32 %v7263, %v7263
      %v7463 = vmul.f32 %v7264, %v7264
      %v7464 = vmul.f32 %v7265, %v7265
      %v7465 = vmul.f32 %v7266, %v7266
      %v7466 = vmul.f32 %v7267, %v7267
      %v7467 = vmul.f32 %v7268, %v7268
      %v7468 = vmul.f32 %v7269, %v7269
      %v7469 = vmul.f32 %v7270, %v7270
      %v7470 = vmul.f32 %v7271, %v7271
      %v7471 = vmul.f32 %v7272, %v7272
      %v7472 = vmul.f32 %v7273, %v7273
      %v7473 = vmul.f32 %v7274, %v7274
      %v7474 = vmul.f32 %v7275, %v7275
      %v7475 = vmul.f32 %v7276, %v7276
      %v7476 = vmul.f32 %v7277, %v7277
      %v7477 = vmul.f32 %v7278, %v7278
      %v7478 = vmul.f32 %v7279, %v7279
      %v7479 = vmul.f32 %v7280, %v7280
      %v7480 = vmul.f32 %v7281, %v7281
      %v7481 = vmul.f32 %v7282, %v7282
      %v7482 = vmul.f32 %v7283, %v7283
      %v7483 = vmul.f32 %v7284, %v7284
      %v7484 = vmul.f32 %v7285, %v7285
      %v7485 = vmul.f32 %v7286, %v7286
      %v7486 = vmul.f32 %v7287, %v7287
      %v7487 = vmul.f32 %v7288, %v7288
      %v7488 = vmul.f32 %v7289, %v7289
      %v7489 = vmul.f32 %v7290, %v7290
      %v7490 = vmul.f32 %v7291, %v7291
      %v7491 = vmul.f32 %v7292, %v7292
      %v7492 = vmul.f32 %v7293, %v7293
      %v7493 = vmul.f32 %v7294, %v7294
      %v7494 = vmul.f32 %v7295, %v7295
      %v7495 = vmul.f32 %v7296, %v7296
      %v7496 = vmul.f32 %v7297, %v7297
      %v7497 = vmul.f32 %v7298, %v7298
      %v7498 = vmul.f32 %v7299, %v7299
      %v7499 = vmul.f32 %v7300, %v7300
      %v7500 = vmul.f32 %v7301, %v7301
      %v7501 = vmul.f32 %v7302, %v7302
      %v7502 = vmul.f32 %v7303, %v7303
      %v7503 = vmul.f32 %v7304, %v7304
      %v7504 = vmul.f32 %v7305, %v7305
      %v7505 = vmul.f32 %v7306, %v7306
      %v7506 = vmul.f32 %v7307, %v7307
      %v7507 = vmul.f32 %v7308, %v7308
      %v7508 = vmul.f32 %v7309, %v7309
      %v7509 = vmul.f32 %v7310, %v7310
      %v7510 = vmul.f32 %v7311, %v7311
      %v7511 = vmul.f32 %v7312, %v7312
      %v7512 = vmul.f32 %v7313, %v7313
      %v7513 = vmul.f32 %v7314, %v7314
      %v7514 = vmul.f32 %v7315, %v7315
      %v7515 = vsel %vm762, %v7451, 0.0
      %v7516 = vsel %vm762, %v7452, 0.0
      %v7517 = vadd.f32 %v7515, %v7516
      %v7518 = vsel %vm762, %v7453, 0.0
      %v7519 = vadd.f32 %v7517, %v7518
      %v7520 = vsel %vm762, %v7454, 0.0
      %v7521 = vadd.f32 %v7519, %v7520
      %v7522 = vsel %vm762, %v7455, 0.0
      %v7523 = vadd.f32 %v7521, %v7522
      %v7524 = vsel %vm762, %v7456, 0.0
      %v7525 = vadd.f32 %v7523, %v7524
      %v7526 = vsel %vm762, %v7457, 0.0
      %v7527 = vadd.f32 %v7525, %v7526
      %v7528 = vsel %vm762, %v7458, 0.0
      %v7529 = vadd.f32 %v7527, %v7528
      %v7530 = vsel %vm762, %v7459, 0.0
      %v7531 = vadd.f32 %v7529, %v7530
      %v7532 = vsel %vm762, %v7460, 0.0
      %v7533 = vadd.f32 %v7531, %v7532
      %v7534 = vsel %vm762, %v7461, 0.0
      %v7535 = vadd.f32 %v7533, %v7534
      %v7536 = vsel %vm762, %v7462, 0.0
      %v7537 = vadd.f32 %v7535, %v7536
      %v7538 = vsel %vm762, %v7463, 0.0
      %v7539 = vadd.f32 %v7537, %v7538
      %v7540 = vsel %vm762, %v7464, 0.0
      %v7541 = vadd.f32 %v7539, %v7540
      %v7542 = vsel %vm762, %v7465, 0.0
      %v7543 = vadd.f32 %v7541, %v7542
      %v7544 = vsel %vm762, %v7466, 0.0
      %v7545 = vadd.f32 %v7543, %v7544
      %v7546 = vsel %vm762, %v7467, 0.0
      %v7547 = vadd.f32 %v7545, %v7546
      %v7548 = vsel %vm762, %v7468, 0.0
      %v7549 = vadd.f32 %v7547, %v7548
      %v7550 = vsel %vm762, %v7469, 0.0
      %v7551 = vadd.f32 %v7549, %v7550
      %v7552 = vsel %vm762, %v7470, 0.0
      %v7553 = vadd.f32 %v7551, %v7552
      %v7554 = vsel %vm762, %v7471, 0.0
      %v7555 = vadd.f32 %v7553, %v7554
      %v7556 = vsel %vm762, %v7472, 0.0
      %v7557 = vadd.f32 %v7555, %v7556
      %v7558 = vsel %vm762, %v7473, 0.0
      %v7559 = vadd.f32 %v7557, %v7558
      %v7560 = vsel %vm762, %v7474, 0.0
      %v7561 = vadd.f32 %v7559, %v7560
      %v7562 = vsel %vm762, %v7475, 0.0
      %v7563 = vadd.f32 %v7561, %v7562
      %v7564 = vsel %vm762, %v7476, 0.0
      %v7565 = vadd.f32 %v7563, %v7564
      %v7566 = vsel %vm762, %v7477, 0.0
      %v7567 = vadd.f32 %v7565, %v7566
      %v7568 = vsel %vm762, %v7478, 0.0
      %v7569 = vadd.f32 %v7567, %v7568
      %v7570 = vsel %vm762, %v7479, 0.0
      %v7571 = vadd.f32 %v7569, %v7570
      %v7572 = vsel %vm762, %v7480, 0.0
      %v7573 = vadd.f32 %v7571, %v7572
      %v7574 = vsel %vm762, %v7481, 0.0
      %v7575 = vadd.f32 %v7573, %v7574
      %v7576 = vsel %vm762, %v7482, 0.0
      %v7577 = vadd.f32 %v7575, %v7576
      %v7578 = vsel %vm762, %v7483, 0.0
      %v7579 = vadd.f32 %v7577, %v7578
      %v7580 = vsel %vm762, %v7484, 0.0
      %v7581 = vadd.f32 %v7579, %v7580
      %v7582 = vsel %vm762, %v7485, 0.0
      %v7583 = vadd.f32 %v7581, %v7582
      %v7584 = vsel %vm762, %v7486, 0.0
      %v7585 = vadd.f32 %v7583, %v7584
      %v7586 = vsel %vm762, %v7487, 0.0
      %v7587 = vadd.f32 %v7585, %v7586
      %v7588 = vsel %vm762, %v7488, 0.0
      %v7589 = vadd.f32 %v7587, %v7588
      %v7590 = vsel %vm762, %v7489, 0.0
      %v7591 = vadd.f32 %v7589, %v7590
      %v7592 = vsel %vm762, %v7490, 0.0
      %v7593 = vadd.f32 %v7591, %v7592
      %v7594 = vsel %vm762, %v7491, 0.0
      %v7595 = vadd.f32 %v7593, %v7594
      %v7596 = vsel %vm762, %v7492, 0.0
      %v7597 = vadd.f32 %v7595, %v7596
      %v7598 = vsel %vm762, %v7493, 0.0
      %v7599 = vadd.f32 %v7597, %v7598
      %v7600 = vsel %vm762, %v7494, 0.0
      %v7601 = vadd.f32 %v7599, %v7600
      %v7602 = vsel %vm762, %v7495, 0.0
      %v7603 = vadd.f32 %v7601, %v7602
      %v7604 = vsel %vm762, %v7496, 0.0
      %v7605 = vadd.f32 %v7603, %v7604
      %v7606 = vsel %vm762, %v7497, 0.0
      %v7607 = vadd.f32 %v7605, %v7606
      %v7608 = vsel %vm762, %v7498, 0.0
      %v7609 = vadd.f32 %v7607, %v7608
      %v7610 = vsel %vm762, %v7499, 0.0
      %v7611 = vadd.f32 %v7609, %v7610
      %v7612 = vsel %vm762, %v7500, 0.0
      %v7613 = vadd.f32 %v7611, %v7612
      %v7614 = vsel %vm762, %v7501, 0.0
      %v7615 = vadd.f32 %v7613, %v7614
      %v7616 = vsel %vm762, %v7502, 0.0
      %v7617 = vadd.f32 %v7615, %v7616
      %v7618 = vsel %vm762, %v7503, 0.0
      %v7619 = vadd.f32 %v7617, %v7618
      %v7620 = vsel %vm762, %v7504, 0.0
      %v7621 = vadd.f32 %v7619, %v7620
      %v7622 = vsel %vm762, %v7505, 0.0
      %v7623 = vadd.f32 %v7621, %v7622
      %v7624 = vsel %vm762, %v7506, 0.0
      %v7625 = vadd.f32 %v7623, %v7624
      %v7626 = vsel %vm762, %v7507, 0.0
      %v7627 = vadd.f32 %v7625, %v7626
      %v7628 = vsel %vm762, %v7508, 0.0
      %v7629 = vadd.f32 %v7627, %v7628
      %v7630 = vsel %vm762, %v7509, 0.0
      %v7631 = vadd.f32 %v7629, %v7630
      %v7632 = vsel %vm762, %v7510, 0.0
      %v7633 = vadd.f32 %v7631, %v7632
      %v7634 = vsel %vm762, %v7511, 0.0
      %v7635 = vadd.f32 %v7633, %v7634
      %v7636 = vsel %vm762, %v7512, 0.0
      %v7637 = vadd.f32 %v7635, %v7636
      %v7638 = vsel %vm762, %v7513, 0.0
      %v7639 = vadd.f32 %v7637, %v7638
      %v7640 = vsel %vm762, %v7514, 0.0
      %v7641 = vadd.f32 %v7639, %v7640
      %v7642 = vrot.slane %v7641, 4
      %v7643 = vadd.f32 %v7641, %v7642
      %v7644 = vrot.slane %v7643, 2
      %v7645 = vadd.f32 %v7643, %v7644
      %v7646 = vrot.slane %v7645, 1
      %v7647 = vadd.f32 %v7645, %v7646
      %v7648 = vmul.f32 %v7450, 0.001953125
      %v7649 = vmul.f32 %v7647, 0.001953125
      %v7650 = vmul.f32 %v7648, %v7648
      %v7651 = vsub.f32 %v7649, %v7650
      %v7652 = vadd.f32 %v7651, 1e-05
      %v7653 = vrsqrt.pop %v7652
      %v7654 = vmul.f32 %v7316, %v7653
      %v7655 = vmul.f32 %v7648, %v7654
      %v7656 = vsub.f32 %v7317, %v7655
      %v7658 = vlaneseq
      %v7659 = vshrl.u32 %v7658, 7
      %v7660 = vsub.s32 0, %v7659
      %v7661 = vrot.slane %v7654, %v7660
      %v7663 = vmul.f32 %v7252, %v7661
      %v7664 = vmul.f32 %v7253, %v7661
      %v7665 = vmul.f32 %v7254, %v7661
      %v7666 = vmul.f32 %v7255, %v7661
      %v7667 = vmul.f32 %v7256, %v7661
      %v7668 = vmul.f32 %v7257, %v7661
      %v7669 = vmul.f32 %v7258, %v7661
      %v7670 = vmul.f32 %v7259, %v7661
      %v7671 = vmul.f32 %v7260, %v7661
      %v7672 = vmul.f32 %v7261, %v7661
      %v7673 = vmul.f32 %v7262, %v7661
      %v7674 = vmul.f32 %v7263, %v7661
      %v7675 = vmul.f32 %v7264, %v7661
      %v7676 = vmul.f32 %v7265, %v7661
      %v7677 = vmul.f32 %v7266, %v7661
      %v7678 = vmul.f32 %v7267, %v7661
      %v7679 = vmul.f32 %v7268, %v7661
      %v7680 = vmul.f32 %v7269, %v7661
      %v7681 = vmul.f32 %v7270, %v7661
      %v7682 = vmul.f32 %v7271, %v7661
      %v7683 = vmul.f32 %v7272, %v7661
      %v7684 = vmul.f32 %v7273, %v7661
      %v7685 = vmul.f32 %v7274, %v7661
      %v7686 = vmul.f32 %v7275, %v7661
      %v7687 = vmul.f32 %v7276, %v7661
      %v7688 = vmul.f32 %v7277, %v7661
      %v7689 = vmul.f32 %v7278, %v7661
      %v7690 = vmul.f32 %v7279, %v7661
      %v7691 = vmul.f32 %v7280, %v7661
      %v7692 = vmul.f32 %v7281, %v7661
      %v7693 = vmul.f32 %v7282, %v7661
      %v7694 = vmul.f32 %v7283, %v7661
      %v7695 = vmul.f32 %v7284, %v7661
      %v7696 = vmul.f32 %v7285, %v7661
      %v7697 = vmul.f32 %v7286, %v7661
      %v7698 = vmul.f32 %v7287, %v7661
      %v7699 = vmul.f32 %v7288, %v7661
      %v7700 = vmul.f32 %v7289, %v7661
      %v7701 = vmul.f32 %v7290, %v7661
      %v7702 = vmul.f32 %v7291, %v7661
      %v7703 = vmul.f32 %v7292, %v7661
      %v7704 = vmul.f32 %v7293, %v7661
      %v7705 = vmul.f32 %v7294, %v7661
      %v7706 = vmul.f32 %v7295, %v7661
      %v7707 = vmul.f32 %v7296, %v7661
      %v7708 = vmul.f32 %v7297, %v7661
      %v7709 = vmul.f32 %v7298, %v7661
      %v7710 = vmul.f32 %v7299, %v7661
      %v7711 = vmul.f32 %v7300, %v7661
      %v7712 = vmul.f32 %v7301, %v7661
      %v7713 = vmul.f32 %v7302, %v7661
      %v7714 = vmul.f32 %v7303, %v7661
      %v7715 = vmul.f32 %v7304, %v7661
      %v7716 = vmul.f32 %v7305, %v7661
      %v7717 = vmul.f32 %v7306, %v7661
      %v7718 = vmul.f32 %v7307, %v7661
      %v7719 = vmul.f32 %v7308, %v7661
      %v7720 = vmul.f32 %v7309, %v7661
      %v7721 = vmul.f32 %v7310, %v7661
      %v7722 = vmul.f32 %v7311, %v7661
      %v7723 = vmul.f32 %v7312, %v7661
      %v7724 = vmul.f32 %v7313, %v7661
      %v7725 = vmul.f32 %v7314, %v7661
      %v7726 = vmul.f32 %v7315, %v7661
      %v7728 = vlaneseq
      %v7729 = vshrl.u32 %v7728, 7
      %v7730 = vsub.s32 0, %v7729
      %v7731 = vrot.slane %v7656, %v7730
      %v7733 = vadd.f32 %v7663, %v7731
      %v7734 = vadd.f32 %v7664, %v7731
      %v7735 = vadd.f32 %v7665, %v7731
      %v7736 = vadd.f32 %v7666, %v7731
      %v7737 = vadd.f32 %v7667, %v7731
      %v7738 = vadd.f32 %v7668, %v7731
      %v7739 = vadd.f32 %v7669, %v7731
      %v7740 = vadd.f32 %v7670, %v7731
      %v7741 = vadd.f32 %v7671, %v7731
      %v7742 = vadd.f32 %v7672, %v7731
      %v7743 = vadd.f32 %v7673, %v7731
      %v7744 = vadd.f32 %v7674, %v7731
      %v7745 = vadd.f32 %v7675, %v7731
      %v7746 = vadd.f32 %v7676, %v7731
      %v7747 = vadd.f32 %v7677, %v7731
      %v7748 = vadd.f32 %v7678, %v7731
      %v7749 = vadd.f32 %v7679, %v7731
      %v7750 = vadd.f32 %v7680, %v7731
      %v7751 = vadd.f32 %v7681, %v7731
      %v7752 = vadd.f32 %v7682, %v7731
      %v7753 = vadd.f32 %v7683, %v7731
      %v7754 = vadd.f32 %v7684, %v7731
      %v7755 = vadd.f32 %v7685, %v7731
      %v7756 = vadd.f32 %v7686, %v7731
      %v7757 = vadd.f32 %v7687, %v7731
      %v7758 = vadd.f32 %v7688, %v7731
      %v7759 = vadd.f32 %v7689, %v7731
      %v7760 = vadd.f32 %v7690, %v7731
      %v7761 = vadd.f32 %v7691, %v7731
      %v7762 = vadd.f32 %v7692, %v7731
      %v7763 = vadd.f32 %v7693, %v7731
      %v7764 = vadd.f32 %v7694, %v7731
      %v7765 = vadd.f32 %v7695, %v7731
      %v7766 = vadd.f32 %v7696, %v7731
      %v7767 = vadd.f32 %v7697, %v7731
      %v7768 = vadd.f32 %v7698, %v7731
      %v7769 = vadd.f32 %v7699, %v7731
      %v7770 = vadd.f32 %v7700, %v7731
      %v7771 = vadd.f32 %v7701, %v7731
      %v7772 = vadd.f32 %v7702, %v7731
      %v7773 = vadd.f32 %v7703, %v7731
      %v7774 = vadd.f32 %v7704, %v7731
      %v7775 = vadd.f32 %v7705, %v7731
      %v7776 = vadd.f32 %v7706, %v7731
      %v7777 = vadd.f32 %v7707, %v7731
      %v7778 = vadd.f32 %v7708, %v7731
      %v7779 = vadd.f32 %v7709, %v7731
      %v7780 = vadd.f32 %v7710, %v7731
      %v7781 = vadd.f32 %v7711, %v7731
      %v7782 = vadd.f32 %v7712, %v7731
      %v7783 = vadd.f32 %v7713, %v7731
      %v7784 = vadd.f32 %v7714, %v7731
      %v7785 = vadd.f32 %v7715, %v7731
      %v7786 = vadd.f32 %v7716, %v7731
      %v7787 = vadd.f32 %v7717, %v7731
      %v7788 = vadd.f32 %v7718, %v7731
      %v7789 = vadd.f32 %v7719, %v7731
      %v7790 = vadd.f32 %v7720, %v7731
      %v7791 = vadd.f32 %v7721, %v7731
      %v7792 = vadd.f32 %v7722, %v7731
      %v7793 = vadd.f32 %v7723, %v7731
      %v7794 = vadd.f32 %v7724, %v7731
      %v7795 = vadd.f32 %v7725, %v7731
      %v7796 = vadd.f32 %v7726, %v7731
      %vm7797 = vcmp.gt.f32.partialorder %v7733, 0.0
      %vm7798 = vcmp.gt.f32.partialorder %v7734, 0.0
      %vm7799 = vcmp.gt.f32.partialorder %v7735, 0.0
      %vm7800 = vcmp.gt.f32.partialorder %v7736, 0.0
      %vm7801 = vcmp.gt.f32.partialorder %v7737, 0.0
      %vm7802 = vcmp.gt.f32.partialorder %v7738, 0.0
      %vm7803 = vcmp.gt.f32.partialorder %v7739, 0.0
      %vm7804 = vcmp.gt.f32.partialorder %v7740, 0.0
      %vm7805 = vcmp.gt.f32.partialorder %v7741, 0.0
      %vm7806 = vcmp.gt.f32.partialorder %v7742, 0.0
      %vm7807 = vcmp.gt.f32.partialorder %v7743, 0.0
      %vm7808 = vcmp.gt.f32.partialorder %v7744, 0.0
      %vm7809 = vcmp.gt.f32.partialorder %v7745, 0.0
      %vm7810 = vcmp.gt.f32.partialorder %v7746, 0.0
      %vm7811 = vcmp.gt.f32.partialorder %v7747, 0.0
      %vm7812 = vcmp.gt.f32.partialorder %v7748, 0.0
      %vm7813 = vcmp.gt.f32.partialorder %v7749, 0.0
      %vm7814 = vcmp.gt.f32.partialorder %v7750, 0.0
      %vm7815 = vcmp.gt.f32.partialorder %v7751, 0.0
      %vm7816 = vcmp.gt.f32.partialorder %v7752, 0.0
      %vm7817 = vcmp.gt.f32.partialorder %v7753, 0.0
      %vm7818 = vcmp.gt.f32.partialorder %v7754, 0.0
      %vm7819 = vcmp.gt.f32.partialorder %v7755, 0.0
      %vm7820 = vcmp.gt.f32.partialorder %v7756, 0.0
      %vm7821 = vcmp.gt.f32.partialorder %v7757, 0.0
      %vm7822 = vcmp.gt.f32.partialorder %v7758, 0.0
      %vm7823 = vcmp.gt.f32.partialorder %v7759, 0.0
      %vm7824 = vcmp.gt.f32.partialorder %v7760, 0.0
      %vm7825 = vcmp.gt.f32.partialorder %v7761, 0.0
      %vm7826 = vcmp.gt.f32.partialorder %v7762, 0.0
      %vm7827 = vcmp.gt.f32.partialorder %v7763, 0.0
      %vm7828 = vcmp.gt.f32.partialorder %v7764, 0.0
      %vm7829 = vcmp.gt.f32.partialorder %v7765, 0.0
      %vm7830 = vcmp.gt.f32.partialorder %v7766, 0.0
      %vm7831 = vcmp.gt.f32.partialorder %v7767, 0.0
      %vm7832 = vcmp.gt.f32.partialorder %v7768, 0.0
      %vm7833 = vcmp.gt.f32.partialorder %v7769, 0.0
      %vm7834 = vcmp.gt.f32.partialorder %v7770, 0.0
      %vm7835 = vcmp.gt.f32.partialorder %v7771, 0.0
      %vm7836 = vcmp.gt.f32.partialorder %v7772, 0.0
      %vm7837 = vcmp.gt.f32.partialorder %v7773, 0.0
      %vm7838 = vcmp.gt.f32.partialorder %v7774, 0.0
      %vm7839 = vcmp.gt.f32.partialorder %v7775, 0.0
      %vm7840 = vcmp.gt.f32.partialorder %v7776, 0.0
      %vm7841 = vcmp.gt.f32.partialorder %v7777, 0.0
      %vm7842 = vcmp.gt.f32.partialorder %v7778, 0.0
      %vm7843 = vcmp.gt.f32.partialorder %v7779, 0.0
      %vm7844 = vcmp.gt.f32.partialorder %v7780, 0.0
      %vm7845 = vcmp.gt.f32.partialorder %v7781, 0.0
      %vm7846 = vcmp.gt.f32.partialorder %v7782, 0.0
      %vm7847 = vcmp.gt.f32.partialorder %v7783, 0.0
      %vm7848 = vcmp.gt.f32.partialorder %v7784, 0.0
      %vm7849 = vcmp.gt.f32.partialorder %v7785, 0.0
      %vm7850 = vcmp.gt.f32.partialorder %v7786, 0.0
      %vm7851 = vcmp.gt.f32.partialorder %v7787, 0.0
      %vm7852 = vcmp.gt.f32.partialorder %v7788, 0.0
      %vm7853 = vcmp.gt.f32.partialorder %v7789, 0.0
      %vm7854 = vcmp.gt.f32.partialorder %v7790, 0.0
      %vm7855 = vcmp.gt.f32.partialorder %v7791, 0.0
      %vm7856 = vcmp.gt.f32.partialorder %v7792, 0.0
      %vm7857 = vcmp.gt.f32.partialorder %v7793, 0.0
      %vm7858 = vcmp.gt.f32.partialorder %v7794, 0.0
      %vm7859 = vcmp.gt.f32.partialorder %v7795, 0.0
      %vm7860 = vcmp.gt.f32.partialorder %v7796, 0.0
      %v7861 = vmul.f32 %v7733, 0.1
      %v7862 = vmul.f32 %v7734, 0.1
      %v7863 = vmul.f32 %v7735, 0.1
      %v7864 = vmul.f32 %v7736, 0.1
      %v7865 = vmul.f32 %v7737, 0.1
      %v7866 = vmul.f32 %v7738, 0.1
      %v7867 = vmul.f32 %v7739, 0.1
      %v7868 = vmul.f32 %v7740, 0.1
      %v7869 = vmul.f32 %v7741, 0.1
      %v7870 = vmul.f32 %v7742, 0.1
      %v7871 = vmul.f32 %v7743, 0.1
      %v7872 = vmul.f32 %v7744, 0.1
      %v7873 = vmul.f32 %v7745, 0.1
      %v7874 = vmul.f32 %v7746, 0.1
      %v7875 = vmul.f32 %v7747, 0.1
      %v7876 = vmul.f32 %v7748, 0.1
      %v7877 = vmul.f32 %v7749, 0.1
      %v7878 = vmul.f32 %v7750, 0.1
      %v7879 = vmul.f32 %v7751, 0.1
      %v7880 = vmul.f32 %v7752, 0.1
      %v7881 = vmul.f32 %v7753, 0.1
      %v7882 = vmul.f32 %v7754, 0.1
      %v7883 = vmul.f32 %v7755, 0.1
      %v7884 = vmul.f32 %v7756, 0.1
      %v7885 = vmul.f32 %v7757, 0.1
      %v7886 = vmul.f32 %v7758, 0.1
      %v7887 = vmul.f32 %v7759, 0.1
      %v7888 = vmul.f32 %v7760, 0.1
      %v7889 = vmul.f32 %v7761, 0.1
      %v7890 = vmul.f32 %v7762, 0.1
      %v7891 = vmul.f32 %v7763, 0.1
      %v7892 = vmul.f32 %v7764, 0.1
      %v7893 = vmul.f32 %v7765, 0.1
      %v7894 = vmul.f32 %v7766, 0.1
      %v7895 = vmul.f32 %v7767, 0.1
      %v7896 = vmul.f32 %v7768, 0.1
      %v7897 = vmul.f32 %v7769, 0.1
      %v7898 = vmul.f32 %v7770, 0.1
      %v7899 = vmul.f32 %v7771, 0.1
      %v7900 = vmul.f32 %v7772, 0.1
      %v7901 = vmul.f32 %v7773, 0.1
      %v7902 = vmul.f32 %v7774, 0.1
      %v7903 = vmul.f32 %v7775, 0.1
      %v7904 = vmul.f32 %v7776, 0.1
      %v7905 = vmul.f32 %v7777, 0.1
      %v7906 = vmul.f32 %v7778, 0.1
      %v7907 = vmul.f32 %v7779, 0.1
      %v7908 = vmul.f32 %v7780, 0.1
      %v7909 = vmul.f32 %v7781, 0.1
      %v7910 = vmul.f32 %v7782, 0.1
      %v7911 = vmul.f32 %v7783, 0.1
      %v7912 = vmul.f32 %v7784, 0.1
      %v7913 = vmul.f32 %v7785, 0.1
      %v7914 = vmul.f32 %v7786, 0.1
      %v7915 = vmul.f32 %v7787, 0.1
      %v7916 = vmul.f32 %v7788, 0.1
      %v7917 = vmul.f32 %v7789, 0.1
      %v7918 = vmul.f32 %v7790, 0.1
      %v7919 = vmul.f32 %v7791, 0.1
      %v7920 = vmul.f32 %v7792, 0.1
      %v7921 = vmul.f32 %v7793, 0.1
      %v7922 = vmul.f32 %v7794, 0.1
      %v7923 = vmul.f32 %v7795, 0.1
      %v7924 = vmul.f32 %v7796, 0.1
      %v7925 = vsel %vm7797, %v7733, %v7861
      %v7926 = vsel %vm7798, %v7734, %v7862
      %v7927 = vsel %vm7799, %v7735, %v7863
      %v7928 = vsel %vm7800, %v7736, %v7864
      %v7929 = vsel %vm7801, %v7737, %v7865
      %v7930 = vsel %vm7802, %v7738, %v7866
      %v7931 = vsel %vm7803, %v7739, %v7867
      %v7932 = vsel %vm7804, %v7740, %v7868
      %v7933 = vsel %vm7805, %v7741, %v7869
      %v7934 = vsel %vm7806, %v7742, %v7870
      %v7935 = vsel %vm7807, %v7743, %v7871
      %v7936 = vsel %vm7808, %v7744, %v7872
      %v7937 = vsel %vm7809, %v7745, %v7873
      %v7938 = vsel %vm7810, %v7746, %v7874
      %v7939 = vsel %vm7811, %v7747, %v7875
      %v7940 = vsel %vm7812, %v7748, %v7876
      %v7941 = vsel %vm7813, %v7749, %v7877
      %v7942 = vsel %vm7814, %v7750, %v7878
      %v7943 = vsel %vm7815, %v7751, %v7879
      %v7944 = vsel %vm7816, %v7752, %v7880
      %v7945 = vsel %vm7817, %v7753, %v7881
      %v7946 = vsel %vm7818, %v7754, %v7882
      %v7947 = vsel %vm7819, %v7755, %v7883
      %v7948 = vsel %vm7820, %v7756, %v7884
      %v7949 = vsel %vm7821, %v7757, %v7885
      %v7950 = vsel %vm7822, %v7758, %v7886
      %v7951 = vsel %vm7823, %v7759, %v7887
      %v7952 = vsel %vm7824, %v7760, %v7888
      %v7953 = vsel %vm7825, %v7761, %v7889
      %v7954 = vsel %vm7826, %v7762, %v7890
      %v7955 = vsel %vm7827, %v7763, %v7891
      %v7956 = vsel %vm7828, %v7764, %v7892
      %v7957 = vsel %vm7829, %v7765, %v7893
      %v7958 = vsel %vm7830, %v7766, %v7894
      %v7959 = vsel %vm7831, %v7767, %v7895
      %v7960 = vsel %vm7832, %v7768, %v7896
      %v7961 = vsel %vm7833, %v7769, %v7897
      %v7962 = vsel %vm7834, %v7770, %v7898
      %v7963 = vsel %vm7835, %v7771, %v7899
      %v7964 = vsel %vm7836, %v7772, %v7900
      %v7965 = vsel %vm7837, %v7773, %v7901
      %v7966 = vsel %vm7838, %v7774, %v7902
      %v7967 = vsel %vm7839, %v7775, %v7903
      %v7968 = vsel %vm7840, %v7776, %v7904
      %v7969 = vsel %vm7841, %v7777, %v7905
      %v7970 = vsel %vm7842, %v7778, %v7906
      %v7971 = vsel %vm7843, %v7779, %v7907
      %v7972 = vsel %vm7844, %v7780, %v7908
      %v7973 = vsel %vm7845, %v7781, %v7909
      %v7974 = vsel %vm7846, %v7782, %v7910
      %v7975 = vsel %vm7847, %v7783, %v7911
      %v7976 = vsel %vm7848, %v7784, %v7912
      %v7977 = vsel %vm7849, %v7785, %v7913
      %v7978 = vsel %vm7850, %v7786, %v7914
      %v7979 = vsel %vm7851, %v7787, %v7915
      %v7980 = vsel %vm7852, %v7788, %v7916
      %v7981 = vsel %vm7853, %v7789, %v7917
      %v7982 = vsel %vm7854, %v7790, %v7918
      %v7983 = vsel %vm7855, %v7791, %v7919
      %v7984 = vsel %vm7856, %v7792, %v7920
      %v7985 = vsel %vm7857, %v7793, %v7921
      %v7986 = vsel %vm7858, %v7794, %v7922
      %v7987 = vsel %vm7859, %v7795, %v7923
      %v7988 = vsel %vm7860, %v7796, %v7924
      %v7989 = vunpack.c.l.bf16 %v537
      %v7990 = vunpack.c.l.bf16 %v538
      %v7991 = vunpack.c.l.bf16 %v539
      %v7992 = vunpack.c.l.bf16 %v540
      %v7993 = vunpack.c.l.bf16 %v541
      %v7994 = vunpack.c.l.bf16 %v542
      %v7995 = vunpack.c.l.bf16 %v543
      %v7996 = vunpack.c.l.bf16 %v544
      %v7997 = vunpack.c.l.bf16 %v545
      %v7998 = vunpack.c.l.bf16 %v546
      %v7999 = vunpack.c.l.bf16 %v547
      %v8000 = vunpack.c.l.bf16 %v548
      %v8001 = vunpack.c.l.bf16 %v549
      %v8002 = vunpack.c.l.bf16 %v550
      %v8003 = vunpack.c.l.bf16 %v551
      %v8004 = vunpack.c.l.bf16 %v552
      %v8005 = vunpack.c.l.bf16 %v553
      %v8006 = vunpack.c.l.bf16 %v554
      %v8007 = vunpack.c.l.bf16 %v555
      %v8008 = vunpack.c.l.bf16 %v556
      %v8009 = vunpack.c.l.bf16 %v557
      %v8010 = vunpack.c.l.bf16 %v558
      %v8011 = vunpack.c.l.bf16 %v559
      %v8012 = vunpack.c.l.bf16 %v560
      %v8013 = vunpack.c.l.bf16 %v561
      %v8014 = vunpack.c.l.bf16 %v562
      %v8015 = vunpack.c.l.bf16 %v563
      %v8016 = vunpack.c.l.bf16 %v564
      %v8017 = vunpack.c.l.bf16 %v565
      %v8018 = vunpack.c.l.bf16 %v566
      %v8019 = vunpack.c.l.bf16 %v567
      %v8020 = vunpack.c.l.bf16 %v568
      %v8021 = vunpack.c.l.bf16 %v569
      %v8022 = vunpack.c.l.bf16 %v570
      %v8023 = vunpack.c.l.bf16 %v571
      %v8024 = vunpack.c.l.bf16 %v572
      %v8025 = vunpack.c.l.bf16 %v573
      %v8026 = vunpack.c.l.bf16 %v574
      %v8027 = vunpack.c.l.bf16 %v575
      %v8028 = vunpack.c.l.bf16 %v576
      %v8029 = vunpack.c.l.bf16 %v577
      %v8030 = vunpack.c.l.bf16 %v578
      %v8031 = vunpack.c.l.bf16 %v579
      %v8032 = vunpack.c.l.bf16 %v580
      %v8033 = vunpack.c.l.bf16 %v581
      %v8034 = vunpack.c.l.bf16 %v582
      %v8035 = vunpack.c.l.bf16 %v583
      %v8036 = vunpack.c.l.bf16 %v584
      %v8037 = vunpack.c.l.bf16 %v585
      %v8038 = vunpack.c.l.bf16 %v586
      %v8039 = vunpack.c.l.bf16 %v587
      %v8040 = vunpack.c.l.bf16 %v588
      %v8041 = vunpack.c.l.bf16 %v589
      %v8042 = vunpack.c.l.bf16 %v590
      %v8043 = vunpack.c.l.bf16 %v591
      %v8044 = vunpack.c.l.bf16 %v592
      %v8045 = vunpack.c.l.bf16 %v593
      %v8046 = vunpack.c.l.bf16 %v594
      %v8047 = vunpack.c.l.bf16 %v595
      %v8048 = vunpack.c.l.bf16 %v596
      %v8049 = vunpack.c.l.bf16 %v597
      %v8050 = vunpack.c.l.bf16 %v598
      %v8051 = vunpack.c.l.bf16 %v599
      %v8052 = vunpack.c.l.bf16 %v600
      %v8053 = vadd.f32 %v7989, %v7925
      %v8054 = vadd.f32 %v7990, %v7926
      %v8055 = vadd.f32 %v7991, %v7927
      %v8056 = vadd.f32 %v7992, %v7928
      %v8057 = vadd.f32 %v7993, %v7929
      %v8058 = vadd.f32 %v7994, %v7930
      %v8059 = vadd.f32 %v7995, %v7931
      %v8060 = vadd.f32 %v7996, %v7932
      %v8061 = vadd.f32 %v7997, %v7933
      %v8062 = vadd.f32 %v7998, %v7934
      %v8063 = vadd.f32 %v7999, %v7935
      %v8064 = vadd.f32 %v8000, %v7936
      %v8065 = vadd.f32 %v8001, %v7937
      %v8066 = vadd.f32 %v8002, %v7938
      %v8067 = vadd.f32 %v8003, %v7939
      %v8068 = vadd.f32 %v8004, %v7940
      %v8069 = vadd.f32 %v8005, %v7941
      %v8070 = vadd.f32 %v8006, %v7942
      %v8071 = vadd.f32 %v8007, %v7943
      %v8072 = vadd.f32 %v8008, %v7944
      %v8073 = vadd.f32 %v8009, %v7945
      %v8074 = vadd.f32 %v8010, %v7946
      %v8075 = vadd.f32 %v8011, %v7947
      %v8076 = vadd.f32 %v8012, %v7948
      %v8077 = vadd.f32 %v8013, %v7949
      %v8078 = vadd.f32 %v8014, %v7950
      %v8079 = vadd.f32 %v8015, %v7951
      %v8080 = vadd.f32 %v8016, %v7952
      %v8081 = vadd.f32 %v8017, %v7953
      %v8082 = vadd.f32 %v8018, %v7954
      %v8083 = vadd.f32 %v8019, %v7955
      %v8084 = vadd.f32 %v8020, %v7956
      %v8085 = vadd.f32 %v8021, %v7957
      %v8086 = vadd.f32 %v8022, %v7958
      %v8087 = vadd.f32 %v8023, %v7959
      %v8088 = vadd.f32 %v8024, %v7960
      %v8089 = vadd.f32 %v8025, %v7961
      %v8090 = vadd.f32 %v8026, %v7962
      %v8091 = vadd.f32 %v8027, %v7963
      %v8092 = vadd.f32 %v8028, %v7964
      %v8093 = vadd.f32 %v8029, %v7965
      %v8094 = vadd.f32 %v8030, %v7966
      %v8095 = vadd.f32 %v8031, %v7967
      %v8096 = vadd.f32 %v8032, %v7968
      %v8097 = vadd.f32 %v8033, %v7969
      %v8098 = vadd.f32 %v8034, %v7970
      %v8099 = vadd.f32 %v8035, %v7971
      %v8100 = vadd.f32 %v8036, %v7972
      %v8101 = vadd.f32 %v8037, %v7973
      %v8102 = vadd.f32 %v8038, %v7974
      %v8103 = vadd.f32 %v8039, %v7975
      %v8104 = vadd.f32 %v8040, %v7976
      %v8105 = vadd.f32 %v8041, %v7977
      %v8106 = vadd.f32 %v8042, %v7978
      %v8107 = vadd.f32 %v8043, %v7979
      %v8108 = vadd.f32 %v8044, %v7980
      %v8109 = vadd.f32 %v8045, %v7981
      %v8110 = vadd.f32 %v8046, %v7982
      %v8111 = vadd.f32 %v8047, %v7983
      %v8112 = vadd.f32 %v8048, %v7984
      %v8113 = vadd.f32 %v8049, %v7985
      %v8114 = vadd.f32 %v8050, %v7986
      %v8115 = vadd.f32 %v8051, %v7987
      %v8116 = vadd.f32 %v8052, %v7988
      %v8117 = vpack.c.bf16 %v8054, %v8053
      %v8118 = vpack.c.bf16 %v8056, %v8055
      %v8119 = vpack.c.bf16 %v8058, %v8057
      %v8120 = vpack.c.bf16 %v8060, %v8059
      %v8121 = vpack.c.bf16 %v8062, %v8061
      %v8122 = vpack.c.bf16 %v8064, %v8063
      %v8123 = vpack.c.bf16 %v8066, %v8065
      %v8124 = vpack.c.bf16 %v8068, %v8067
      %v8125 = vpack.c.bf16 %v8070, %v8069
      %v8126 = vpack.c.bf16 %v8072, %v8071
      %v8127 = vpack.c.bf16 %v8074, %v8073
      %v8128 = vpack.c.bf16 %v8076, %v8075
      %v8129 = vpack.c.bf16 %v8078, %v8077
      %v8130 = vpack.c.bf16 %v8080, %v8079
      %v8131 = vpack.c.bf16 %v8082, %v8081
      %v8132 = vpack.c.bf16 %v8084, %v8083
      %v8133 = vpack.c.bf16 %v8086, %v8085
      %v8134 = vpack.c.bf16 %v8088, %v8087
      %v8135 = vpack.c.bf16 %v8090, %v8089
      %v8136 = vpack.c.bf16 %v8092, %v8091
      %v8137 = vpack.c.bf16 %v8094, %v8093
      %v8138 = vpack.c.bf16 %v8096, %v8095
      %v8139 = vpack.c.bf16 %v8098, %v8097
      %v8140 = vpack.c.bf16 %v8100, %v8099
      %v8141 = vpack.c.bf16 %v8102, %v8101
      %v8142 = vpack.c.bf16 %v8104, %v8103
      %v8143 = vpack.c.bf16 %v8106, %v8105
      %v8144 = vpack.c.bf16 %v8108, %v8107
      %v8145 = vpack.c.bf16 %v8110, %v8109
      %v8146 = vpack.c.bf16 %v8112, %v8111
      %v8147 = vpack.c.bf16 %v8114, %v8113
      %v8148 = vpack.c.bf16 %v8116, %v8115
      %v8181 = vunpack.c.l.b16 %v8117
      %v8182 = vunpack.c.h.b16 %v8117
      %v8183 = vunpack.c.l.b16 %v8118
      %v8184 = vunpack.c.h.b16 %v8118
      %v8185 = vunpack.c.l.b16 %v8119
      %v8186 = vunpack.c.h.b16 %v8119
      %v8187 = vunpack.c.l.b16 %v8120
      %v8188 = vunpack.c.h.b16 %v8120
      %v8189 = vunpack.c.l.b16 %v8121
      %v8190 = vunpack.c.h.b16 %v8121
      %v8191 = vunpack.c.l.b16 %v8122
      %v8192 = vunpack.c.h.b16 %v8122
      %v8193 = vunpack.c.l.b16 %v8123
      %v8194 = vunpack.c.h.b16 %v8123
      %v8195 = vunpack.c.l.b16 %v8124
      %v8196 = vunpack.c.h.b16 %v8124
      %v8197 = vunpack.c.l.b16 %v8125
      %v8198 = vunpack.c.h.b16 %v8125
      %v8199 = vunpack.c.l.b16 %v8126
      %v8200 = vunpack.c.h.b16 %v8126
      %v8201 = vunpack.c.l.b16 %v8127
      %v8202 = vunpack.c.h.b16 %v8127
      %v8203 = vunpack.c.l.b16 %v8128
      %v8204 = vunpack.c.h.b16 %v8128
      %v8205 = vunpack.c.l.b16 %v8129
      %v8206 = vunpack.c.h.b16 %v8129
      %v8207 = vunpack.c.l.b16 %v8130
      %v8208 = vunpack.c.h.b16 %v8130
      %v8209 = vunpack.c.l.b16 %v8131
      %v8210 = vunpack.c.h.b16 %v8131
      %v8211 = vunpack.c.l.b16 %v8132
      %v8212 = vunpack.c.h.b16 %v8132
      %v8213 = vunpack.c.l.b16 %v8133
      %v8214 = vunpack.c.h.b16 %v8133
      %v8215 = vunpack.c.l.b16 %v8134
      %v8216 = vunpack.c.h.b16 %v8134
      %v8217 = vunpack.c.l.b16 %v8135
      %v8218 = vunpack.c.h.b16 %v8135
      %v8219 = vunpack.c.l.b16 %v8136
      %v8220 = vunpack.c.h.b16 %v8136
      %v8221 = vunpack.c.l.b16 %v8137
      %v8222 = vunpack.c.h.b16 %v8137
      %v8223 = vunpack.c.l.b16 %v8138
      %v8224 = vunpack.c.h.b16 %v8138
      %v8225 = vunpack.c.l.b16 %v8139
      %v8226 = vunpack.c.h.b16 %v8139
      %v8227 = vunpack.c.l.b16 %v8140
      %v8228 = vunpack.c.h.b16 %v8140
      %v8229 = vunpack.c.l.b16 %v8141
      %v8230 = vunpack.c.h.b16 %v8141
      %v8231 = vunpack.c.l.b16 %v8142
      %v8232 = vunpack.c.h.b16 %v8142
      %v8233 = vunpack.c.l.b16 %v8143
      %v8234 = vunpack.c.h.b16 %v8143
      %v8235 = vunpack.c.l.b16 %v8144
      %v8236 = vunpack.c.h.b16 %v8144
      %v8237 = vunpack.c.l.b16 %v8145
      %v8238 = vunpack.c.h.b16 %v8145
      %v8239 = vunpack.c.l.b16 %v8146
      %v8240 = vunpack.c.h.b16 %v8146
      %v8241 = vunpack.c.l.b16 %v8147
      %v8242 = vunpack.c.h.b16 %v8147
      %v8243 = vunpack.c.l.b16 %v8148
      %v8244 = vunpack.c.h.b16 %v8148
      %v8245 = vpack.c.b16 %v8181, %v8181
      %v8246 = vpack.c.b16 %v8182, %v8182
      %v8247 = vpack.c.b16 %v8183, %v8183
      %v8248 = vpack.c.b16 %v8184, %v8184
      %v8249 = vpack.c.b16 %v8185, %v8185
      %v8250 = vpack.c.b16 %v8186, %v8186
      %v8251 = vpack.c.b16 %v8187, %v8187
      %v8252 = vpack.c.b16 %v8188, %v8188
      %v8253 = vpack.c.b16 %v8189, %v8189
      %v8254 = vpack.c.b16 %v8190, %v8190
      %v8255 = vpack.c.b16 %v8191, %v8191
      %v8256 = vpack.c.b16 %v8192, %v8192
      %v8257 = vpack.c.b16 %v8193, %v8193
      %v8258 = vpack.c.b16 %v8194, %v8194
      %v8259 = vpack.c.b16 %v8195, %v8195
      %v8260 = vpack.c.b16 %v8196, %v8196
      %v8261 = vpack.c.b16 %v8197, %v8197
      %v8262 = vpack.c.b16 %v8198, %v8198
      %v8263 = vpack.c.b16 %v8199, %v8199
      %v8264 = vpack.c.b16 %v8200, %v8200
      %v8265 = vpack.c.b16 %v8201, %v8201
      %v8266 = vpack.c.b16 %v8202, %v8202
      %v8267 = vpack.c.b16 %v8203, %v8203
      %v8268 = vpack.c.b16 %v8204, %v8204
      %v8269 = vpack.c.b16 %v8205, %v8205
      %v8270 = vpack.c.b16 %v8206, %v8206
      %v8271 = vpack.c.b16 %v8207, %v8207
      %v8272 = vpack.c.b16 %v8208, %v8208
      %v8273 = vpack.c.b16 %v8209, %v8209
      %v8274 = vpack.c.b16 %v8210, %v8210
      %v8275 = vpack.c.b16 %v8211, %v8211
      %v8276 = vpack.c.b16 %v8212, %v8212
      %v8277 = vpack.c.b16 %v8213, %v8213
      %v8278 = vpack.c.b16 %v8214, %v8214
      %v8279 = vpack.c.b16 %v8215, %v8215
      %v8280 = vpack.c.b16 %v8216, %v8216
      %v8281 = vpack.c.b16 %v8217, %v8217
      %v8282 = vpack.c.b16 %v8218, %v8218
      %v8283 = vpack.c.b16 %v8219, %v8219
      %v8284 = vpack.c.b16 %v8220, %v8220
      %v8285 = vpack.c.b16 %v8221, %v8221
      %v8286 = vpack.c.b16 %v8222, %v8222
      %v8287 = vpack.c.b16 %v8223, %v8223
      %v8288 = vpack.c.b16 %v8224, %v8224
      %v8289 = vpack.c.b16 %v8225, %v8225
      %v8290 = vpack.c.b16 %v8226, %v8226
      %v8291 = vpack.c.b16 %v8227, %v8227
      %v8292 = vpack.c.b16 %v8228, %v8228
      %v8293 = vpack.c.b16 %v8229, %v8229
      %v8294 = vpack.c.b16 %v8230, %v8230
      %v8295 = vpack.c.b16 %v8231, %v8231
      %v8296 = vpack.c.b16 %v8232, %v8232
      %v8297 = vpack.c.b16 %v8233, %v8233
      %v8298 = vpack.c.b16 %v8234, %v8234
      %v8299 = vpack.c.b16 %v8235, %v8235
      %v8300 = vpack.c.b16 %v8236, %v8236
      %v8301 = vpack.c.b16 %v8237, %v8237
      %v8302 = vpack.c.b16 %v8238, %v8238
      %v8303 = vpack.c.b16 %v8239, %v8239
      %v8304 = vpack.c.b16 %v8240, %v8240
      %v8305 = vpack.c.b16 %v8241, %v8241
      %v8306 = vpack.c.b16 %v8242, %v8242
      %v8307 = vpack.c.b16 %v8243, %v8243
      %v8308 = vpack.c.b16 %v8244, %v8244
      %vm8373 = vcmask 60416
      %8374 = vst.msk [vmem:[%s7] sm:$0xf] %vm8373, %v8245
      %8375 = vst.msk [vmem:[%s7 + $0x4] sm:$0xf] %vm8373, %v8246
      %8376 = vst.msk [vmem:[%s7 + $0x8] sm:$0xf] %vm8373, %v8247
      %8377 = vst.msk [vmem:[%s7 + $0xc] sm:$0xf] %vm8373, %v8248
      %8378 = vst.msk [vmem:[%s7 + $0x10] sm:$0xf] %vm8373, %v8249
      %8379 = vst.msk [vmem:[%s7 + $0x14] sm:$0xf] %vm8373, %v8250
      %8380 = vst.msk [vmem:[%s7 + $0x18] sm:$0xf] %vm8373, %v8251
      %8381 = vst.msk [vmem:[%s7 + $0x1c] sm:$0xf] %vm8373, %v8252
      %8382 = vst.msk [vmem:[%s7 + $0x20] sm:$0xf] %vm8373, %v8253
      %8383 = vst.msk [vmem:[%s7 + $0x24] sm:$0xf] %vm8373, %v8254
      %8384 = vst.msk [vmem:[%s7 + $0x28] sm:$0xf] %vm8373, %v8255
      %8385 = vst.msk [vmem:[%s7 + $0x2c] sm:$0xf] %vm8373, %v8256
      %8386 = vst.msk [vmem:[%s7 + $0x30] sm:$0xf] %vm8373, %v8257
      %8387 = vst.msk [vmem:[%s7 + $0x34] sm:$0xf] %vm8373, %v8258
      %8388 = vst.msk [vmem:[%s7 + $0x38] sm:$0xf] %vm8373, %v8259
      %8389 = vst.msk [vmem:[%s7 + $0x3c] sm:$0xf] %vm8373, %v8260
      %8390 = vst.msk [vmem:[%s7 + $0x40] sm:$0xf] %vm8373, %v8261
      %8391 = vst.msk [vmem:[%s7 + $0x44] sm:$0xf] %vm8373, %v8262
      %8392 = vst.msk [vmem:[%s7 + $0x48] sm:$0xf] %vm8373, %v8263
      %8393 = vst.msk [vmem:[%s7 + $0x4c] sm:$0xf] %vm8373, %v8264
      %8394 = vst.msk [vmem:[%s7 + $0x50] sm:$0xf] %vm8373, %v8265
      %8395 = vst.msk [vmem:[%s7 + $0x54] sm:$0xf] %vm8373, %v8266
      %8396 = vst.msk [vmem:[%s7 + $0x58] sm:$0xf] %vm8373, %v8267
      %8397 = vst.msk [vmem:[%s7 + $0x5c] sm:$0xf] %vm8373, %v8268
      %8398 = vst.msk [vmem:[%s7 + $0x60] sm:$0xf] %vm8373, %v8269
      %8399 = vst.msk [vmem:[%s7 + $0x64] sm:$0xf] %vm8373, %v8270
      %8400 = vst.msk [vmem:[%s7 + $0x68] sm:$0xf] %vm8373, %v8271
      %8401 = vst.msk [vmem:[%s7 + $0x6c] sm:$0xf] %vm8373, %v8272
      %8402 = vst.msk [vmem:[%s7 + $0x70] sm:$0xf] %vm8373, %v8273
      %8403 = vst.msk [vmem:[%s7 + $0x74] sm:$0xf] %vm8373, %v8274
      %8404 = vst.msk [vmem:[%s7 + $0x78] sm:$0xf] %vm8373, %v8275
      %8405 = vst.msk [vmem:[%s7 + $0x7c] sm:$0xf] %vm8373, %v8276
      %8406 = vst.msk [vmem:[%s7 + $0x80] sm:$0xf] %vm8373, %v8277
      %8407 = vst.msk [vmem:[%s7 + $0x84] sm:$0xf] %vm8373, %v8278
      %8408 = vst.msk [vmem:[%s7 + $0x88] sm:$0xf] %vm8373, %v8279
      %8409 = vst.msk [vmem:[%s7 + $0x8c] sm:$0xf] %vm8373, %v8280
      %8410 = vst.msk [vmem:[%s7 + $0x90] sm:$0xf] %vm8373, %v8281
      %8411 = vst.msk [vmem:[%s7 + $0x94] sm:$0xf] %vm8373, %v8282
      %8412 = vst.msk [vmem:[%s7 + $0x98] sm:$0xf] %vm8373, %v8283
      %8413 = vst.msk [vmem:[%s7 + $0x9c] sm:$0xf] %vm8373, %v8284
      %8414 = vst.msk [vmem:[%s7 + $0xa0] sm:$0xf] %vm8373, %v8285
      %8415 = vst.msk [vmem:[%s7 + $0xa4] sm:$0xf] %vm8373, %v8286
      %8416 = vst.msk [vmem:[%s7 + $0xa8] sm:$0xf] %vm8373, %v8287
      %8417 = vst.msk [vmem:[%s7 + $0xac] sm:$0xf] %vm8373, %v8288
      %8418 = vst.msk [vmem:[%s7 + $0xb0] sm:$0xf] %vm8373, %v8289
      %8419 = vst.msk [vmem:[%s7 + $0xb4] sm:$0xf] %vm8373, %v8290
      %8420 = vst.msk [vmem:[%s7 + $0xb8] sm:$0xf] %vm8373, %v8291
      %8421 = vst.msk [vmem:[%s7 + $0xbc] sm:$0xf] %vm8373, %v8292
      %8422 = vst.msk [vmem:[%s7 + $0xc0] sm:$0xf] %vm8373, %v8293
      %8423 = vst.msk [vmem:[%s7 + $0xc4] sm:$0xf] %vm8373, %v8294
      %8424 = vst.msk [vmem:[%s7 + $0xc8] sm:$0xf] %vm8373, %v8295
      %8425 = vst.msk [vmem:[%s7 + $0xcc] sm:$0xf] %vm8373, %v8296
      %8426 = vst.msk [vmem:[%s7 + $0xd0] sm:$0xf] %vm8373, %v8297
      %8427 = vst.msk [vmem:[%s7 + $0xd4] sm:$0xf] %vm8373, %v8298
      %8428 = vst.msk [vmem:[%s7 + $0xd8] sm:$0xf] %vm8373, %v8299
      %8429 = vst.msk [vmem:[%s7 + $0xdc] sm:$0xf] %vm8373, %v8300
      %8430 = vst.msk [vmem:[%s7 + $0xe0] sm:$0xf] %vm8373, %v8301
      %8431 = vst.msk [vmem:[%s7 + $0xe4] sm:$0xf] %vm8373, %v8302
      %8432 = vst.msk [vmem:[%s7 + $0xe8] sm:$0xf] %vm8373, %v8303
      %8433 = vst.msk [vmem:[%s7 + $0xec] sm:$0xf] %vm8373, %v8304
      %8434 = vst.msk [vmem:[%s7 + $0xf0] sm:$0xf] %vm8373, %v8305
      %8435 = vst.msk [vmem:[%s7 + $0xf4] sm:$0xf] %vm8373, %v8306
      %8436 = vst.msk [vmem:[%s7 + $0xf8] sm:$0xf] %vm8373, %v8307
      %8437 = vst.msk [vmem:[%s7 + $0xfc] sm:$0xf] %vm8373, %v8308
      // Predicated region
      $region84: #{tpu_custom_call.1} parent=43 // pred_check
        %p8438 = pneg %p187
      $region85: #{tpu_custom_call.1} parent=43 // pred_check_branch
        %8440 = sbr.rel (%p8438) target = $region87
      $region86: #{tpu_custom_call.1} parent=43 // pred_region
        _
      $region87: #{tpu_custom_call.1} parent=43 // pred_fallthru
        _
      // Predicated region
      $region88: #{tpu_custom_call.1} parent=43 // pred_check
        %p8441 = pneg %p187
      $region89: #{tpu_custom_call.1} parent=43 // pred_check_branch
        %8443 = sbr.rel (%p8441) target = $region91
      $region90: #{tpu_custom_call.1} parent=43 // pred_region
        _
      $region91: #{tpu_custom_call.1} parent=43 // pred_fallthru
        _
    $region44: #{tpu_custom_call.1} parent=5 // pred_fallthru
      _
    %p8444 = scmp.le.s32.totalorder 2, %s13
    // Predicated region
    $region92: #{tpu_custom_call.1} parent=5 // pred_check
      %p8445 = pneg %p8444
    $region93: #{tpu_custom_call.1} parent=5 // pred_check_branch
      %8447 = sbr.rel (%p8445) target = $region95
    $region94: #{tpu_custom_call.1} parent=5 // pred_region
      %s8448 = ssub.s32 %s13, 2
    $region95: #{tpu_custom_call.1} parent=5 // pred_fallthru
      _
  $region6: #{tpu_custom_call.1} parent=0 // loop_footer
    %s17 = sadd.s32 1, %s13
  $region7: #{tpu_custom_call.1} parent=0 // loop_footer_branch
    %12 = sbr.rel target = $region3
  $region8: #{tpu_custom_call.1} parent=0 // loop_exit
    _

</llo_original>
